<compile_context>
chip_gen: v6e
topology: v6e:2x2x1
jax: 0.10.0
libtpu: 0.0.40
codegen_flags: <defaults>
</compile_context>

<pallas_src>
import functools

import jax
import jax.numpy as jnp
from jax.experimental import pallas as pl
from jax.experimental.pallas import tpu as pltpu

B_PAD = 8        # f32 sublane count: pad batch so vregs/MXU rows are full
V_PAD = 4096     # vocab padded to a multiple of 128 lanes
NEG = -1e9       # additive bias for masked columns (vocab pad / attention)

_VMEM = pl.BlockSpec(memory_space=pltpu.MemorySpace.VMEM)


# ----------------------------------------------------------------------------
# Fused kernel: frontend + LSTM/attention decode + vocab projection + CE loss
# ----------------------------------------------------------------------------
def seq2seq_kernel(emb_x_ref, pool_ref, attn_bias_ref, y_emb_ref,
                   tgt_ref, valid_ref,
                   w_enc_ref, b_enc_ref, w_h_ref, b_h_ref,
                   w_cnn_ref, b_cnn_ref, w_lch_ref, w_lcc_ref, b_lc_ref,
                   w_ih_ref, w_hh_ref, b_lstm_ref,
                   w_ah_ref, w_ac_ref, b_attn_ref,
                   w_out_ref, b_out_ref,
                   logits_ref, loss_ref,
                   dec_buf):
    s_len, Bp, H = y_emb_ref.shape

    # ---------------- frontend: encoder + cnn + linear_cnn -----------------
    # TODO(synk): encoder / cnn are injected nn.Modules in the reference;
    # synthesized here as projections (encoder: per-step tanh proj + pooled
    # hidden; cnn: temporal mean-pool + tanh proj).
    x_flat = emb_x_ref[...]                                     # (Bp*T, H)
    eo_flat = jnp.tanh(
        jnp.dot(x_flat, w_enc_ref[...], preferred_element_type=jnp.float32)
        + b_enc_ref[...])                                       # (Bp*T, H)

    pool = pool_ref[...]                                        # (Bp, Bp*T)
    pooled = jnp.dot(pool, eo_flat, preferred_element_type=jnp.float32)
    h0_enc = jnp.tanh(
        jnp.dot(pooled, w_h_ref[...], preferred_element_type=jnp.float32)
        + b_h_ref[...])                                         # (Bp, H)

    xm = jnp.dot(pool, x_flat, preferred_element_type=jnp.float32)
    cnn_out = jnp.tanh(
        jnp.dot(xm, w_cnn_ref[...], preferred_element_type=jnp.float32)
        + b_cnn_ref[...])                                       # (Bp, H)

    # linear_cnn(cat(h[0], cnn_out)) without a lane-axis concat: split weights
    h = (jnp.dot(h0_enc, w_lch_ref[...], preferred_element_type=jnp.float32)
         + jnp.dot(cnn_out, w_lcc_ref[...], preferred_element_type=jnp.float32)
         + b_lc_ref[...])                                       # (Bp, H)
    c = jnp.zeros_like(h)

    # ---------------- recurrent decode: LSTM cell + attention --------------
    w_ih = w_ih_ref[...]                                        # (H, 4H)
    w_hh = w_hh_ref[...]                                        # (H, 4H)
    b_l = b_lstm_ref[...]                                       # (1, 4H)
    w_ah = w_ah_ref[...]
    w_ac = w_ac_ref[...]
    b_a = b_attn_ref[...]
    attn_bias = attn_bias_ref[...]                              # (Bp, Bp*T)

    for i in range(s_len):                                      # static unroll
        emb = y_emb_ref[i]                                      # (Bp, H)

        # fused-gate LSTM: one lane-dense N=4H matmul per operand
        gates = (jnp.dot(emb, w_ih, preferred_element_type=jnp.float32)
                 + jnp.dot(h, w_hh, preferred_element_type=jnp.float32)
                 + b_l)                                         # (Bp, 4H)
        sg = jax.nn.sigmoid(gates)
        i_g = sg[:, 0 * H:1 * H]
        f_g = sg[:, 1 * H:2 * H]
        o_g = sg[:, 3 * H:4 * H]
        g_g = jnp.tanh(gates[:, 2 * H:3 * H])
        c = f_g * c + i_g * g_g
        h = o_g * jnp.tanh(c)

        # dot-product attention over encoder_out, all on the MXU:
        # scores[b, b*T + t] = <h_b, enc_{b,t}>; other batches' rows masked
        # out via the precomputed additive block-diagonal bias.
        scores = jax.lax.dot_general(
            h, eo_flat, (((1,), (1,)), ((), ())),
            preferred_element_type=jnp.float32)                 # (Bp, Bp*T)
        scores = scores + attn_bias
        scores = scores - jnp.max(scores, axis=-1, keepdims=True)
        p = jnp.exp(scores)
        p = p * pl.reciprocal(jnp.sum(p, axis=-1, keepdims=True), approx=True)
        ctx = jnp.dot(p, eo_flat, preferred_element_type=jnp.float32)  # (Bp,H)

        # attention combine: split weights instead of a lane-axis concat
        out = jnp.tanh(
            jnp.dot(h, w_ah, preferred_element_type=jnp.float32)
            + jnp.dot(ctx, w_ac, preferred_element_type=jnp.float32)
            + b_a)                                              # (Bp, H)
        dec_buf[pl.ds(i * Bp, Bp), :] = out                     # stays in VMEM

    # -------- batched vocab projection (bf16 MXU) + cross-entropy ----------
    dec_all = dec_buf[...]                                      # (S*Bp, H)
    logits = (jnp.dot(dec_all.astype(jnp.bfloat16), w_out_ref[...],
                      preferred_element_type=jnp.float32)
              + b_out_ref[...])                                 # (S*Bp, Vp)
    logits_ref[...] = logits                                    # lane-dense slab

    tgt = tgt_ref[...]                                          # (S*Bp, 1) i32
    lane = jax.lax.broadcasted_iota(jnp.int32, logits.shape, 1)
    tgt_logit = jnp.sum(jnp.where(lane == tgt, logits, 0.0),
                        axis=-1, keepdims=True)                 # (S*Bp, 1)
    m = jnp.max(logits, axis=-1, keepdims=True)
    lse = m + jnp.log(jnp.sum(jnp.exp(logits - m), axis=-1, keepdims=True))
    loss_ref[...] = (lse - tgt_logit) * valid_ref[...]          # pad rows -> 0


# ----------------------------------------------------------------------------
# pallas_call wrapper (single launch, no grid — everything is VMEM-resident)
# ----------------------------------------------------------------------------
def seq2seq_pallas(emb_x_flat, pool_mat, attn_bias, y_emb, tgt, valid,
                   p, w_out_p, b_out_p):
    s_len, Bp, H = y_emb.shape
    Vp = w_out_p.shape[1]
    args = (emb_x_flat, pool_mat, attn_bias, y_emb, tgt, valid,
            p['w_enc'], p['b_enc'], p['w_h'], p['b_h'],
            p['w_cnn'], p['b_cnn'], p['w_lincnn_h'], p['w_lincnn_c'],
            p['b_lincnn'],
            p['w_ih'], p['w_hh'], p['b_lstm'],
            p['w_attn_h'], p['w_attn_c'], p['b_attn'],
            w_out_p, b_out_p)
    return pl.pallas_call(
        seq2seq_kernel,
        out_shape=(jax.ShapeDtypeStruct((s_len * Bp, Vp), jnp.float32),
                   jax.ShapeDtypeStruct((s_len * Bp, 1), jnp.float32)),
        in_specs=[_VMEM] * len(args),
        out_specs=(_VMEM, _VMEM),
        scratch_shapes=[pltpu.VMEM((s_len * Bp, H), jnp.float32)],
    )(*args)


# ----------------------------------------------------------------------------
# Seq2seq forward (mirrors Seq2seq.forward with cnn=1, intra_decoder=0, rl=0)
# ----------------------------------------------------------------------------
@functools.partial(jax.jit, static_argnames=("s_len", "bos", "vocab_size",
                                             "hidden_size"))
def seq2seq_forward(params, x, y, *, s_len, bos, vocab_size, hidden_size):
    B, T = x.shape
    H = hidden_size
    V = vocab_size
    S = s_len

    # encoder-side embeddings, batch sublane-padded, flattened to (Bp*T, H)
    emb_x = jnp.take(params['emb_enc'], x, axis=0)                # (B, T, H)
    emb_x = jnp.pad(emb_x, ((0, B_PAD - B), (0, 0), (0, 0)))
    emb_x_flat = emb_x.reshape(B_PAD * T, H)

    # convert(y): prepend <bos>, drop last token; embed decoder inputs
    bos_col = jnp.full((B, 1), bos, dtype=y.dtype)
    y_c = jnp.concatenate([bos_col, y], axis=1)[:, :-1]           # (B, S)
    y_emb = jnp.take(params['emb_dec'], y_c, axis=0)              # (B, S, H)
    y_emb = jnp.transpose(y_emb, (1, 0, 2))                       # (S, B, H)
    y_emb = jnp.pad(y_emb, ((0, 0), (0, B_PAD - B), (0, 0)))      # (S, Bp, H)

    # pooling matrix (mean over T per batch) and attention block-diag bias
    row_batch = jnp.arange(B_PAD * T, dtype=jnp.int32) // T       # (Bp*T,)
    col_batch = jnp.arange(B_PAD, dtype=jnp.int32)
    same = col_batch[:, None] == row_batch[None, :]               # (Bp, Bp*T)
    pool_mat = same.astype(jnp.float32) / float(T)
    attn_bias = jnp.where(same, 0.0, NEG).astype(jnp.float32)

    # targets / valid-row mask, flattened step-major to match dec_buf rows
    tgt = jnp.transpose(y.astype(jnp.int32), (1, 0))              # (S, B)
    tgt = jnp.pad(tgt, ((0, 0), (0, B_PAD - B))).reshape(S * B_PAD, 1)
    valid = jnp.tile((jnp.arange(B_PAD) < B).astype(jnp.float32),
                     (S,)).reshape(S * B_PAD, 1)

    # vocab projection: bf16 weights, lane-padded, pad cols bias-masked
    w_out_p = jnp.pad(params['w_out'],
                      ((0, 0), (0, V_PAD - V))).astype(jnp.bfloat16)
    b_out_p = jnp.pad(params['b_out'], ((0, 0), (0, V_PAD - V)),
                      constant_values=NEG)

    logits_flat, loss_rows = seq2seq_pallas(
        emb_x_flat, pool_mat, attn_bias, y_emb, tgt, valid,
        params, w_out_p, b_out_p)

    loss = jnp.sum(loss_rows) / float(B * S)                      # CE mean
    outputs = logits_flat.reshape(S, B_PAD, V_PAD)
    outputs = jnp.transpose(outputs, (1, 0, 2))[:B, :, :V]        # (B, S, V)
    return loss, outputs


# ----------------------------------------------------------------------------
# Main
# ----------------------------------------------------------------------------
if __name__ == "__main__":
    B, T_LEN, S_LEN = 2, 16, 8
    H = 32
    V = 4000          # compute_loss views logits as (-1, 4000)
    BOS = 1

    key = jax.random.PRNGKey(0)
    ks = jax.random.split(key, 16)

    def init(k, shape, scale=0.05):
        return (scale * jax.random.normal(k, shape)).astype(jnp.float32)

    params = {
        'emb_enc':    init(ks[0], (V, H)),
        'emb_dec':    init(ks[1], (V, H)),
        'w_enc':      init(ks[2], (H, H)),
        'b_enc':      jnp.zeros((1, H), jnp.float32),
        'w_h':        init(ks[3], (H, H)),
        'b_h':        jnp.zeros((1, H), jnp.float32),
        'w_cnn':      init(ks[4], (H, H)),
        'b_cnn':      jnp.zeros((1, H), jnp.float32),
        'w_lincnn_h': init(ks[5], (H, H)),
        'w_lincnn_c': init(ks[6], (H, H)),
        'b_lincnn':   jnp.zeros((1, H), jnp.float32),
        'w_ih':       init(ks[7], (H, 4 * H)),   # gates stacked: i|f|g|o
        'w_hh':       init(ks[8], (H, 4 * H)),
        'b_lstm':     jnp.zeros((1, 4 * H), jnp.float32),
        'w_attn_h':   init(ks[9], (H, H)),
        'w_attn_c':   init(ks[10], (H, H)),
        'b_attn':     jnp.zeros((1, H), jnp.float32),
        'w_out':      init(ks[11], (H, V)),
        'b_out':      jnp.zeros((1, V), jnp.float32),
    }

    kx, ky = jax.random.split(ks[12])
    x = jax.random.randint(kx, (B, T_LEN), 0, V, dtype=jnp.int32)
    y = jax.random.randint(ky, (B, S_LEN), 0, V, dtype=jnp.int32)

    loss, outputs = seq2seq_forward(params, x, y, s_len=S_LEN, bos=BOS,
                                    vocab_size=V, hidden_size=H)
    loss = jax.block_until_ready(loss)
    outputs = jax.block_until_ready(outputs)

    assert outputs.shape == (B, S_LEN, V)
    assert bool(jnp.isfinite(loss)) and bool(jnp.all(jnp.isfinite(outputs)))
    print("KERNEL_OK")
</pallas_src>

<mosaic_0001>
module attributes {stable_mosaic.version = 11 : i64} {
  func.func @seq2seq_kernel(%arg0: memref<128x32xf32, #tpu.memory_space<vmem>>, %arg1: memref<8x128xf32, #tpu.memory_space<vmem>>, %arg2: memref<8x128xf32, #tpu.memory_space<vmem>>, %arg3: memref<8x8x32xf32, #tpu.memory_space<vmem>>, %arg4: memref<64x1xi32, #tpu.memory_space<vmem>>, %arg5: memref<64x1xf32, #tpu.memory_space<vmem>>, %arg6: memref<32x32xf32, #tpu.memory_space<vmem>>, %arg7: memref<1x32xf32, #tpu.memory_space<vmem>>, %arg8: memref<32x32xf32, #tpu.memory_space<vmem>>, %arg9: memref<1x32xf32, #tpu.memory_space<vmem>>, %arg10: memref<32x32xf32, #tpu.memory_space<vmem>>, %arg11: memref<1x32xf32, #tpu.memory_space<vmem>>, %arg12: memref<32x32xf32, #tpu.memory_space<vmem>>, %arg13: memref<32x32xf32, #tpu.memory_space<vmem>>, %arg14: memref<1x32xf32, #tpu.memory_space<vmem>>, %arg15: memref<32x128xf32, #tpu.memory_space<vmem>>, %arg16: memref<32x128xf32, #tpu.memory_space<vmem>>, %arg17: memref<1x128xf32, #tpu.memory_space<vmem>>, %arg18: memref<32x32xf32, #tpu.memory_space<vmem>>, %arg19: memref<32x32xf32, #tpu.memory_space<vmem>>, %arg20: memref<1x32xf32, #tpu.memory_space<vmem>>, %arg21: memref<32x4096xbf16, #tpu.memory_space<vmem>>, %arg22: memref<1x4096xf32, #tpu.memory_space<vmem>>, %arg23: memref<64x4096xf32, #tpu.memory_space<vmem>>, %arg24: memref<64x1xf32, #tpu.memory_space<vmem>>, %arg25: memref<64x32xf32, #tpu.memory_space<vmem>>) attributes {dimension_semantics = [], scalar_prefetch = 0 : i64, scratch_operands = 1 : i64, tpu.core_type = #tpu.core_type<tc>} {
    %c0 = arith.constant 0 : index
    %c0_0 = arith.constant 0 : index
    %0 = vector.load %arg0[%c0, %c0_0] : memref<128x32xf32, #tpu.memory_space<vmem>>, vector<128x32xf32>
    %c0_1 = arith.constant 0 : index
    %c0_2 = arith.constant 0 : index
    %1 = vector.load %arg6[%c0_1, %c0_2] : memref<32x32xf32, #tpu.memory_space<vmem>>, vector<32x32xf32>
    %cst = arith.constant dense<0.000000e+00> : vector<128x32xf32>
    %2 = tpu.matmul %0, %1, %cst {dimension_numbers = #tpu.dot_dimension_numbers<[1], [0], [0], [1], [0, 0, 1, 1], [], []>} : vector<128x32xf32>, vector<32x32xf32>, vector<128x32xf32> -> vector<128x32xf32>
    %c0_3 = arith.constant 0 : index
    %c0_4 = arith.constant 0 : index
    %3 = vector.load %arg7[%c0_3, %c0_4] : memref<1x32xf32, #tpu.memory_space<vmem>>, vector<1x32xf32>
    %4 = vector.broadcast %3 : vector<1x32xf32> to vector<128x32xf32>
    %5 = arith.addf %2, %4 : vector<128x32xf32>
    %6 = math.tanh %5 : vector<128x32xf32>
    %c0_5 = arith.constant 0 : index
    %c0_6 = arith.constant 0 : index
    %7 = vector.load %arg1[%c0_5, %c0_6] : memref<8x128xf32, #tpu.memory_space<vmem>>, vector<8x128xf32>
    %cst_7 = arith.constant dense<0.000000e+00> : vector<8x32xf32>
    %8 = tpu.matmul %7, %6, %cst_7 {dimension_numbers = #tpu.dot_dimension_numbers<[1], [0], [0], [1], [0, 0, 1, 1], [], []>} : vector<8x128xf32>, vector<128x32xf32>, vector<8x32xf32> -> vector<8x32xf32>
    %c0_8 = arith.constant 0 : index
    %c0_9 = arith.constant 0 : index
    %9 = vector.load %arg8[%c0_8, %c0_9] : memref<32x32xf32, #tpu.memory_space<vmem>>, vector<32x32xf32>
    %cst_10 = arith.constant dense<0.000000e+00> : vector<8x32xf32>
    %10 = tpu.matmul %8, %9, %cst_10 {dimension_numbers = #tpu.dot_dimension_numbers<[1], [0], [0], [1], [0, 0, 1, 1], [], []>} : vector<8x32xf32>, vector<32x32xf32>, vector<8x32xf32> -> vector<8x32xf32>
    %c0_11 = arith.constant 0 : index
    %c0_12 = arith.constant 0 : index
    %11 = vector.load %arg9[%c0_11, %c0_12] : memref<1x32xf32, #tpu.memory_space<vmem>>, vector<1x32xf32>
    %12 = vector.broadcast %11 : vector<1x32xf32> to vector<8x32xf32>
    %13 = arith.addf %10, %12 : vector<8x32xf32>
    %14 = math.tanh %13 : vector<8x32xf32>
    %cst_13 = arith.constant dense<0.000000e+00> : vector<8x32xf32>
    %15 = tpu.matmul %7, %0, %cst_13 {dimension_numbers = #tpu.dot_dimension_numbers<[1], [0], [0], [1], [0, 0, 1, 1], [], []>} : vector<8x128xf32>, vector<128x32xf32>, vector<8x32xf32> -> vector<8x32xf32>
    %c0_14 = arith.constant 0 : index
    %c0_15 = arith.constant 0 : index
    %16 = vector.load %arg10[%c0_14, %c0_15] : memref<32x32xf32, #tpu.memory_space<vmem>>, vector<32x32xf32>
    %cst_16 = arith.constant dense<0.000000e+00> : vector<8x32xf32>
    %17 = tpu.matmul %15, %16, %cst_16 {dimension_numbers = #tpu.dot_dimension_numbers<[1], [0], [0], [1], [0, 0, 1, 1], [], []>} : vector<8x32xf32>, vector<32x32xf32>, vector<8x32xf32> -> vector<8x32xf32>
    %c0_17 = arith.constant 0 : index
    %c0_18 = arith.constant 0 : index
    %18 = vector.load %arg11[%c0_17, %c0_18] : memref<1x32xf32, #tpu.memory_space<vmem>>, vector<1x32xf32>
    %19 = vector.broadcast %18 : vector<1x32xf32> to vector<8x32xf32>
    %20 = arith.addf %17, %19 : vector<8x32xf32>
    %21 = math.tanh %20 : vector<8x32xf32>
    %c0_19 = arith.constant 0 : index
    %c0_20 = arith.constant 0 : index
    %22 = vector.load %arg12[%c0_19, %c0_20] : memref<32x32xf32, #tpu.memory_space<vmem>>, vector<32x32xf32>
    %cst_21 = arith.constant dense<0.000000e+00> : vector<8x32xf32>
    %23 = tpu.matmul %14, %22, %cst_21 {dimension_numbers = #tpu.dot_dimension_numbers<[1], [0], [0], [1], [0, 0, 1, 1], [], []>} : vector<8x32xf32>, vector<32x32xf32>, vector<8x32xf32> -> vector<8x32xf32>
    %c0_22 = arith.constant 0 : index
    %c0_23 = arith.constant 0 : index
    %24 = vector.load %arg13[%c0_22, %c0_23] : memref<32x32xf32, #tpu.memory_space<vmem>>, vector<32x32xf32>
    %cst_24 = arith.constant dense<0.000000e+00> : vector<8x32xf32>
    %25 = tpu.matmul %21, %24, %cst_24 {dimension_numbers = #tpu.dot_dimension_numbers<[1], [0], [0], [1], [0, 0, 1, 1], [], []>} : vector<8x32xf32>, vector<32x32xf32>, vector<8x32xf32> -> vector<8x32xf32>
    %26 = arith.addf %23, %25 : vector<8x32xf32>
    %c0_25 = arith.constant 0 : index
    %c0_26 = arith.constant 0 : index
    %27 = vector.load %arg14[%c0_25, %c0_26] : memref<1x32xf32, #tpu.memory_space<vmem>>, vector<1x32xf32>
    %28 = vector.broadcast %27 : vector<1x32xf32> to vector<8x32xf32>
    %29 = arith.addf %26, %28 : vector<8x32xf32>
    %cst_27 = arith.constant 0.000000e+00 : f32
    %30 = vector.broadcast %cst_27 : f32 to vector<8x32xf32>
    %c0_28 = arith.constant 0 : index
    %c0_29 = arith.constant 0 : index
    %31 = vector.load %arg15[%c0_28, %c0_29] : memref<32x128xf32, #tpu.memory_space<vmem>>, vector<32x128xf32>
    %c0_30 = arith.constant 0 : index
    %c0_31 = arith.constant 0 : index
    %32 = vector.load %arg16[%c0_30, %c0_31] : memref<32x128xf32, #tpu.memory_space<vmem>>, vector<32x128xf32>
    %c0_32 = arith.constant 0 : index
    %c0_33 = arith.constant 0 : index
    %33 = vector.load %arg17[%c0_32, %c0_33] : memref<1x128xf32, #tpu.memory_space<vmem>>, vector<1x128xf32>
    %c0_34 = arith.constant 0 : index
    %c0_35 = arith.constant 0 : index
    %34 = vector.load %arg18[%c0_34, %c0_35] : memref<32x32xf32, #tpu.memory_space<vmem>>, vector<32x32xf32>
    %c0_36 = arith.constant 0 : index
    %c0_37 = arith.constant 0 : index
    %35 = vector.load %arg19[%c0_36, %c0_37] : memref<32x32xf32, #tpu.memory_space<vmem>>, vector<32x32xf32>
    %c0_38 = arith.constant 0 : index
    %c0_39 = arith.constant 0 : index
    %36 = vector.load %arg20[%c0_38, %c0_39] : memref<1x32xf32, #tpu.memory_space<vmem>>, vector<1x32xf32>
    %c0_40 = arith.constant 0 : index
    %c0_41 = arith.constant 0 : index
    %37 = vector.load %arg2[%c0_40, %c0_41] : memref<8x128xf32, #tpu.memory_space<vmem>>, vector<8x128xf32>
    %c0_42 = arith.constant 0 : index
    %c0_43 = arith.constant 0 : index
    %c0_44 = arith.constant 0 : index
    %38 = vector.load %arg3[%c0_42, %c0_43, %c0_44] : memref<8x8x32xf32, #tpu.memory_space<vmem>>, vector<1x8x32xf32>
    %39 = vector.shape_cast %38 : vector<1x8x32xf32> to vector<8x32xf32>
    %cst_45 = arith.constant dense<0.000000e+00> : vector<8x128xf32>
    %40 = tpu.matmul %39, %31, %cst_45 {dimension_numbers = #tpu.dot_dimension_numbers<[1], [0], [0], [1], [0, 0, 1, 1], [], []>} : vector<8x32xf32>, vector<32x128xf32>, vector<8x128xf32> -> vector<8x128xf32>
    %cst_46 = arith.constant dense<0.000000e+00> : vector<8x128xf32>
    %41 = tpu.matmul %29, %32, %cst_46 {dimension_numbers = #tpu.dot_dimension_numbers<[1], [0], [0], [1], [0, 0, 1, 1], [], []>} : vector<8x32xf32>, vector<32x128xf32>, vector<8x128xf32> -> vector<8x128xf32>
    %42 = arith.addf %40, %41 : vector<8x128xf32>
    %43 = vector.broadcast %33 : vector<1x128xf32> to vector<8x128xf32>
    %44 = arith.addf %42, %43 : vector<8x128xf32>
    %45 = arith.negf %44 : vector<8x128xf32>
    %46 = math.exp %45 : vector<8x128xf32>
    %cst_47 = arith.constant 1.000000e+00 : f32
    %47 = vector.broadcast %cst_47 : f32 to vector<8x128xf32>
    %48 = arith.addf %47, %46 : vector<8x128xf32>
    %49 = arith.divf %47, %48 : vector<8x128xf32>
    %50 = vector.extract_strided_slice %49 {offsets = [0, 0], sizes = [8, 32], strides = [1, 1]} : vector<8x128xf32> to vector<8x32xf32>
    %51 = vector.extract_strided_slice %49 {offsets = [0, 32], sizes = [8, 32], strides = [1, 1]} : vector<8x128xf32> to vector<8x32xf32>
    %52 = vector.extract_strided_slice %49 {offsets = [0, 96], sizes = [8, 32], strides = [1, 1]} : vector<8x128xf32> to vector<8x32xf32>
    %53 = vector.extract_strided_slice %44 {offsets = [0, 64], sizes = [8, 32], strides = [1, 1]} : vector<8x128xf32> to vector<8x32xf32>
    %54 = math.tanh %53 : vector<8x32xf32>
    %55 = arith.mulf %51, %30 : vector<8x32xf32>
    %56 = arith.mulf %50, %54 : vector<8x32xf32>
    %57 = arith.addf %55, %56 : vector<8x32xf32>
    %58 = math.tanh %57 : vector<8x32xf32>
    %59 = arith.mulf %52, %58 : vector<8x32xf32>
    %cst_48 = arith.constant dense<0.000000e+00> : vector<8x128xf32>
    %60 = tpu.matmul %59, %6, %cst_48 {dimension_numbers = #tpu.dot_dimension_numbers<[1], [1], [0], [0], [0, 0, 1, 0], [], []>} : vector<8x32xf32>, vector<128x32xf32>, vector<8x128xf32> -> vector<8x128xf32>
    %61 = arith.addf %60, %37 : vector<8x128xf32>
    %cst_49 = arith.constant dense<0xFF800000> : vector<8xf32>
    %62 = vector.multi_reduction <maximumf>, %61, %cst_49 [1] : vector<8x128xf32> to vector<8xf32>
    %63 = vector.shape_cast %62 : vector<8xf32> to vector<8x1xf32>
    %64 = vector.broadcast %63 : vector<8x1xf32> to vector<8x128xf32>
    %65 = arith.subf %61, %64 : vector<8x128xf32>
    %66 = math.exp %65 : vector<8x128xf32>
    %cst_50 = arith.constant dense<0.000000e+00> : vector<8xf32>
    %67 = vector.multi_reduction <add>, %66, %cst_50 [1] : vector<8x128xf32> to vector<8xf32>
    %68 = vector.shape_cast %67 : vector<8xf32> to vector<8x1xf32>
    %69 = tpu.reciprocal %68 {approx = true} : vector<8x1xf32> -> vector<8x1xf32>
    %70 = vector.broadcast %69 : vector<8x1xf32> to vector<8x128xf32>
    %71 = arith.mulf %66, %70 : vector<8x128xf32>
    %cst_51 = arith.constant dense<0.000000e+00> : vector<8x32xf32>
    %72 = tpu.matmul %71, %6, %cst_51 {dimension_numbers = #tpu.dot_dimension_numbers<[1], [0], [0], [1], [0, 0, 1, 1], [], []>} : vector<8x128xf32>, vector<128x32xf32>, vector<8x32xf32> -> vector<8x32xf32>
    %cst_52 = arith.constant dense<0.000000e+00> : vector<8x32xf32>
    %73 = tpu.matmul %59, %34, %cst_52 {dimension_numbers = #tpu.dot_dimension_numbers<[1], [0], [0], [1], [0, 0, 1, 1], [], []>} : vector<8x32xf32>, vector<32x32xf32>, vector<8x32xf32> -> vector<8x32xf32>
    %cst_53 = arith.constant dense<0.000000e+00> : vector<8x32xf32>
    %74 = tpu.matmul %72, %35, %cst_53 {dimension_numbers = #tpu.dot_dimension_numbers<[1], [0], [0], [1], [0, 0, 1, 1], [], []>} : vector<8x32xf32>, vector<32x32xf32>, vector<8x32xf32> -> vector<8x32xf32>
    %75 = arith.addf %73, %74 : vector<8x32xf32>
    %76 = vector.broadcast %36 : vector<1x32xf32> to vector<8x32xf32>
    %77 = arith.addf %75, %76 : vector<8x32xf32>
    %78 = math.tanh %77 : vector<8x32xf32>
    %c0_54 = arith.constant 0 : index
    %c0_55 = arith.constant 0 : index
    %79 = vector.load %arg25[%c0_54, %c0_55] : memref<64x32xf32, #tpu.memory_space<vmem>>, vector<8x32xf32>
    tpu.vector_store %arg25[%c0_54, %c0_55], %78 {strides = array<i32>} : memref<64x32xf32, #tpu.memory_space<vmem>>, vector<8x32xf32>,
    %c1 = arith.constant 1 : index
    %c0_56 = arith.constant 0 : index
    %c0_57 = arith.constant 0 : index
    %80 = vector.load %arg3[%c1, %c0_56, %c0_57] : memref<8x8x32xf32, #tpu.memory_space<vmem>>, vector<1x8x32xf32>
    %81 = vector.shape_cast %80 : vector<1x8x32xf32> to vector<8x32xf32>
    %cst_58 = arith.constant dense<0.000000e+00> : vector<8x128xf32>
    %82 = tpu.matmul %81, %31, %cst_58 {dimension_numbers = #tpu.dot_dimension_numbers<[1], [0], [0], [1], [0, 0, 1, 1], [], []>} : vector<8x32xf32>, vector<32x128xf32>, vector<8x128xf32> -> vector<8x128xf32>
    %cst_59 = arith.constant dense<0.000000e+00> : vector<8x128xf32>
    %83 = tpu.matmul %59, %32, %cst_59 {dimension_numbers = #tpu.dot_dimension_numbers<[1], [0], [0], [1], [0, 0, 1, 1], [], []>} : vector<8x32xf32>, vector<32x128xf32>, vector<8x128xf32> -> vector<8x128xf32>
    %84 = arith.addf %82, %83 : vector<8x128xf32>
    %85 = vector.broadcast %33 : vector<1x128xf32> to vector<8x128xf32>
    %86 = arith.addf %84, %85 : vector<8x128xf32>
    %87 = arith.negf %86 : vector<8x128xf32>
    %88 = math.exp %87 : vector<8x128xf32>
    %cst_60 = arith.constant 1.000000e+00 : f32
    %89 = vector.broadcast %cst_60 : f32 to vector<8x128xf32>
    %90 = arith.addf %89, %88 : vector<8x128xf32>
    %91 = arith.divf %89, %90 : vector<8x128xf32>
    %92 = vector.extract_strided_slice %91 {offsets = [0, 0], sizes = [8, 32], strides = [1, 1]} : vector<8x128xf32> to vector<8x32xf32>
    %93 = vector.extract_strided_slice %91 {offsets = [0, 32], sizes = [8, 32], strides = [1, 1]} : vector<8x128xf32> to vector<8x32xf32>
    %94 = vector.extract_strided_slice %91 {offsets = [0, 96], sizes = [8, 32], strides = [1, 1]} : vector<8x128xf32> to vector<8x32xf32>
    %95 = vector.extract_strided_slice %86 {offsets = [0, 64], sizes = [8, 32], strides = [1, 1]} : vector<8x128xf32> to vector<8x32xf32>
    %96 = math.tanh %95 : vector<8x32xf32>
    %97 = arith.mulf %93, %57 : vector<8x32xf32>
    %98 = arith.mulf %92, %96 : vector<8x32xf32>
    %99 = arith.addf %97, %98 : vector<8x32xf32>
    %100 = math.tanh %99 : vector<8x32xf32>
    %101 = arith.mulf %94, %100 : vector<8x32xf32>
    %cst_61 = arith.constant dense<0.000000e+00> : vector<8x128xf32>
    %102 = tpu.matmul %101, %6, %cst_61 {dimension_numbers = #tpu.dot_dimension_numbers<[1], [1], [0], [0], [0, 0, 1, 0], [], []>} : vector<8x32xf32>, vector<128x32xf32>, vector<8x128xf32> -> vector<8x128xf32>
    %103 = arith.addf %102, %37 : vector<8x128xf32>
    %cst_62 = arith.constant dense<0xFF800000> : vector<8xf32>
    %104 = vector.multi_reduction <maximumf>, %103, %cst_62 [1] : vector<8x128xf32> to vector<8xf32>
    %105 = vector.shape_cast %104 : vector<8xf32> to vector<8x1xf32>
    %106 = vector.broadcast %105 : vector<8x1xf32> to vector<8x128xf32>
    %107 = arith.subf %103, %106 : vector<8x128xf32>
    %108 = math.exp %107 : vector<8x128xf32>
    %cst_63 = arith.constant dense<0.000000e+00> : vector<8xf32>
    %109 = vector.multi_reduction <add>, %108, %cst_63 [1] : vector<8x128xf32> to vector<8xf32>
    %110 = vector.shape_cast %109 : vector<8xf32> to vector<8x1xf32>
    %111 = tpu.reciprocal %110 {approx = true} : vector<8x1xf32> -> vector<8x1xf32>
    %112 = vector.broadcast %111 : vector<8x1xf32> to vector<8x128xf32>
    %113 = arith.mulf %108, %112 : vector<8x128xf32>
    %cst_64 = arith.constant dense<0.000000e+00> : vector<8x32xf32>
    %114 = tpu.matmul %113, %6, %cst_64 {dimension_numbers = #tpu.dot_dimension_numbers<[1], [0], [0], [1], [0, 0, 1, 1], [], []>} : vector<8x128xf32>, vector<128x32xf32>, vector<8x32xf32> -> vector<8x32xf32>
    %cst_65 = arith.constant dense<0.000000e+00> : vector<8x32xf32>
    %115 = tpu.matmul %101, %34, %cst_65 {dimension_numbers = #tpu.dot_dimension_numbers<[1], [0], [0], [1], [0, 0, 1, 1], [], []>} : vector<8x32xf32>, vector<32x32xf32>, vector<8x32xf32> -> vector<8x32xf32>
    %cst_66 = arith.constant dense<0.000000e+00> : vector<8x32xf32>
    %116 = tpu.matmul %114, %35, %cst_66 {dimension_numbers = #tpu.dot_dimension_numbers<[1], [0], [0], [1], [0, 0, 1, 1], [], []>} : vector<8x32xf32>, vector<32x32xf32>, vector<8x32xf32> -> vector<8x32xf32>
    %117 = arith.addf %115, %116 : vector<8x32xf32>
    %118 = vector.broadcast %36 : vector<1x32xf32> to vector<8x32xf32>
    %119 = arith.addf %117, %118 : vector<8x32xf32>
    %120 = math.tanh %119 : vector<8x32xf32>
    %c8 = arith.constant 8 : index
    %c0_67 = arith.constant 0 : index
    %121 = vector.load %arg25[%c8, %c0_67] : memref<64x32xf32, #tpu.memory_space<vmem>>, vector<8x32xf32>
    tpu.vector_store %arg25[%c8, %c0_67], %120 {strides = array<i32>} : memref<64x32xf32, #tpu.memory_space<vmem>>, vector<8x32xf32>,
    %c2 = arith.constant 2 : index
    %c0_68 = arith.constant 0 : index
    %c0_69 = arith.constant 0 : index
    %122 = vector.load %arg3[%c2, %c0_68, %c0_69] : memref<8x8x32xf32, #tpu.memory_space<vmem>>, vector<1x8x32xf32>
    %123 = vector.shape_cast %122 : vector<1x8x32xf32> to vector<8x32xf32>
    %cst_70 = arith.constant dense<0.000000e+00> : vector<8x128xf32>
    %124 = tpu.matmul %123, %31, %cst_70 {dimension_numbers = #tpu.dot_dimension_numbers<[1], [0], [0], [1], [0, 0, 1, 1], [], []>} : vector<8x32xf32>, vector<32x128xf32>, vector<8x128xf32> -> vector<8x128xf32>
    %cst_71 = arith.constant dense<0.000000e+00> : vector<8x128xf32>
    %125 = tpu.matmul %101, %32, %cst_71 {dimension_numbers = #tpu.dot_dimension_numbers<[1], [0], [0], [1], [0, 0, 1, 1], [], []>} : vector<8x32xf32>, vector<32x128xf32>, vector<8x128xf32> -> vector<8x128xf32>
    %126 = arith.addf %124, %125 : vector<8x128xf32>
    %127 = vector.broadcast %33 : vector<1x128xf32> to vector<8x128xf32>
    %128 = arith.addf %126, %127 : vector<8x128xf32>
    %129 = arith.negf %128 : vector<8x128xf32>
    %130 = math.exp %129 : vector<8x128xf32>
    %cst_72 = arith.constant 1.000000e+00 : f32
    %131 = vector.broadcast %cst_72 : f32 to vector<8x128xf32>
    %132 = arith.addf %131, %130 : vector<8x128xf32>
    %133 = arith.divf %131, %132 : vector<8x128xf32>
    %134 = vector.extract_strided_slice %133 {offsets = [0, 0], sizes = [8, 32], strides = [1, 1]} : vector<8x128xf32> to vector<8x32xf32>
    %135 = vector.extract_strided_slice %133 {offsets = [0, 32], sizes = [8, 32], strides = [1, 1]} : vector<8x128xf32> to vector<8x32xf32>
    %136 = vector.extract_strided_slice %133 {offsets = [0, 96], sizes = [8, 32], strides = [1, 1]} : vector<8x128xf32> to vector<8x32xf32>
    %137 = vector.extract_strided_slice %128 {offsets = [0, 64], sizes = [8, 32], strides = [1, 1]} : vector<8x128xf32> to vector<8x32xf32>
    %138 = math.tanh %137 : vector<8x32xf32>
    %139 = arith.mulf %135, %99 : vector<8x32xf32>
    %140 = arith.mulf %134, %138 : vector<8x32xf32>
    %141 = arith.addf %139, %140 : vector<8x32xf32>
    %142 = math.tanh %141 : vector<8x32xf32>
    %143 = arith.mulf %136, %142 : vector<8x32xf32>
    %cst_73 = arith.constant dense<0.000000e+00> : vector<8x128xf32>
    %144 = tpu.matmul %143, %6, %cst_73 {dimension_numbers = #tpu.dot_dimension_numbers<[1], [1], [0], [0], [0, 0, 1, 0], [], []>} : vector<8x32xf32>, vector<128x32xf32>, vector<8x128xf32> -> vector<8x128xf32>
    %145 = arith.addf %144, %37 : vector<8x128xf32>
    %cst_74 = arith.constant dense<0xFF800000> : vector<8xf32>
    %146 = vector.multi_reduction <maximumf>, %145, %cst_74 [1] : vector<8x128xf32> to vector<8xf32>
    %147 = vector.shape_cast %146 : vector<8xf32> to vector<8x1xf32>
    %148 = vector.broadcast %147 : vector<8x1xf32> to vector<8x128xf32>
    %149 = arith.subf %145, %148 : vector<8x128xf32>
    %150 = math.exp %149 : vector<8x128xf32>
    %cst_75 = arith.constant dense<0.000000e+00> : vector<8xf32>
    %151 = vector.multi_reduction <add>, %150, %cst_75 [1] : vector<8x128xf32> to vector<8xf32>
    %152 = vector.shape_cast %151 : vector<8xf32> to vector<8x1xf32>
    %153 = tpu.reciprocal %152 {approx = true} : vector<8x1xf32> -> vector<8x1xf32>
    %154 = vector.broadcast %153 : vector<8x1xf32> to vector<8x128xf32>
    %155 = arith.mulf %150, %154 : vector<8x128xf32>
    %cst_76 = arith.constant dense<0.000000e+00> : vector<8x32xf32>
    %156 = tpu.matmul %155, %6, %cst_76 {dimension_numbers = #tpu.dot_dimension_numbers<[1], [0], [0], [1], [0, 0, 1, 1], [], []>} : vector<8x128xf32>, vector<128x32xf32>, vector<8x32xf32> -> vector<8x32xf32>
    %cst_77 = arith.constant dense<0.000000e+00> : vector<8x32xf32>
    %157 = tpu.matmul %143, %34, %cst_77 {dimension_numbers = #tpu.dot_dimension_numbers<[1], [0], [0], [1], [0, 0, 1, 1], [], []>} : vector<8x32xf32>, vector<32x32xf32>, vector<8x32xf32> -> vector<8x32xf32>
    %cst_78 = arith.constant dense<0.000000e+00> : vector<8x32xf32>
    %158 = tpu.matmul %156, %35, %cst_78 {dimension_numbers = #tpu.dot_dimension_numbers<[1], [0], [0], [1], [0, 0, 1, 1], [], []>} : vector<8x32xf32>, vector<32x32xf32>, vector<8x32xf32> -> vector<8x32xf32>
    %159 = arith.addf %157, %158 : vector<8x32xf32>
    %160 = vector.broadcast %36 : vector<1x32xf32> to vector<8x32xf32>
    %161 = arith.addf %159, %160 : vector<8x32xf32>
    %162 = math.tanh %161 : vector<8x32xf32>
    %c16 = arith.constant 16 : index
    %c0_79 = arith.constant 0 : index
    %163 = vector.load %arg25[%c16, %c0_79] : memref<64x32xf32, #tpu.memory_space<vmem>>, vector<8x32xf32>
    tpu.vector_store %arg25[%c16, %c0_79], %162 {strides = array<i32>} : memref<64x32xf32, #tpu.memory_space<vmem>>, vector<8x32xf32>,
    %c3 = arith.constant 3 : index
    %c0_80 = arith.constant 0 : index
    %c0_81 = arith.constant 0 : index
    %164 = vector.load %arg3[%c3, %c0_80, %c0_81] : memref<8x8x32xf32, #tpu.memory_space<vmem>>, vector<1x8x32xf32>
    %165 = vector.shape_cast %164 : vector<1x8x32xf32> to vector<8x32xf32>
    %cst_82 = arith.constant dense<0.000000e+00> : vector<8x128xf32>
    %166 = tpu.matmul %165, %31, %cst_82 {dimension_numbers = #tpu.dot_dimension_numbers<[1], [0], [0], [1], [0, 0, 1, 1], [], []>} : vector<8x32xf32>, vector<32x128xf32>, vector<8x128xf32> -> vector<8x128xf32>
    %cst_83 = arith.constant dense<0.000000e+00> : vector<8x128xf32>
    %167 = tpu.matmul %143, %32, %cst_83 {dimension_numbers = #tpu.dot_dimension_numbers<[1], [0], [0], [1], [0, 0, 1, 1], [], []>} : vector<8x32xf32>, vector<32x128xf32>, vector<8x128xf32> -> vector<8x128xf32>
    %168 = arith.addf %166, %167 : vector<8x128xf32>
    %169 = vector.broadcast %33 : vector<1x128xf32> to vector<8x128xf32>
    %170 = arith.addf %168, %169 : vector<8x128xf32>
    %171 = arith.negf %170 : vector<8x128xf32>
    %172 = math.exp %171 : vector<8x128xf32>
    %cst_84 = arith.constant 1.000000e+00 : f32
    %173 = vector.broadcast %cst_84 : f32 to vector<8x128xf32>
    %174 = arith.addf %173, %172 : vector<8x128xf32>
    %175 = arith.divf %173, %174 : vector<8x128xf32>
    %176 = vector.extract_strided_slice %175 {offsets = [0, 0], sizes = [8, 32], strides = [1, 1]} : vector<8x128xf32> to vector<8x32xf32>
    %177 = vector.extract_strided_slice %175 {offsets = [0, 32], sizes = [8, 32], strides = [1, 1]} : vector<8x128xf32> to vector<8x32xf32>
    %178 = vector.extract_strided_slice %175 {offsets = [0, 96], sizes = [8, 32], strides = [1, 1]} : vector<8x128xf32> to vector<8x32xf32>
    %179 = vector.extract_strided_slice %170 {offsets = [0, 64], sizes = [8, 32], strides = [1, 1]} : vector<8x128xf32> to vector<8x32xf32>
    %180 = math.tanh %179 : vector<8x32xf32>
    %181 = arith.mulf %177, %141 : vector<8x32xf32>
    %182 = arith.mulf %176, %180 : vector<8x32xf32>
    %183 = arith.addf %181, %182 : vector<8x32xf32>
    %184 = math.tanh %183 : vector<8x32xf32>
    %185 = arith.mulf %178, %184 : vector<8x32xf32>
    %cst_85 = arith.constant dense<0.000000e+00> : vector<8x128xf32>
    %186 = tpu.matmul %185, %6, %cst_85 {dimension_numbers = #tpu.dot_dimension_numbers<[1], [1], [0], [0], [0, 0, 1, 0], [], []>} : vector<8x32xf32>, vector<128x32xf32>, vector<8x128xf32> -> vector<8x128xf32>
    %187 = arith.addf %186, %37 : vector<8x128xf32>
    %cst_86 = arith.constant dense<0xFF800000> : vector<8xf32>
    %188 = vector.multi_reduction <maximumf>, %187, %cst_86 [1] : vector<8x128xf32> to vector<8xf32>
    %189 = vector.shape_cast %188 : vector<8xf32> to vector<8x1xf32>
    %190 = vector.broadcast %189 : vector<8x1xf32> to vector<8x128xf32>
    %191 = arith.subf %187, %190 : vector<8x128xf32>
    %192 = math.exp %191 : vector<8x128xf32>
    %cst_87 = arith.constant dense<0.000000e+00> : vector<8xf32>
    %193 = vector.multi_reduction <add>, %192, %cst_87 [1] : vector<8x128xf32> to vector<8xf32>
    %194 = vector.shape_cast %193 : vector<8xf32> to vector<8x1xf32>
    %195 = tpu.reciprocal %194 {approx = true} : vector<8x1xf32> -> vector<8x1xf32>
    %196 = vector.broadcast %195 : vector<8x1xf32> to vector<8x128xf32>
    %197 = arith.mulf %192, %196 : vector<8x128xf32>
    %cst_88 = arith.constant dense<0.000000e+00> : vector<8x32xf32>
    %198 = tpu.matmul %197, %6, %cst_88 {dimension_numbers = #tpu.dot_dimension_numbers<[1], [0], [0], [1], [0, 0, 1, 1], [], []>} : vector<8x128xf32>, vector<128x32xf32>, vector<8x32xf32> -> vector<8x32xf32>
    %cst_89 = arith.constant dense<0.000000e+00> : vector<8x32xf32>
    %199 = tpu.matmul %185, %34, %cst_89 {dimension_numbers = #tpu.dot_dimension_numbers<[1], [0], [0], [1], [0, 0, 1, 1], [], []>} : vector<8x32xf32>, vector<32x32xf32>, vector<8x32xf32> -> vector<8x32xf32>
    %cst_90 = arith.constant dense<0.000000e+00> : vector<8x32xf32>
    %200 = tpu.matmul %198, %35, %cst_90 {dimension_numbers = #tpu.dot_dimension_numbers<[1], [0], [0], [1], [0, 0, 1, 1], [], []>} : vector<8x32xf32>, vector<32x32xf32>, vector<8x32xf32> -> vector<8x32xf32>
    %201 = arith.addf %199, %200 : vector<8x32xf32>
    %202 = vector.broadcast %36 : vector<1x32xf32> to vector<8x32xf32>
    %203 = arith.addf %201, %202 : vector<8x32xf32>
    %204 = math.tanh %203 : vector<8x32xf32>
    %c24 = arith.constant 24 : index
    %c0_91 = arith.constant 0 : index
    %205 = vector.load %arg25[%c24, %c0_91] : memref<64x32xf32, #tpu.memory_space<vmem>>, vector<8x32xf32>
    tpu.vector_store %arg25[%c24, %c0_91], %204 {strides = array<i32>} : memref<64x32xf32, #tpu.memory_space<vmem>>, vector<8x32xf32>,
    %c4 = arith.constant 4 : index
    %c0_92 = arith.constant 0 : index
    %c0_93 = arith.constant 0 : index
    %206 = vector.load %arg3[%c4, %c0_92, %c0_93] : memref<8x8x32xf32, #tpu.memory_space<vmem>>, vector<1x8x32xf32>
    %207 = vector.shape_cast %206 : vector<1x8x32xf32> to vector<8x32xf32>
    %cst_94 = arith.constant dense<0.000000e+00> : vector<8x128xf32>
    %208 = tpu.matmul %207, %31, %cst_94 {dimension_numbers = #tpu.dot_dimension_numbers<[1], [0], [0], [1], [0, 0, 1, 1], [], []>} : vector<8x32xf32>, vector<32x128xf32>, vector<8x128xf32> -> vector<8x128xf32>
    %cst_95 = arith.constant dense<0.000000e+00> : vector<8x128xf32>
    %209 = tpu.matmul %185, %32, %cst_95 {dimension_numbers = #tpu.dot_dimension_numbers<[1], [0], [0], [1], [0, 0, 1, 1], [], []>} : vector<8x32xf32>, vector<32x128xf32>, vector<8x128xf32> -> vector<8x128xf32>
    %210 = arith.addf %208, %209 : vector<8x128xf32>
    %211 = vector.broadcast %33 : vector<1x128xf32> to vector<8x128xf32>
    %212 = arith.addf %210, %211 : vector<8x128xf32>
    %213 = arith.negf %212 : vector<8x128xf32>
    %214 = math.exp %213 : vector<8x128xf32>
    %cst_96 = arith.constant 1.000000e+00 : f32
    %215 = vector.broadcast %cst_96 : f32 to vector<8x128xf32>
    %216 = arith.addf %215, %214 : vector<8x128xf32>
    %217 = arith.divf %215, %216 : vector<8x128xf32>
    %218 = vector.extract_strided_slice %217 {offsets = [0, 0], sizes = [8, 32], strides = [1, 1]} : vector<8x128xf32> to vector<8x32xf32>
    %219 = vector.extract_strided_slice %217 {offsets = [0, 32], sizes = [8, 32], strides = [1, 1]} : vector<8x128xf32> to vector<8x32xf32>
    %220 = vector.extract_strided_slice %217 {offsets = [0, 96], sizes = [8, 32], strides = [1, 1]} : vector<8x128xf32> to vector<8x32xf32>
    %221 = vector.extract_strided_slice %212 {offsets = [0, 64], sizes = [8, 32], strides = [1, 1]} : vector<8x128xf32> to vector<8x32xf32>
    %222 = math.tanh %221 : vector<8x32xf32>
    %223 = arith.mulf %219, %183 : vector<8x32xf32>
    %224 = arith.mulf %218, %222 : vector<8x32xf32>
    %225 = arith.addf %223, %224 : vector<8x32xf32>
    %226 = math.tanh %225 : vector<8x32xf32>
    %227 = arith.mulf %220, %226 : vector<8x32xf32>
    %cst_97 = arith.constant dense<0.000000e+00> : vector<8x128xf32>
    %228 = tpu.matmul %227, %6, %cst_97 {dimension_numbers = #tpu.dot_dimension_numbers<[1], [1], [0], [0], [0, 0, 1, 0], [], []>} : vector<8x32xf32>, vector<128x32xf32>, vector<8x128xf32> -> vector<8x128xf32>
    %229 = arith.addf %228, %37 : vector<8x128xf32>
    %cst_98 = arith.constant dense<0xFF800000> : vector<8xf32>
    %230 = vector.multi_reduction <maximumf>, %229, %cst_98 [1] : vector<8x128xf32> to vector<8xf32>
    %231 = vector.shape_cast %230 : vector<8xf32> to vector<8x1xf32>
    %232 = vector.broadcast %231 : vector<8x1xf32> to vector<8x128xf32>
    %233 = arith.subf %229, %232 : vector<8x128xf32>
    %234 = math.exp %233 : vector<8x128xf32>
    %cst_99 = arith.constant dense<0.000000e+00> : vector<8xf32>
    %235 = vector.multi_reduction <add>, %234, %cst_99 [1] : vector<8x128xf32> to vector<8xf32>
    %236 = vector.shape_cast %235 : vector<8xf32> to vector<8x1xf32>
    %237 = tpu.reciprocal %236 {approx = true} : vector<8x1xf32> -> vector<8x1xf32>
    %238 = vector.broadcast %237 : vector<8x1xf32> to vector<8x128xf32>
    %239 = arith.mulf %234, %238 : vector<8x128xf32>
    %cst_100 = arith.constant dense<0.000000e+00> : vector<8x32xf32>
    %240 = tpu.matmul %239, %6, %cst_100 {dimension_numbers = #tpu.dot_dimension_numbers<[1], [0], [0], [1], [0, 0, 1, 1], [], []>} : vector<8x128xf32>, vector<128x32xf32>, vector<8x32xf32> -> vector<8x32xf32>
    %cst_101 = arith.constant dense<0.000000e+00> : vector<8x32xf32>
    %241 = tpu.matmul %227, %34, %cst_101 {dimension_numbers = #tpu.dot_dimension_numbers<[1], [0], [0], [1], [0, 0, 1, 1], [], []>} : vector<8x32xf32>, vector<32x32xf32>, vector<8x32xf32> -> vector<8x32xf32>
    %cst_102 = arith.constant dense<0.000000e+00> : vector<8x32xf32>
    %242 = tpu.matmul %240, %35, %cst_102 {dimension_numbers = #tpu.dot_dimension_numbers<[1], [0], [0], [1], [0, 0, 1, 1], [], []>} : vector<8x32xf32>, vector<32x32xf32>, vector<8x32xf32> -> vector<8x32xf32>
    %243 = arith.addf %241, %242 : vector<8x32xf32>
    %244 = vector.broadcast %36 : vector<1x32xf32> to vector<8x32xf32>
    %245 = arith.addf %243, %244 : vector<8x32xf32>
    %246 = math.tanh %245 : vector<8x32xf32>
    %c32 = arith.constant 32 : index
    %c0_103 = arith.constant 0 : index
    %247 = vector.load %arg25[%c32, %c0_103] : memref<64x32xf32, #tpu.memory_space<vmem>>, vector<8x32xf32>
    tpu.vector_store %arg25[%c32, %c0_103], %246 {strides = array<i32>} : memref<64x32xf32, #tpu.memory_space<vmem>>, vector<8x32xf32>,
    %c5 = arith.constant 5 : index
    %c0_104 = arith.constant 0 : index
    %c0_105 = arith.constant 0 : index
    %248 = vector.load %arg3[%c5, %c0_104, %c0_105] : memref<8x8x32xf32, #tpu.memory_space<vmem>>, vector<1x8x32xf32>
    %249 = vector.shape_cast %248 : vector<1x8x32xf32> to vector<8x32xf32>
    %cst_106 = arith.constant dense<0.000000e+00> : vector<8x128xf32>
    %250 = tpu.matmul %249, %31, %cst_106 {dimension_numbers = #tpu.dot_dimension_numbers<[1], [0], [0], [1], [0, 0, 1, 1], [], []>} : vector<8x32xf32>, vector<32x128xf32>, vector<8x128xf32> -> vector<8x128xf32>
    %cst_107 = arith.constant dense<0.000000e+00> : vector<8x128xf32>
    %251 = tpu.matmul %227, %32, %cst_107 {dimension_numbers = #tpu.dot_dimension_numbers<[1], [0], [0], [1], [0, 0, 1, 1], [], []>} : vector<8x32xf32>, vector<32x128xf32>, vector<8x128xf32> -> vector<8x128xf32>
    %252 = arith.addf %250, %251 : vector<8x128xf32>
    %253 = vector.broadcast %33 : vector<1x128xf32> to vector<8x128xf32>
    %254 = arith.addf %252, %253 : vector<8x128xf32>
    %255 = arith.negf %254 : vector<8x128xf32>
    %256 = math.exp %255 : vector<8x128xf32>
    %cst_108 = arith.constant 1.000000e+00 : f32
    %257 = vector.broadcast %cst_108 : f32 to vector<8x128xf32>
    %258 = arith.addf %257, %256 : vector<8x128xf32>
    %259 = arith.divf %257, %258 : vector<8x128xf32>
    %260 = vector.extract_strided_slice %259 {offsets = [0, 0], sizes = [8, 32], strides = [1, 1]} : vector<8x128xf32> to vector<8x32xf32>
    %261 = vector.extract_strided_slice %259 {offsets = [0, 32], sizes = [8, 32], strides = [1, 1]} : vector<8x128xf32> to vector<8x32xf32>
    %262 = vector.extract_strided_slice %259 {offsets = [0, 96], sizes = [8, 32], strides = [1, 1]} : vector<8x128xf32> to vector<8x32xf32>
    %263 = vector.extract_strided_slice %254 {offsets = [0, 64], sizes = [8, 32], strides = [1, 1]} : vector<8x128xf32> to vector<8x32xf32>
    %264 = math.tanh %263 : vector<8x32xf32>
    %265 = arith.mulf %261, %225 : vector<8x32xf32>
    %266 = arith.mulf %260, %264 : vector<8x32xf32>
    %267 = arith.addf %265, %266 : vector<8x32xf32>
    %268 = math.tanh %267 : vector<8x32xf32>
    %269 = arith.mulf %262, %268 : vector<8x32xf32>
    %cst_109 = arith.constant dense<0.000000e+00> : vector<8x128xf32>
    %270 = tpu.matmul %269, %6, %cst_109 {dimension_numbers = #tpu.dot_dimension_numbers<[1], [1], [0], [0], [0, 0, 1, 0], [], []>} : vector<8x32xf32>, vector<128x32xf32>, vector<8x128xf32> -> vector<8x128xf32>
    %271 = arith.addf %270, %37 : vector<8x128xf32>
    %cst_110 = arith.constant dense<0xFF800000> : vector<8xf32>
    %272 = vector.multi_reduction <maximumf>, %271, %cst_110 [1] : vector<8x128xf32> to vector<8xf32>
    %273 = vector.shape_cast %272 : vector<8xf32> to vector<8x1xf32>
    %274 = vector.broadcast %273 : vector<8x1xf32> to vector<8x128xf32>
    %275 = arith.subf %271, %274 : vector<8x128xf32>
    %276 = math.exp %275 : vector<8x128xf32>
    %cst_111 = arith.constant dense<0.000000e+00> : vector<8xf32>
    %277 = vector.multi_reduction <add>, %276, %cst_111 [1] : vector<8x128xf32> to vector<8xf32>
    %278 = vector.shape_cast %277 : vector<8xf32> to vector<8x1xf32>
    %279 = tpu.reciprocal %278 {approx = true} : vector<8x1xf32> -> vector<8x1xf32>
    %280 = vector.broadcast %279 : vector<8x1xf32> to vector<8x128xf32>
    %281 = arith.mulf %276, %280 : vector<8x128xf32>
    %cst_112 = arith.constant dense<0.000000e+00> : vector<8x32xf32>
    %282 = tpu.matmul %281, %6, %cst_112 {dimension_numbers = #tpu.dot_dimension_numbers<[1], [0], [0], [1], [0, 0, 1, 1], [], []>} : vector<8x128xf32>, vector<128x32xf32>, vector<8x32xf32> -> vector<8x32xf32>
    %cst_113 = arith.constant dense<0.000000e+00> : vector<8x32xf32>
    %283 = tpu.matmul %269, %34, %cst_113 {dimension_numbers = #tpu.dot_dimension_numbers<[1], [0], [0], [1], [0, 0, 1, 1], [], []>} : vector<8x32xf32>, vector<32x32xf32>, vector<8x32xf32> -> vector<8x32xf32>
    %cst_114 = arith.constant dense<0.000000e+00> : vector<8x32xf32>
    %284 = tpu.matmul %282, %35, %cst_114 {dimension_numbers = #tpu.dot_dimension_numbers<[1], [0], [0], [1], [0, 0, 1, 1], [], []>} : vector<8x32xf32>, vector<32x32xf32>, vector<8x32xf32> -> vector<8x32xf32>
    %285 = arith.addf %283, %284 : vector<8x32xf32>
    %286 = vector.broadcast %36 : vector<1x32xf32> to vector<8x32xf32>
    %287 = arith.addf %285, %286 : vector<8x32xf32>
    %288 = math.tanh %287 : vector<8x32xf32>
    %c40 = arith.constant 40 : index
    %c0_115 = arith.constant 0 : index
    %289 = vector.load %arg25[%c40, %c0_115] : memref<64x32xf32, #tpu.memory_space<vmem>>, vector<8x32xf32>
    tpu.vector_store %arg25[%c40, %c0_115], %288 {strides = array<i32>} : memref<64x32xf32, #tpu.memory_space<vmem>>, vector<8x32xf32>,
    %c6 = arith.constant 6 : index
    %c0_116 = arith.constant 0 : index
    %c0_117 = arith.constant 0 : index
    %290 = vector.load %arg3[%c6, %c0_116, %c0_117] : memref<8x8x32xf32, #tpu.memory_space<vmem>>, vector<1x8x32xf32>
    %291 = vector.shape_cast %290 : vector<1x8x32xf32> to vector<8x32xf32>
    %cst_118 = arith.constant dense<0.000000e+00> : vector<8x128xf32>
    %292 = tpu.matmul %291, %31, %cst_118 {dimension_numbers = #tpu.dot_dimension_numbers<[1], [0], [0], [1], [0, 0, 1, 1], [], []>} : vector<8x32xf32>, vector<32x128xf32>, vector<8x128xf32> -> vector<8x128xf32>
    %cst_119 = arith.constant dense<0.000000e+00> : vector<8x128xf32>
    %293 = tpu.matmul %269, %32, %cst_119 {dimension_numbers = #tpu.dot_dimension_numbers<[1], [0], [0], [1], [0, 0, 1, 1], [], []>} : vector<8x32xf32>, vector<32x128xf32>, vector<8x128xf32> -> vector<8x128xf32>
    %294 = arith.addf %292, %293 : vector<8x128xf32>
    %295 = vector.broadcast %33 : vector<1x128xf32> to vector<8x128xf32>
    %296 = arith.addf %294, %295 : vector<8x128xf32>
    %297 = arith.negf %296 : vector<8x128xf32>
    %298 = math.exp %297 : vector<8x128xf32>
    %cst_120 = arith.constant 1.000000e+00 : f32
    %299 = vector.broadcast %cst_120 : f32 to vector<8x128xf32>
    %300 = arith.addf %299, %298 : vector<8x128xf32>
    %301 = arith.divf %299, %300 : vector<8x128xf32>
    %302 = vector.extract_strided_slice %301 {offsets = [0, 0], sizes = [8, 32], strides = [1, 1]} : vector<8x128xf32> to vector<8x32xf32>
    %303 = vector.extract_strided_slice %301 {offsets = [0, 32], sizes = [8, 32], strides = [1, 1]} : vector<8x128xf32> to vector<8x32xf32>
    %304 = vector.extract_strided_slice %301 {offsets = [0, 96], sizes = [8, 32], strides = [1, 1]} : vector<8x128xf32> to vector<8x32xf32>
    %305 = vector.extract_strided_slice %296 {offsets = [0, 64], sizes = [8, 32], strides = [1, 1]} : vector<8x128xf32> to vector<8x32xf32>
    %306 = math.tanh %305 : vector<8x32xf32>
    %307 = arith.mulf %303, %267 : vector<8x32xf32>
    %308 = arith.mulf %302, %306 : vector<8x32xf32>
    %309 = arith.addf %307, %308 : vector<8x32xf32>
    %310 = math.tanh %309 : vector<8x32xf32>
    %311 = arith.mulf %304, %310 : vector<8x32xf32>
    %cst_121 = arith.constant dense<0.000000e+00> : vector<8x128xf32>
    %312 = tpu.matmul %311, %6, %cst_121 {dimension_numbers = #tpu.dot_dimension_numbers<[1], [1], [0], [0], [0, 0, 1, 0], [], []>} : vector<8x32xf32>, vector<128x32xf32>, vector<8x128xf32> -> vector<8x128xf32>
    %313 = arith.addf %312, %37 : vector<8x128xf32>
    %cst_122 = arith.constant dense<0xFF800000> : vector<8xf32>
    %314 = vector.multi_reduction <maximumf>, %313, %cst_122 [1] : vector<8x128xf32> to vector<8xf32>
    %315 = vector.shape_cast %314 : vector<8xf32> to vector<8x1xf32>
    %316 = vector.broadcast %315 : vector<8x1xf32> to vector<8x128xf32>
    %317 = arith.subf %313, %316 : vector<8x128xf32>
    %318 = math.exp %317 : vector<8x128xf32>
    %cst_123 = arith.constant dense<0.000000e+00> : vector<8xf32>
    %319 = vector.multi_reduction <add>, %318, %cst_123 [1] : vector<8x128xf32> to vector<8xf32>
    %320 = vector.shape_cast %319 : vector<8xf32> to vector<8x1xf32>
    %321 = tpu.reciprocal %320 {approx = true} : vector<8x1xf32> -> vector<8x1xf32>
    %322 = vector.broadcast %321 : vector<8x1xf32> to vector<8x128xf32>
    %323 = arith.mulf %318, %322 : vector<8x128xf32>
    %cst_124 = arith.constant dense<0.000000e+00> : vector<8x32xf32>
    %324 = tpu.matmul %323, %6, %cst_124 {dimension_numbers = #tpu.dot_dimension_numbers<[1], [0], [0], [1], [0, 0, 1, 1], [], []>} : vector<8x128xf32>, vector<128x32xf32>, vector<8x32xf32> -> vector<8x32xf32>
    %cst_125 = arith.constant dense<0.000000e+00> : vector<8x32xf32>
    %325 = tpu.matmul %311, %34, %cst_125 {dimension_numbers = #tpu.dot_dimension_numbers<[1], [0], [0], [1], [0, 0, 1, 1], [], []>} : vector<8x32xf32>, vector<32x32xf32>, vector<8x32xf32> -> vector<8x32xf32>
    %cst_126 = arith.constant dense<0.000000e+00> : vector<8x32xf32>
    %326 = tpu.matmul %324, %35, %cst_126 {dimension_numbers = #tpu.dot_dimension_numbers<[1], [0], [0], [1], [0, 0, 1, 1], [], []>} : vector<8x32xf32>, vector<32x32xf32>, vector<8x32xf32> -> vector<8x32xf32>
    %327 = arith.addf %325, %326 : vector<8x32xf32>
    %328 = vector.broadcast %36 : vector<1x32xf32> to vector<8x32xf32>
    %329 = arith.addf %327, %328 : vector<8x32xf32>
    %330 = math.tanh %329 : vector<8x32xf32>
    %c48 = arith.constant 48 : index
    %c0_127 = arith.constant 0 : index
    %331 = vector.load %arg25[%c48, %c0_127] : memref<64x32xf32, #tpu.memory_space<vmem>>, vector<8x32xf32>
    tpu.vector_store %arg25[%c48, %c0_127], %330 {strides = array<i32>} : memref<64x32xf32, #tpu.memory_space<vmem>>, vector<8x32xf32>,
    %c7 = arith.constant 7 : index
    %c0_128 = arith.constant 0 : index
    %c0_129 = arith.constant 0 : index
    %332 = vector.load %arg3[%c7, %c0_128, %c0_129] : memref<8x8x32xf32, #tpu.memory_space<vmem>>, vector<1x8x32xf32>
    %333 = vector.shape_cast %332 : vector<1x8x32xf32> to vector<8x32xf32>
    %cst_130 = arith.constant dense<0.000000e+00> : vector<8x128xf32>
    %334 = tpu.matmul %333, %31, %cst_130 {dimension_numbers = #tpu.dot_dimension_numbers<[1], [0], [0], [1], [0, 0, 1, 1], [], []>} : vector<8x32xf32>, vector<32x128xf32>, vector<8x128xf32> -> vector<8x128xf32>
    %cst_131 = arith.constant dense<0.000000e+00> : vector<8x128xf32>
    %335 = tpu.matmul %311, %32, %cst_131 {dimension_numbers = #tpu.dot_dimension_numbers<[1], [0], [0], [1], [0, 0, 1, 1], [], []>} : vector<8x32xf32>, vector<32x128xf32>, vector<8x128xf32> -> vector<8x128xf32>
    %336 = arith.addf %334, %335 : vector<8x128xf32>
    %337 = vector.broadcast %33 : vector<1x128xf32> to vector<8x128xf32>
    %338 = arith.addf %336, %337 : vector<8x128xf32>
    %339 = arith.negf %338 : vector<8x128xf32>
    %340 = math.exp %339 : vector<8x128xf32>
    %cst_132 = arith.constant 1.000000e+00 : f32
    %341 = vector.broadcast %cst_132 : f32 to vector<8x128xf32>
    %342 = arith.addf %341, %340 : vector<8x128xf32>
    %343 = arith.divf %341, %342 : vector<8x128xf32>
    %344 = vector.extract_strided_slice %343 {offsets = [0, 0], sizes = [8, 32], strides = [1, 1]} : vector<8x128xf32> to vector<8x32xf32>
    %345 = vector.extract_strided_slice %343 {offsets = [0, 32], sizes = [8, 32], strides = [1, 1]} : vector<8x128xf32> to vector<8x32xf32>
    %346 = vector.extract_strided_slice %343 {offsets = [0, 96], sizes = [8, 32], strides = [1, 1]} : vector<8x128xf32> to vector<8x32xf32>
    %347 = vector.extract_strided_slice %338 {offsets = [0, 64], sizes = [8, 32], strides = [1, 1]} : vector<8x128xf32> to vector<8x32xf32>
    %348 = math.tanh %347 : vector<8x32xf32>
    %349 = arith.mulf %345, %309 : vector<8x32xf32>
    %350 = arith.mulf %344, %348 : vector<8x32xf32>
    %351 = arith.addf %349, %350 : vector<8x32xf32>
    %352 = math.tanh %351 : vector<8x32xf32>
    %353 = arith.mulf %346, %352 : vector<8x32xf32>
    %cst_133 = arith.constant dense<0.000000e+00> : vector<8x128xf32>
    %354 = tpu.matmul %353, %6, %cst_133 {dimension_numbers = #tpu.dot_dimension_numbers<[1], [1], [0], [0], [0, 0, 1, 0], [], []>} : vector<8x32xf32>, vector<128x32xf32>, vector<8x128xf32> -> vector<8x128xf32>
    %355 = arith.addf %354, %37 : vector<8x128xf32>
    %cst_134 = arith.constant dense<0xFF800000> : vector<8xf32>
    %356 = vector.multi_reduction <maximumf>, %355, %cst_134 [1] : vector<8x128xf32> to vector<8xf32>
    %357 = vector.shape_cast %356 : vector<8xf32> to vector<8x1xf32>
    %358 = vector.broadcast %357 : vector<8x1xf32> to vector<8x128xf32>
    %359 = arith.subf %355, %358 : vector<8x128xf32>
    %360 = math.exp %359 : vector<8x128xf32>
    %cst_135 = arith.constant dense<0.000000e+00> : vector<8xf32>
    %361 = vector.multi_reduction <add>, %360, %cst_135 [1] : vector<8x128xf32> to vector<8xf32>
    %362 = vector.shape_cast %361 : vector<8xf32> to vector<8x1xf32>
    %363 = tpu.reciprocal %362 {approx = true} : vector<8x1xf32> -> vector<8x1xf32>
    %364 = vector.broadcast %363 : vector<8x1xf32> to vector<8x128xf32>
    %365 = arith.mulf %360, %364 : vector<8x128xf32>
    %cst_136 = arith.constant dense<0.000000e+00> : vector<8x32xf32>
    %366 = tpu.matmul %365, %6, %cst_136 {dimension_numbers = #tpu.dot_dimension_numbers<[1], [0], [0], [1], [0, 0, 1, 1], [], []>} : vector<8x128xf32>, vector<128x32xf32>, vector<8x32xf32> -> vector<8x32xf32>
    %cst_137 = arith.constant dense<0.000000e+00> : vector<8x32xf32>
    %367 = tpu.matmul %353, %34, %cst_137 {dimension_numbers = #tpu.dot_dimension_numbers<[1], [0], [0], [1], [0, 0, 1, 1], [], []>} : vector<8x32xf32>, vector<32x32xf32>, vector<8x32xf32> -> vector<8x32xf32>
    %cst_138 = arith.constant dense<0.000000e+00> : vector<8x32xf32>
    %368 = tpu.matmul %366, %35, %cst_138 {dimension_numbers = #tpu.dot_dimension_numbers<[1], [0], [0], [1], [0, 0, 1, 1], [], []>} : vector<8x32xf32>, vector<32x32xf32>, vector<8x32xf32> -> vector<8x32xf32>
    %369 = arith.addf %367, %368 : vector<8x32xf32>
    %370 = vector.broadcast %36 : vector<1x32xf32> to vector<8x32xf32>
    %371 = arith.addf %369, %370 : vector<8x32xf32>
    %372 = math.tanh %371 : vector<8x32xf32>
    %c56 = arith.constant 56 : index
    %c0_139 = arith.constant 0 : index
    %373 = vector.load %arg25[%c56, %c0_139] : memref<64x32xf32, #tpu.memory_space<vmem>>, vector<8x32xf32>
    tpu.vector_store %arg25[%c56, %c0_139], %372 {strides = array<i32>} : memref<64x32xf32, #tpu.memory_space<vmem>>, vector<8x32xf32>,
    %c0_140 = arith.constant 0 : index
    %c0_141 = arith.constant 0 : index
    %374 = vector.load %arg25[%c0_140, %c0_141] : memref<64x32xf32, #tpu.memory_space<vmem>>, vector<64x32xf32>
    %375 = arith.truncf %374 : vector<64x32xf32> to vector<64x32xbf16>
    %c0_142 = arith.constant 0 : index
    %c0_143 = arith.constant 0 : index
    %376 = vector.load %arg21[%c0_142, %c0_143] : memref<32x4096xbf16, #tpu.memory_space<vmem>>, vector<32x4096xbf16>
    %cst_144 = arith.constant dense<0.000000e+00> : vector<64x4096xf32>
    %377 = tpu.matmul %375, %376, %cst_144 {dimension_numbers = #tpu.dot_dimension_numbers<[1], [0], [0], [1], [0, 0, 1, 1], [], []>} : vector<64x32xbf16>, vector<32x4096xbf16>, vector<64x4096xf32> -> vector<64x4096xf32>
    %c0_145 = arith.constant 0 : index
    %c0_146 = arith.constant 0 : index
    %378 = vector.load %arg22[%c0_145, %c0_146] : memref<1x4096xf32, #tpu.memory_space<vmem>>, vector<1x4096xf32>
    %379 = vector.broadcast %378 : vector<1x4096xf32> to vector<64x4096xf32>
    %380 = arith.addf %377, %379 : vector<64x4096xf32>
    %c0_147 = arith.constant 0 : index
    %c0_148 = arith.constant 0 : index
    %381 = vector.load %arg23[%c0_147, %c0_148] : memref<64x4096xf32, #tpu.memory_space<vmem>>, vector<64x4096xf32>
    tpu.vector_store %arg23[%c0_147, %c0_148], %380 {strides = array<i32>} : memref<64x4096xf32, #tpu.memory_space<vmem>>, vector<64x4096xf32>,
    %c0_149 = arith.constant 0 : index
    %c0_150 = arith.constant 0 : index
    %382 = vector.load %arg4[%c0_149, %c0_150] : memref<64x1xi32, #tpu.memory_space<vmem>>, vector<64x1xi32>
    %383 = tpu.iota {dimensions = array<i32: 1>} : vector<64x4096xi32>
    %384 = vector.broadcast %382 : vector<64x1xi32> to vector<64x4096xi32>
    %385 = arith.cmpi eq, %383, %384 : vector<64x4096xi32>
    %cst_151 = arith.constant 0.000000e+00 : f32
    %386 = vector.broadcast %cst_151 : f32 to vector<64x4096xf32>
    %387 = arith.select %385, %380, %386 : vector<64x4096xi1>, vector<64x4096xf32>
    %cst_152 = arith.constant dense<0.000000e+00> : vector<64xf32>
    %388 = vector.multi_reduction <add>, %387, %cst_152 [1] : vector<64x4096xf32> to vector<64xf32>
    %389 = vector.shape_cast %388 : vector<64xf32> to vector<64x1xf32>
    %cst_153 = arith.constant dense<0xFF800000> : vector<64xf32>
    %390 = vector.multi_reduction <maximumf>, %380, %cst_153 [1] : vector<64x4096xf32> to vector<64xf32>
    %391 = vector.shape_cast %390 : vector<64xf32> to vector<64x1xf32>
    %392 = vector.broadcast %391 : vector<64x1xf32> to vector<64x4096xf32>
    %393 = arith.subf %380, %392 : vector<64x4096xf32>
    %394 = math.exp %393 : vector<64x4096xf32>
    %cst_154 = arith.constant dense<0.000000e+00> : vector<64xf32>
    %395 = vector.multi_reduction <add>, %394, %cst_154 [1] : vector<64x4096xf32> to vector<64xf32>
    %396 = vector.shape_cast %395 : vector<64xf32> to vector<64x1xf32>
    %397 = math.log %396 : vector<64x1xf32>
    %398 = arith.addf %391, %397 : vector<64x1xf32>
    %399 = arith.subf %398, %389 : vector<64x1xf32>
    %c0_155 = arith.constant 0 : index
    %c0_156 = arith.constant 0 : index
    %400 = vector.load %arg5[%c0_155, %c0_156] : memref<64x1xf32, #tpu.memory_space<vmem>>, vector<64x1xf32>
    %401 = arith.mulf %399, %400 : vector<64x1xf32>
    %c0_157 = arith.constant 0 : index
    %c0_158 = arith.constant 0 : index
    %402 = vector.load %arg24[%c0_157, %c0_158] : memref<64x1xf32, #tpu.memory_space<vmem>>, vector<64x1xf32>
    tpu.vector_store %arg24[%c0_157, %c0_158], %401 {strides = array<i32>} : memref<64x1xf32, #tpu.memory_space<vmem>>, vector<64x1xf32>,
    return
  }
}

</mosaic_0001>

<llo_original>
// kernel: tile.8
$region0: #{tile.8}
  #allocation0 [shape = 's32[1]{0}', space=sflag, size = 0x4, scoped, tag = 'scoped memory for tile.8']
  %s0 = inlined_call_operand.vmem [shape: f32[8], index: 0, kind: input, shape index: {}]
  %s1 = inlined_call_operand.vmem [shape: f32[8,8], index: 1, kind: output, shape index: {}]
  // Predicated region
  $region2: #{tile.8} parent=0 // pred_check
    _
  $region3: #{tile.8} parent=0 // pred_check_branch
    %3 = sbr.rel (0) target = $region5
  $region4: #{tile.8} parent=0 // pred_region
    _
  $region5: #{tile.8} parent=0 // pred_fallthru
    _
  %v4 = vld [vmem:[%s0] ss:$0 sm:$0xff]
  %5 = vst [vmem:[%s1] sm:$0xff] %v4

// kernel: tile.0
$region0: #{tile.0}
  %s0 = inlined_call_operand.vmem [shape: f32[8,8], index: 0, kind: input, shape index: {}]
  %s1 = inlined_call_operand.vmem [shape: f32[64,1], index: 1, kind: output, shape index: {}]
  %v2 = vld [vmem:[%s0] sm:$0xff]
  %vm3 = vcmask 7168
  %4 = vst.msk [vmem:[%s1] ss:$8 sm:$0xf] %vm3, %v2
  %5 = vst.msk [vmem:[%s1] ss:$8 sm:$0xf0] %vm3, %v2
  %v6 = vld [vmem:[%s0] sm:$0xff]
  %7 = vrot.lane.b32.xlu0 %v6, 127
  %v8 = vpop.permute.xlu0 %7
  %vm9 = vcmask 7168
  %s10 = scalar_lea.vmem %s1, 1
  %11 = vst.msk [vmem:[%s10] ss:$8 sm:$0xf] %vm9, %v8
  %s12 = scalar_lea.vmem %s1, 1
  %13 = vst.msk [vmem:[%s12] ss:$8 sm:$0xf0] %vm9, %v8
  %v14 = vld [vmem:[%s0] sm:$0xff]
  %15 = vrot.lane.b32.xlu0 %v14, 126
  %v16 = vpop.permute.xlu0 %15
  %vm17 = vcmask 7168
  %s18 = scalar_lea.vmem %s1, 2
  %19 = vst.msk [vmem:[%s18] ss:$8 sm:$0xf] %vm17, %v16
  %s20 = scalar_lea.vmem %s1, 2
  %21 = vst.msk [vmem:[%s20] ss:$8 sm:$0xf0] %vm17, %v16
  %v22 = vld [vmem:[%s0] sm:$0xff]
  %23 = vrot.lane.b32.xlu0 %v22, 125
  %v24 = vpop.permute.xlu0 %23
  %vm25 = vcmask 7168
  %s26 = scalar_lea.vmem %s1, 3
  %27 = vst.msk [vmem:[%s26] ss:$8 sm:$0xf] %vm25, %v24
  %s28 = scalar_lea.vmem %s1, 3
  %29 = vst.msk [vmem:[%s28] ss:$8 sm:$0xf0] %vm25, %v24
  %v30 = vld [vmem:[%s0] sm:$0xff]
  %31 = vrot.lane.b32.xlu0 %v30, 124
  %v32 = vpop.permute.xlu0 %31
  %vm33 = vcmask 7168
  %s34 = scalar_lea.vmem %s1, 4
  %35 = vst.msk [vmem:[%s34] ss:$8 sm:$0xf] %vm33, %v32
  %s36 = scalar_lea.vmem %s1, 4
  %37 = vst.msk [vmem:[%s36] ss:$8 sm:$0xf0] %vm33, %v32
  %v38 = vld [vmem:[%s0] sm:$0xff]
  %39 = vrot.lane.b32.xlu0 %v38, 123
  %v40 = vpop.permute.xlu0 %39
  %vm41 = vcmask 7168
  %s42 = scalar_lea.vmem %s1, 5
  %43 = vst.msk [vmem:[%s42] ss:$8 sm:$0xf] %vm41, %v40
  %s44 = scalar_lea.vmem %s1, 5
  %45 = vst.msk [vmem:[%s44] ss:$8 sm:$0xf0] %vm41, %v40
  %v46 = vld [vmem:[%s0] sm:$0xff]
  %47 = vrot.lane.b32.xlu0 %v46, 122
  %v48 = vpop.permute.xlu0 %47
  %vm49 = vcmask 7168
  %s50 = scalar_lea.vmem %s1, 6
  %51 = vst.msk [vmem:[%s50] ss:$8 sm:$0xf] %vm49, %v48
  %s52 = scalar_lea.vmem %s1, 6
  %53 = vst.msk [vmem:[%s52] ss:$8 sm:$0xf0] %vm49, %v48
  %v54 = vld [vmem:[%s0] sm:$0xff]
  %55 = vrot.lane.b32.xlu0 %v54, 121
  %v56 = vpop.permute.xlu0 %55
  %vm57 = vcmask 7168
  %s58 = scalar_lea.vmem %s1, 7
  %59 = vst.msk [vmem:[%s58] ss:$8 sm:$0xf] %vm57, %v56
  %s60 = scalar_lea.vmem %s1, 7
  %61 = vst.msk [vmem:[%s60] ss:$8 sm:$0xf0] %vm57, %v56

// kernel: seq2seq_forward.1
$region0: #{seq2seq_forward.1}
  #allocation0 [shape = 'u32[]', space=smem, size = 0x4, offset = 0x4, fixed_abs, tag = 'smem constant byte address 0x4 - core index']
  #allocation1 [shape = 'u32[144,128]{1,0:T(1,128)}', space=vmem, size = 0x12000, scoped, tag = 'internal scratch']
  #allocation2 [shape = 'f32[64,32]{1,0:T(8,128)}', space=vmem, size = 0x8000, scoped, tag = 'scratch operand']
  %s0 = inlined_call_operand.vmem [shape: f32[128,32], index: 0, kind: input, shape index: {}]
  %s1 = inlined_call_operand.vmem [shape: f32[8,128], index: 1, kind: input, shape index: {}]
  %s2 = inlined_call_operand.vmem [shape: f32[8,128], index: 2, kind: input, shape index: {}]
  %s3 = inlined_call_operand.vmem [shape: f32[8,8,32], index: 3, kind: input, shape index: {}]
  %s4 = inlined_call_operand.vmem [shape: s32[64,1], index: 4, kind: input, shape index: {}]
  %s5 = inlined_call_operand.vmem [shape: f32[64,1], index: 5, kind: input, shape index: {}]
  %s6 = inlined_call_operand.vmem [shape: f32[32,32], index: 6, kind: input, shape index: {}]
  %s7 = inlined_call_operand.vmem [shape: f32[1,32], index: 7, kind: input, shape index: {}]
  %s8 = inlined_call_operand.vmem [shape: f32[32,32], index: 8, kind: input, shape index: {}]
  %s9 = inlined_call_operand.vmem [shape: f32[1,32], index: 9, kind: input, shape index: {}]
  %s10 = inlined_call_operand.vmem [shape: f32[32,32], index: 10, kind: input, shape index: {}]
  %s11 = inlined_call_operand.vmem [shape: f32[1,32], index: 11, kind: input, shape index: {}]
  %s12 = inlined_call_operand.vmem [shape: f32[32,32], index: 12, kind: input, shape index: {}]
  %s13 = inlined_call_operand.vmem [shape: f32[32,32], index: 13, kind: input, shape index: {}]
  %s14 = inlined_call_operand.vmem [shape: f32[1,32], index: 14, kind: input, shape index: {}]
  %s15 = inlined_call_operand.vmem [shape: f32[32,128], index: 15, kind: input, shape index: {}]
  %s16 = inlined_call_operand.vmem [shape: f32[32,128], index: 16, kind: input, shape index: {}]
  %s17 = inlined_call_operand.vmem [shape: f32[1,128], index: 17, kind: input, shape index: {}]
  %s18 = inlined_call_operand.vmem [shape: f32[32,32], index: 18, kind: input, shape index: {}]
  %s19 = inlined_call_operand.vmem [shape: f32[32,32], index: 19, kind: input, shape index: {}]
  %s20 = inlined_call_operand.vmem [shape: f32[1,32], index: 20, kind: input, shape index: {}]
  %s21 = inlined_call_operand.vmem [shape: bf16[32,4096], index: 21, kind: input, shape index: {}]
  %s22 = inlined_call_operand.vmem [shape: f32[1,4096], index: 22, kind: input, shape index: {}]
  %s23 = inlined_call_operand.vmem [shape: f32[64,4096], index: 23, kind: output, shape index: {0}]
  %s24 = inlined_call_operand.vmem [shape: f32[64,1], index: 24, kind: output, shape index: {1}]
  %25 = xla_tuple %s23, %s24
  %s26 = sld [smem:[#allocation0]]
  $region110: #{seq2seq_forward.1} parent=0
    _
  %s28 = ssub.s32 1, %s26
  %s29 = scalar_select 0, %s28, %s26
  // Predicated region
  $region2: #{seq2seq_forward.1} parent=0 // pred_check
    _
  $region3: #{seq2seq_forward.1} parent=0 // pred_check_branch
    %31 = sbr.rel (0) target = $region5
  $region4: #{seq2seq_forward.1} parent=0 // pred_region
    _
  $region5: #{seq2seq_forward.1} parent=0 // pred_fallthru
    _
  // Predicated region
  $region6: #{seq2seq_forward.1} parent=0 // pred_check
    _
  $region7: #{seq2seq_forward.1} parent=0 // pred_check_branch
    %33 = sbr.rel (0) target = $region9
  $region8: #{seq2seq_forward.1} parent=0 // pred_region
    _
  $region9: #{seq2seq_forward.1} parent=0 // pred_fallthru
    _
  // Predicated region
  $region10: #{seq2seq_forward.1} parent=0 // pred_check
    _
  $region11: #{seq2seq_forward.1} parent=0 // pred_check_branch
    %35 = sbr.rel (0) target = $region13
  $region12: #{seq2seq_forward.1} parent=0 // pred_region
    _
  $region13: #{seq2seq_forward.1} parent=0 // pred_fallthru
    _
  // Predicated region
  $region14: #{seq2seq_forward.1} parent=0 // pred_check
    _
  $region15: #{seq2seq_forward.1} parent=0 // pred_check_branch
    %37 = sbr.rel (0) target = $region17
  $region16: #{seq2seq_forward.1} parent=0 // pred_region
    _
  $region17: #{seq2seq_forward.1} parent=0 // pred_fallthru
    _
  // Predicated region
  $region18: #{seq2seq_forward.1} parent=0 // pred_check
    _
  $region19: #{seq2seq_forward.1} parent=0 // pred_check_branch
    %39 = sbr.rel (0) target = $region21
  $region20: #{seq2seq_forward.1} parent=0 // pred_region
    _
  $region21: #{seq2seq_forward.1} parent=0 // pred_fallthru
    _
  // Predicated region
  $region22: #{seq2seq_forward.1} parent=0 // pred_check
    _
  $region23: #{seq2seq_forward.1} parent=0 // pred_check_branch
    %41 = sbr.rel (0) target = $region25
  $region24: #{seq2seq_forward.1} parent=0 // pred_region
    _
  $region25: #{seq2seq_forward.1} parent=0 // pred_fallthru
    _
  // Predicated region
  $region26: #{seq2seq_forward.1} parent=0 // pred_check
    _
  $region27: #{seq2seq_forward.1} parent=0 // pred_check_branch
    %43 = sbr.rel (0) target = $region29
  $region28: #{seq2seq_forward.1} parent=0 // pred_region
    _
  $region29: #{seq2seq_forward.1} parent=0 // pred_fallthru
    _
  // Predicated region
  $region30: #{seq2seq_forward.1} parent=0 // pred_check
    _
  $region31: #{seq2seq_forward.1} parent=0 // pred_check_branch
    %45 = sbr.rel (0) target = $region33
  $region32: #{seq2seq_forward.1} parent=0 // pred_region
    _
  $region33: #{seq2seq_forward.1} parent=0 // pred_fallthru
    _
  // Predicated region
  $region34: #{seq2seq_forward.1} parent=0 // pred_check
    _
  $region35: #{seq2seq_forward.1} parent=0 // pred_check_branch
    %47 = sbr.rel (0) target = $region37
  $region36: #{seq2seq_forward.1} parent=0 // pred_region
    _
  $region37: #{seq2seq_forward.1} parent=0 // pred_fallthru
    _
  // Predicated region
  $region38: #{seq2seq_forward.1} parent=0 // pred_check
    _
  $region39: #{seq2seq_forward.1} parent=0 // pred_check_branch
    %49 = sbr.rel (0) target = $region41
  $region40: #{seq2seq_forward.1} parent=0 // pred_region
    _
  $region41: #{seq2seq_forward.1} parent=0 // pred_fallthru
    _
  // Predicated region
  $region42: #{seq2seq_forward.1} parent=0 // pred_check
    _
  $region43: #{seq2seq_forward.1} parent=0 // pred_check_branch
    %51 = sbr.rel (0) target = $region45
  $region44: #{seq2seq_forward.1} parent=0 // pred_region
    _
  $region45: #{seq2seq_forward.1} parent=0 // pred_fallthru
    _
  // Predicated region
  $region46: #{seq2seq_forward.1} parent=0 // pred_check
    _
  $region47: #{seq2seq_forward.1} parent=0 // pred_check_branch
    %53 = sbr.rel (0) target = $region49
  $region48: #{seq2seq_forward.1} parent=0 // pred_region
    _
  $region49: #{seq2seq_forward.1} parent=0 // pred_fallthru
    _
  // Predicated region
  $region50: #{seq2seq_forward.1} parent=0 // pred_check
    _
  $region51: #{seq2seq_forward.1} parent=0 // pred_check_branch
    %55 = sbr.rel (0) target = $region53
  $region52: #{seq2seq_forward.1} parent=0 // pred_region
    _
  $region53: #{seq2seq_forward.1} parent=0 // pred_fallthru
    _
  // Predicated region
  $region54: #{seq2seq_forward.1} parent=0 // pred_check
    _
  $region55: #{seq2seq_forward.1} parent=0 // pred_check_branch
    %57 = sbr.rel (0) target = $region57
  $region56: #{seq2seq_forward.1} parent=0 // pred_region
    _
  $region57: #{seq2seq_forward.1} parent=0 // pred_fallthru
    _
  // Predicated region
  $region58: #{seq2seq_forward.1} parent=0 // pred_check
    _
  $region59: #{seq2seq_forward.1} parent=0 // pred_check_branch
    %59 = sbr.rel (0) target = $region61
  $region60: #{seq2seq_forward.1} parent=0 // pred_region
    _
  $region61: #{seq2seq_forward.1} parent=0 // pred_fallthru
    _
  // Predicated region
  $region62: #{seq2seq_forward.1} parent=0 // pred_check
    _
  $region63: #{seq2seq_forward.1} parent=0 // pred_check_branch
    %61 = sbr.rel (0) target = $region65
  $region64: #{seq2seq_forward.1} parent=0 // pred_region
    _
  $region65: #{seq2seq_forward.1} parent=0 // pred_fallthru
    _
  // Predicated region
  $region66: #{seq2seq_forward.1} parent=0 // pred_check
    _
  $region67: #{seq2seq_forward.1} parent=0 // pred_check_branch
    %63 = sbr.rel (0) target = $region69
  $region68: #{seq2seq_forward.1} parent=0 // pred_region
    _
  $region69: #{seq2seq_forward.1} parent=0 // pred_fallthru
    _
  // Predicated region
  $region70: #{seq2seq_forward.1} parent=0 // pred_check
    _
  $region71: #{seq2seq_forward.1} parent=0 // pred_check_branch
    %65 = sbr.rel (0) target = $region73
  $region72: #{seq2seq_forward.1} parent=0 // pred_region
    _
  $region73: #{seq2seq_forward.1} parent=0 // pred_fallthru
    _
  // Predicated region
  $region74: #{seq2seq_forward.1} parent=0 // pred_check
    _
  $region75: #{seq2seq_forward.1} parent=0 // pred_check_branch
    %67 = sbr.rel (0) target = $region77
  $region76: #{seq2seq_forward.1} parent=0 // pred_region
    _
  $region77: #{seq2seq_forward.1} parent=0 // pred_fallthru
    _
  // Predicated region
  $region78: #{seq2seq_forward.1} parent=0 // pred_check
    _
  $region79: #{seq2seq_forward.1} parent=0 // pred_check_branch
    %69 = sbr.rel (0) target = $region81
  $region80: #{seq2seq_forward.1} parent=0 // pred_region
    _
  $region81: #{seq2seq_forward.1} parent=0 // pred_fallthru
    _
  // Predicated region
  $region82: #{seq2seq_forward.1} parent=0 // pred_check
    _
  $region83: #{seq2seq_forward.1} parent=0 // pred_check_branch
    %71 = sbr.rel (0) target = $region85
  $region84: #{seq2seq_forward.1} parent=0 // pred_region
    _
  $region85: #{seq2seq_forward.1} parent=0 // pred_fallthru
    _
  // Predicated region
  $region86: #{seq2seq_forward.1} parent=0 // pred_check
    _
  $region87: #{seq2seq_forward.1} parent=0 // pred_check_branch
    %73 = sbr.rel (0) target = $region89
  $region88: #{seq2seq_forward.1} parent=0 // pred_region
    _
  $region89: #{seq2seq_forward.1} parent=0 // pred_fallthru
    _
  // Predicated region
  $region90: #{seq2seq_forward.1} parent=0 // pred_check
    _
  $region91: #{seq2seq_forward.1} parent=0 // pred_check_branch
    %75 = sbr.rel (0) target = $region93
  $region92: #{seq2seq_forward.1} parent=0 // pred_region
    _
  $region93: #{seq2seq_forward.1} parent=0 // pred_fallthru
    _
  %v77 = vld [vmem:[%s0] sm:$0xff]
  %v78 = vld [vmem:[%s0 + $0x8] sm:$0xff]
  %v79 = vld [vmem:[%s0 + $0x10] sm:$0xff]
  %v80 = vld [vmem:[%s0 + $0x18] sm:$0xff]
  %v81 = vld [vmem:[%s0 + $0x20] sm:$0xff]
  %v82 = vld [vmem:[%s0 + $0x28] sm:$0xff]
  %v83 = vld [vmem:[%s0 + $0x30] sm:$0xff]
  %v84 = vld [vmem:[%s0 + $0x38] sm:$0xff]
  %v85 = vld [vmem:[%s0 + $0x40] sm:$0xff]
  %v86 = vld [vmem:[%s0 + $0x48] sm:$0xff]
  %v87 = vld [vmem:[%s0 + $0x50] sm:$0xff]
  %v88 = vld [vmem:[%s0 + $0x58] sm:$0xff]
  %v89 = vld [vmem:[%s0 + $0x60] sm:$0xff]
  %v90 = vld [vmem:[%s0 + $0x68] sm:$0xff]
  %v91 = vld [vmem:[%s0 + $0x70] sm:$0xff]
  %v92 = vld [vmem:[%s0 + $0x78] sm:$0xff]
  %v93 = vld [vmem:[%s6] sm:$0xff]
  %v94 = vld [vmem:[%s6 + $0x8] sm:$0xff]
  %v95 = vld [vmem:[%s6 + $0x10] sm:$0xff]
  %v96 = vld [vmem:[%s6 + $0x18] sm:$0xff]
  %v97 = vld [vmem:[%s7] sm:$0x1]
  %v99 = vlaneseq
  %v100 = vshrl.u32 %v99, 7
  %v101 = vsub.s32 0, %v100
  %v102 = vrot.slane %v97, %v101
  %vm104 = vcmask 261120
  %v106 = vsel %vm104, %v77, 0
  %v109 = vsel %vm104, %v78, 0
  %v112 = vsel %vm104, %v79, 0
  %v115 = vsel %vm104, %v80, 0
  %v118 = vsel %vm104, %v81, 0
  %v121 = vsel %vm104, %v82, 0
  %v124 = vsel %vm104, %v83, 0
  %v127 = vsel %vm104, %v84, 0
  %v130 = vsel %vm104, %v85, 0
  %v133 = vsel %vm104, %v86, 0
  %v136 = vsel %vm104, %v87, 0
  %v139 = vsel %vm104, %v88, 0
  %v142 = vsel %vm104, %v89, 0
  %v145 = vsel %vm104, %v90, 0
  %v148 = vsel %vm104, %v91, 0
  %v151 = vsel %vm104, %v92, 0
  %153 = vmatprep.subr.mxu0 0.0
  %154 = vmatpush1.msra.mxu0 0.0
  %155 = vmatprep.subr.mxu0 0.0
  %156 = vmatpush1.msra.mxu0 0.0
  %157 = vmatprep.subr.mxu0 0.0
  %158 = vmatpush1.msra.mxu0 0.0
  %159 = vmatprep.subr.mxu0 0.0
  %160 = vmatpush1.msra.mxu0 0.0
  %161 = vmatprep.subr.mxu0 0.0
  %162 = vmatpush1.msra.mxu0 0.0
  %163 = vmatprep.subr.mxu0 0.0
  %164 = vmatpush1.msra.mxu0 0.0
  %165 = vmatprep.subr.mxu0 0.0
  %166 = vmatpush1.msra.mxu0 0.0
  %167 = vmatprep.subr.mxu0 0.0
  %168 = vmatpush1.msra.mxu0 0.0
  %169 = vmatprep.subr.mxu0 0.0
  %170 = vmatpush1.msra.mxu0 0.0
  %171 = vmatprep.subr.mxu0 0.0
  %172 = vmatpush1.msra.mxu0 0.0
  %173 = vmatprep.subr.mxu0 0.0
  %174 = vmatpush1.msra.mxu0 0.0
  %175 = vmatprep.subr.mxu0 0.0
  %176 = vmatpush1.msra.mxu0 0.0
  %177 = vmatprep.subr.mxu0 0.0
  %178 = vmatpush1.msra.mxu0 %v96
  %179 = vmatprep.subr.mxu0 0.0
  %180 = vmatpush1.msra.mxu0 %v95
  %181 = vmatprep.subr.mxu0 0.0
  %182 = vmatpush1.msra.mxu0 %v94
  %183 = vmatprep.subr.mxu0 0.0
  %184 = vmatpush1.msra.mxu0 %v93
  %185 = vmatprep.subr.mxu0 0.0
  %186 = vmatpush2.msra.mxu0 0.0
  %187 = vmatprep.subr.mxu0 0.0
  %188 = vmatpush2.msra.mxu0 0.0
  %189 = vmatprep.subr.mxu0 0.0
  %190 = vmatpush2.msra.mxu0 0.0
  %191 = vmatprep.subr.mxu0 0.0
  %192 = vmatpush2.msra.mxu0 0.0
  %193 = vmatprep.subr.mxu0 0.0
  %194 = vmatpush2.msra.mxu0 0.0
  %195 = vmatprep.subr.mxu0 0.0
  %196 = vmatpush2.msra.mxu0 0.0
  %197 = vmatprep.subr.mxu0 0.0
  %198 = vmatpush2.msra.mxu0 0.0
  %199 = vmatprep.subr.mxu0 0.0
  %200 = vmatpush2.msra.mxu0 0.0
  %201 = vmatprep.subr.mxu0 0.0
  %202 = vmatpush2.msra.mxu0 0.0
  %203 = vmatprep.subr.mxu0 0.0
  %204 = vmatpush2.msra.mxu0 0.0
  %205 = vmatprep.subr.mxu0 0.0
  %206 = vmatpush2.msra.mxu0 0.0
  %207 = vmatprep.subr.mxu0 0.0
  %208 = vmatpush2.msra.mxu0 0.0
  %209 = vmatprep.subr.mxu0 0.0
  %210 = vmatpush2.msra.mxu0 0.0
  %211 = vmatprep.subr.mxu0 0.0
  %212 = vmatpush2.msra.mxu0 0.0
  %213 = vmatprep.subr.mxu0 0.0
  %214 = vmatpush2.msra.mxu0 0.0
  %215 = vmatprep.subr.mxu0 0.0
  %216 = vmatpush2.msra.mxu0 0.0
  %217 = vmatprep.mubr.f32.mxu0 0.0
  %218 = vmatmul.mubr.f32.gmra.mxu0 %v106
  %v219 = vpop.f32.mrf.mxu0
  %v220 = vadd.f32 %v102, %v219
  %v221 = vpop.f32.mrf.mxu0
  %222 = vmatprep.mubr.f32.mxu0 0.0
  %223 = vmatmul.mubr.f32.gmra.mxu0 %v109
  %v224 = vpop.f32.mrf.mxu0
  %v225 = vadd.f32 %v102, %v224
  %v226 = vpop.f32.mrf.mxu0
  %227 = vmatprep.mubr.f32.mxu0 0.0
  %228 = vmatmul.mubr.f32.gmra.mxu0 %v112
  %v229 = vpop.f32.mrf.mxu0
  %v230 = vadd.f32 %v102, %v229
  %v231 = vpop.f32.mrf.mxu0
  %232 = vmatprep.mubr.f32.mxu0 0.0
  %233 = vmatmul.mubr.f32.gmra.mxu0 %v115
  %v234 = vpop.f32.mrf.mxu0
  %v235 = vadd.f32 %v102, %v234
  %v236 = vpop.f32.mrf.mxu0
  %237 = vmatprep.mubr.f32.mxu0 0.0
  %238 = vmatmul.mubr.f32.gmra.mxu0 %v118
  %v239 = vpop.f32.mrf.mxu0
  %v240 = vadd.f32 %v102, %v239
  %v241 = vpop.f32.mrf.mxu0
  %242 = vmatprep.mubr.f32.mxu0 0.0
  %243 = vmatmul.mubr.f32.gmra.mxu0 %v121
  %v244 = vpop.f32.mrf.mxu0
  %v245 = vadd.f32 %v102, %v244
  %v246 = vpop.f32.mrf.mxu0
  %247 = vmatprep.mubr.f32.mxu0 0.0
  %248 = vmatmul.mubr.f32.gmra.mxu0 %v124
  %v249 = vpop.f32.mrf.mxu0
  %v250 = vadd.f32 %v102, %v249
  %v251 = vpop.f32.mrf.mxu0
  %252 = vmatprep.mubr.f32.mxu0 0.0
  %253 = vmatmul.mubr.f32.gmra.mxu0 %v127
  %v254 = vpop.f32.mrf.mxu0
  %v255 = vadd.f32 %v102, %v254
  %v256 = vpop.f32.mrf.mxu0
  %257 = vmatprep.mubr.f32.mxu0 0.0
  %258 = vmatmul.mubr.f32.gmra.mxu0 %v130
  %v259 = vpop.f32.mrf.mxu0
  %v260 = vadd.f32 %v102, %v259
  %v261 = vpop.f32.mrf.mxu0
  %262 = vmatprep.mubr.f32.mxu0 0.0
  %263 = vmatmul.mubr.f32.gmra.mxu0 %v133
  %v264 = vpop.f32.mrf.mxu0
  %v265 = vadd.f32 %v102, %v264
  %v266 = vpop.f32.mrf.mxu0
  %267 = vmatprep.mubr.f32.mxu0 0.0
  %268 = vmatmul.mubr.f32.gmra.mxu0 %v136
  %v269 = vpop.f32.mrf.mxu0
  %v270 = vadd.f32 %v102, %v269
  %v271 = vpop.f32.mrf.mxu0
  %272 = vmatprep.mubr.f32.mxu0 0.0
  %273 = vmatmul.mubr.f32.gmra.mxu0 %v139
  %v274 = vpop.f32.mrf.mxu0
  %v275 = vadd.f32 %v102, %v274
  %v276 = vpop.f32.mrf.mxu0
  %277 = vmatprep.mubr.f32.mxu0 0.0
  %278 = vmatmul.mubr.f32.gmra.mxu0 %v142
  %v279 = vpop.f32.mrf.mxu0
  %v280 = vadd.f32 %v102, %v279
  %v281 = vpop.f32.mrf.mxu0
  %282 = vmatprep.mubr.f32.mxu0 0.0
  %283 = vmatmul.mubr.f32.gmra.mxu0 %v145
  %v284 = vpop.f32.mrf.mxu0
  %v285 = vadd.f32 %v102, %v284
  %v286 = vpop.f32.mrf.mxu0
  %287 = vmatprep.mubr.f32.mxu0 0.0
  %288 = vmatmul.mubr.f32.gmra.mxu0 %v148
  %v289 = vpop.f32.mrf.mxu0
  %v290 = vadd.f32 %v102, %v289
  %v291 = vpop.f32.mrf.mxu0
  %292 = vmatprep.mubr.f32.mxu0 0.0
  %293 = vmatmul.mubr.f32.gmra.mxu0 %v151
  %v294 = vpop.f32.mrf.mxu0
  %v295 = vadd.f32 %v102, %v294
  %v296 = vpop.f32.mrf.mxu0
  %297 = vdwg.mxu0
  %v298 = vtanh.pop %v220
  %v299 = vtanh.pop %v225
  %v300 = vtanh.pop %v230
  %v301 = vtanh.pop %v235
  %v302 = vtanh.pop %v240
  %v303 = vtanh.pop %v245
  %v304 = vtanh.pop %v250
  %v305 = vtanh.pop %v255
  %v306 = vtanh.pop %v260
  %v307 = vtanh.pop %v265
  %v308 = vtanh.pop %v270
  %v309 = vtanh.pop %v275
  %v310 = vtanh.pop %v280
  %v311 = vtanh.pop %v285
  %v312 = vtanh.pop %v290
  %v313 = vtanh.pop %v295
  %v314 = vld [vmem:[%s1] sm:$0xff]
  %315 = vmatprep.subr.mxu0 0.0
  %316 = vmatpush1.msra.mxu0 %v313
  %317 = vmatprep.subr.mxu0 0.0
  %318 = vmatpush1.msra.mxu0 %v312
  %319 = vmatprep.subr.mxu0 0.0
  %320 = vmatpush1.msra.mxu0 %v311
  %321 = vmatprep.subr.mxu0 0.0
  %322 = vmatpush1.msra.mxu0 %v310
  %323 = vmatprep.subr.mxu0 0.0
  %324 = vmatpush1.msra.mxu0 %v309
  %325 = vmatprep.subr.mxu0 0.0
  %326 = vmatpush1.msra.mxu0 %v308
  %327 = vmatprep.subr.mxu0 0.0
  %328 = vmatpush1.msra.mxu0 %v307
  %329 = vmatprep.subr.mxu0 0.0
  %330 = vmatpush1.msra.mxu0 %v306
  %331 = vmatprep.subr.mxu0 0.0
  %332 = vmatpush1.msra.mxu0 %v305
  %333 = vmatprep.subr.mxu0 0.0
  %334 = vmatpush1.msra.mxu0 %v304
  %335 = vmatprep.subr.mxu0 0.0
  %336 = vmatpush1.msra.mxu0 %v303
  %337 = vmatprep.subr.mxu0 0.0
  %338 = vmatpush1.msra.mxu0 %v302
  %339 = vmatprep.subr.mxu0 0.0
  %340 = vmatpush1.msra.mxu0 %v301
  %341 = vmatprep.subr.mxu0 0.0
  %342 = vmatpush1.msra.mxu0 %v300
  %343 = vmatprep.subr.mxu0 0.0
  %344 = vmatpush1.msra.mxu0 %v299
  %345 = vmatprep.subr.mxu0 0.0
  %346 = vmatpush1.msra.mxu0 %v298
  %347 = vmatprep.subr.mxu0 0.0
  %348 = vmatpush2.msra.mxu0 0.0
  %349 = vmatprep.subr.mxu0 0.0
  %350 = vmatpush2.msra.mxu0 0.0
  %351 = vmatprep.subr.mxu0 0.0
  %352 = vmatpush2.msra.mxu0 0.0
  %353 = vmatprep.subr.mxu0 0.0
  %354 = vmatpush2.msra.mxu0 0.0
  %355 = vmatprep.subr.mxu0 0.0
  %356 = vmatpush2.msra.mxu0 0.0
  %357 = vmatprep.subr.mxu0 0.0
  %358 = vmatpush2.msra.mxu0 0.0
  %359 = vmatprep.subr.mxu0 0.0
  %360 = vmatpush2.msra.mxu0 0.0
  %361 = vmatprep.subr.mxu0 0.0
  %362 = vmatpush2.msra.mxu0 0.0
  %363 = vmatprep.subr.mxu0 0.0
  %364 = vmatpush2.msra.mxu0 0.0
  %365 = vmatprep.subr.mxu0 0.0
  %366 = vmatpush2.msra.mxu0 0.0
  %367 = vmatprep.subr.mxu0 0.0
  %368 = vmatpush2.msra.mxu0 0.0
  %369 = vmatprep.subr.mxu0 0.0
  %370 = vmatpush2.msra.mxu0 0.0
  %371 = vmatprep.subr.mxu0 0.0
  %372 = vmatpush2.msra.mxu0 0.0
  %373 = vmatprep.subr.mxu0 0.0
  %374 = vmatpush2.msra.mxu0 0.0
  %375 = vmatprep.subr.mxu0 0.0
  %376 = vmatpush2.msra.mxu0 0.0
  %377 = vmatprep.subr.mxu0 0.0
  %378 = vmatpush2.msra.mxu0 0.0
  %379 = vmatprep.mubr.f32.mxu0 0.0
  %380 = vmatmul.mubr.f32.gmra.mxu0 %v314
  %v381 = vpop.f32.mrf.mxu0
  %v382 = vadd.f32 0.0, %v381
  %v383 = vpop.f32.mrf.mxu0
  %384 = vdwg.mxu0
  %v385 = vld [vmem:[%s8] sm:$0xff]
  %v386 = vld [vmem:[%s8 + $0x8] sm:$0xff]
  %v387 = vld [vmem:[%s8 + $0x10] sm:$0xff]
  %v388 = vld [vmem:[%s8 + $0x18] sm:$0xff]
  %v389 = vld [vmem:[%s9] sm:$0x1]
  %v391 = vlaneseq
  %v392 = vshrl.u32 %v391, 7
  %v393 = vsub.s32 0, %v392
  %v394 = vrot.slane %v389, %v393
  %v397 = vsel %vm104, %v382, 0
  %399 = vmatprep.subr.mxu0 0.0
  %400 = vmatpush1.msra.mxu0 0.0
  %401 = vmatprep.subr.mxu0 0.0
  %402 = vmatpush1.msra.mxu0 0.0
  %403 = vmatprep.subr.mxu0 0.0
  %404 = vmatpush1.msra.mxu0 0.0
  %405 = vmatprep.subr.mxu0 0.0
  %406 = vmatpush1.msra.mxu0 0.0
  %407 = vmatprep.subr.mxu0 0.0
  %408 = vmatpush1.msra.mxu0 0.0
  %409 = vmatprep.subr.mxu0 0.0
  %410 = vmatpush1.msra.mxu0 0.0
  %411 = vmatprep.subr.mxu0 0.0
  %412 = vmatpush1.msra.mxu0 0.0
  %413 = vmatprep.subr.mxu0 0.0
  %414 = vmatpush1.msra.mxu0 0.0
  %415 = vmatprep.subr.mxu0 0.0
  %416 = vmatpush1.msra.mxu0 0.0
  %417 = vmatprep.subr.mxu0 0.0
  %418 = vmatpush1.msra.mxu0 0.0
  %419 = vmatprep.subr.mxu0 0.0
  %420 = vmatpush1.msra.mxu0 0.0
  %421 = vmatprep.subr.mxu0 0.0
  %422 = vmatpush1.msra.mxu0 0.0
  %423 = vmatprep.subr.mxu0 0.0
  %424 = vmatpush1.msra.mxu0 %v388
  %425 = vmatprep.subr.mxu0 0.0
  %426 = vmatpush1.msra.mxu0 %v387
  %427 = vmatprep.subr.mxu0 0.0
  %428 = vmatpush1.msra.mxu0 %v386
  %429 = vmatprep.subr.mxu0 0.0
  %430 = vmatpush1.msra.mxu0 %v385
  %431 = vmatprep.subr.mxu0 0.0
  %432 = vmatpush2.msra.mxu0 0.0
  %433 = vmatprep.subr.mxu0 0.0
  %434 = vmatpush2.msra.mxu0 0.0
  %435 = vmatprep.subr.mxu0 0.0
  %436 = vmatpush2.msra.mxu0 0.0
  %437 = vmatprep.subr.mxu0 0.0
  %438 = vmatpush2.msra.mxu0 0.0
  %439 = vmatprep.subr.mxu0 0.0
  %440 = vmatpush2.msra.mxu0 0.0
  %441 = vmatprep.subr.mxu0 0.0
  %442 = vmatpush2.msra.mxu0 0.0
  %443 = vmatprep.subr.mxu0 0.0
  %444 = vmatpush2.msra.mxu0 0.0
  %445 = vmatprep.subr.mxu0 0.0
  %446 = vmatpush2.msra.mxu0 0.0
  %447 = vmatprep.subr.mxu0 0.0
  %448 = vmatpush2.msra.mxu0 0.0
  %449 = vmatprep.subr.mxu0 0.0
  %450 = vmatpush2.msra.mxu0 0.0
  %451 = vmatprep.subr.mxu0 0.0
  %452 = vmatpush2.msra.mxu0 0.0
  %453 = vmatprep.subr.mxu0 0.0
  %454 = vmatpush2.msra.mxu0 0.0
  %455 = vmatprep.subr.mxu0 0.0
  %456 = vmatpush2.msra.mxu0 0.0
  %457 = vmatprep.subr.mxu0 0.0
  %458 = vmatpush2.msra.mxu0 0.0
  %459 = vmatprep.subr.mxu0 0.0
  %460 = vmatpush2.msra.mxu0 0.0
  %461 = vmatprep.subr.mxu0 0.0
  %462 = vmatpush2.msra.mxu0 0.0
  %463 = vmatprep.mubr.f32.mxu0 0.0
  %464 = vmatmul.mubr.f32.gmra.mxu0 %v397
  %v465 = vpop.f32.mrf.mxu0
  %v466 = vadd.f32 %v394, %v465
  %v467 = vpop.f32.mrf.mxu0
  %468 = vdwg.mxu0
  %v469 = vtanh.pop %v466
  %470 = vmatprep.subr.mxu0 0.0
  %471 = vmatpush1.msra.mxu0 %v92
  %472 = vmatprep.subr.mxu0 0.0
  %473 = vmatpush1.msra.mxu0 %v91
  %474 = vmatprep.subr.mxu0 0.0
  %475 = vmatpush1.msra.mxu0 %v90
  %476 = vmatprep.subr.mxu0 0.0
  %477 = vmatpush1.msra.mxu0 %v89
  %478 = vmatprep.subr.mxu0 0.0
  %479 = vmatpush1.msra.mxu0 %v88
  %480 = vmatprep.subr.mxu0 0.0
  %481 = vmatpush1.msra.mxu0 %v87
  %482 = vmatprep.subr.mxu0 0.0
  %483 = vmatpush1.msra.mxu0 %v86
  %484 = vmatprep.subr.mxu0 0.0
  %485 = vmatpush1.msra.mxu0 %v85
  %486 = vmatprep.subr.mxu0 0.0
  %487 = vmatpush1.msra.mxu0 %v84
  %488 = vmatprep.subr.mxu0 0.0
  %489 = vmatpush1.msra.mxu0 %v83
  %490 = vmatprep.subr.mxu0 0.0
  %491 = vmatpush1.msra.mxu0 %v82
  %492 = vmatprep.subr.mxu0 0.0
  %493 = vmatpush1.msra.mxu0 %v81
  %494 = vmatprep.subr.mxu0 0.0
  %495 = vmatpush1.msra.mxu0 %v80
  %496 = vmatprep.subr.mxu0 0.0
  %497 = vmatpush1.msra.mxu0 %v79
  %498 = vmatprep.subr.mxu0 0.0
  %499 = vmatpush1.msra.mxu0 %v78
  %500 = vmatprep.subr.mxu0 0.0
  %501 = vmatpush1.msra.mxu0 %v77
  %502 = vmatprep.subr.mxu0 0.0
  %503 = vmatpush2.msra.mxu0 0.0
  %504 = vmatprep.subr.mxu0 0.0
  %505 = vmatpush2.msra.mxu0 0.0
  %506 = vmatprep.subr.mxu0 0.0
  %507 = vmatpush2.msra.mxu0 0.0
  %508 = vmatprep.subr.mxu0 0.0
  %509 = vmatpush2.msra.mxu0 0.0
  %510 = vmatprep.subr.mxu0 0.0
  %511 = vmatpush2.msra.mxu0 0.0
  %512 = vmatprep.subr.mxu0 0.0
  %513 = vmatpush2.msra.mxu0 0.0
  %514 = vmatprep.subr.mxu0 0.0
  %515 = vmatpush2.msra.mxu0 0.0
  %516 = vmatprep.subr.mxu0 0.0
  %517 = vmatpush2.msra.mxu0 0.0
  %518 = vmatprep.subr.mxu0 0.0
  %519 = vmatpush2.msra.mxu0 0.0
  %520 = vmatprep.subr.mxu0 0.0
  %521 = vmatpush2.msra.mxu0 0.0
  %522 = vmatprep.subr.mxu0 0.0
  %523 = vmatpush2.msra.mxu0 0.0
  %524 = vmatprep.subr.mxu0 0.0
  %525 = vmatpush2.msra.mxu0 0.0
  %526 = vmatprep.subr.mxu0 0.0
  %527 = vmatpush2.msra.mxu0 0.0
  %528 = vmatprep.subr.mxu0 0.0
  %529 = vmatpush2.msra.mxu0 0.0
  %530 = vmatprep.subr.mxu0 0.0
  %531 = vmatpush2.msra.mxu0 0.0
  %532 = vmatprep.subr.mxu0 0.0
  %533 = vmatpush2.msra.mxu0 0.0
  %534 = vmatprep.mubr.f32.mxu0 0.0
  %535 = vmatmul.mubr.f32.gmra.mxu0 %v314
  %v536 = vpop.f32.mrf.mxu0
  %v537 = vadd.f32 0.0, %v536
  %v538 = vpop.f32.mrf.mxu0
  %539 = vdwg.mxu0
  %v540 = vld [vmem:[%s10] sm:$0xff]
  %v541 = vld [vmem:[%s10 + $0x8] sm:$0xff]
  %v542 = vld [vmem:[%s10 + $0x10] sm:$0xff]
  %v543 = vld [vmem:[%s10 + $0x18] sm:$0xff]
  %v544 = vld [vmem:[%s11] sm:$0x1]
  %v546 = vlaneseq
  %v547 = vshrl.u32 %v546, 7
  %v548 = vsub.s32 0, %v547
  %v549 = vrot.slane %v544, %v548
  %v552 = vsel %vm104, %v537, 0
  %554 = vmatprep.subr.mxu0 0.0
  %555 = vmatpush1.msra.mxu0 0.0
  %556 = vmatprep.subr.mxu0 0.0
  %557 = vmatpush1.msra.mxu0 0.0
  %558 = vmatprep.subr.mxu0 0.0
  %559 = vmatpush1.msra.mxu0 0.0
  %560 = vmatprep.subr.mxu0 0.0
  %561 = vmatpush1.msra.mxu0 0.0
  %562 = vmatprep.subr.mxu0 0.0
  %563 = vmatpush1.msra.mxu0 0.0
  %564 = vmatprep.subr.mxu0 0.0
  %565 = vmatpush1.msra.mxu0 0.0
  %566 = vmatprep.subr.mxu0 0.0
  %567 = vmatpush1.msra.mxu0 0.0
  %568 = vmatprep.subr.mxu0 0.0
  %569 = vmatpush1.msra.mxu0 0.0
  %570 = vmatprep.subr.mxu0 0.0
  %571 = vmatpush1.msra.mxu0 0.0
  %572 = vmatprep.subr.mxu0 0.0
  %573 = vmatpush1.msra.mxu0 0.0
  %574 = vmatprep.subr.mxu0 0.0
  %575 = vmatpush1.msra.mxu0 0.0
  %576 = vmatprep.subr.mxu0 0.0
  %577 = vmatpush1.msra.mxu0 0.0
  %578 = vmatprep.subr.mxu0 0.0
  %579 = vmatpush1.msra.mxu0 %v543
  %580 = vmatprep.subr.mxu0 0.0
  %581 = vmatpush1.msra.mxu0 %v542
  %582 = vmatprep.subr.mxu0 0.0
  %583 = vmatpush1.msra.mxu0 %v541
  %584 = vmatprep.subr.mxu0 0.0
  %585 = vmatpush1.msra.mxu0 %v540
  %586 = vmatprep.subr.mxu0 0.0
  %587 = vmatpush2.msra.mxu0 0.0
  %588 = vmatprep.subr.mxu0 0.0
  %589 = vmatpush2.msra.mxu0 0.0
  %590 = vmatprep.subr.mxu0 0.0
  %591 = vmatpush2.msra.mxu0 0.0
  %592 = vmatprep.subr.mxu0 0.0
  %593 = vmatpush2.msra.mxu0 0.0
  %594 = vmatprep.subr.mxu0 0.0
  %595 = vmatpush2.msra.mxu0 0.0
  %596 = vmatprep.subr.mxu0 0.0
  %597 = vmatpush2.msra.mxu0 0.0
  %598 = vmatprep.subr.mxu0 0.0
  %599 = vmatpush2.msra.mxu0 0.0
  %600 = vmatprep.subr.mxu0 0.0
  %601 = vmatpush2.msra.mxu0 0.0
  %602 = vmatprep.subr.mxu0 0.0
  %603 = vmatpush2.msra.mxu0 0.0
  %604 = vmatprep.subr.mxu0 0.0
  %605 = vmatpush2.msra.mxu0 0.0
  %606 = vmatprep.subr.mxu0 0.0
  %607 = vmatpush2.msra.mxu0 0.0
  %608 = vmatprep.subr.mxu0 0.0
  %609 = vmatpush2.msra.mxu0 0.0
  %610 = vmatprep.subr.mxu0 0.0
  %611 = vmatpush2.msra.mxu0 0.0
  %612 = vmatprep.subr.mxu0 0.0
  %613 = vmatpush2.msra.mxu0 0.0
  %614 = vmatprep.subr.mxu0 0.0
  %615 = vmatpush2.msra.mxu0 0.0
  %616 = vmatprep.subr.mxu0 0.0
  %617 = vmatpush2.msra.mxu0 0.0
  %618 = vmatprep.mubr.f32.mxu0 0.0
  %619 = vmatmul.mubr.f32.gmra.mxu0 %v552
  %v620 = vpop.f32.mrf.mxu0
  %v621 = vadd.f32 %v549, %v620
  %v622 = vpop.f32.mrf.mxu0
  %623 = vdwg.mxu0
  %v624 = vtanh.pop %v621
  %v625 = vld [vmem:[%s12] sm:$0xff]
  %v626 = vld [vmem:[%s12 + $0x8] sm:$0xff]
  %v627 = vld [vmem:[%s12 + $0x10] sm:$0xff]
  %v628 = vld [vmem:[%s12 + $0x18] sm:$0xff]
  %v629 = vld [vmem:[%s13] sm:$0xff]
  %v630 = vld [vmem:[%s13 + $0x8] sm:$0xff]
  %v631 = vld [vmem:[%s13 + $0x10] sm:$0xff]
  %v632 = vld [vmem:[%s13 + $0x18] sm:$0xff]
  %v634 = vsel %vm104, %v624, 0
  %636 = vmatprep.subr.mxu0 0.0
  %637 = vmatpush1.msra.mxu0 0.0
  %638 = vmatprep.subr.mxu0 0.0
  %639 = vmatpush1.msra.mxu0 0.0
  %640 = vmatprep.subr.mxu0 0.0
  %641 = vmatpush1.msra.mxu0 0.0
  %642 = vmatprep.subr.mxu0 0.0
  %643 = vmatpush1.msra.mxu0 0.0
  %644 = vmatprep.subr.mxu0 0.0
  %645 = vmatpush1.msra.mxu0 0.0
  %646 = vmatprep.subr.mxu0 0.0
  %647 = vmatpush1.msra.mxu0 0.0
  %648 = vmatprep.subr.mxu0 0.0
  %649 = vmatpush1.msra.mxu0 0.0
  %650 = vmatprep.subr.mxu0 0.0
  %651 = vmatpush1.msra.mxu0 0.0
  %652 = vmatprep.subr.mxu0 0.0
  %653 = vmatpush1.msra.mxu0 0.0
  %654 = vmatprep.subr.mxu0 0.0
  %655 = vmatpush1.msra.mxu0 0.0
  %656 = vmatprep.subr.mxu0 0.0
  %657 = vmatpush1.msra.mxu0 0.0
  %658 = vmatprep.subr.mxu0 0.0
  %659 = vmatpush1.msra.mxu0 0.0
  %660 = vmatprep.subr.mxu0 0.0
  %661 = vmatpush1.msra.mxu0 %v632
  %662 = vmatprep.subr.mxu0 0.0
  %663 = vmatpush1.msra.mxu0 %v631
  %664 = vmatprep.subr.mxu0 0.0
  %665 = vmatpush1.msra.mxu0 %v630
  %666 = vmatprep.subr.mxu0 0.0
  %667 = vmatpush1.msra.mxu0 %v629
  %668 = vmatprep.subr.mxu0 0.0
  %669 = vmatpush2.msra.mxu0 0.0
  %670 = vmatprep.subr.mxu0 0.0
  %671 = vmatpush2.msra.mxu0 0.0
  %672 = vmatprep.subr.mxu0 0.0
  %673 = vmatpush2.msra.mxu0 0.0
  %674 = vmatprep.subr.mxu0 0.0
  %675 = vmatpush2.msra.mxu0 0.0
  %676 = vmatprep.subr.mxu0 0.0
  %677 = vmatpush2.msra.mxu0 0.0
  %678 = vmatprep.subr.mxu0 0.0
  %679 = vmatpush2.msra.mxu0 0.0
  %680 = vmatprep.subr.mxu0 0.0
  %681 = vmatpush2.msra.mxu0 0.0
  %682 = vmatprep.subr.mxu0 0.0
  %683 = vmatpush2.msra.mxu0 0.0
  %684 = vmatprep.subr.mxu0 0.0
  %685 = vmatpush2.msra.mxu0 0.0
  %686 = vmatprep.subr.mxu0 0.0
  %687 = vmatpush2.msra.mxu0 0.0
  %688 = vmatprep.subr.mxu0 0.0
  %689 = vmatpush2.msra.mxu0 0.0
  %690 = vmatprep.subr.mxu0 0.0
  %691 = vmatpush2.msra.mxu0 0.0
  %692 = vmatprep.subr.mxu0 0.0
  %693 = vmatpush2.msra.mxu0 0.0
  %694 = vmatprep.subr.mxu0 0.0
  %695 = vmatpush2.msra.mxu0 0.0
  %696 = vmatprep.subr.mxu0 0.0
  %697 = vmatpush2.msra.mxu0 0.0
  %698 = vmatprep.subr.mxu0 0.0
  %699 = vmatpush2.msra.mxu0 0.0
  %700 = vmatprep.mubr.f32.mxu0 0.0
  %701 = vmatmul.mubr.f32.gmra.mxu0 %v634
  %v702 = vpop.f32.mrf.mxu0
  %v703 = vadd.f32 0.0, %v702
  %v704 = vpop.f32.mrf.mxu0
  %705 = vdwg.mxu0
  %v707 = vsel %vm104, %v469, 0
  %709 = vmatprep.subr.mxu0 0.0
  %710 = vmatpush1.msra.mxu0 0.0
  %711 = vmatprep.subr.mxu0 0.0
  %712 = vmatpush1.msra.mxu0 0.0
  %713 = vmatprep.subr.mxu0 0.0
  %714 = vmatpush1.msra.mxu0 0.0
  %715 = vmatprep.subr.mxu0 0.0
  %716 = vmatpush1.msra.mxu0 0.0
  %717 = vmatprep.subr.mxu0 0.0
  %718 = vmatpush1.msra.mxu0 0.0
  %719 = vmatprep.subr.mxu0 0.0
  %720 = vmatpush1.msra.mxu0 0.0
  %721 = vmatprep.subr.mxu0 0.0
  %722 = vmatpush1.msra.mxu0 0.0
  %723 = vmatprep.subr.mxu0 0.0
  %724 = vmatpush1.msra.mxu0 0.0
  %725 = vmatprep.subr.mxu0 0.0
  %726 = vmatpush1.msra.mxu0 0.0
  %727 = vmatprep.subr.mxu0 0.0
  %728 = vmatpush1.msra.mxu0 0.0
  %729 = vmatprep.subr.mxu0 0.0
  %730 = vmatpush1.msra.mxu0 0.0
  %731 = vmatprep.subr.mxu0 0.0
  %732 = vmatpush1.msra.mxu0 0.0
  %733 = vmatprep.subr.mxu0 0.0
  %734 = vmatpush1.msra.mxu0 %v628
  %735 = vmatprep.subr.mxu0 0.0
  %736 = vmatpush1.msra.mxu0 %v627
  %737 = vmatprep.subr.mxu0 0.0
  %738 = vmatpush1.msra.mxu0 %v626
  %739 = vmatprep.subr.mxu0 0.0
  %740 = vmatpush1.msra.mxu0 %v625
  %741 = vmatprep.subr.mxu0 0.0
  %742 = vmatpush2.msra.mxu0 0.0
  %743 = vmatprep.subr.mxu0 0.0
  %744 = vmatpush2.msra.mxu0 0.0
  %745 = vmatprep.subr.mxu0 0.0
  %746 = vmatpush2.msra.mxu0 0.0
  %747 = vmatprep.subr.mxu0 0.0
  %748 = vmatpush2.msra.mxu0 0.0
  %749 = vmatprep.subr.mxu0 0.0
  %750 = vmatpush2.msra.mxu0 0.0
  %751 = vmatprep.subr.mxu0 0.0
  %752 = vmatpush2.msra.mxu0 0.0
  %753 = vmatprep.subr.mxu0 0.0
  %754 = vmatpush2.msra.mxu0 0.0
  %755 = vmatprep.subr.mxu0 0.0
  %756 = vmatpush2.msra.mxu0 0.0
  %757 = vmatprep.subr.mxu0 0.0
  %758 = vmatpush2.msra.mxu0 0.0
  %759 = vmatprep.subr.mxu0 0.0
  %760 = vmatpush2.msra.mxu0 0.0
  %761 = vmatprep.subr.mxu0 0.0
  %762 = vmatpush2.msra.mxu0 0.0
  %763 = vmatprep.subr.mxu0 0.0
  %764 = vmatpush2.msra.mxu0 0.0
  %765 = vmatprep.subr.mxu0 0.0
  %766 = vmatpush2.msra.mxu0 0.0
  %767 = vmatprep.subr.mxu0 0.0
  %768 = vmatpush2.msra.mxu0 0.0
  %769 = vmatprep.subr.mxu0 0.0
  %770 = vmatpush2.msra.mxu0 0.0
  %771 = vmatprep.subr.mxu0 0.0
  %772 = vmatpush2.msra.mxu0 0.0
  %773 = vmatprep.mubr.f32.mxu0 0.0
  %774 = vmatmul.mubr.f32.gmra.mxu0 %v707
  %v775 = vpop.f32.mrf.mxu0
  %v776 = vadd.f32 %v703, %v775
  %v777 = vpop.f32.mrf.mxu0
  %778 = vdwg.mxu0
  %v779 = vld [vmem:[%s14] sm:$0x1]
  %v781 = vlaneseq
  %v782 = vshrl.u32 %v781, 7
  %v783 = vsub.s32 0, %v782
  %v784 = vrot.slane %v779, %v783
  %v786 = vadd.f32 %v776, %v784
  %v787 = vld [vmem:[%s15] sm:$0xff]
  %v788 = vld [vmem:[%s15 + $0x8] sm:$0xff]
  %v789 = vld [vmem:[%s15 + $0x10] sm:$0xff]
  %v790 = vld [vmem:[%s15 + $0x18] sm:$0xff]
  %v791 = vld [vmem:[%s16] sm:$0xff]
  %v792 = vld [vmem:[%s16 + $0x8] sm:$0xff]
  %v793 = vld [vmem:[%s16 + $0x10] sm:$0xff]
  %v794 = vld [vmem:[%s16 + $0x18] sm:$0xff]
  %v795 = vld [vmem:[%s17] sm:$0x1]
  %v796 = vld [vmem:[%s18] sm:$0xff]
  %v797 = vld [vmem:[%s18 + $0x8] sm:$0xff]
  %v798 = vld [vmem:[%s18 + $0x10] sm:$0xff]
  %v799 = vld [vmem:[%s18 + $0x18] sm:$0xff]
  %v800 = vld [vmem:[%s19] sm:$0xff]
  %v801 = vld [vmem:[%s19 + $0x8] sm:$0xff]
  %v802 = vld [vmem:[%s19 + $0x10] sm:$0xff]
  %v803 = vld [vmem:[%s19 + $0x18] sm:$0xff]
  %v804 = vld [vmem:[%s20] sm:$0x1]
  %v805 = vld [vmem:[%s2] sm:$0xff]
  %v806 = vld [vmem:[%s3] sm:$0xff]
  %v808 = vsel %vm104, %v786, 0
  %810 = vmatprep.subr.mxu0 0.0
  %811 = vmatpush1.msra.mxu0 0.0
  %812 = vmatprep.subr.mxu0 0.0
  %813 = vmatpush1.msra.mxu0 0.0
  %814 = vmatprep.subr.mxu0 0.0
  %815 = vmatpush1.msra.mxu0 0.0
  %816 = vmatprep.subr.mxu0 0.0
  %817 = vmatpush1.msra.mxu0 0.0
  %818 = vmatprep.subr.mxu0 0.0
  %819 = vmatpush1.msra.mxu0 0.0
  %820 = vmatprep.subr.mxu0 0.0
  %821 = vmatpush1.msra.mxu0 0.0
  %822 = vmatprep.subr.mxu0 0.0
  %823 = vmatpush1.msra.mxu0 0.0
  %824 = vmatprep.subr.mxu0 0.0
  %825 = vmatpush1.msra.mxu0 0.0
  %826 = vmatprep.subr.mxu0 0.0
  %827 = vmatpush1.msra.mxu0 0.0
  %828 = vmatprep.subr.mxu0 0.0
  %829 = vmatpush1.msra.mxu0 0.0
  %830 = vmatprep.subr.mxu0 0.0
  %831 = vmatpush1.msra.mxu0 0.0
  %832 = vmatprep.subr.mxu0 0.0
  %833 = vmatpush1.msra.mxu0 0.0
  %834 = vmatprep.subr.mxu0 0.0
  %835 = vmatpush1.msra.mxu0 %v794
  %836 = vmatprep.subr.mxu0 0.0
  %837 = vmatpush1.msra.mxu0 %v793
  %838 = vmatprep.subr.mxu0 0.0
  %839 = vmatpush1.msra.mxu0 %v792
  %840 = vmatprep.subr.mxu0 0.0
  %841 = vmatpush1.msra.mxu0 %v791
  %842 = vmatprep.subr.mxu0 0.0
  %843 = vmatpush2.msra.mxu0 0.0
  %844 = vmatprep.subr.mxu0 0.0
  %845 = vmatpush2.msra.mxu0 0.0
  %846 = vmatprep.subr.mxu0 0.0
  %847 = vmatpush2.msra.mxu0 0.0
  %848 = vmatprep.subr.mxu0 0.0
  %849 = vmatpush2.msra.mxu0 0.0
  %850 = vmatprep.subr.mxu0 0.0
  %851 = vmatpush2.msra.mxu0 0.0
  %852 = vmatprep.subr.mxu0 0.0
  %853 = vmatpush2.msra.mxu0 0.0
  %854 = vmatprep.subr.mxu0 0.0
  %855 = vmatpush2.msra.mxu0 0.0
  %856 = vmatprep.subr.mxu0 0.0
  %857 = vmatpush2.msra.mxu0 0.0
  %858 = vmatprep.subr.mxu0 0.0
  %859 = vmatpush2.msra.mxu0 0.0
  %860 = vmatprep.subr.mxu0 0.0
  %861 = vmatpush2.msra.mxu0 0.0
  %862 = vmatprep.subr.mxu0 0.0
  %863 = vmatpush2.msra.mxu0 0.0
  %864 = vmatprep.subr.mxu0 0.0
  %865 = vmatpush2.msra.mxu0 0.0
  %866 = vmatprep.subr.mxu0 0.0
  %867 = vmatpush2.msra.mxu0 0.0
  %868 = vmatprep.subr.mxu0 0.0
  %869 = vmatpush2.msra.mxu0 0.0
  %870 = vmatprep.subr.mxu0 0.0
  %871 = vmatpush2.msra.mxu0 0.0
  %872 = vmatprep.subr.mxu0 0.0
  %873 = vmatpush2.msra.mxu0 0.0
  %874 = vmatprep.mubr.f32.mxu0 0.0
  %875 = vmatmul.mubr.f32.gmra.mxu0 %v808
  %v876 = vpop.f32.mrf.mxu0
  %v877 = vadd.f32 0.0, %v876
  %v878 = vpop.f32.mrf.mxu0
  %879 = vdwg.mxu0
  %v881 = vsel %vm104, %v806, 0
  %883 = vmatprep.subr.mxu0 0.0
  %884 = vmatpush1.msra.mxu0 0.0
  %885 = vmatprep.subr.mxu0 0.0
  %886 = vmatpush1.msra.mxu0 0.0
  %887 = vmatprep.subr.mxu0 0.0
  %888 = vmatpush1.msra.mxu0 0.0
  %889 = vmatprep.subr.mxu0 0.0
  %890 = vmatpush1.msra.mxu0 0.0
  %891 = vmatprep.subr.mxu0 0.0
  %892 = vmatpush1.msra.mxu0 0.0
  %893 = vmatprep.subr.mxu0 0.0
  %894 = vmatpush1.msra.mxu0 0.0
  %895 = vmatprep.subr.mxu0 0.0
  %896 = vmatpush1.msra.mxu0 0.0
  %897 = vmatprep.subr.mxu0 0.0
  %898 = vmatpush1.msra.mxu0 0.0
  %899 = vmatprep.subr.mxu0 0.0
  %900 = vmatpush1.msra.mxu0 0.0
  %901 = vmatprep.subr.mxu0 0.0
  %902 = vmatpush1.msra.mxu0 0.0
  %903 = vmatprep.subr.mxu0 0.0
  %904 = vmatpush1.msra.mxu0 0.0
  %905 = vmatprep.subr.mxu0 0.0
  %906 = vmatpush1.msra.mxu0 0.0
  %907 = vmatprep.subr.mxu0 0.0
  %908 = vmatpush1.msra.mxu0 %v790
  %909 = vmatprep.subr.mxu0 0.0
  %910 = vmatpush1.msra.mxu0 %v789
  %911 = vmatprep.subr.mxu0 0.0
  %912 = vmatpush1.msra.mxu0 %v788
  %913 = vmatprep.subr.mxu0 0.0
  %914 = vmatpush1.msra.mxu0 %v787
  %915 = vmatprep.subr.mxu0 0.0
  %916 = vmatpush2.msra.mxu0 0.0
  %917 = vmatprep.subr.mxu0 0.0
  %918 = vmatpush2.msra.mxu0 0.0
  %919 = vmatprep.subr.mxu0 0.0
  %920 = vmatpush2.msra.mxu0 0.0
  %921 = vmatprep.subr.mxu0 0.0
  %922 = vmatpush2.msra.mxu0 0.0
  %923 = vmatprep.subr.mxu0 0.0
  %924 = vmatpush2.msra.mxu0 0.0
  %925 = vmatprep.subr.mxu0 0.0
  %926 = vmatpush2.msra.mxu0 0.0
  %927 = vmatprep.subr.mxu0 0.0
  %928 = vmatpush2.msra.mxu0 0.0
  %929 = vmatprep.subr.mxu0 0.0
  %930 = vmatpush2.msra.mxu0 0.0
  %931 = vmatprep.subr.mxu0 0.0
  %932 = vmatpush2.msra.mxu0 0.0
  %933 = vmatprep.subr.mxu0 0.0
  %934 = vmatpush2.msra.mxu0 0.0
  %935 = vmatprep.subr.mxu0 0.0
  %936 = vmatpush2.msra.mxu0 0.0
  %937 = vmatprep.subr.mxu0 0.0
  %938 = vmatpush2.msra.mxu0 0.0
  %939 = vmatprep.subr.mxu0 0.0
  %940 = vmatpush2.msra.mxu0 0.0
  %941 = vmatprep.subr.mxu0 0.0
  %942 = vmatpush2.msra.mxu0 0.0
  %943 = vmatprep.subr.mxu0 0.0
  %944 = vmatpush2.msra.mxu0 0.0
  %945 = vmatprep.subr.mxu0 0.0
  %946 = vmatpush2.msra.mxu0 0.0
  %947 = vmatprep.mubr.f32.mxu0 0.0
  %948 = vmatmul.mubr.f32.gmra.mxu0 %v881
  %v949 = vpop.f32.mrf.mxu0
  %v950 = vadd.f32 %v877, %v949
  %v951 = vpop.f32.mrf.mxu0
  %952 = vdwg.mxu0
  %v954 = vlaneseq
  %v955 = vshrl.u32 %v954, 7
  %v956 = vsub.s32 0, %v955
  %v957 = vrot.slane %v795, %v956
  %v959 = vadd.f32 %v950, %v957
  %v960 = vxor.u32 %v959, 2147483648
  %v961 = vmul.f32 %v960, 1.442695
  %v962 = vpow.pop %v961
  %v963 = vadd.f32 %v962, 1.0
  %v964 = vrcp.pop %v963
  %v965 = vmul.f32 1.0, %v964
  %v966 = vtanh.pop %v959
  %v967 = vmul.f32 %v965, 0.0
  %969 = vrot.lane.b32.xlu0 %v966, 64
  %v970 = vpop.permute.xlu0 %969
  %v972 = vmul.f32 %v965, %v970
  %974 = vrot.lane.b32.xlu0 %v972, 32
  %v975 = vpop.permute.xlu0 %974
  %v977 = vadd.f32 %v967, %v975
  %v978 = vtanh.pop %v977
  %980 = vrot.lane.b32.xlu0 %v978, 64
  %v981 = vpop.permute.xlu0 %980
  %v983 = vmul.f32 %v965, %v981
  %985 = vrot.lane.b32.xlu0 %v983, 32
  %v986 = vpop.permute.xlu0 %985
  %v987 = vsel %vm104, %v986, 0
  %v990 = vsel %vm104, %v298, 0
  %v993 = vsel %vm104, %v299, 0
  %v996 = vsel %vm104, %v300, 0
  %v999 = vsel %vm104, %v301, 0
  %v1002 = vsel %vm104, %v302, 0
  %v1005 = vsel %vm104, %v303, 0
  %v1008 = vsel %vm104, %v304, 0
  %v1011 = vsel %vm104, %v305, 0
  %v1014 = vsel %vm104, %v306, 0
  %v1017 = vsel %vm104, %v307, 0
  %v1020 = vsel %vm104, %v308, 0
  %v1023 = vsel %vm104, %v309, 0
  %v1026 = vsel %vm104, %v310, 0
  %v1029 = vsel %vm104, %v311, 0
  %v1032 = vsel %vm104, %v312, 0
  %v1035 = vsel %vm104, %v313, 0
  %1037 = vmatprep.subr.mxu0 0.0
  %1038 = vmatpush1.xpose.msra.mxu0 %v1035
  %1039 = vmatprep.subr.mxu0 0.0
  %1040 = vmatpush1.xpose.msra.mxu0 %v1032
  %1041 = vmatprep.subr.mxu0 0.0
  %1042 = vmatpush1.xpose.msra.mxu0 %v1029
  %1043 = vmatprep.subr.mxu0 0.0
  %1044 = vmatpush1.xpose.msra.mxu0 %v1026
  %1045 = vmatprep.subr.mxu0 0.0
  %1046 = vmatpush1.xpose.msra.mxu0 %v1023
  %1047 = vmatprep.subr.mxu0 0.0
  %1048 = vmatpush1.xpose.msra.mxu0 %v1020
  %1049 = vmatprep.subr.mxu0 0.0
  %1050 = vmatpush1.xpose.msra.mxu0 %v1017
  %1051 = vmatprep.subr.mxu0 0.0
  %1052 = vmatpush1.xpose.msra.mxu0 %v1014
  %1053 = vmatprep.subr.mxu0 0.0
  %1054 = vmatpush1.xpose.msra.mxu0 %v1011
  %1055 = vmatprep.subr.mxu0 0.0
  %1056 = vmatpush1.xpose.msra.mxu0 %v1008
  %1057 = vmatprep.subr.mxu0 0.0
  %1058 = vmatpush1.xpose.msra.mxu0 %v1005
  %1059 = vmatprep.subr.mxu0 0.0
  %1060 = vmatpush1.xpose.msra.mxu0 %v1002
  %1061 = vmatprep.subr.mxu0 0.0
  %1062 = vmatpush1.xpose.msra.mxu0 %v999
  %1063 = vmatprep.subr.mxu0 0.0
  %1064 = vmatpush1.xpose.msra.mxu0 %v996
  %1065 = vmatprep.subr.mxu0 0.0
  %1066 = vmatpush1.xpose.msra.mxu0 %v993
  %1067 = vmatprep.subr.mxu0 0.0
  %1068 = vmatpush1.xpose.msra.mxu0 %v990
  %1069 = vmatprep.subr.mxu0 0.0
  %1070 = vmatpush2.xpose.msra.mxu0 0.0
  %1071 = vmatprep.subr.mxu0 0.0
  %1072 = vmatpush2.xpose.msra.mxu0 0.0
  %1073 = vmatprep.subr.mxu0 0.0
  %1074 = vmatpush2.xpose.msra.mxu0 0.0
  %1075 = vmatprep.subr.mxu0 0.0
  %1076 = vmatpush2.xpose.msra.mxu0 0.0
  %1077 = vmatprep.subr.mxu0 0.0
  %1078 = vmatpush2.xpose.msra.mxu0 0.0
  %1079 = vmatprep.subr.mxu0 0.0
  %1080 = vmatpush2.xpose.msra.mxu0 0.0
  %1081 = vmatprep.subr.mxu0 0.0
  %1082 = vmatpush2.xpose.msra.mxu0 0.0
  %1083 = vmatprep.subr.mxu0 0.0
  %1084 = vmatpush2.xpose.msra.mxu0 0.0
  %1085 = vmatprep.subr.mxu0 0.0
  %1086 = vmatpush2.xpose.msra.mxu0 0.0
  %1087 = vmatprep.subr.mxu0 0.0
  %1088 = vmatpush2.xpose.msra.mxu0 0.0
  %1089 = vmatprep.subr.mxu0 0.0
  %1090 = vmatpush2.xpose.msra.mxu0 0.0
  %1091 = vmatprep.subr.mxu0 0.0
  %1092 = vmatpush2.xpose.msra.mxu0 0.0
  %1093 = vmatprep.subr.mxu0 0.0
  %1094 = vmatpush2.xpose.msra.mxu0 0.0
  %1095 = vmatprep.subr.mxu0 0.0
  %1096 = vmatpush2.xpose.msra.mxu0 0.0
  %1097 = vmatprep.subr.mxu0 0.0
  %1098 = vmatpush2.xpose.msra.mxu0 0.0
  %1099 = vmatprep.subr.mxu0 0.0
  %1100 = vmatpush2.xpose.msra.mxu0 0.0
  %1101 = vmatprep.mubr.f32.mxu0 0.0
  %1102 = vmatmul.mubr.f32.gmra.mxu0 %v987
  %v1103 = vpop.f32.mrf.mxu0
  %v1104 = vadd.f32 %v805, %v1103
  %v1105 = vpop.f32.mrf.mxu0
  %1106 = vdwg.mxu0
  %1107 = vmax.xlane.f32.xlu0 %v1104
  %v1108 = vpop.xlane.xlu0 %1107
  %v1109 = vsub.f32 %v1104, %v1108
  %v1110 = vmul.f32 %v1109, 1.442695
  %v1111 = vpow.pop %v1110
  %1112 = vadd.xlane.f32.xlu0 %v1111
  %v1113 = vpop.xlane.xlu0 %1112
  %v1114 = vrcp.pop %v1113
  %v1115 = vmul.f32 %v1111, %v1114
  %1116 = vmatprep.subr.mxu0 0.0
  %1117 = vmatpush1.msra.mxu0 %v313
  %1118 = vmatprep.subr.mxu0 0.0
  %1119 = vmatpush1.msra.mxu0 %v312
  %1120 = vmatprep.subr.mxu0 0.0
  %1121 = vmatpush1.msra.mxu0 %v311
  %1122 = vmatprep.subr.mxu0 0.0
  %1123 = vmatpush1.msra.mxu0 %v310
  %1124 = vmatprep.subr.mxu0 0.0
  %1125 = vmatpush1.msra.mxu0 %v309
  %1126 = vmatprep.subr.mxu0 0.0
  %1127 = vmatpush1.msra.mxu0 %v308
  %1128 = vmatprep.subr.mxu0 0.0
  %1129 = vmatpush1.msra.mxu0 %v307
  %1130 = vmatprep.subr.mxu0 0.0
  %1131 = vmatpush1.msra.mxu0 %v306
  %1132 = vmatprep.subr.mxu0 0.0
  %1133 = vmatpush1.msra.mxu0 %v305
  %1134 = vmatprep.subr.mxu0 0.0
  %1135 = vmatpush1.msra.mxu0 %v304
  %1136 = vmatprep.subr.mxu0 0.0
  %1137 = vmatpush1.msra.mxu0 %v303
  %1138 = vmatprep.subr.mxu0 0.0
  %1139 = vmatpush1.msra.mxu0 %v302
  %1140 = vmatprep.subr.mxu0 0.0
  %1141 = vmatpush1.msra.mxu0 %v301
  %1142 = vmatprep.subr.mxu0 0.0
  %1143 = vmatpush1.msra.mxu0 %v300
  %1144 = vmatprep.subr.mxu0 0.0
  %1145 = vmatpush1.msra.mxu0 %v299
  %1146 = vmatprep.subr.mxu0 0.0
  %1147 = vmatpush1.msra.mxu0 %v298
  %1148 = vmatprep.subr.mxu0 0.0
  %1149 = vmatpush2.msra.mxu0 0.0
  %1150 = vmatprep.subr.mxu0 0.0
  %1151 = vmatpush2.msra.mxu0 0.0
  %1152 = vmatprep.subr.mxu0 0.0
  %1153 = vmatpush2.msra.mxu0 0.0
  %1154 = vmatprep.subr.mxu0 0.0
  %1155 = vmatpush2.msra.mxu0 0.0
  %1156 = vmatprep.subr.mxu0 0.0
  %1157 = vmatpush2.msra.mxu0 0.0
  %1158 = vmatprep.subr.mxu0 0.0
  %1159 = vmatpush2.msra.mxu0 0.0
  %1160 = vmatprep.subr.mxu0 0.0
  %1161 = vmatpush2.msra.mxu0 0.0
  %1162 = vmatprep.subr.mxu0 0.0
  %1163 = vmatpush2.msra.mxu0 0.0
  %1164 = vmatprep.subr.mxu0 0.0
  %1165 = vmatpush2.msra.mxu0 0.0
  %1166 = vmatprep.subr.mxu0 0.0
  %1167 = vmatpush2.msra.mxu0 0.0
  %1168 = vmatprep.subr.mxu0 0.0
  %1169 = vmatpush2.msra.mxu0 0.0
  %1170 = vmatprep.subr.mxu0 0.0
  %1171 = vmatpush2.msra.mxu0 0.0
  %1172 = vmatprep.subr.mxu0 0.0
  %1173 = vmatpush2.msra.mxu0 0.0
  %1174 = vmatprep.subr.mxu0 0.0
  %1175 = vmatpush2.msra.mxu0 0.0
  %1176 = vmatprep.subr.mxu0 0.0
  %1177 = vmatpush2.msra.mxu0 0.0
  %1178 = vmatprep.subr.mxu0 0.0
  %1179 = vmatpush2.msra.mxu0 0.0
  %1180 = vmatprep.mubr.f32.mxu0 0.0
  %1181 = vmatmul.mubr.f32.gmra.mxu0 %v1115
  %v1182 = vpop.f32.mrf.mxu0
  %v1183 = vadd.f32 0.0, %v1182
  %v1184 = vpop.f32.mrf.mxu0
  %1185 = vdwg.mxu0
  %v1187 = vsel %vm104, %v1183, 0
  %1189 = vmatprep.subr.mxu0 0.0
  %1190 = vmatpush1.msra.mxu0 0.0
  %1191 = vmatprep.subr.mxu0 0.0
  %1192 = vmatpush1.msra.mxu0 0.0
  %1193 = vmatprep.subr.mxu0 0.0
  %1194 = vmatpush1.msra.mxu0 0.0
  %1195 = vmatprep.subr.mxu0 0.0
  %1196 = vmatpush1.msra.mxu0 0.0
  %1197 = vmatprep.subr.mxu0 0.0
  %1198 = vmatpush1.msra.mxu0 0.0
  %1199 = vmatprep.subr.mxu0 0.0
  %1200 = vmatpush1.msra.mxu0 0.0
  %1201 = vmatprep.subr.mxu0 0.0
  %1202 = vmatpush1.msra.mxu0 0.0
  %1203 = vmatprep.subr.mxu0 0.0
  %1204 = vmatpush1.msra.mxu0 0.0
  %1205 = vmatprep.subr.mxu0 0.0
  %1206 = vmatpush1.msra.mxu0 0.0
  %1207 = vmatprep.subr.mxu0 0.0
  %1208 = vmatpush1.msra.mxu0 0.0
  %1209 = vmatprep.subr.mxu0 0.0
  %1210 = vmatpush1.msra.mxu0 0.0
  %1211 = vmatprep.subr.mxu0 0.0
  %1212 = vmatpush1.msra.mxu0 0.0
  %1213 = vmatprep.subr.mxu0 0.0
  %1214 = vmatpush1.msra.mxu0 %v803
  %1215 = vmatprep.subr.mxu0 0.0
  %1216 = vmatpush1.msra.mxu0 %v802
  %1217 = vmatprep.subr.mxu0 0.0
  %1218 = vmatpush1.msra.mxu0 %v801
  %1219 = vmatprep.subr.mxu0 0.0
  %1220 = vmatpush1.msra.mxu0 %v800
  %1221 = vmatprep.subr.mxu0 0.0
  %1222 = vmatpush2.msra.mxu0 0.0
  %1223 = vmatprep.subr.mxu0 0.0
  %1224 = vmatpush2.msra.mxu0 0.0
  %1225 = vmatprep.subr.mxu0 0.0
  %1226 = vmatpush2.msra.mxu0 0.0
  %1227 = vmatprep.subr.mxu0 0.0
  %1228 = vmatpush2.msra.mxu0 0.0
  %1229 = vmatprep.subr.mxu0 0.0
  %1230 = vmatpush2.msra.mxu0 0.0
  %1231 = vmatprep.subr.mxu0 0.0
  %1232 = vmatpush2.msra.mxu0 0.0
  %1233 = vmatprep.subr.mxu0 0.0
  %1234 = vmatpush2.msra.mxu0 0.0
  %1235 = vmatprep.subr.mxu0 0.0
  %1236 = vmatpush2.msra.mxu0 0.0
  %1237 = vmatprep.subr.mxu0 0.0
  %1238 = vmatpush2.msra.mxu0 0.0
  %1239 = vmatprep.subr.mxu0 0.0
  %1240 = vmatpush2.msra.mxu0 0.0
  %1241 = vmatprep.subr.mxu0 0.0
  %1242 = vmatpush2.msra.mxu0 0.0
  %1243 = vmatprep.subr.mxu0 0.0
  %1244 = vmatpush2.msra.mxu0 0.0
  %1245 = vmatprep.subr.mxu0 0.0
  %1246 = vmatpush2.msra.mxu0 0.0
  %1247 = vmatprep.subr.mxu0 0.0
  %1248 = vmatpush2.msra.mxu0 0.0
  %1249 = vmatprep.subr.mxu0 0.0
  %1250 = vmatpush2.msra.mxu0 0.0
  %1251 = vmatprep.subr.mxu0 0.0
  %1252 = vmatpush2.msra.mxu0 0.0
  %1253 = vmatprep.mubr.f32.mxu0 0.0
  %1254 = vmatmul.mubr.f32.gmra.mxu0 %v1187
  %v1255 = vpop.f32.mrf.mxu0
  %v1256 = vadd.f32 0.0, %v1255
  %v1257 = vpop.f32.mrf.mxu0
  %1258 = vdwg.mxu0
  %1259 = vmatprep.subr.mxu0 0.0
  %1260 = vmatpush1.msra.mxu0 0.0
  %1261 = vmatprep.subr.mxu0 0.0
  %1262 = vmatpush1.msra.mxu0 0.0
  %1263 = vmatprep.subr.mxu0 0.0
  %1264 = vmatpush1.msra.mxu0 0.0
  %1265 = vmatprep.subr.mxu0 0.0
  %1266 = vmatpush1.msra.mxu0 0.0
  %1267 = vmatprep.subr.mxu0 0.0
  %1268 = vmatpush1.msra.mxu0 0.0
  %1269 = vmatprep.subr.mxu0 0.0
  %1270 = vmatpush1.msra.mxu0 0.0
  %1271 = vmatprep.subr.mxu0 0.0
  %1272 = vmatpush1.msra.mxu0 0.0
  %1273 = vmatprep.subr.mxu0 0.0
  %1274 = vmatpush1.msra.mxu0 0.0
  %1275 = vmatprep.subr.mxu0 0.0
  %1276 = vmatpush1.msra.mxu0 0.0
  %1277 = vmatprep.subr.mxu0 0.0
  %1278 = vmatpush1.msra.mxu0 0.0
  %1279 = vmatprep.subr.mxu0 0.0
  %1280 = vmatpush1.msra.mxu0 0.0
  %1281 = vmatprep.subr.mxu0 0.0
  %1282 = vmatpush1.msra.mxu0 0.0
  %1283 = vmatprep.subr.mxu0 0.0
  %1284 = vmatpush1.msra.mxu0 %v799
  %1285 = vmatprep.subr.mxu0 0.0
  %1286 = vmatpush1.msra.mxu0 %v798
  %1287 = vmatprep.subr.mxu0 0.0
  %1288 = vmatpush1.msra.mxu0 %v797
  %1289 = vmatprep.subr.mxu0 0.0
  %1290 = vmatpush1.msra.mxu0 %v796
  %1291 = vmatprep.subr.mxu0 0.0
  %1292 = vmatpush2.msra.mxu0 0.0
  %1293 = vmatprep.subr.mxu0 0.0
  %1294 = vmatpush2.msra.mxu0 0.0
  %1295 = vmatprep.subr.mxu0 0.0
  %1296 = vmatpush2.msra.mxu0 0.0
  %1297 = vmatprep.subr.mxu0 0.0
  %1298 = vmatpush2.msra.mxu0 0.0
  %1299 = vmatprep.subr.mxu0 0.0
  %1300 = vmatpush2.msra.mxu0 0.0
  %1301 = vmatprep.subr.mxu0 0.0
  %1302 = vmatpush2.msra.mxu0 0.0
  %1303 = vmatprep.subr.mxu0 0.0
  %1304 = vmatpush2.msra.mxu0 0.0
  %1305 = vmatprep.subr.mxu0 0.0
  %1306 = vmatpush2.msra.mxu0 0.0
  %1307 = vmatprep.subr.mxu0 0.0
  %1308 = vmatpush2.msra.mxu0 0.0
  %1309 = vmatprep.subr.mxu0 0.0
  %1310 = vmatpush2.msra.mxu0 0.0
  %1311 = vmatprep.subr.mxu0 0.0
  %1312 = vmatpush2.msra.mxu0 0.0
  %1313 = vmatprep.subr.mxu0 0.0
  %1314 = vmatpush2.msra.mxu0 0.0
  %1315 = vmatprep.subr.mxu0 0.0
  %1316 = vmatpush2.msra.mxu0 0.0
  %1317 = vmatprep.subr.mxu0 0.0
  %1318 = vmatpush2.msra.mxu0 0.0
  %1319 = vmatprep.subr.mxu0 0.0
  %1320 = vmatpush2.msra.mxu0 0.0
  %1321 = vmatprep.subr.mxu0 0.0
  %1322 = vmatpush2.msra.mxu0 0.0
  %1323 = vmatprep.mubr.f32.mxu0 0.0
  %1324 = vmatmul.mubr.f32.gmra.mxu0 %v987
  %v1325 = vpop.f32.mrf.mxu0
  %v1326 = vadd.f32 %v1256, %v1325
  %v1327 = vpop.f32.mrf.mxu0
  %1328 = vdwg.mxu0
  %v1330 = vlaneseq
  %v1331 = vshrl.u32 %v1330, 7
  %v1332 = vsub.s32 0, %v1331
  %v1333 = vrot.slane %v804, %v1332
  %v1335 = vadd.f32 %v1326, %v1333
  %v1336 = vtanh.pop %v1335
  %1337 = vst.msk [vmem:[#allocation2] sm:$0xff] %vm104, %v1336
  %s1338 = scalar_lea.vmem %s3, 8
  %v1339 = vld [vmem:[%s1338] sm:$0xff]
  %1340 = vmatprep.subr.mxu0 0.0
  %1341 = vmatpush1.msra.mxu0 0.0
  %1342 = vmatprep.subr.mxu0 0.0
  %1343 = vmatpush1.msra.mxu0 0.0
  %1344 = vmatprep.subr.mxu0 0.0
  %1345 = vmatpush1.msra.mxu0 0.0
  %1346 = vmatprep.subr.mxu0 0.0
  %1347 = vmatpush1.msra.mxu0 0.0
  %1348 = vmatprep.subr.mxu0 0.0
  %1349 = vmatpush1.msra.mxu0 0.0
  %1350 = vmatprep.subr.mxu0 0.0
  %1351 = vmatpush1.msra.mxu0 0.0
  %1352 = vmatprep.subr.mxu0 0.0
  %1353 = vmatpush1.msra.mxu0 0.0
  %1354 = vmatprep.subr.mxu0 0.0
  %1355 = vmatpush1.msra.mxu0 0.0
  %1356 = vmatprep.subr.mxu0 0.0
  %1357 = vmatpush1.msra.mxu0 0.0
  %1358 = vmatprep.subr.mxu0 0.0
  %1359 = vmatpush1.msra.mxu0 0.0
  %1360 = vmatprep.subr.mxu0 0.0
  %1361 = vmatpush1.msra.mxu0 0.0
  %1362 = vmatprep.subr.mxu0 0.0
  %1363 = vmatpush1.msra.mxu0 0.0
  %1364 = vmatprep.subr.mxu0 0.0
  %1365 = vmatpush1.msra.mxu0 %v794
  %1366 = vmatprep.subr.mxu0 0.0
  %1367 = vmatpush1.msra.mxu0 %v793
  %1368 = vmatprep.subr.mxu0 0.0
  %1369 = vmatpush1.msra.mxu0 %v792
  %1370 = vmatprep.subr.mxu0 0.0
  %1371 = vmatpush1.msra.mxu0 %v791
  %1372 = vmatprep.subr.mxu0 0.0
  %1373 = vmatpush2.msra.mxu0 0.0
  %1374 = vmatprep.subr.mxu0 0.0
  %1375 = vmatpush2.msra.mxu0 0.0
  %1376 = vmatprep.subr.mxu0 0.0
  %1377 = vmatpush2.msra.mxu0 0.0
  %1378 = vmatprep.subr.mxu0 0.0
  %1379 = vmatpush2.msra.mxu0 0.0
  %1380 = vmatprep.subr.mxu0 0.0
  %1381 = vmatpush2.msra.mxu0 0.0
  %1382 = vmatprep.subr.mxu0 0.0
  %1383 = vmatpush2.msra.mxu0 0.0
  %1384 = vmatprep.subr.mxu0 0.0
  %1385 = vmatpush2.msra.mxu0 0.0
  %1386 = vmatprep.subr.mxu0 0.0
  %1387 = vmatpush2.msra.mxu0 0.0
  %1388 = vmatprep.subr.mxu0 0.0
  %1389 = vmatpush2.msra.mxu0 0.0
  %1390 = vmatprep.subr.mxu0 0.0
  %1391 = vmatpush2.msra.mxu0 0.0
  %1392 = vmatprep.subr.mxu0 0.0
  %1393 = vmatpush2.msra.mxu0 0.0
  %1394 = vmatprep.subr.mxu0 0.0
  %1395 = vmatpush2.msra.mxu0 0.0
  %1396 = vmatprep.subr.mxu0 0.0
  %1397 = vmatpush2.msra.mxu0 0.0
  %1398 = vmatprep.subr.mxu0 0.0
  %1399 = vmatpush2.msra.mxu0 0.0
  %1400 = vmatprep.subr.mxu0 0.0
  %1401 = vmatpush2.msra.mxu0 0.0
  %1402 = vmatprep.subr.mxu0 0.0
  %1403 = vmatpush2.msra.mxu0 0.0
  %1404 = vmatprep.mubr.f32.mxu0 0.0
  %1405 = vmatmul.mubr.f32.gmra.mxu0 %v987
  %v1406 = vpop.f32.mrf.mxu0
  %v1407 = vadd.f32 0.0, %v1406
  %v1408 = vpop.f32.mrf.mxu0
  %1409 = vdwg.mxu0
  %v1411 = vsel %vm104, %v1339, 0
  %1413 = vmatprep.subr.mxu0 0.0
  %1414 = vmatpush1.msra.mxu0 0.0
  %1415 = vmatprep.subr.mxu0 0.0
  %1416 = vmatpush1.msra.mxu0 0.0
  %1417 = vmatprep.subr.mxu0 0.0
  %1418 = vmatpush1.msra.mxu0 0.0
  %1419 = vmatprep.subr.mxu0 0.0
  %1420 = vmatpush1.msra.mxu0 0.0
  %1421 = vmatprep.subr.mxu0 0.0
  %1422 = vmatpush1.msra.mxu0 0.0
  %1423 = vmatprep.subr.mxu0 0.0
  %1424 = vmatpush1.msra.mxu0 0.0
  %1425 = vmatprep.subr.mxu0 0.0
  %1426 = vmatpush1.msra.mxu0 0.0
  %1427 = vmatprep.subr.mxu0 0.0
  %1428 = vmatpush1.msra.mxu0 0.0
  %1429 = vmatprep.subr.mxu0 0.0
  %1430 = vmatpush1.msra.mxu0 0.0
  %1431 = vmatprep.subr.mxu0 0.0
  %1432 = vmatpush1.msra.mxu0 0.0
  %1433 = vmatprep.subr.mxu0 0.0
  %1434 = vmatpush1.msra.mxu0 0.0
  %1435 = vmatprep.subr.mxu0 0.0
  %1436 = vmatpush1.msra.mxu0 0.0
  %1437 = vmatprep.subr.mxu0 0.0
  %1438 = vmatpush1.msra.mxu0 %v790
  %1439 = vmatprep.subr.mxu0 0.0
  %1440 = vmatpush1.msra.mxu0 %v789
  %1441 = vmatprep.subr.mxu0 0.0
  %1442 = vmatpush1.msra.mxu0 %v788
  %1443 = vmatprep.subr.mxu0 0.0
  %1444 = vmatpush1.msra.mxu0 %v787
  %1445 = vmatprep.subr.mxu0 0.0
  %1446 = vmatpush2.msra.mxu0 0.0
  %1447 = vmatprep.subr.mxu0 0.0
  %1448 = vmatpush2.msra.mxu0 0.0
  %1449 = vmatprep.subr.mxu0 0.0
  %1450 = vmatpush2.msra.mxu0 0.0
  %1451 = vmatprep.subr.mxu0 0.0
  %1452 = vmatpush2.msra.mxu0 0.0
  %1453 = vmatprep.subr.mxu0 0.0
  %1454 = vmatpush2.msra.mxu0 0.0
  %1455 = vmatprep.subr.mxu0 0.0
  %1456 = vmatpush2.msra.mxu0 0.0
  %1457 = vmatprep.subr.mxu0 0.0
  %1458 = vmatpush2.msra.mxu0 0.0
  %1459 = vmatprep.subr.mxu0 0.0
  %1460 = vmatpush2.msra.mxu0 0.0
  %1461 = vmatprep.subr.mxu0 0.0
  %1462 = vmatpush2.msra.mxu0 0.0
  %1463 = vmatprep.subr.mxu0 0.0
  %1464 = vmatpush2.msra.mxu0 0.0
  %1465 = vmatprep.subr.mxu0 0.0
  %1466 = vmatpush2.msra.mxu0 0.0
  %1467 = vmatprep.subr.mxu0 0.0
  %1468 = vmatpush2.msra.mxu0 0.0
  %1469 = vmatprep.subr.mxu0 0.0
  %1470 = vmatpush2.msra.mxu0 0.0
  %1471 = vmatprep.subr.mxu0 0.0
  %1472 = vmatpush2.msra.mxu0 0.0
  %1473 = vmatprep.subr.mxu0 0.0
  %1474 = vmatpush2.msra.mxu0 0.0
  %1475 = vmatprep.subr.mxu0 0.0
  %1476 = vmatpush2.msra.mxu0 0.0
  %1477 = vmatprep.mubr.f32.mxu0 0.0
  %1478 = vmatmul.mubr.f32.gmra.mxu0 %v1411
  %v1479 = vpop.f32.mrf.mxu0
  %v1480 = vadd.f32 %v1407, %v1479
  %v1481 = vpop.f32.mrf.mxu0
  %1482 = vdwg.mxu0
  %v1483 = vadd.f32 %v1480, %v957
  %v1484 = vxor.u32 %v1483, 2147483648
  %v1485 = vmul.f32 %v1484, 1.442695
  %v1486 = vpow.pop %v1485
  %v1487 = vadd.f32 %v1486, 1.0
  %v1488 = vrcp.pop %v1487
  %v1489 = vmul.f32 1.0, %v1488
  %v1490 = vtanh.pop %v1483
  %v1491 = vmul.f32 %v1489, %v977
  %1493 = vrot.lane.b32.xlu0 %v1490, 64
  %v1494 = vpop.permute.xlu0 %1493
  %v1496 = vmul.f32 %v1489, %v1494
  %1498 = vrot.lane.b32.xlu0 %v1496, 32
  %v1499 = vpop.permute.xlu0 %1498
  %v1501 = vadd.f32 %v1491, %v1499
  %v1502 = vtanh.pop %v1501
  %1504 = vrot.lane.b32.xlu0 %v1502, 64
  %v1505 = vpop.permute.xlu0 %1504
  %v1507 = vmul.f32 %v1489, %v1505
  %1509 = vrot.lane.b32.xlu0 %v1507, 32
  %v1510 = vpop.permute.xlu0 %1509
  %v1511 = vsel %vm104, %v1510, 0
  %1513 = vmatprep.subr.mxu0 0.0
  %1514 = vmatpush1.xpose.msra.mxu0 %v1035
  %1515 = vmatprep.subr.mxu0 0.0
  %1516 = vmatpush1.xpose.msra.mxu0 %v1032
  %1517 = vmatprep.subr.mxu0 0.0
  %1518 = vmatpush1.xpose.msra.mxu0 %v1029
  %1519 = vmatprep.subr.mxu0 0.0
  %1520 = vmatpush1.xpose.msra.mxu0 %v1026
  %1521 = vmatprep.subr.mxu0 0.0
  %1522 = vmatpush1.xpose.msra.mxu0 %v1023
  %1523 = vmatprep.subr.mxu0 0.0
  %1524 = vmatpush1.xpose.msra.mxu0 %v1020
  %1525 = vmatprep.subr.mxu0 0.0
  %1526 = vmatpush1.xpose.msra.mxu0 %v1017
  %1527 = vmatprep.subr.mxu0 0.0
  %1528 = vmatpush1.xpose.msra.mxu0 %v1014
  %1529 = vmatprep.subr.mxu0 0.0
  %1530 = vmatpush1.xpose.msra.mxu0 %v1011
  %1531 = vmatprep.subr.mxu0 0.0
  %1532 = vmatpush1.xpose.msra.mxu0 %v1008
  %1533 = vmatprep.subr.mxu0 0.0
  %1534 = vmatpush1.xpose.msra.mxu0 %v1005
  %1535 = vmatprep.subr.mxu0 0.0
  %1536 = vmatpush1.xpose.msra.mxu0 %v1002
  %1537 = vmatprep.subr.mxu0 0.0
  %1538 = vmatpush1.xpose.msra.mxu0 %v999
  %1539 = vmatprep.subr.mxu0 0.0
  %1540 = vmatpush1.xpose.msra.mxu0 %v996
  %1541 = vmatprep.subr.mxu0 0.0
  %1542 = vmatpush1.xpose.msra.mxu0 %v993
  %1543 = vmatprep.subr.mxu0 0.0
  %1544 = vmatpush1.xpose.msra.mxu0 %v990
  %1545 = vmatprep.subr.mxu0 0.0
  %1546 = vmatpush2.xpose.msra.mxu0 0.0
  %1547 = vmatprep.subr.mxu0 0.0
  %1548 = vmatpush2.xpose.msra.mxu0 0.0
  %1549 = vmatprep.subr.mxu0 0.0
  %1550 = vmatpush2.xpose.msra.mxu0 0.0
  %1551 = vmatprep.subr.mxu0 0.0
  %1552 = vmatpush2.xpose.msra.mxu0 0.0
  %1553 = vmatprep.subr.mxu0 0.0
  %1554 = vmatpush2.xpose.msra.mxu0 0.0
  %1555 = vmatprep.subr.mxu0 0.0
  %1556 = vmatpush2.xpose.msra.mxu0 0.0
  %1557 = vmatprep.subr.mxu0 0.0
  %1558 = vmatpush2.xpose.msra.mxu0 0.0
  %1559 = vmatprep.subr.mxu0 0.0
  %1560 = vmatpush2.xpose.msra.mxu0 0.0
  %1561 = vmatprep.subr.mxu0 0.0
  %1562 = vmatpush2.xpose.msra.mxu0 0.0
  %1563 = vmatprep.subr.mxu0 0.0
  %1564 = vmatpush2.xpose.msra.mxu0 0.0
  %1565 = vmatprep.subr.mxu0 0.0
  %1566 = vmatpush2.xpose.msra.mxu0 0.0
  %1567 = vmatprep.subr.mxu0 0.0
  %1568 = vmatpush2.xpose.msra.mxu0 0.0
  %1569 = vmatprep.subr.mxu0 0.0
  %1570 = vmatpush2.xpose.msra.mxu0 0.0
  %1571 = vmatprep.subr.mxu0 0.0
  %1572 = vmatpush2.xpose.msra.mxu0 0.0
  %1573 = vmatprep.subr.mxu0 0.0
  %1574 = vmatpush2.xpose.msra.mxu0 0.0
  %1575 = vmatprep.subr.mxu0 0.0
  %1576 = vmatpush2.xpose.msra.mxu0 0.0
  %1577 = vmatprep.mubr.f32.mxu0 0.0
  %1578 = vmatmul.mubr.f32.gmra.mxu0 %v1511
  %v1579 = vpop.f32.mrf.mxu0
  %v1580 = vadd.f32 %v805, %v1579
  %v1581 = vpop.f32.mrf.mxu0
  %1582 = vdwg.mxu0
  %1583 = vmax.xlane.f32.xlu0 %v1580
  %v1584 = vpop.xlane.xlu0 %1583
  %v1585 = vsub.f32 %v1580, %v1584
  %v1586 = vmul.f32 %v1585, 1.442695
  %v1587 = vpow.pop %v1586
  %1588 = vadd.xlane.f32.xlu0 %v1587
  %v1589 = vpop.xlane.xlu0 %1588
  %v1590 = vrcp.pop %v1589
  %v1591 = vmul.f32 %v1587, %v1590
  %1592 = vmatprep.subr.mxu0 0.0
  %1593 = vmatpush1.msra.mxu0 %v313
  %1594 = vmatprep.subr.mxu0 0.0
  %1595 = vmatpush1.msra.mxu0 %v312
  %1596 = vmatprep.subr.mxu0 0.0
  %1597 = vmatpush1.msra.mxu0 %v311
  %1598 = vmatprep.subr.mxu0 0.0
  %1599 = vmatpush1.msra.mxu0 %v310
  %1600 = vmatprep.subr.mxu0 0.0
  %1601 = vmatpush1.msra.mxu0 %v309
  %1602 = vmatprep.subr.mxu0 0.0
  %1603 = vmatpush1.msra.mxu0 %v308
  %1604 = vmatprep.subr.mxu0 0.0
  %1605 = vmatpush1.msra.mxu0 %v307
  %1606 = vmatprep.subr.mxu0 0.0
  %1607 = vmatpush1.msra.mxu0 %v306
  %1608 = vmatprep.subr.mxu0 0.0
  %1609 = vmatpush1.msra.mxu0 %v305
  %1610 = vmatprep.subr.mxu0 0.0
  %1611 = vmatpush1.msra.mxu0 %v304
  %1612 = vmatprep.subr.mxu0 0.0
  %1613 = vmatpush1.msra.mxu0 %v303
  %1614 = vmatprep.subr.mxu0 0.0
  %1615 = vmatpush1.msra.mxu0 %v302
  %1616 = vmatprep.subr.mxu0 0.0
  %1617 = vmatpush1.msra.mxu0 %v301
  %1618 = vmatprep.subr.mxu0 0.0
  %1619 = vmatpush1.msra.mxu0 %v300
  %1620 = vmatprep.subr.mxu0 0.0
  %1621 = vmatpush1.msra.mxu0 %v299
  %1622 = vmatprep.subr.mxu0 0.0
  %1623 = vmatpush1.msra.mxu0 %v298
  %1624 = vmatprep.subr.mxu0 0.0
  %1625 = vmatpush2.msra.mxu0 0.0
  %1626 = vmatprep.subr.mxu0 0.0
  %1627 = vmatpush2.msra.mxu0 0.0
  %1628 = vmatprep.subr.mxu0 0.0
  %1629 = vmatpush2.msra.mxu0 0.0
  %1630 = vmatprep.subr.mxu0 0.0
  %1631 = vmatpush2.msra.mxu0 0.0
  %1632 = vmatprep.subr.mxu0 0.0
  %1633 = vmatpush2.msra.mxu0 0.0
  %1634 = vmatprep.subr.mxu0 0.0
  %1635 = vmatpush2.msra.mxu0 0.0
  %1636 = vmatprep.subr.mxu0 0.0
  %1637 = vmatpush2.msra.mxu0 0.0
  %1638 = vmatprep.subr.mxu0 0.0
  %1639 = vmatpush2.msra.mxu0 0.0
  %1640 = vmatprep.subr.mxu0 0.0
  %1641 = vmatpush2.msra.mxu0 0.0
  %1642 = vmatprep.subr.mxu0 0.0
  %1643 = vmatpush2.msra.mxu0 0.0
  %1644 = vmatprep.subr.mxu0 0.0
  %1645 = vmatpush2.msra.mxu0 0.0
  %1646 = vmatprep.subr.mxu0 0.0
  %1647 = vmatpush2.msra.mxu0 0.0
  %1648 = vmatprep.subr.mxu0 0.0
  %1649 = vmatpush2.msra.mxu0 0.0
  %1650 = vmatprep.subr.mxu0 0.0
  %1651 = vmatpush2.msra.mxu0 0.0
  %1652 = vmatprep.subr.mxu0 0.0
  %1653 = vmatpush2.msra.mxu0 0.0
  %1654 = vmatprep.subr.mxu0 0.0
  %1655 = vmatpush2.msra.mxu0 0.0
  %1656 = vmatprep.mubr.f32.mxu0 0.0
  %1657 = vmatmul.mubr.f32.gmra.mxu0 %v1591
  %v1658 = vpop.f32.mrf.mxu0
  %v1659 = vadd.f32 0.0, %v1658
  %v1660 = vpop.f32.mrf.mxu0
  %1661 = vdwg.mxu0
  %v1663 = vsel %vm104, %v1659, 0
  %1665 = vmatprep.subr.mxu0 0.0
  %1666 = vmatpush1.msra.mxu0 0.0
  %1667 = vmatprep.subr.mxu0 0.0
  %1668 = vmatpush1.msra.mxu0 0.0
  %1669 = vmatprep.subr.mxu0 0.0
  %1670 = vmatpush1.msra.mxu0 0.0
  %1671 = vmatprep.subr.mxu0 0.0
  %1672 = vmatpush1.msra.mxu0 0.0
  %1673 = vmatprep.subr.mxu0 0.0
  %1674 = vmatpush1.msra.mxu0 0.0
  %1675 = vmatprep.subr.mxu0 0.0
  %1676 = vmatpush1.msra.mxu0 0.0
  %1677 = vmatprep.subr.mxu0 0.0
  %1678 = vmatpush1.msra.mxu0 0.0
  %1679 = vmatprep.subr.mxu0 0.0
  %1680 = vmatpush1.msra.mxu0 0.0
  %1681 = vmatprep.subr.mxu0 0.0
  %1682 = vmatpush1.msra.mxu0 0.0
  %1683 = vmatprep.subr.mxu0 0.0
  %1684 = vmatpush1.msra.mxu0 0.0
  %1685 = vmatprep.subr.mxu0 0.0
  %1686 = vmatpush1.msra.mxu0 0.0
  %1687 = vmatprep.subr.mxu0 0.0
  %1688 = vmatpush1.msra.mxu0 0.0
  %1689 = vmatprep.subr.mxu0 0.0
  %1690 = vmatpush1.msra.mxu0 %v803
  %1691 = vmatprep.subr.mxu0 0.0
  %1692 = vmatpush1.msra.mxu0 %v802
  %1693 = vmatprep.subr.mxu0 0.0
  %1694 = vmatpush1.msra.mxu0 %v801
  %1695 = vmatprep.subr.mxu0 0.0
  %1696 = vmatpush1.msra.mxu0 %v800
  %1697 = vmatprep.subr.mxu0 0.0
  %1698 = vmatpush2.msra.mxu0 0.0
  %1699 = vmatprep.subr.mxu0 0.0
  %1700 = vmatpush2.msra.mxu0 0.0
  %1701 = vmatprep.subr.mxu0 0.0
  %1702 = vmatpush2.msra.mxu0 0.0
  %1703 = vmatprep.subr.mxu0 0.0
  %1704 = vmatpush2.msra.mxu0 0.0
  %1705 = vmatprep.subr.mxu0 0.0
  %1706 = vmatpush2.msra.mxu0 0.0
  %1707 = vmatprep.subr.mxu0 0.0
  %1708 = vmatpush2.msra.mxu0 0.0
  %1709 = vmatprep.subr.mxu0 0.0
  %1710 = vmatpush2.msra.mxu0 0.0
  %1711 = vmatprep.subr.mxu0 0.0
  %1712 = vmatpush2.msra.mxu0 0.0
  %1713 = vmatprep.subr.mxu0 0.0
  %1714 = vmatpush2.msra.mxu0 0.0
  %1715 = vmatprep.subr.mxu0 0.0
  %1716 = vmatpush2.msra.mxu0 0.0
  %1717 = vmatprep.subr.mxu0 0.0
  %1718 = vmatpush2.msra.mxu0 0.0
  %1719 = vmatprep.subr.mxu0 0.0
  %1720 = vmatpush2.msra.mxu0 0.0
  %1721 = vmatprep.subr.mxu0 0.0
  %1722 = vmatpush2.msra.mxu0 0.0
  %1723 = vmatprep.subr.mxu0 0.0
  %1724 = vmatpush2.msra.mxu0 0.0
  %1725 = vmatprep.subr.mxu0 0.0
  %1726 = vmatpush2.msra.mxu0 0.0
  %1727 = vmatprep.subr.mxu0 0.0
  %1728 = vmatpush2.msra.mxu0 0.0
  %1729 = vmatprep.mubr.f32.mxu0 0.0
  %1730 = vmatmul.mubr.f32.gmra.mxu0 %v1663
  %v1731 = vpop.f32.mrf.mxu0
  %v1732 = vadd.f32 0.0, %v1731
  %v1733 = vpop.f32.mrf.mxu0
  %1734 = vdwg.mxu0
  %1735 = vmatprep.subr.mxu0 0.0
  %1736 = vmatpush1.msra.mxu0 0.0
  %1737 = vmatprep.subr.mxu0 0.0
  %1738 = vmatpush1.msra.mxu0 0.0
  %1739 = vmatprep.subr.mxu0 0.0
  %1740 = vmatpush1.msra.mxu0 0.0
  %1741 = vmatprep.subr.mxu0 0.0
  %1742 = vmatpush1.msra.mxu0 0.0
  %1743 = vmatprep.subr.mxu0 0.0
  %1744 = vmatpush1.msra.mxu0 0.0
  %1745 = vmatprep.subr.mxu0 0.0
  %1746 = vmatpush1.msra.mxu0 0.0
  %1747 = vmatprep.subr.mxu0 0.0
  %1748 = vmatpush1.msra.mxu0 0.0
  %1749 = vmatprep.subr.mxu0 0.0
  %1750 = vmatpush1.msra.mxu0 0.0
  %1751 = vmatprep.subr.mxu0 0.0
  %1752 = vmatpush1.msra.mxu0 0.0
  %1753 = vmatprep.subr.mxu0 0.0
  %1754 = vmatpush1.msra.mxu0 0.0
  %1755 = vmatprep.subr.mxu0 0.0
  %1756 = vmatpush1.msra.mxu0 0.0
  %1757 = vmatprep.subr.mxu0 0.0
  %1758 = vmatpush1.msra.mxu0 0.0
  %1759 = vmatprep.subr.mxu0 0.0
  %1760 = vmatpush1.msra.mxu0 %v799
  %1761 = vmatprep.subr.mxu0 0.0
  %1762 = vmatpush1.msra.mxu0 %v798
  %1763 = vmatprep.subr.mxu0 0.0
  %1764 = vmatpush1.msra.mxu0 %v797
  %1765 = vmatprep.subr.mxu0 0.0
  %1766 = vmatpush1.msra.mxu0 %v796
  %1767 = vmatprep.subr.mxu0 0.0
  %1768 = vmatpush2.msra.mxu0 0.0
  %1769 = vmatprep.subr.mxu0 0.0
  %1770 = vmatpush2.msra.mxu0 0.0
  %1771 = vmatprep.subr.mxu0 0.0
  %1772 = vmatpush2.msra.mxu0 0.0
  %1773 = vmatprep.subr.mxu0 0.0
  %1774 = vmatpush2.msra.mxu0 0.0
  %1775 = vmatprep.subr.mxu0 0.0
  %1776 = vmatpush2.msra.mxu0 0.0
  %1777 = vmatprep.subr.mxu0 0.0
  %1778 = vmatpush2.msra.mxu0 0.0
  %1779 = vmatprep.subr.mxu0 0.0
  %1780 = vmatpush2.msra.mxu0 0.0
  %1781 = vmatprep.subr.mxu0 0.0
  %1782 = vmatpush2.msra.mxu0 0.0
  %1783 = vmatprep.subr.mxu0 0.0
  %1784 = vmatpush2.msra.mxu0 0.0
  %1785 = vmatprep.subr.mxu0 0.0
  %1786 = vmatpush2.msra.mxu0 0.0
  %1787 = vmatprep.subr.mxu0 0.0
  %1788 = vmatpush2.msra.mxu0 0.0
  %1789 = vmatprep.subr.mxu0 0.0
  %1790 = vmatpush2.msra.mxu0 0.0
  %1791 = vmatprep.subr.mxu0 0.0
  %1792 = vmatpush2.msra.mxu0 0.0
  %1793 = vmatprep.subr.mxu0 0.0
  %1794 = vmatpush2.msra.mxu0 0.0
  %1795 = vmatprep.subr.mxu0 0.0
  %1796 = vmatpush2.msra.mxu0 0.0
  %1797 = vmatprep.subr.mxu0 0.0
  %1798 = vmatpush2.msra.mxu0 0.0
  %1799 = vmatprep.mubr.f32.mxu0 0.0
  %1800 = vmatmul.mubr.f32.gmra.mxu0 %v1511
  %v1801 = vpop.f32.mrf.mxu0
  %v1802 = vadd.f32 %v1732, %v1801
  %v1803 = vpop.f32.mrf.mxu0
  %1804 = vdwg.mxu0
  %v1805 = vadd.f32 %v1802, %v1333
  %v1806 = vtanh.pop %v1805
  %1807 = vst.msk [vmem:[#allocation2 + $0x8] sm:$0xff] %vm104, %v1806
  %s1808 = scalar_lea.vmem %s3, 16
  %v1809 = vld [vmem:[%s1808] sm:$0xff]
  %1810 = vmatprep.subr.mxu0 0.0
  %1811 = vmatpush1.msra.mxu0 0.0
  %1812 = vmatprep.subr.mxu0 0.0
  %1813 = vmatpush1.msra.mxu0 0.0
  %1814 = vmatprep.subr.mxu0 0.0
  %1815 = vmatpush1.msra.mxu0 0.0
  %1816 = vmatprep.subr.mxu0 0.0
  %1817 = vmatpush1.msra.mxu0 0.0
  %1818 = vmatprep.subr.mxu0 0.0
  %1819 = vmatpush1.msra.mxu0 0.0
  %1820 = vmatprep.subr.mxu0 0.0
  %1821 = vmatpush1.msra.mxu0 0.0
  %1822 = vmatprep.subr.mxu0 0.0
  %1823 = vmatpush1.msra.mxu0 0.0
  %1824 = vmatprep.subr.mxu0 0.0
  %1825 = vmatpush1.msra.mxu0 0.0
  %1826 = vmatprep.subr.mxu0 0.0
  %1827 = vmatpush1.msra.mxu0 0.0
  %1828 = vmatprep.subr.mxu0 0.0
  %1829 = vmatpush1.msra.mxu0 0.0
  %1830 = vmatprep.subr.mxu0 0.0
  %1831 = vmatpush1.msra.mxu0 0.0
  %1832 = vmatprep.subr.mxu0 0.0
  %1833 = vmatpush1.msra.mxu0 0.0
  %1834 = vmatprep.subr.mxu0 0.0
  %1835 = vmatpush1.msra.mxu0 %v794
  %1836 = vmatprep.subr.mxu0 0.0
  %1837 = vmatpush1.msra.mxu0 %v793
  %1838 = vmatprep.subr.mxu0 0.0
  %1839 = vmatpush1.msra.mxu0 %v792
  %1840 = vmatprep.subr.mxu0 0.0
  %1841 = vmatpush1.msra.mxu0 %v791
  %1842 = vmatprep.subr.mxu0 0.0
  %1843 = vmatpush2.msra.mxu0 0.0
  %1844 = vmatprep.subr.mxu0 0.0
  %1845 = vmatpush2.msra.mxu0 0.0
  %1846 = vmatprep.subr.mxu0 0.0
  %1847 = vmatpush2.msra.mxu0 0.0
  %1848 = vmatprep.subr.mxu0 0.0
  %1849 = vmatpush2.msra.mxu0 0.0
  %1850 = vmatprep.subr.mxu0 0.0
  %1851 = vmatpush2.msra.mxu0 0.0
  %1852 = vmatprep.subr.mxu0 0.0
  %1853 = vmatpush2.msra.mxu0 0.0
  %1854 = vmatprep.subr.mxu0 0.0
  %1855 = vmatpush2.msra.mxu0 0.0
  %1856 = vmatprep.subr.mxu0 0.0
  %1857 = vmatpush2.msra.mxu0 0.0
  %1858 = vmatprep.subr.mxu0 0.0
  %1859 = vmatpush2.msra.mxu0 0.0
  %1860 = vmatprep.subr.mxu0 0.0
  %1861 = vmatpush2.msra.mxu0 0.0
  %1862 = vmatprep.subr.mxu0 0.0
  %1863 = vmatpush2.msra.mxu0 0.0
  %1864 = vmatprep.subr.mxu0 0.0
  %1865 = vmatpush2.msra.mxu0 0.0
  %1866 = vmatprep.subr.mxu0 0.0
  %1867 = vmatpush2.msra.mxu0 0.0
  %1868 = vmatprep.subr.mxu0 0.0
  %1869 = vmatpush2.msra.mxu0 0.0
  %1870 = vmatprep.subr.mxu0 0.0
  %1871 = vmatpush2.msra.mxu0 0.0
  %1872 = vmatprep.subr.mxu0 0.0
  %1873 = vmatpush2.msra.mxu0 0.0
  %1874 = vmatprep.mubr.f32.mxu0 0.0
  %1875 = vmatmul.mubr.f32.gmra.mxu0 %v1511
  %v1876 = vpop.f32.mrf.mxu0
  %v1877 = vadd.f32 0.0, %v1876
  %v1878 = vpop.f32.mrf.mxu0
  %1879 = vdwg.mxu0
  %v1881 = vsel %vm104, %v1809, 0
  %1883 = vmatprep.subr.mxu0 0.0
  %1884 = vmatpush1.msra.mxu0 0.0
  %1885 = vmatprep.subr.mxu0 0.0
  %1886 = vmatpush1.msra.mxu0 0.0
  %1887 = vmatprep.subr.mxu0 0.0
  %1888 = vmatpush1.msra.mxu0 0.0
  %1889 = vmatprep.subr.mxu0 0.0
  %1890 = vmatpush1.msra.mxu0 0.0
  %1891 = vmatprep.subr.mxu0 0.0
  %1892 = vmatpush1.msra.mxu0 0.0
  %1893 = vmatprep.subr.mxu0 0.0
  %1894 = vmatpush1.msra.mxu0 0.0
  %1895 = vmatprep.subr.mxu0 0.0
  %1896 = vmatpush1.msra.mxu0 0.0
  %1897 = vmatprep.subr.mxu0 0.0
  %1898 = vmatpush1.msra.mxu0 0.0
  %1899 = vmatprep.subr.mxu0 0.0
  %1900 = vmatpush1.msra.mxu0 0.0
  %1901 = vmatprep.subr.mxu0 0.0
  %1902 = vmatpush1.msra.mxu0 0.0
  %1903 = vmatprep.subr.mxu0 0.0
  %1904 = vmatpush1.msra.mxu0 0.0
  %1905 = vmatprep.subr.mxu0 0.0
  %1906 = vmatpush1.msra.mxu0 0.0
  %1907 = vmatprep.subr.mxu0 0.0
  %1908 = vmatpush1.msra.mxu0 %v790
  %1909 = vmatprep.subr.mxu0 0.0
  %1910 = vmatpush1.msra.mxu0 %v789
  %1911 = vmatprep.subr.mxu0 0.0
  %1912 = vmatpush1.msra.mxu0 %v788
  %1913 = vmatprep.subr.mxu0 0.0
  %1914 = vmatpush1.msra.mxu0 %v787
  %1915 = vmatprep.subr.mxu0 0.0
  %1916 = vmatpush2.msra.mxu0 0.0
  %1917 = vmatprep.subr.mxu0 0.0
  %1918 = vmatpush2.msra.mxu0 0.0
  %1919 = vmatprep.subr.mxu0 0.0
  %1920 = vmatpush2.msra.mxu0 0.0
  %1921 = vmatprep.subr.mxu0 0.0
  %1922 = vmatpush2.msra.mxu0 0.0
  %1923 = vmatprep.subr.mxu0 0.0
  %1924 = vmatpush2.msra.mxu0 0.0
  %1925 = vmatprep.subr.mxu0 0.0
  %1926 = vmatpush2.msra.mxu0 0.0
  %1927 = vmatprep.subr.mxu0 0.0
  %1928 = vmatpush2.msra.mxu0 0.0
  %1929 = vmatprep.subr.mxu0 0.0
  %1930 = vmatpush2.msra.mxu0 0.0
  %1931 = vmatprep.subr.mxu0 0.0
  %1932 = vmatpush2.msra.mxu0 0.0
  %1933 = vmatprep.subr.mxu0 0.0
  %1934 = vmatpush2.msra.mxu0 0.0
  %1935 = vmatprep.subr.mxu0 0.0
  %1936 = vmatpush2.msra.mxu0 0.0
  %1937 = vmatprep.subr.mxu0 0.0
  %1938 = vmatpush2.msra.mxu0 0.0
  %1939 = vmatprep.subr.mxu0 0.0
  %1940 = vmatpush2.msra.mxu0 0.0
  %1941 = vmatprep.subr.mxu0 0.0
  %1942 = vmatpush2.msra.mxu0 0.0
  %1943 = vmatprep.subr.mxu0 0.0
  %1944 = vmatpush2.msra.mxu0 0.0
  %1945 = vmatprep.subr.mxu0 0.0
  %1946 = vmatpush2.msra.mxu0 0.0
  %1947 = vmatprep.mubr.f32.mxu0 0.0
  %1948 = vmatmul.mubr.f32.gmra.mxu0 %v1881
  %v1949 = vpop.f32.mrf.mxu0
  %v1950 = vadd.f32 %v1877, %v1949
  %v1951 = vpop.f32.mrf.mxu0
  %1952 = vdwg.mxu0
  %v1953 = vadd.f32 %v1950, %v957
  %v1954 = vxor.u32 %v1953, 2147483648
  %v1955 = vmul.f32 %v1954, 1.442695
  %v1956 = vpow.pop %v1955
  %v1957 = vadd.f32 %v1956, 1.0
  %v1958 = vrcp.pop %v1957
  %v1959 = vmul.f32 1.0, %v1958
  %v1960 = vtanh.pop %v1953
  %v1961 = vmul.f32 %v1959, %v1501
  %1963 = vrot.lane.b32.xlu0 %v1960, 64
  %v1964 = vpop.permute.xlu0 %1963
  %v1966 = vmul.f32 %v1959, %v1964
  %1968 = vrot.lane.b32.xlu0 %v1966, 32
  %v1969 = vpop.permute.xlu0 %1968
  %v1971 = vadd.f32 %v1961, %v1969
  %v1972 = vtanh.pop %v1971
  %1974 = vrot.lane.b32.xlu0 %v1972, 64
  %v1975 = vpop.permute.xlu0 %1974
  %v1977 = vmul.f32 %v1959, %v1975
  %1979 = vrot.lane.b32.xlu0 %v1977, 32
  %v1980 = vpop.permute.xlu0 %1979
  %v1981 = vsel %vm104, %v1980, 0
  %1983 = vmatprep.subr.mxu0 0.0
  %1984 = vmatpush1.xpose.msra.mxu0 %v1035
  %1985 = vmatprep.subr.mxu0 0.0
  %1986 = vmatpush1.xpose.msra.mxu0 %v1032
  %1987 = vmatprep.subr.mxu0 0.0
  %1988 = vmatpush1.xpose.msra.mxu0 %v1029
  %1989 = vmatprep.subr.mxu0 0.0
  %1990 = vmatpush1.xpose.msra.mxu0 %v1026
  %1991 = vmatprep.subr.mxu0 0.0
  %1992 = vmatpush1.xpose.msra.mxu0 %v1023
  %1993 = vmatprep.subr.mxu0 0.0
  %1994 = vmatpush1.xpose.msra.mxu0 %v1020
  %1995 = vmatprep.subr.mxu0 0.0
  %1996 = vmatpush1.xpose.msra.mxu0 %v1017
  %1997 = vmatprep.subr.mxu0 0.0
  %1998 = vmatpush1.xpose.msra.mxu0 %v1014
  %1999 = vmatprep.subr.mxu0 0.0
  %2000 = vmatpush1.xpose.msra.mxu0 %v1011
  %2001 = vmatprep.subr.mxu0 0.0
  %2002 = vmatpush1.xpose.msra.mxu0 %v1008
  %2003 = vmatprep.subr.mxu0 0.0
  %2004 = vmatpush1.xpose.msra.mxu0 %v1005
  %2005 = vmatprep.subr.mxu0 0.0
  %2006 = vmatpush1.xpose.msra.mxu0 %v1002
  %2007 = vmatprep.subr.mxu0 0.0
  %2008 = vmatpush1.xpose.msra.mxu0 %v999
  %2009 = vmatprep.subr.mxu0 0.0
  %2010 = vmatpush1.xpose.msra.mxu0 %v996
  %2011 = vmatprep.subr.mxu0 0.0
  %2012 = vmatpush1.xpose.msra.mxu0 %v993
  %2013 = vmatprep.subr.mxu0 0.0
  %2014 = vmatpush1.xpose.msra.mxu0 %v990
  %2015 = vmatprep.subr.mxu0 0.0
  %2016 = vmatpush2.xpose.msra.mxu0 0.0
  %2017 = vmatprep.subr.mxu0 0.0
  %2018 = vmatpush2.xpose.msra.mxu0 0.0
  %2019 = vmatprep.subr.mxu0 0.0
  %2020 = vmatpush2.xpose.msra.mxu0 0.0
  %2021 = vmatprep.subr.mxu0 0.0
  %2022 = vmatpush2.xpose.msra.mxu0 0.0
  %2023 = vmatprep.subr.mxu0 0.0
  %2024 = vmatpush2.xpose.msra.mxu0 0.0
  %2025 = vmatprep.subr.mxu0 0.0
  %2026 = vmatpush2.xpose.msra.mxu0 0.0
  %2027 = vmatprep.subr.mxu0 0.0
  %2028 = vmatpush2.xpose.msra.mxu0 0.0
  %2029 = vmatprep.subr.mxu0 0.0
  %2030 = vmatpush2.xpose.msra.mxu0 0.0
  %2031 = vmatprep.subr.mxu0 0.0
  %2032 = vmatpush2.xpose.msra.mxu0 0.0
  %2033 = vmatprep.subr.mxu0 0.0
  %2034 = vmatpush2.xpose.msra.mxu0 0.0
  %2035 = vmatprep.subr.mxu0 0.0
  %2036 = vmatpush2.xpose.msra.mxu0 0.0
  %2037 = vmatprep.subr.mxu0 0.0
  %2038 = vmatpush2.xpose.msra.mxu0 0.0
  %2039 = vmatprep.subr.mxu0 0.0
  %2040 = vmatpush2.xpose.msra.mxu0 0.0
  %2041 = vmatprep.subr.mxu0 0.0
  %2042 = vmatpush2.xpose.msra.mxu0 0.0
  %2043 = vmatprep.subr.mxu0 0.0
  %2044 = vmatpush2.xpose.msra.mxu0 0.0
  %2045 = vmatprep.subr.mxu0 0.0
  %2046 = vmatpush2.xpose.msra.mxu0 0.0
  %2047 = vmatprep.mubr.f32.mxu0 0.0
  %2048 = vmatmul.mubr.f32.gmra.mxu0 %v1981
  %v2049 = vpop.f32.mrf.mxu0
  %v2050 = vadd.f32 %v805, %v2049
  %v2051 = vpop.f32.mrf.mxu0
  %2052 = vdwg.mxu0
  %2053 = vmax.xlane.f32.xlu0 %v2050
  %v2054 = vpop.xlane.xlu0 %2053
  %v2055 = vsub.f32 %v2050, %v2054
  %v2056 = vmul.f32 %v2055, 1.442695
  %v2057 = vpow.pop %v2056
  %2058 = vadd.xlane.f32.xlu0 %v2057
  %v2059 = vpop.xlane.xlu0 %2058
  %v2060 = vrcp.pop %v2059
  %v2061 = vmul.f32 %v2057, %v2060
  %2062 = vmatprep.subr.mxu0 0.0
  %2063 = vmatpush1.msra.mxu0 %v313
  %2064 = vmatprep.subr.mxu0 0.0
  %2065 = vmatpush1.msra.mxu0 %v312
  %2066 = vmatprep.subr.mxu0 0.0
  %2067 = vmatpush1.msra.mxu0 %v311
  %2068 = vmatprep.subr.mxu0 0.0
  %2069 = vmatpush1.msra.mxu0 %v310
  %2070 = vmatprep.subr.mxu0 0.0
  %2071 = vmatpush1.msra.mxu0 %v309
  %2072 = vmatprep.subr.mxu0 0.0
  %2073 = vmatpush1.msra.mxu0 %v308
  %2074 = vmatprep.subr.mxu0 0.0
  %2075 = vmatpush1.msra.mxu0 %v307
  %2076 = vmatprep.subr.mxu0 0.0
  %2077 = vmatpush1.msra.mxu0 %v306
  %2078 = vmatprep.subr.mxu0 0.0
  %2079 = vmatpush1.msra.mxu0 %v305
  %2080 = vmatprep.subr.mxu0 0.0
  %2081 = vmatpush1.msra.mxu0 %v304
  %2082 = vmatprep.subr.mxu0 0.0
  %2083 = vmatpush1.msra.mxu0 %v303
  %2084 = vmatprep.subr.mxu0 0.0
  %2085 = vmatpush1.msra.mxu0 %v302
  %2086 = vmatprep.subr.mxu0 0.0
  %2087 = vmatpush1.msra.mxu0 %v301
  %2088 = vmatprep.subr.mxu0 0.0
  %2089 = vmatpush1.msra.mxu0 %v300
  %2090 = vmatprep.subr.mxu0 0.0
  %2091 = vmatpush1.msra.mxu0 %v299
  %2092 = vmatprep.subr.mxu0 0.0
  %2093 = vmatpush1.msra.mxu0 %v298
  %2094 = vmatprep.subr.mxu0 0.0
  %2095 = vmatpush2.msra.mxu0 0.0
  %2096 = vmatprep.subr.mxu0 0.0
  %2097 = vmatpush2.msra.mxu0 0.0
  %2098 = vmatprep.subr.mxu0 0.0
  %2099 = vmatpush2.msra.mxu0 0.0
  %2100 = vmatprep.subr.mxu0 0.0
  %2101 = vmatpush2.msra.mxu0 0.0
  %2102 = vmatprep.subr.mxu0 0.0
  %2103 = vmatpush2.msra.mxu0 0.0
  %2104 = vmatprep.subr.mxu0 0.0
  %2105 = vmatpush2.msra.mxu0 0.0
  %2106 = vmatprep.subr.mxu0 0.0
  %2107 = vmatpush2.msra.mxu0 0.0
  %2108 = vmatprep.subr.mxu0 0.0
  %2109 = vmatpush2.msra.mxu0 0.0
  %2110 = vmatprep.subr.mxu0 0.0
  %2111 = vmatpush2.msra.mxu0 0.0
  %2112 = vmatprep.subr.mxu0 0.0
  %2113 = vmatpush2.msra.mxu0 0.0
  %2114 = vmatprep.subr.mxu0 0.0
  %2115 = vmatpush2.msra.mxu0 0.0
  %2116 = vmatprep.subr.mxu0 0.0
  %2117 = vmatpush2.msra.mxu0 0.0
  %2118 = vmatprep.subr.mxu0 0.0
  %2119 = vmatpush2.msra.mxu0 0.0
  %2120 = vmatprep.subr.mxu0 0.0
  %2121 = vmatpush2.msra.mxu0 0.0
  %2122 = vmatprep.subr.mxu0 0.0
  %2123 = vmatpush2.msra.mxu0 0.0
  %2124 = vmatprep.subr.mxu0 0.0
  %2125 = vmatpush2.msra.mxu0 0.0
  %2126 = vmatprep.mubr.f32.mxu0 0.0
  %2127 = vmatmul.mubr.f32.gmra.mxu0 %v2061
  %v2128 = vpop.f32.mrf.mxu0
  %v2129 = vadd.f32 0.0, %v2128
  %v2130 = vpop.f32.mrf.mxu0
  %2131 = vdwg.mxu0
  %v2133 = vsel %vm104, %v2129, 0
  %2135 = vmatprep.subr.mxu0 0.0
  %2136 = vmatpush1.msra.mxu0 0.0
  %2137 = vmatprep.subr.mxu0 0.0
  %2138 = vmatpush1.msra.mxu0 0.0
  %2139 = vmatprep.subr.mxu0 0.0
  %2140 = vmatpush1.msra.mxu0 0.0
  %2141 = vmatprep.subr.mxu0 0.0
  %2142 = vmatpush1.msra.mxu0 0.0
  %2143 = vmatprep.subr.mxu0 0.0
  %2144 = vmatpush1.msra.mxu0 0.0
  %2145 = vmatprep.subr.mxu0 0.0
  %2146 = vmatpush1.msra.mxu0 0.0
  %2147 = vmatprep.subr.mxu0 0.0
  %2148 = vmatpush1.msra.mxu0 0.0
  %2149 = vmatprep.subr.mxu0 0.0
  %2150 = vmatpush1.msra.mxu0 0.0
  %2151 = vmatprep.subr.mxu0 0.0
  %2152 = vmatpush1.msra.mxu0 0.0
  %2153 = vmatprep.subr.mxu0 0.0
  %2154 = vmatpush1.msra.mxu0 0.0
  %2155 = vmatprep.subr.mxu0 0.0
  %2156 = vmatpush1.msra.mxu0 0.0
  %2157 = vmatprep.subr.mxu0 0.0
  %2158 = vmatpush1.msra.mxu0 0.0
  %2159 = vmatprep.subr.mxu0 0.0
  %2160 = vmatpush1.msra.mxu0 %v803
  %2161 = vmatprep.subr.mxu0 0.0
  %2162 = vmatpush1.msra.mxu0 %v802
  %2163 = vmatprep.subr.mxu0 0.0
  %2164 = vmatpush1.msra.mxu0 %v801
  %2165 = vmatprep.subr.mxu0 0.0
  %2166 = vmatpush1.msra.mxu0 %v800
  %2167 = vmatprep.subr.mxu0 0.0
  %2168 = vmatpush2.msra.mxu0 0.0
  %2169 = vmatprep.subr.mxu0 0.0
  %2170 = vmatpush2.msra.mxu0 0.0
  %2171 = vmatprep.subr.mxu0 0.0
  %2172 = vmatpush2.msra.mxu0 0.0
  %2173 = vmatprep.subr.mxu0 0.0
  %2174 = vmatpush2.msra.mxu0 0.0
  %2175 = vmatprep.subr.mxu0 0.0
  %2176 = vmatpush2.msra.mxu0 0.0
  %2177 = vmatprep.subr.mxu0 0.0
  %2178 = vmatpush2.msra.mxu0 0.0
  %2179 = vmatprep.subr.mxu0 0.0
  %2180 = vmatpush2.msra.mxu0 0.0
  %2181 = vmatprep.subr.mxu0 0.0
  %2182 = vmatpush2.msra.mxu0 0.0
  %2183 = vmatprep.subr.mxu0 0.0
  %2184 = vmatpush2.msra.mxu0 0.0
  %2185 = vmatprep.subr.mxu0 0.0
  %2186 = vmatpush2.msra.mxu0 0.0
  %2187 = vmatprep.subr.mxu0 0.0
  %2188 = vmatpush2.msra.mxu0 0.0
  %2189 = vmatprep.subr.mxu0 0.0
  %2190 = vmatpush2.msra.mxu0 0.0
  %2191 = vmatprep.subr.mxu0 0.0
  %2192 = vmatpush2.msra.mxu0 0.0
  %2193 = vmatprep.subr.mxu0 0.0
  %2194 = vmatpush2.msra.mxu0 0.0
  %2195 = vmatprep.subr.mxu0 0.0
  %2196 = vmatpush2.msra.mxu0 0.0
  %2197 = vmatprep.subr.mxu0 0.0
  %2198 = vmatpush2.msra.mxu0 0.0
  %2199 = vmatprep.mubr.f32.mxu0 0.0
  %2200 = vmatmul.mubr.f32.gmra.mxu0 %v2133
  %v2201 = vpop.f32.mrf.mxu0
  %v2202 = vadd.f32 0.0, %v2201
  %v2203 = vpop.f32.mrf.mxu0
  %2204 = vdwg.mxu0
  %2205 = vmatprep.subr.mxu0 0.0
  %2206 = vmatpush1.msra.mxu0 0.0
  %2207 = vmatprep.subr.mxu0 0.0
  %2208 = vmatpush1.msra.mxu0 0.0
  %2209 = vmatprep.subr.mxu0 0.0
  %2210 = vmatpush1.msra.mxu0 0.0
  %2211 = vmatprep.subr.mxu0 0.0
  %2212 = vmatpush1.msra.mxu0 0.0
  %2213 = vmatprep.subr.mxu0 0.0
  %2214 = vmatpush1.msra.mxu0 0.0
  %2215 = vmatprep.subr.mxu0 0.0
  %2216 = vmatpush1.msra.mxu0 0.0
  %2217 = vmatprep.subr.mxu0 0.0
  %2218 = vmatpush1.msra.mxu0 0.0
  %2219 = vmatprep.subr.mxu0 0.0
  %2220 = vmatpush1.msra.mxu0 0.0
  %2221 = vmatprep.subr.mxu0 0.0
  %2222 = vmatpush1.msra.mxu0 0.0
  %2223 = vmatprep.subr.mxu0 0.0
  %2224 = vmatpush1.msra.mxu0 0.0
  %2225 = vmatprep.subr.mxu0 0.0
  %2226 = vmatpush1.msra.mxu0 0.0
  %2227 = vmatprep.subr.mxu0 0.0
  %2228 = vmatpush1.msra.mxu0 0.0
  %2229 = vmatprep.subr.mxu0 0.0
  %2230 = vmatpush1.msra.mxu0 %v799
  %2231 = vmatprep.subr.mxu0 0.0
  %2232 = vmatpush1.msra.mxu0 %v798
  %2233 = vmatprep.subr.mxu0 0.0
  %2234 = vmatpush1.msra.mxu0 %v797
  %2235 = vmatprep.subr.mxu0 0.0
  %2236 = vmatpush1.msra.mxu0 %v796
  %2237 = vmatprep.subr.mxu0 0.0
  %2238 = vmatpush2.msra.mxu0 0.0
  %2239 = vmatprep.subr.mxu0 0.0
  %2240 = vmatpush2.msra.mxu0 0.0
  %2241 = vmatprep.subr.mxu0 0.0
  %2242 = vmatpush2.msra.mxu0 0.0
  %2243 = vmatprep.subr.mxu0 0.0
  %2244 = vmatpush2.msra.mxu0 0.0
  %2245 = vmatprep.subr.mxu0 0.0
  %2246 = vmatpush2.msra.mxu0 0.0
  %2247 = vmatprep.subr.mxu0 0.0
  %2248 = vmatpush2.msra.mxu0 0.0
  %2249 = vmatprep.subr.mxu0 0.0
  %2250 = vmatpush2.msra.mxu0 0.0
  %2251 = vmatprep.subr.mxu0 0.0
  %2252 = vmatpush2.msra.mxu0 0.0
  %2253 = vmatprep.subr.mxu0 0.0
  %2254 = vmatpush2.msra.mxu0 0.0
  %2255 = vmatprep.subr.mxu0 0.0
  %2256 = vmatpush2.msra.mxu0 0.0
  %2257 = vmatprep.subr.mxu0 0.0
  %2258 = vmatpush2.msra.mxu0 0.0
  %2259 = vmatprep.subr.mxu0 0.0
  %2260 = vmatpush2.msra.mxu0 0.0
  %2261 = vmatprep.subr.mxu0 0.0
  %2262 = vmatpush2.msra.mxu0 0.0
  %2263 = vmatprep.subr.mxu0 0.0
  %2264 = vmatpush2.msra.mxu0 0.0
  %2265 = vmatprep.subr.mxu0 0.0
  %2266 = vmatpush2.msra.mxu0 0.0
  %2267 = vmatprep.subr.mxu0 0.0
  %2268 = vmatpush2.msra.mxu0 0.0
  %2269 = vmatprep.mubr.f32.mxu0 0.0
  %2270 = vmatmul.mubr.f32.gmra.mxu0 %v1981
  %v2271 = vpop.f32.mrf.mxu0
  %v2272 = vadd.f32 %v2202, %v2271
  %v2273 = vpop.f32.mrf.mxu0
  %2274 = vdwg.mxu0
  %v2275 = vadd.f32 %v2272, %v1333
  %v2276 = vtanh.pop %v2275
  %2277 = vst.msk [vmem:[#allocation2 + $0x10] sm:$0xff] %vm104, %v2276
  %s2278 = scalar_lea.vmem %s3, 24
  %v2279 = vld [vmem:[%s2278] sm:$0xff]
  %2280 = vmatprep.subr.mxu0 0.0
  %2281 = vmatpush1.msra.mxu0 0.0
  %2282 = vmatprep.subr.mxu0 0.0
  %2283 = vmatpush1.msra.mxu0 0.0
  %2284 = vmatprep.subr.mxu0 0.0
  %2285 = vmatpush1.msra.mxu0 0.0
  %2286 = vmatprep.subr.mxu0 0.0
  %2287 = vmatpush1.msra.mxu0 0.0
  %2288 = vmatprep.subr.mxu0 0.0
  %2289 = vmatpush1.msra.mxu0 0.0
  %2290 = vmatprep.subr.mxu0 0.0
  %2291 = vmatpush1.msra.mxu0 0.0
  %2292 = vmatprep.subr.mxu0 0.0
  %2293 = vmatpush1.msra.mxu0 0.0
  %2294 = vmatprep.subr.mxu0 0.0
  %2295 = vmatpush1.msra.mxu0 0.0
  %2296 = vmatprep.subr.mxu0 0.0
  %2297 = vmatpush1.msra.mxu0 0.0
  %2298 = vmatprep.subr.mxu0 0.0
  %2299 = vmatpush1.msra.mxu0 0.0
  %2300 = vmatprep.subr.mxu0 0.0
  %2301 = vmatpush1.msra.mxu0 0.0
  %2302 = vmatprep.subr.mxu0 0.0
  %2303 = vmatpush1.msra.mxu0 0.0
  %2304 = vmatprep.subr.mxu0 0.0
  %2305 = vmatpush1.msra.mxu0 %v794
  %2306 = vmatprep.subr.mxu0 0.0
  %2307 = vmatpush1.msra.mxu0 %v793
  %2308 = vmatprep.subr.mxu0 0.0
  %2309 = vmatpush1.msra.mxu0 %v792
  %2310 = vmatprep.subr.mxu0 0.0
  %2311 = vmatpush1.msra.mxu0 %v791
  %2312 = vmatprep.subr.mxu0 0.0
  %2313 = vmatpush2.msra.mxu0 0.0
  %2314 = vmatprep.subr.mxu0 0.0
  %2315 = vmatpush2.msra.mxu0 0.0
  %2316 = vmatprep.subr.mxu0 0.0
  %2317 = vmatpush2.msra.mxu0 0.0
  %2318 = vmatprep.subr.mxu0 0.0
  %2319 = vmatpush2.msra.mxu0 0.0
  %2320 = vmatprep.subr.mxu0 0.0
  %2321 = vmatpush2.msra.mxu0 0.0
  %2322 = vmatprep.subr.mxu0 0.0
  %2323 = vmatpush2.msra.mxu0 0.0
  %2324 = vmatprep.subr.mxu0 0.0
  %2325 = vmatpush2.msra.mxu0 0.0
  %2326 = vmatprep.subr.mxu0 0.0
  %2327 = vmatpush2.msra.mxu0 0.0
  %2328 = vmatprep.subr.mxu0 0.0
  %2329 = vmatpush2.msra.mxu0 0.0
  %2330 = vmatprep.subr.mxu0 0.0
  %2331 = vmatpush2.msra.mxu0 0.0
  %2332 = vmatprep.subr.mxu0 0.0
  %2333 = vmatpush2.msra.mxu0 0.0
  %2334 = vmatprep.subr.mxu0 0.0
  %2335 = vmatpush2.msra.mxu0 0.0
  %2336 = vmatprep.subr.mxu0 0.0
  %2337 = vmatpush2.msra.mxu0 0.0
  %2338 = vmatprep.subr.mxu0 0.0
  %2339 = vmatpush2.msra.mxu0 0.0
  %2340 = vmatprep.subr.mxu0 0.0
  %2341 = vmatpush2.msra.mxu0 0.0
  %2342 = vmatprep.subr.mxu0 0.0
  %2343 = vmatpush2.msra.mxu0 0.0
  %2344 = vmatprep.mubr.f32.mxu0 0.0
  %2345 = vmatmul.mubr.f32.gmra.mxu0 %v1981
  %v2346 = vpop.f32.mrf.mxu0
  %v2347 = vadd.f32 0.0, %v2346
  %v2348 = vpop.f32.mrf.mxu0
  %2349 = vdwg.mxu0
  %v2351 = vsel %vm104, %v2279, 0
  %2353 = vmatprep.subr.mxu0 0.0
  %2354 = vmatpush1.msra.mxu0 0.0
  %2355 = vmatprep.subr.mxu0 0.0
  %2356 = vmatpush1.msra.mxu0 0.0
  %2357 = vmatprep.subr.mxu0 0.0
  %2358 = vmatpush1.msra.mxu0 0.0
  %2359 = vmatprep.subr.mxu0 0.0
  %2360 = vmatpush1.msra.mxu0 0.0
  %2361 = vmatprep.subr.mxu0 0.0
  %2362 = vmatpush1.msra.mxu0 0.0
  %2363 = vmatprep.subr.mxu0 0.0
  %2364 = vmatpush1.msra.mxu0 0.0
  %2365 = vmatprep.subr.mxu0 0.0
  %2366 = vmatpush1.msra.mxu0 0.0
  %2367 = vmatprep.subr.mxu0 0.0
  %2368 = vmatpush1.msra.mxu0 0.0
  %2369 = vmatprep.subr.mxu0 0.0
  %2370 = vmatpush1.msra.mxu0 0.0
  %2371 = vmatprep.subr.mxu0 0.0
  %2372 = vmatpush1.msra.mxu0 0.0
  %2373 = vmatprep.subr.mxu0 0.0
  %2374 = vmatpush1.msra.mxu0 0.0
  %2375 = vmatprep.subr.mxu0 0.0
  %2376 = vmatpush1.msra.mxu0 0.0
  %2377 = vmatprep.subr.mxu0 0.0
  %2378 = vmatpush1.msra.mxu0 %v790
  %2379 = vmatprep.subr.mxu0 0.0
  %2380 = vmatpush1.msra.mxu0 %v789
  %2381 = vmatprep.subr.mxu0 0.0
  %2382 = vmatpush1.msra.mxu0 %v788
  %2383 = vmatprep.subr.mxu0 0.0
  %2384 = vmatpush1.msra.mxu0 %v787
  %2385 = vmatprep.subr.mxu0 0.0
  %2386 = vmatpush2.msra.mxu0 0.0
  %2387 = vmatprep.subr.mxu0 0.0
  %2388 = vmatpush2.msra.mxu0 0.0
  %2389 = vmatprep.subr.mxu0 0.0
  %2390 = vmatpush2.msra.mxu0 0.0
  %2391 = vmatprep.subr.mxu0 0.0
  %2392 = vmatpush2.msra.mxu0 0.0
  %2393 = vmatprep.subr.mxu0 0.0
  %2394 = vmatpush2.msra.mxu0 0.0
  %2395 = vmatprep.subr.mxu0 0.0
  %2396 = vmatpush2.msra.mxu0 0.0
  %2397 = vmatprep.subr.mxu0 0.0
  %2398 = vmatpush2.msra.mxu0 0.0
  %2399 = vmatprep.subr.mxu0 0.0
  %2400 = vmatpush2.msra.mxu0 0.0
  %2401 = vmatprep.subr.mxu0 0.0
  %2402 = vmatpush2.msra.mxu0 0.0
  %2403 = vmatprep.subr.mxu0 0.0
  %2404 = vmatpush2.msra.mxu0 0.0
  %2405 = vmatprep.subr.mxu0 0.0
  %2406 = vmatpush2.msra.mxu0 0.0
  %2407 = vmatprep.subr.mxu0 0.0
  %2408 = vmatpush2.msra.mxu0 0.0
  %2409 = vmatprep.subr.mxu0 0.0
  %2410 = vmatpush2.msra.mxu0 0.0
  %2411 = vmatprep.subr.mxu0 0.0
  %2412 = vmatpush2.msra.mxu0 0.0
  %2413 = vmatprep.subr.mxu0 0.0
  %2414 = vmatpush2.msra.mxu0 0.0
  %2415 = vmatprep.subr.mxu0 0.0
  %2416 = vmatpush2.msra.mxu0 0.0
  %2417 = vmatprep.mubr.f32.mxu0 0.0
  %2418 = vmatmul.mubr.f32.gmra.mxu0 %v2351
  %v2419 = vpop.f32.mrf.mxu0
  %v2420 = vadd.f32 %v2347, %v2419
  %v2421 = vpop.f32.mrf.mxu0
  %2422 = vdwg.mxu0
  %v2423 = vadd.f32 %v2420, %v957
  %v2424 = vxor.u32 %v2423, 2147483648
  %v2425 = vmul.f32 %v2424, 1.442695
  %v2426 = vpow.pop %v2425
  %v2427 = vadd.f32 %v2426, 1.0
  %v2428 = vrcp.pop %v2427
  %v2429 = vmul.f32 1.0, %v2428
  %v2430 = vtanh.pop %v2423
  %v2431 = vmul.f32 %v2429, %v1971
  %2433 = vrot.lane.b32.xlu0 %v2430, 64
  %v2434 = vpop.permute.xlu0 %2433
  %v2436 = vmul.f32 %v2429, %v2434
  %2438 = vrot.lane.b32.xlu0 %v2436, 32
  %v2439 = vpop.permute.xlu0 %2438
  %v2441 = vadd.f32 %v2431, %v2439
  %v2442 = vtanh.pop %v2441
  %2444 = vrot.lane.b32.xlu0 %v2442, 64
  %v2445 = vpop.permute.xlu0 %2444
  %v2447 = vmul.f32 %v2429, %v2445
  %2449 = vrot.lane.b32.xlu0 %v2447, 32
  %v2450 = vpop.permute.xlu0 %2449
  %v2451 = vsel %vm104, %v2450, 0
  %2453 = vmatprep.subr.mxu0 0.0
  %2454 = vmatpush1.xpose.msra.mxu0 %v1035
  %2455 = vmatprep.subr.mxu0 0.0
  %2456 = vmatpush1.xpose.msra.mxu0 %v1032
  %2457 = vmatprep.subr.mxu0 0.0
  %2458 = vmatpush1.xpose.msra.mxu0 %v1029
  %2459 = vmatprep.subr.mxu0 0.0
  %2460 = vmatpush1.xpose.msra.mxu0 %v1026
  %2461 = vmatprep.subr.mxu0 0.0
  %2462 = vmatpush1.xpose.msra.mxu0 %v1023
  %2463 = vmatprep.subr.mxu0 0.0
  %2464 = vmatpush1.xpose.msra.mxu0 %v1020
  %2465 = vmatprep.subr.mxu0 0.0
  %2466 = vmatpush1.xpose.msra.mxu0 %v1017
  %2467 = vmatprep.subr.mxu0 0.0
  %2468 = vmatpush1.xpose.msra.mxu0 %v1014
  %2469 = vmatprep.subr.mxu0 0.0
  %2470 = vmatpush1.xpose.msra.mxu0 %v1011
  %2471 = vmatprep.subr.mxu0 0.0
  %2472 = vmatpush1.xpose.msra.mxu0 %v1008
  %2473 = vmatprep.subr.mxu0 0.0
  %2474 = vmatpush1.xpose.msra.mxu0 %v1005
  %2475 = vmatprep.subr.mxu0 0.0
  %2476 = vmatpush1.xpose.msra.mxu0 %v1002
  %2477 = vmatprep.subr.mxu0 0.0
  %2478 = vmatpush1.xpose.msra.mxu0 %v999
  %2479 = vmatprep.subr.mxu0 0.0
  %2480 = vmatpush1.xpose.msra.mxu0 %v996
  %2481 = vmatprep.subr.mxu0 0.0
  %2482 = vmatpush1.xpose.msra.mxu0 %v993
  %2483 = vmatprep.subr.mxu0 0.0
  %2484 = vmatpush1.xpose.msra.mxu0 %v990
  %2485 = vmatprep.subr.mxu0 0.0
  %2486 = vmatpush2.xpose.msra.mxu0 0.0
  %2487 = vmatprep.subr.mxu0 0.0
  %2488 = vmatpush2.xpose.msra.mxu0 0.0
  %2489 = vmatprep.subr.mxu0 0.0
  %2490 = vmatpush2.xpose.msra.mxu0 0.0
  %2491 = vmatprep.subr.mxu0 0.0
  %2492 = vmatpush2.xpose.msra.mxu0 0.0
  %2493 = vmatprep.subr.mxu0 0.0
  %2494 = vmatpush2.xpose.msra.mxu0 0.0
  %2495 = vmatprep.subr.mxu0 0.0
  %2496 = vmatpush2.xpose.msra.mxu0 0.0
  %2497 = vmatprep.subr.mxu0 0.0
  %2498 = vmatpush2.xpose.msra.mxu0 0.0
  %2499 = vmatprep.subr.mxu0 0.0
  %2500 = vmatpush2.xpose.msra.mxu0 0.0
  %2501 = vmatprep.subr.mxu0 0.0
  %2502 = vmatpush2.xpose.msra.mxu0 0.0
  %2503 = vmatprep.subr.mxu0 0.0
  %2504 = vmatpush2.xpose.msra.mxu0 0.0
  %2505 = vmatprep.subr.mxu0 0.0
  %2506 = vmatpush2.xpose.msra.mxu0 0.0
  %2507 = vmatprep.subr.mxu0 0.0
  %2508 = vmatpush2.xpose.msra.mxu0 0.0
  %2509 = vmatprep.subr.mxu0 0.0
  %2510 = vmatpush2.xpose.msra.mxu0 0.0
  %2511 = vmatprep.subr.mxu0 0.0
  %2512 = vmatpush2.xpose.msra.mxu0 0.0
  %2513 = vmatprep.subr.mxu0 0.0
  %2514 = vmatpush2.xpose.msra.mxu0 0.0
  %2515 = vmatprep.subr.mxu0 0.0
  %2516 = vmatpush2.xpose.msra.mxu0 0.0
  %2517 = vmatprep.mubr.f32.mxu0 0.0
  %2518 = vmatmul.mubr.f32.gmra.mxu0 %v2451
  %v2519 = vpop.f32.mrf.mxu0
  %v2520 = vadd.f32 %v805, %v2519
  %v2521 = vpop.f32.mrf.mxu0
  %2522 = vdwg.mxu0
  %2523 = vmax.xlane.f32.xlu0 %v2520
  %v2524 = vpop.xlane.xlu0 %2523
  %v2525 = vsub.f32 %v2520, %v2524
  %v2526 = vmul.f32 %v2525, 1.442695
  %v2527 = vpow.pop %v2526
  %2528 = vadd.xlane.f32.xlu0 %v2527
  %v2529 = vpop.xlane.xlu0 %2528
  %v2530 = vrcp.pop %v2529
  %v2531 = vmul.f32 %v2527, %v2530
  %2532 = vmatprep.subr.mxu0 0.0
  %2533 = vmatpush1.msra.mxu0 %v313
  %2534 = vmatprep.subr.mxu0 0.0
  %2535 = vmatpush1.msra.mxu0 %v312
  %2536 = vmatprep.subr.mxu0 0.0
  %2537 = vmatpush1.msra.mxu0 %v311
  %2538 = vmatprep.subr.mxu0 0.0
  %2539 = vmatpush1.msra.mxu0 %v310
  %2540 = vmatprep.subr.mxu0 0.0
  %2541 = vmatpush1.msra.mxu0 %v309
  %2542 = vmatprep.subr.mxu0 0.0
  %2543 = vmatpush1.msra.mxu0 %v308
  %2544 = vmatprep.subr.mxu0 0.0
  %2545 = vmatpush1.msra.mxu0 %v307
  %2546 = vmatprep.subr.mxu0 0.0
  %2547 = vmatpush1.msra.mxu0 %v306
  %2548 = vmatprep.subr.mxu0 0.0
  %2549 = vmatpush1.msra.mxu0 %v305
  %2550 = vmatprep.subr.mxu0 0.0
  %2551 = vmatpush1.msra.mxu0 %v304
  %2552 = vmatprep.subr.mxu0 0.0
  %2553 = vmatpush1.msra.mxu0 %v303
  %2554 = vmatprep.subr.mxu0 0.0
  %2555 = vmatpush1.msra.mxu0 %v302
  %2556 = vmatprep.subr.mxu0 0.0
  %2557 = vmatpush1.msra.mxu0 %v301
  %2558 = vmatprep.subr.mxu0 0.0
  %2559 = vmatpush1.msra.mxu0 %v300
  %2560 = vmatprep.subr.mxu0 0.0
  %2561 = vmatpush1.msra.mxu0 %v299
  %2562 = vmatprep.subr.mxu0 0.0
  %2563 = vmatpush1.msra.mxu0 %v298
  %2564 = vmatprep.subr.mxu0 0.0
  %2565 = vmatpush2.msra.mxu0 0.0
  %2566 = vmatprep.subr.mxu0 0.0
  %2567 = vmatpush2.msra.mxu0 0.0
  %2568 = vmatprep.subr.mxu0 0.0
  %2569 = vmatpush2.msra.mxu0 0.0
  %2570 = vmatprep.subr.mxu0 0.0
  %2571 = vmatpush2.msra.mxu0 0.0
  %2572 = vmatprep.subr.mxu0 0.0
  %2573 = vmatpush2.msra.mxu0 0.0
  %2574 = vmatprep.subr.mxu0 0.0
  %2575 = vmatpush2.msra.mxu0 0.0
  %2576 = vmatprep.subr.mxu0 0.0
  %2577 = vmatpush2.msra.mxu0 0.0
  %2578 = vmatprep.subr.mxu0 0.0
  %2579 = vmatpush2.msra.mxu0 0.0
  %2580 = vmatprep.subr.mxu0 0.0
  %2581 = vmatpush2.msra.mxu0 0.0
  %2582 = vmatprep.subr.mxu0 0.0
  %2583 = vmatpush2.msra.mxu0 0.0
  %2584 = vmatprep.subr.mxu0 0.0
  %2585 = vmatpush2.msra.mxu0 0.0
  %2586 = vmatprep.subr.mxu0 0.0
  %2587 = vmatpush2.msra.mxu0 0.0
  %2588 = vmatprep.subr.mxu0 0.0
  %2589 = vmatpush2.msra.mxu0 0.0
  %2590 = vmatprep.subr.mxu0 0.0
  %2591 = vmatpush2.msra.mxu0 0.0
  %2592 = vmatprep.subr.mxu0 0.0
  %2593 = vmatpush2.msra.mxu0 0.0
  %2594 = vmatprep.subr.mxu0 0.0
  %2595 = vmatpush2.msra.mxu0 0.0
  %2596 = vmatprep.mubr.f32.mxu0 0.0
  %2597 = vmatmul.mubr.f32.gmra.mxu0 %v2531
  %v2598 = vpop.f32.mrf.mxu0
  %v2599 = vadd.f32 0.0, %v2598
  %v2600 = vpop.f32.mrf.mxu0
  %2601 = vdwg.mxu0
  %v2603 = vsel %vm104, %v2599, 0
  %2605 = vmatprep.subr.mxu0 0.0
  %2606 = vmatpush1.msra.mxu0 0.0
  %2607 = vmatprep.subr.mxu0 0.0
  %2608 = vmatpush1.msra.mxu0 0.0
  %2609 = vmatprep.subr.mxu0 0.0
  %2610 = vmatpush1.msra.mxu0 0.0
  %2611 = vmatprep.subr.mxu0 0.0
  %2612 = vmatpush1.msra.mxu0 0.0
  %2613 = vmatprep.subr.mxu0 0.0
  %2614 = vmatpush1.msra.mxu0 0.0
  %2615 = vmatprep.subr.mxu0 0.0
  %2616 = vmatpush1.msra.mxu0 0.0
  %2617 = vmatprep.subr.mxu0 0.0
  %2618 = vmatpush1.msra.mxu0 0.0
  %2619 = vmatprep.subr.mxu0 0.0
  %2620 = vmatpush1.msra.mxu0 0.0
  %2621 = vmatprep.subr.mxu0 0.0
  %2622 = vmatpush1.msra.mxu0 0.0
  %2623 = vmatprep.subr.mxu0 0.0
  %2624 = vmatpush1.msra.mxu0 0.0
  %2625 = vmatprep.subr.mxu0 0.0
  %2626 = vmatpush1.msra.mxu0 0.0
  %2627 = vmatprep.subr.mxu0 0.0
  %2628 = vmatpush1.msra.mxu0 0.0
  %2629 = vmatprep.subr.mxu0 0.0
  %2630 = vmatpush1.msra.mxu0 %v803
  %2631 = vmatprep.subr.mxu0 0.0
  %2632 = vmatpush1.msra.mxu0 %v802
  %2633 = vmatprep.subr.mxu0 0.0
  %2634 = vmatpush1.msra.mxu0 %v801
  %2635 = vmatprep.subr.mxu0 0.0
  %2636 = vmatpush1.msra.mxu0 %v800
  %2637 = vmatprep.subr.mxu0 0.0
  %2638 = vmatpush2.msra.mxu0 0.0
  %2639 = vmatprep.subr.mxu0 0.0
  %2640 = vmatpush2.msra.mxu0 0.0
  %2641 = vmatprep.subr.mxu0 0.0
  %2642 = vmatpush2.msra.mxu0 0.0
  %2643 = vmatprep.subr.mxu0 0.0
  %2644 = vmatpush2.msra.mxu0 0.0
  %2645 = vmatprep.subr.mxu0 0.0
  %2646 = vmatpush2.msra.mxu0 0.0
  %2647 = vmatprep.subr.mxu0 0.0
  %2648 = vmatpush2.msra.mxu0 0.0
  %2649 = vmatprep.subr.mxu0 0.0
  %2650 = vmatpush2.msra.mxu0 0.0
  %2651 = vmatprep.subr.mxu0 0.0
  %2652 = vmatpush2.msra.mxu0 0.0
  %2653 = vmatprep.subr.mxu0 0.0
  %2654 = vmatpush2.msra.mxu0 0.0
  %2655 = vmatprep.subr.mxu0 0.0
  %2656 = vmatpush2.msra.mxu0 0.0
  %2657 = vmatprep.subr.mxu0 0.0
  %2658 = vmatpush2.msra.mxu0 0.0
  %2659 = vmatprep.subr.mxu0 0.0
  %2660 = vmatpush2.msra.mxu0 0.0
  %2661 = vmatprep.subr.mxu0 0.0
  %2662 = vmatpush2.msra.mxu0 0.0
  %2663 = vmatprep.subr.mxu0 0.0
  %2664 = vmatpush2.msra.mxu0 0.0
  %2665 = vmatprep.subr.mxu0 0.0
  %2666 = vmatpush2.msra.mxu0 0.0
  %2667 = vmatprep.subr.mxu0 0.0
  %2668 = vmatpush2.msra.mxu0 0.0
  %2669 = vmatprep.mubr.f32.mxu0 0.0
  %2670 = vmatmul.mubr.f32.gmra.mxu0 %v2603
  %v2671 = vpop.f32.mrf.mxu0
  %v2672 = vadd.f32 0.0, %v2671
  %v2673 = vpop.f32.mrf.mxu0
  %2674 = vdwg.mxu0
  %2675 = vmatprep.subr.mxu0 0.0
  %2676 = vmatpush1.msra.mxu0 0.0
  %2677 = vmatprep.subr.mxu0 0.0
  %2678 = vmatpush1.msra.mxu0 0.0
  %2679 = vmatprep.subr.mxu0 0.0
  %2680 = vmatpush1.msra.mxu0 0.0
  %2681 = vmatprep.subr.mxu0 0.0
  %2682 = vmatpush1.msra.mxu0 0.0
  %2683 = vmatprep.subr.mxu0 0.0
  %2684 = vmatpush1.msra.mxu0 0.0
  %2685 = vmatprep.subr.mxu0 0.0
  %2686 = vmatpush1.msra.mxu0 0.0
  %2687 = vmatprep.subr.mxu0 0.0
  %2688 = vmatpush1.msra.mxu0 0.0
  %2689 = vmatprep.subr.mxu0 0.0
  %2690 = vmatpush1.msra.mxu0 0.0
  %2691 = vmatprep.subr.mxu0 0.0
  %2692 = vmatpush1.msra.mxu0 0.0
  %2693 = vmatprep.subr.mxu0 0.0
  %2694 = vmatpush1.msra.mxu0 0.0
  %2695 = vmatprep.subr.mxu0 0.0
  %2696 = vmatpush1.msra.mxu0 0.0
  %2697 = vmatprep.subr.mxu0 0.0
  %2698 = vmatpush1.msra.mxu0 0.0
  %2699 = vmatprep.subr.mxu0 0.0
  %2700 = vmatpush1.msra.mxu0 %v799
  %2701 = vmatprep.subr.mxu0 0.0
  %2702 = vmatpush1.msra.mxu0 %v798
  %2703 = vmatprep.subr.mxu0 0.0
  %2704 = vmatpush1.msra.mxu0 %v797
  %2705 = vmatprep.subr.mxu0 0.0
  %2706 = vmatpush1.msra.mxu0 %v796
  %2707 = vmatprep.subr.mxu0 0.0
  %2708 = vmatpush2.msra.mxu0 0.0
  %2709 = vmatprep.subr.mxu0 0.0
  %2710 = vmatpush2.msra.mxu0 0.0
  %2711 = vmatprep.subr.mxu0 0.0
  %2712 = vmatpush2.msra.mxu0 0.0
  %2713 = vmatprep.subr.mxu0 0.0
  %2714 = vmatpush2.msra.mxu0 0.0
  %2715 = vmatprep.subr.mxu0 0.0
  %2716 = vmatpush2.msra.mxu0 0.0
  %2717 = vmatprep.subr.mxu0 0.0
  %2718 = vmatpush2.msra.mxu0 0.0
  %2719 = vmatprep.subr.mxu0 0.0
  %2720 = vmatpush2.msra.mxu0 0.0
  %2721 = vmatprep.subr.mxu0 0.0
  %2722 = vmatpush2.msra.mxu0 0.0
  %2723 = vmatprep.subr.mxu0 0.0
  %2724 = vmatpush2.msra.mxu0 0.0
  %2725 = vmatprep.subr.mxu0 0.0
  %2726 = vmatpush2.msra.mxu0 0.0
  %2727 = vmatprep.subr.mxu0 0.0
  %2728 = vmatpush2.msra.mxu0 0.0
  %2729 = vmatprep.subr.mxu0 0.0
  %2730 = vmatpush2.msra.mxu0 0.0
  %2731 = vmatprep.subr.mxu0 0.0
  %2732 = vmatpush2.msra.mxu0 0.0
  %2733 = vmatprep.subr.mxu0 0.0
  %2734 = vmatpush2.msra.mxu0 0.0
  %2735 = vmatprep.subr.mxu0 0.0
  %2736 = vmatpush2.msra.mxu0 0.0
  %2737 = vmatprep.subr.mxu0 0.0
  %2738 = vmatpush2.msra.mxu0 0.0
  %2739 = vmatprep.mubr.f32.mxu0 0.0
  %2740 = vmatmul.mubr.f32.gmra.mxu0 %v2451
  %v2741 = vpop.f32.mrf.mxu0
  %v2742 = vadd.f32 %v2672, %v2741
  %v2743 = vpop.f32.mrf.mxu0
  %2744 = vdwg.mxu0
  %v2745 = vadd.f32 %v2742, %v1333
  %v2746 = vtanh.pop %v2745
  %2747 = vst.msk [vmem:[#allocation2 + $0x18] sm:$0xff] %vm104, %v2746
  %s2748 = scalar_lea.vmem %s3, 32
  %v2749 = vld [vmem:[%s2748] sm:$0xff]
  %2750 = vmatprep.subr.mxu0 0.0
  %2751 = vmatpush1.msra.mxu0 0.0
  %2752 = vmatprep.subr.mxu0 0.0
  %2753 = vmatpush1.msra.mxu0 0.0
  %2754 = vmatprep.subr.mxu0 0.0
  %2755 = vmatpush1.msra.mxu0 0.0
  %2756 = vmatprep.subr.mxu0 0.0
  %2757 = vmatpush1.msra.mxu0 0.0
  %2758 = vmatprep.subr.mxu0 0.0
  %2759 = vmatpush1.msra.mxu0 0.0
  %2760 = vmatprep.subr.mxu0 0.0
  %2761 = vmatpush1.msra.mxu0 0.0
  %2762 = vmatprep.subr.mxu0 0.0
  %2763 = vmatpush1.msra.mxu0 0.0
  %2764 = vmatprep.subr.mxu0 0.0
  %2765 = vmatpush1.msra.mxu0 0.0
  %2766 = vmatprep.subr.mxu0 0.0
  %2767 = vmatpush1.msra.mxu0 0.0
  %2768 = vmatprep.subr.mxu0 0.0
  %2769 = vmatpush1.msra.mxu0 0.0
  %2770 = vmatprep.subr.mxu0 0.0
  %2771 = vmatpush1.msra.mxu0 0.0
  %2772 = vmatprep.subr.mxu0 0.0
  %2773 = vmatpush1.msra.mxu0 0.0
  %2774 = vmatprep.subr.mxu0 0.0
  %2775 = vmatpush1.msra.mxu0 %v794
  %2776 = vmatprep.subr.mxu0 0.0
  %2777 = vmatpush1.msra.mxu0 %v793
  %2778 = vmatprep.subr.mxu0 0.0
  %2779 = vmatpush1.msra.mxu0 %v792
  %2780 = vmatprep.subr.mxu0 0.0
  %2781 = vmatpush1.msra.mxu0 %v791
  %2782 = vmatprep.subr.mxu0 0.0
  %2783 = vmatpush2.msra.mxu0 0.0
  %2784 = vmatprep.subr.mxu0 0.0
  %2785 = vmatpush2.msra.mxu0 0.0
  %2786 = vmatprep.subr.mxu0 0.0
  %2787 = vmatpush2.msra.mxu0 0.0
  %2788 = vmatprep.subr.mxu0 0.0
  %2789 = vmatpush2.msra.mxu0 0.0
  %2790 = vmatprep.subr.mxu0 0.0
  %2791 = vmatpush2.msra.mxu0 0.0
  %2792 = vmatprep.subr.mxu0 0.0
  %2793 = vmatpush2.msra.mxu0 0.0
  %2794 = vmatprep.subr.mxu0 0.0
  %2795 = vmatpush2.msra.mxu0 0.0
  %2796 = vmatprep.subr.mxu0 0.0
  %2797 = vmatpush2.msra.mxu0 0.0
  %2798 = vmatprep.subr.mxu0 0.0
  %2799 = vmatpush2.msra.mxu0 0.0
  %2800 = vmatprep.subr.mxu0 0.0
  %2801 = vmatpush2.msra.mxu0 0.0
  %2802 = vmatprep.subr.mxu0 0.0
  %2803 = vmatpush2.msra.mxu0 0.0
  %2804 = vmatprep.subr.mxu0 0.0
  %2805 = vmatpush2.msra.mxu0 0.0
  %2806 = vmatprep.subr.mxu0 0.0
  %2807 = vmatpush2.msra.mxu0 0.0
  %2808 = vmatprep.subr.mxu0 0.0
  %2809 = vmatpush2.msra.mxu0 0.0
  %2810 = vmatprep.subr.mxu0 0.0
  %2811 = vmatpush2.msra.mxu0 0.0
  %2812 = vmatprep.subr.mxu0 0.0
  %2813 = vmatpush2.msra.mxu0 0.0
  %2814 = vmatprep.mubr.f32.mxu0 0.0
  %2815 = vmatmul.mubr.f32.gmra.mxu0 %v2451
  %v2816 = vpop.f32.mrf.mxu0
  %v2817 = vadd.f32 0.0, %v2816
  %v2818 = vpop.f32.mrf.mxu0
  %2819 = vdwg.mxu0
  %v2821 = vsel %vm104, %v2749, 0
  %2823 = vmatprep.subr.mxu0 0.0
  %2824 = vmatpush1.msra.mxu0 0.0
  %2825 = vmatprep.subr.mxu0 0.0
  %2826 = vmatpush1.msra.mxu0 0.0
  %2827 = vmatprep.subr.mxu0 0.0
  %2828 = vmatpush1.msra.mxu0 0.0
  %2829 = vmatprep.subr.mxu0 0.0
  %2830 = vmatpush1.msra.mxu0 0.0
  %2831 = vmatprep.subr.mxu0 0.0
  %2832 = vmatpush1.msra.mxu0 0.0
  %2833 = vmatprep.subr.mxu0 0.0
  %2834 = vmatpush1.msra.mxu0 0.0
  %2835 = vmatprep.subr.mxu0 0.0
  %2836 = vmatpush1.msra.mxu0 0.0
  %2837 = vmatprep.subr.mxu0 0.0
  %2838 = vmatpush1.msra.mxu0 0.0
  %2839 = vmatprep.subr.mxu0 0.0
  %2840 = vmatpush1.msra.mxu0 0.0
  %2841 = vmatprep.subr.mxu0 0.0
  %2842 = vmatpush1.msra.mxu0 0.0
  %2843 = vmatprep.subr.mxu0 0.0
  %2844 = vmatpush1.msra.mxu0 0.0
  %2845 = vmatprep.subr.mxu0 0.0
  %2846 = vmatpush1.msra.mxu0 0.0
  %2847 = vmatprep.subr.mxu0 0.0
  %2848 = vmatpush1.msra.mxu0 %v790
  %2849 = vmatprep.subr.mxu0 0.0
  %2850 = vmatpush1.msra.mxu0 %v789
  %2851 = vmatprep.subr.mxu0 0.0
  %2852 = vmatpush1.msra.mxu0 %v788
  %2853 = vmatprep.subr.mxu0 0.0
  %2854 = vmatpush1.msra.mxu0 %v787
  %2855 = vmatprep.subr.mxu0 0.0
  %2856 = vmatpush2.msra.mxu0 0.0
  %2857 = vmatprep.subr.mxu0 0.0
  %2858 = vmatpush2.msra.mxu0 0.0
  %2859 = vmatprep.subr.mxu0 0.0
  %2860 = vmatpush2.msra.mxu0 0.0
  %2861 = vmatprep.subr.mxu0 0.0
  %2862 = vmatpush2.msra.mxu0 0.0
  %2863 = vmatprep.subr.mxu0 0.0
  %2864 = vmatpush2.msra.mxu0 0.0
  %2865 = vmatprep.subr.mxu0 0.0
  %2866 = vmatpush2.msra.mxu0 0.0
  %2867 = vmatprep.subr.mxu0 0.0
  %2868 = vmatpush2.msra.mxu0 0.0
  %2869 = vmatprep.subr.mxu0 0.0
  %2870 = vmatpush2.msra.mxu0 0.0
  %2871 = vmatprep.subr.mxu0 0.0
  %2872 = vmatpush2.msra.mxu0 0.0
  %2873 = vmatprep.subr.mxu0 0.0
  %2874 = vmatpush2.msra.mxu0 0.0
  %2875 = vmatprep.subr.mxu0 0.0
  %2876 = vmatpush2.msra.mxu0 0.0
  %2877 = vmatprep.subr.mxu0 0.0
  %2878 = vmatpush2.msra.mxu0 0.0
  %2879 = vmatprep.subr.mxu0 0.0
  %2880 = vmatpush2.msra.mxu0 0.0
  %2881 = vmatprep.subr.mxu0 0.0
  %2882 = vmatpush2.msra.mxu0 0.0
  %2883 = vmatprep.subr.mxu0 0.0
  %2884 = vmatpush2.msra.mxu0 0.0
  %2885 = vmatprep.subr.mxu0 0.0
  %2886 = vmatpush2.msra.mxu0 0.0
  %2887 = vmatprep.mubr.f32.mxu0 0.0
  %2888 = vmatmul.mubr.f32.gmra.mxu0 %v2821
  %v2889 = vpop.f32.mrf.mxu0
  %v2890 = vadd.f32 %v2817, %v2889
  %v2891 = vpop.f32.mrf.mxu0
  %2892 = vdwg.mxu0
  %v2893 = vadd.f32 %v2890, %v957
  %v2894 = vxor.u32 %v2893, 2147483648
  %v2895 = vmul.f32 %v2894, 1.442695
  %v2896 = vpow.pop %v2895
  %v2897 = vadd.f32 %v2896, 1.0
  %v2898 = vrcp.pop %v2897
  %v2899 = vmul.f32 1.0, %v2898
  %v2900 = vtanh.pop %v2893
  %v2901 = vmul.f32 %v2899, %v2441
  %2903 = vrot.lane.b32.xlu0 %v2900, 64
  %v2904 = vpop.permute.xlu0 %2903
  %v2906 = vmul.f32 %v2899, %v2904
  %2908 = vrot.lane.b32.xlu0 %v2906, 32
  %v2909 = vpop.permute.xlu0 %2908
  %v2911 = vadd.f32 %v2901, %v2909
  %v2912 = vtanh.pop %v2911
  %2914 = vrot.lane.b32.xlu0 %v2912, 64
  %v2915 = vpop.permute.xlu0 %2914
  %v2917 = vmul.f32 %v2899, %v2915
  %2919 = vrot.lane.b32.xlu0 %v2917, 32
  %v2920 = vpop.permute.xlu0 %2919
  %v2921 = vsel %vm104, %v2920, 0
  %2923 = vmatprep.subr.mxu0 0.0
  %2924 = vmatpush1.xpose.msra.mxu0 %v1035
  %2925 = vmatprep.subr.mxu0 0.0
  %2926 = vmatpush1.xpose.msra.mxu0 %v1032
  %2927 = vmatprep.subr.mxu0 0.0
  %2928 = vmatpush1.xpose.msra.mxu0 %v1029
  %2929 = vmatprep.subr.mxu0 0.0
  %2930 = vmatpush1.xpose.msra.mxu0 %v1026
  %2931 = vmatprep.subr.mxu0 0.0
  %2932 = vmatpush1.xpose.msra.mxu0 %v1023
  %2933 = vmatprep.subr.mxu0 0.0
  %2934 = vmatpush1.xpose.msra.mxu0 %v1020
  %2935 = vmatprep.subr.mxu0 0.0
  %2936 = vmatpush1.xpose.msra.mxu0 %v1017
  %2937 = vmatprep.subr.mxu0 0.0
  %2938 = vmatpush1.xpose.msra.mxu0 %v1014
  %2939 = vmatprep.subr.mxu0 0.0
  %2940 = vmatpush1.xpose.msra.mxu0 %v1011
  %2941 = vmatprep.subr.mxu0 0.0
  %2942 = vmatpush1.xpose.msra.mxu0 %v1008
  %2943 = vmatprep.subr.mxu0 0.0
  %2944 = vmatpush1.xpose.msra.mxu0 %v1005
  %2945 = vmatprep.subr.mxu0 0.0
  %2946 = vmatpush1.xpose.msra.mxu0 %v1002
  %2947 = vmatprep.subr.mxu0 0.0
  %2948 = vmatpush1.xpose.msra.mxu0 %v999
  %2949 = vmatprep.subr.mxu0 0.0
  %2950 = vmatpush1.xpose.msra.mxu0 %v996
  %2951 = vmatprep.subr.mxu0 0.0
  %2952 = vmatpush1.xpose.msra.mxu0 %v993
  %2953 = vmatprep.subr.mxu0 0.0
  %2954 = vmatpush1.xpose.msra.mxu0 %v990
  %2955 = vmatprep.subr.mxu0 0.0
  %2956 = vmatpush2.xpose.msra.mxu0 0.0
  %2957 = vmatprep.subr.mxu0 0.0
  %2958 = vmatpush2.xpose.msra.mxu0 0.0
  %2959 = vmatprep.subr.mxu0 0.0
  %2960 = vmatpush2.xpose.msra.mxu0 0.0
  %2961 = vmatprep.subr.mxu0 0.0
  %2962 = vmatpush2.xpose.msra.mxu0 0.0
  %2963 = vmatprep.subr.mxu0 0.0
  %2964 = vmatpush2.xpose.msra.mxu0 0.0
  %2965 = vmatprep.subr.mxu0 0.0
  %2966 = vmatpush2.xpose.msra.mxu0 0.0
  %2967 = vmatprep.subr.mxu0 0.0
  %2968 = vmatpush2.xpose.msra.mxu0 0.0
  %2969 = vmatprep.subr.mxu0 0.0
  %2970 = vmatpush2.xpose.msra.mxu0 0.0
  %2971 = vmatprep.subr.mxu0 0.0
  %2972 = vmatpush2.xpose.msra.mxu0 0.0
  %2973 = vmatprep.subr.mxu0 0.0
  %2974 = vmatpush2.xpose.msra.mxu0 0.0
  %2975 = vmatprep.subr.mxu0 0.0
  %2976 = vmatpush2.xpose.msra.mxu0 0.0
  %2977 = vmatprep.subr.mxu0 0.0
  %2978 = vmatpush2.xpose.msra.mxu0 0.0
  %2979 = vmatprep.subr.mxu0 0.0
  %2980 = vmatpush2.xpose.msra.mxu0 0.0
  %2981 = vmatprep.subr.mxu0 0.0
  %2982 = vmatpush2.xpose.msra.mxu0 0.0
  %2983 = vmatprep.subr.mxu0 0.0
  %2984 = vmatpush2.xpose.msra.mxu0 0.0
  %2985 = vmatprep.subr.mxu0 0.0
  %2986 = vmatpush2.xpose.msra.mxu0 0.0
  %2987 = vmatprep.mubr.f32.mxu0 0.0
  %2988 = vmatmul.mubr.f32.gmra.mxu0 %v2921
  %v2989 = vpop.f32.mrf.mxu0
  %v2990 = vadd.f32 %v805, %v2989
  %v2991 = vpop.f32.mrf.mxu0
  %2992 = vdwg.mxu0
  %2993 = vmax.xlane.f32.xlu0 %v2990
  %v2994 = vpop.xlane.xlu0 %2993
  %v2995 = vsub.f32 %v2990, %v2994
  %v2996 = vmul.f32 %v2995, 1.442695
  %v2997 = vpow.pop %v2996
  %2998 = vadd.xlane.f32.xlu0 %v2997
  %v2999 = vpop.xlane.xlu0 %2998
  %v3000 = vrcp.pop %v2999
  %v3001 = vmul.f32 %v2997, %v3000
  %3002 = vmatprep.subr.mxu0 0.0
  %3003 = vmatpush1.msra.mxu0 %v313
  %3004 = vmatprep.subr.mxu0 0.0
  %3005 = vmatpush1.msra.mxu0 %v312
  %3006 = vmatprep.subr.mxu0 0.0
  %3007 = vmatpush1.msra.mxu0 %v311
  %3008 = vmatprep.subr.mxu0 0.0
  %3009 = vmatpush1.msra.mxu0 %v310
  %3010 = vmatprep.subr.mxu0 0.0
  %3011 = vmatpush1.msra.mxu0 %v309
  %3012 = vmatprep.subr.mxu0 0.0
  %3013 = vmatpush1.msra.mxu0 %v308
  %3014 = vmatprep.subr.mxu0 0.0
  %3015 = vmatpush1.msra.mxu0 %v307
  %3016 = vmatprep.subr.mxu0 0.0
  %3017 = vmatpush1.msra.mxu0 %v306
  %3018 = vmatprep.subr.mxu0 0.0
  %3019 = vmatpush1.msra.mxu0 %v305
  %3020 = vmatprep.subr.mxu0 0.0
  %3021 = vmatpush1.msra.mxu0 %v304
  %3022 = vmatprep.subr.mxu0 0.0
  %3023 = vmatpush1.msra.mxu0 %v303
  %3024 = vmatprep.subr.mxu0 0.0
  %3025 = vmatpush1.msra.mxu0 %v302
  %3026 = vmatprep.subr.mxu0 0.0
  %3027 = vmatpush1.msra.mxu0 %v301
  %3028 = vmatprep.subr.mxu0 0.0
  %3029 = vmatpush1.msra.mxu0 %v300
  %3030 = vmatprep.subr.mxu0 0.0
  %3031 = vmatpush1.msra.mxu0 %v299
  %3032 = vmatprep.subr.mxu0 0.0
  %3033 = vmatpush1.msra.mxu0 %v298
  %3034 = vmatprep.subr.mxu0 0.0
  %3035 = vmatpush2.msra.mxu0 0.0
  %3036 = vmatprep.subr.mxu0 0.0
  %3037 = vmatpush2.msra.mxu0 0.0
  %3038 = vmatprep.subr.mxu0 0.0
  %3039 = vmatpush2.msra.mxu0 0.0
  %3040 = vmatprep.subr.mxu0 0.0
  %3041 = vmatpush2.msra.mxu0 0.0
  %3042 = vmatprep.subr.mxu0 0.0
  %3043 = vmatpush2.msra.mxu0 0.0
  %3044 = vmatprep.subr.mxu0 0.0
  %3045 = vmatpush2.msra.mxu0 0.0
  %3046 = vmatprep.subr.mxu0 0.0
  %3047 = vmatpush2.msra.mxu0 0.0
  %3048 = vmatprep.subr.mxu0 0.0
  %3049 = vmatpush2.msra.mxu0 0.0
  %3050 = vmatprep.subr.mxu0 0.0
  %3051 = vmatpush2.msra.mxu0 0.0
  %3052 = vmatprep.subr.mxu0 0.0
  %3053 = vmatpush2.msra.mxu0 0.0
  %3054 = vmatprep.subr.mxu0 0.0
  %3055 = vmatpush2.msra.mxu0 0.0
  %3056 = vmatprep.subr.mxu0 0.0
  %3057 = vmatpush2.msra.mxu0 0.0
  %3058 = vmatprep.subr.mxu0 0.0
  %3059 = vmatpush2.msra.mxu0 0.0
  %3060 = vmatprep.subr.mxu0 0.0
  %3061 = vmatpush2.msra.mxu0 0.0
  %3062 = vmatprep.subr.mxu0 0.0
  %3063 = vmatpush2.msra.mxu0 0.0
  %3064 = vmatprep.subr.mxu0 0.0
  %3065 = vmatpush2.msra.mxu0 0.0
  %3066 = vmatprep.mubr.f32.mxu0 0.0
  %3067 = vmatmul.mubr.f32.gmra.mxu0 %v3001
  %v3068 = vpop.f32.mrf.mxu0
  %v3069 = vadd.f32 0.0, %v3068
  %v3070 = vpop.f32.mrf.mxu0
  %3071 = vdwg.mxu0
  %v3073 = vsel %vm104, %v3069, 0
  %3075 = vmatprep.subr.mxu0 0.0
  %3076 = vmatpush1.msra.mxu0 0.0
  %3077 = vmatprep.subr.mxu0 0.0
  %3078 = vmatpush1.msra.mxu0 0.0
  %3079 = vmatprep.subr.mxu0 0.0
  %3080 = vmatpush1.msra.mxu0 0.0
  %3081 = vmatprep.subr.mxu0 0.0
  %3082 = vmatpush1.msra.mxu0 0.0
  %3083 = vmatprep.subr.mxu0 0.0
  %3084 = vmatpush1.msra.mxu0 0.0
  %3085 = vmatprep.subr.mxu0 0.0
  %3086 = vmatpush1.msra.mxu0 0.0
  %3087 = vmatprep.subr.mxu0 0.0
  %3088 = vmatpush1.msra.mxu0 0.0
  %3089 = vmatprep.subr.mxu0 0.0
  %3090 = vmatpush1.msra.mxu0 0.0
  %3091 = vmatprep.subr.mxu0 0.0
  %3092 = vmatpush1.msra.mxu0 0.0
  %3093 = vmatprep.subr.mxu0 0.0
  %3094 = vmatpush1.msra.mxu0 0.0
  %3095 = vmatprep.subr.mxu0 0.0
  %3096 = vmatpush1.msra.mxu0 0.0
  %3097 = vmatprep.subr.mxu0 0.0
  %3098 = vmatpush1.msra.mxu0 0.0
  %3099 = vmatprep.subr.mxu0 0.0
  %3100 = vmatpush1.msra.mxu0 %v803
  %3101 = vmatprep.subr.mxu0 0.0
  %3102 = vmatpush1.msra.mxu0 %v802
  %3103 = vmatprep.subr.mxu0 0.0
  %3104 = vmatpush1.msra.mxu0 %v801
  %3105 = vmatprep.subr.mxu0 0.0
  %3106 = vmatpush1.msra.mxu0 %v800
  %3107 = vmatprep.subr.mxu0 0.0
  %3108 = vmatpush2.msra.mxu0 0.0
  %3109 = vmatprep.subr.mxu0 0.0
  %3110 = vmatpush2.msra.mxu0 0.0
  %3111 = vmatprep.subr.mxu0 0.0
  %3112 = vmatpush2.msra.mxu0 0.0
  %3113 = vmatprep.subr.mxu0 0.0
  %3114 = vmatpush2.msra.mxu0 0.0
  %3115 = vmatprep.subr.mxu0 0.0
  %3116 = vmatpush2.msra.mxu0 0.0
  %3117 = vmatprep.subr.mxu0 0.0
  %3118 = vmatpush2.msra.mxu0 0.0
  %3119 = vmatprep.subr.mxu0 0.0
  %3120 = vmatpush2.msra.mxu0 0.0
  %3121 = vmatprep.subr.mxu0 0.0
  %3122 = vmatpush2.msra.mxu0 0.0
  %3123 = vmatprep.subr.mxu0 0.0
  %3124 = vmatpush2.msra.mxu0 0.0
  %3125 = vmatprep.subr.mxu0 0.0
  %3126 = vmatpush2.msra.mxu0 0.0
  %3127 = vmatprep.subr.mxu0 0.0
  %3128 = vmatpush2.msra.mxu0 0.0
  %3129 = vmatprep.subr.mxu0 0.0
  %3130 = vmatpush2.msra.mxu0 0.0
  %3131 = vmatprep.subr.mxu0 0.0
  %3132 = vmatpush2.msra.mxu0 0.0
  %3133 = vmatprep.subr.mxu0 0.0
  %3134 = vmatpush2.msra.mxu0 0.0
  %3135 = vmatprep.subr.mxu0 0.0
  %3136 = vmatpush2.msra.mxu0 0.0
  %3137 = vmatprep.subr.mxu0 0.0
  %3138 = vmatpush2.msra.mxu0 0.0
  %3139 = vmatprep.mubr.f32.mxu0 0.0
  %3140 = vmatmul.mubr.f32.gmra.mxu0 %v3073
  %v3141 = vpop.f32.mrf.mxu0
  %v3142 = vadd.f32 0.0, %v3141
  %v3143 = vpop.f32.mrf.mxu0
  %3144 = vdwg.mxu0
  %3145 = vmatprep.subr.mxu0 0.0
  %3146 = vmatpush1.msra.mxu0 0.0
  %3147 = vmatprep.subr.mxu0 0.0
  %3148 = vmatpush1.msra.mxu0 0.0
  %3149 = vmatprep.subr.mxu0 0.0
  %3150 = vmatpush1.msra.mxu0 0.0
  %3151 = vmatprep.subr.mxu0 0.0
  %3152 = vmatpush1.msra.mxu0 0.0
  %3153 = vmatprep.subr.mxu0 0.0
  %3154 = vmatpush1.msra.mxu0 0.0
  %3155 = vmatprep.subr.mxu0 0.0
  %3156 = vmatpush1.msra.mxu0 0.0
  %3157 = vmatprep.subr.mxu0 0.0
  %3158 = vmatpush1.msra.mxu0 0.0
  %3159 = vmatprep.subr.mxu0 0.0
  %3160 = vmatpush1.msra.mxu0 0.0
  %3161 = vmatprep.subr.mxu0 0.0
  %3162 = vmatpush1.msra.mxu0 0.0
  %3163 = vmatprep.subr.mxu0 0.0
  %3164 = vmatpush1.msra.mxu0 0.0
  %3165 = vmatprep.subr.mxu0 0.0
  %3166 = vmatpush1.msra.mxu0 0.0
  %3167 = vmatprep.subr.mxu0 0.0
  %3168 = vmatpush1.msra.mxu0 0.0
  %3169 = vmatprep.subr.mxu0 0.0
  %3170 = vmatpush1.msra.mxu0 %v799
  %3171 = vmatprep.subr.mxu0 0.0
  %3172 = vmatpush1.msra.mxu0 %v798
  %3173 = vmatprep.subr.mxu0 0.0
  %3174 = vmatpush1.msra.mxu0 %v797
  %3175 = vmatprep.subr.mxu0 0.0
  %3176 = vmatpush1.msra.mxu0 %v796
  %3177 = vmatprep.subr.mxu0 0.0
  %3178 = vmatpush2.msra.mxu0 0.0
  %3179 = vmatprep.subr.mxu0 0.0
  %3180 = vmatpush2.msra.mxu0 0.0
  %3181 = vmatprep.subr.mxu0 0.0
  %3182 = vmatpush2.msra.mxu0 0.0
  %3183 = vmatprep.subr.mxu0 0.0
  %3184 = vmatpush2.msra.mxu0 0.0
  %3185 = vmatprep.subr.mxu0 0.0
  %3186 = vmatpush2.msra.mxu0 0.0
  %3187 = vmatprep.subr.mxu0 0.0
  %3188 = vmatpush2.msra.mxu0 0.0
  %3189 = vmatprep.subr.mxu0 0.0
  %3190 = vmatpush2.msra.mxu0 0.0
  %3191 = vmatprep.subr.mxu0 0.0
  %3192 = vmatpush2.msra.mxu0 0.0
  %3193 = vmatprep.subr.mxu0 0.0
  %3194 = vmatpush2.msra.mxu0 0.0
  %3195 = vmatprep.subr.mxu0 0.0
  %3196 = vmatpush2.msra.mxu0 0.0
  %3197 = vmatprep.subr.mxu0 0.0
  %3198 = vmatpush2.msra.mxu0 0.0
  %3199 = vmatprep.subr.mxu0 0.0
  %3200 = vmatpush2.msra.mxu0 0.0
  %3201 = vmatprep.subr.mxu0 0.0
  %3202 = vmatpush2.msra.mxu0 0.0
  %3203 = vmatprep.subr.mxu0 0.0
  %3204 = vmatpush2.msra.mxu0 0.0
  %3205 = vmatprep.subr.mxu0 0.0
  %3206 = vmatpush2.msra.mxu0 0.0
  %3207 = vmatprep.subr.mxu0 0.0
  %3208 = vmatpush2.msra.mxu0 0.0
  %3209 = vmatprep.mubr.f32.mxu0 0.0
  %3210 = vmatmul.mubr.f32.gmra.mxu0 %v2921
  %v3211 = vpop.f32.mrf.mxu0
  %v3212 = vadd.f32 %v3142, %v3211
  %v3213 = vpop.f32.mrf.mxu0
  %3214 = vdwg.mxu0
  %v3215 = vadd.f32 %v3212, %v1333
  %v3216 = vtanh.pop %v3215
  %3217 = vst.msk [vmem:[#allocation2 + $0x20] sm:$0xff] %vm104, %v3216
  %s3218 = scalar_lea.vmem %s3, 40
  %v3219 = vld [vmem:[%s3218] sm:$0xff]
  %3220 = vmatprep.subr.mxu0 0.0
  %3221 = vmatpush1.msra.mxu0 0.0
  %3222 = vmatprep.subr.mxu0 0.0
  %3223 = vmatpush1.msra.mxu0 0.0
  %3224 = vmatprep.subr.mxu0 0.0
  %3225 = vmatpush1.msra.mxu0 0.0
  %3226 = vmatprep.subr.mxu0 0.0
  %3227 = vmatpush1.msra.mxu0 0.0
  %3228 = vmatprep.subr.mxu0 0.0
  %3229 = vmatpush1.msra.mxu0 0.0
  %3230 = vmatprep.subr.mxu0 0.0
  %3231 = vmatpush1.msra.mxu0 0.0
  %3232 = vmatprep.subr.mxu0 0.0
  %3233 = vmatpush1.msra.mxu0 0.0
  %3234 = vmatprep.subr.mxu0 0.0
  %3235 = vmatpush1.msra.mxu0 0.0
  %3236 = vmatprep.subr.mxu0 0.0
  %3237 = vmatpush1.msra.mxu0 0.0
  %3238 = vmatprep.subr.mxu0 0.0
  %3239 = vmatpush1.msra.mxu0 0.0
  %3240 = vmatprep.subr.mxu0 0.0
  %3241 = vmatpush1.msra.mxu0 0.0
  %3242 = vmatprep.subr.mxu0 0.0
  %3243 = vmatpush1.msra.mxu0 0.0
  %3244 = vmatprep.subr.mxu0 0.0
  %3245 = vmatpush1.msra.mxu0 %v794
  %3246 = vmatprep.subr.mxu0 0.0
  %3247 = vmatpush1.msra.mxu0 %v793
  %3248 = vmatprep.subr.mxu0 0.0
  %3249 = vmatpush1.msra.mxu0 %v792
  %3250 = vmatprep.subr.mxu0 0.0
  %3251 = vmatpush1.msra.mxu0 %v791
  %3252 = vmatprep.subr.mxu0 0.0
  %3253 = vmatpush2.msra.mxu0 0.0
  %3254 = vmatprep.subr.mxu0 0.0
  %3255 = vmatpush2.msra.mxu0 0.0
  %3256 = vmatprep.subr.mxu0 0.0
  %3257 = vmatpush2.msra.mxu0 0.0
  %3258 = vmatprep.subr.mxu0 0.0
  %3259 = vmatpush2.msra.mxu0 0.0
  %3260 = vmatprep.subr.mxu0 0.0
  %3261 = vmatpush2.msra.mxu0 0.0
  %3262 = vmatprep.subr.mxu0 0.0
  %3263 = vmatpush2.msra.mxu0 0.0
  %3264 = vmatprep.subr.mxu0 0.0
  %3265 = vmatpush2.msra.mxu0 0.0
  %3266 = vmatprep.subr.mxu0 0.0
  %3267 = vmatpush2.msra.mxu0 0.0
  %3268 = vmatprep.subr.mxu0 0.0
  %3269 = vmatpush2.msra.mxu0 0.0
  %3270 = vmatprep.subr.mxu0 0.0
  %3271 = vmatpush2.msra.mxu0 0.0
  %3272 = vmatprep.subr.mxu0 0.0
  %3273 = vmatpush2.msra.mxu0 0.0
  %3274 = vmatprep.subr.mxu0 0.0
  %3275 = vmatpush2.msra.mxu0 0.0
  %3276 = vmatprep.subr.mxu0 0.0
  %3277 = vmatpush2.msra.mxu0 0.0
  %3278 = vmatprep.subr.mxu0 0.0
  %3279 = vmatpush2.msra.mxu0 0.0
  %3280 = vmatprep.subr.mxu0 0.0
  %3281 = vmatpush2.msra.mxu0 0.0
  %3282 = vmatprep.subr.mxu0 0.0
  %3283 = vmatpush2.msra.mxu0 0.0
  %3284 = vmatprep.mubr.f32.mxu0 0.0
  %3285 = vmatmul.mubr.f32.gmra.mxu0 %v2921
  %v3286 = vpop.f32.mrf.mxu0
  %v3287 = vadd.f32 0.0, %v3286
  %v3288 = vpop.f32.mrf.mxu0
  %3289 = vdwg.mxu0
  %v3291 = vsel %vm104, %v3219, 0
  %3293 = vmatprep.subr.mxu0 0.0
  %3294 = vmatpush1.msra.mxu0 0.0
  %3295 = vmatprep.subr.mxu0 0.0
  %3296 = vmatpush1.msra.mxu0 0.0
  %3297 = vmatprep.subr.mxu0 0.0
  %3298 = vmatpush1.msra.mxu0 0.0
  %3299 = vmatprep.subr.mxu0 0.0
  %3300 = vmatpush1.msra.mxu0 0.0
  %3301 = vmatprep.subr.mxu0 0.0
  %3302 = vmatpush1.msra.mxu0 0.0
  %3303 = vmatprep.subr.mxu0 0.0
  %3304 = vmatpush1.msra.mxu0 0.0
  %3305 = vmatprep.subr.mxu0 0.0
  %3306 = vmatpush1.msra.mxu0 0.0
  %3307 = vmatprep.subr.mxu0 0.0
  %3308 = vmatpush1.msra.mxu0 0.0
  %3309 = vmatprep.subr.mxu0 0.0
  %3310 = vmatpush1.msra.mxu0 0.0
  %3311 = vmatprep.subr.mxu0 0.0
  %3312 = vmatpush1.msra.mxu0 0.0
  %3313 = vmatprep.subr.mxu0 0.0
  %3314 = vmatpush1.msra.mxu0 0.0
  %3315 = vmatprep.subr.mxu0 0.0
  %3316 = vmatpush1.msra.mxu0 0.0
  %3317 = vmatprep.subr.mxu0 0.0
  %3318 = vmatpush1.msra.mxu0 %v790
  %3319 = vmatprep.subr.mxu0 0.0
  %3320 = vmatpush1.msra.mxu0 %v789
  %3321 = vmatprep.subr.mxu0 0.0
  %3322 = vmatpush1.msra.mxu0 %v788
  %3323 = vmatprep.subr.mxu0 0.0
  %3324 = vmatpush1.msra.mxu0 %v787
  %3325 = vmatprep.subr.mxu0 0.0
  %3326 = vmatpush2.msra.mxu0 0.0
  %3327 = vmatprep.subr.mxu0 0.0
  %3328 = vmatpush2.msra.mxu0 0.0
  %3329 = vmatprep.subr.mxu0 0.0
  %3330 = vmatpush2.msra.mxu0 0.0
  %3331 = vmatprep.subr.mxu0 0.0
  %3332 = vmatpush2.msra.mxu0 0.0
  %3333 = vmatprep.subr.mxu0 0.0
  %3334 = vmatpush2.msra.mxu0 0.0
  %3335 = vmatprep.subr.mxu0 0.0
  %3336 = vmatpush2.msra.mxu0 0.0
  %3337 = vmatprep.subr.mxu0 0.0
  %3338 = vmatpush2.msra.mxu0 0.0
  %3339 = vmatprep.subr.mxu0 0.0
  %3340 = vmatpush2.msra.mxu0 0.0
  %3341 = vmatprep.subr.mxu0 0.0
  %3342 = vmatpush2.msra.mxu0 0.0
  %3343 = vmatprep.subr.mxu0 0.0
  %3344 = vmatpush2.msra.mxu0 0.0
  %3345 = vmatprep.subr.mxu0 0.0
  %3346 = vmatpush2.msra.mxu0 0.0
  %3347 = vmatprep.subr.mxu0 0.0
  %3348 = vmatpush2.msra.mxu0 0.0
  %3349 = vmatprep.subr.mxu0 0.0
  %3350 = vmatpush2.msra.mxu0 0.0
  %3351 = vmatprep.subr.mxu0 0.0
  %3352 = vmatpush2.msra.mxu0 0.0
  %3353 = vmatprep.subr.mxu0 0.0
  %3354 = vmatpush2.msra.mxu0 0.0
  %3355 = vmatprep.subr.mxu0 0.0
  %3356 = vmatpush2.msra.mxu0 0.0
  %3357 = vmatprep.mubr.f32.mxu0 0.0
  %3358 = vmatmul.mubr.f32.gmra.mxu0 %v3291
  %v3359 = vpop.f32.mrf.mxu0
  %v3360 = vadd.f32 %v3287, %v3359
  %v3361 = vpop.f32.mrf.mxu0
  %3362 = vdwg.mxu0
  %v3363 = vadd.f32 %v3360, %v957
  %v3364 = vxor.u32 %v3363, 2147483648
  %v3365 = vmul.f32 %v3364, 1.442695
  %v3366 = vpow.pop %v3365
  %v3367 = vadd.f32 %v3366, 1.0
  %v3368 = vrcp.pop %v3367
  %v3369 = vmul.f32 1.0, %v3368
  %v3370 = vtanh.pop %v3363
  %v3371 = vmul.f32 %v3369, %v2911
  %3373 = vrot.lane.b32.xlu0 %v3370, 64
  %v3374 = vpop.permute.xlu0 %3373
  %v3376 = vmul.f32 %v3369, %v3374
  %3378 = vrot.lane.b32.xlu0 %v3376, 32
  %v3379 = vpop.permute.xlu0 %3378
  %v3381 = vadd.f32 %v3371, %v3379
  %v3382 = vtanh.pop %v3381
  %3384 = vrot.lane.b32.xlu0 %v3382, 64
  %v3385 = vpop.permute.xlu0 %3384
  %v3387 = vmul.f32 %v3369, %v3385
  %3389 = vrot.lane.b32.xlu0 %v3387, 32
  %v3390 = vpop.permute.xlu0 %3389
  %v3391 = vsel %vm104, %v3390, 0
  %3393 = vmatprep.subr.mxu0 0.0
  %3394 = vmatpush1.xpose.msra.mxu0 %v1035
  %3395 = vmatprep.subr.mxu0 0.0
  %3396 = vmatpush1.xpose.msra.mxu0 %v1032
  %3397 = vmatprep.subr.mxu0 0.0
  %3398 = vmatpush1.xpose.msra.mxu0 %v1029
  %3399 = vmatprep.subr.mxu0 0.0
  %3400 = vmatpush1.xpose.msra.mxu0 %v1026
  %3401 = vmatprep.subr.mxu0 0.0
  %3402 = vmatpush1.xpose.msra.mxu0 %v1023
  %3403 = vmatprep.subr.mxu0 0.0
  %3404 = vmatpush1.xpose.msra.mxu0 %v1020
  %3405 = vmatprep.subr.mxu0 0.0
  %3406 = vmatpush1.xpose.msra.mxu0 %v1017
  %3407 = vmatprep.subr.mxu0 0.0
  %3408 = vmatpush1.xpose.msra.mxu0 %v1014
  %3409 = vmatprep.subr.mxu0 0.0
  %3410 = vmatpush1.xpose.msra.mxu0 %v1011
  %3411 = vmatprep.subr.mxu0 0.0
  %3412 = vmatpush1.xpose.msra.mxu0 %v1008
  %3413 = vmatprep.subr.mxu0 0.0
  %3414 = vmatpush1.xpose.msra.mxu0 %v1005
  %3415 = vmatprep.subr.mxu0 0.0
  %3416 = vmatpush1.xpose.msra.mxu0 %v1002
  %3417 = vmatprep.subr.mxu0 0.0
  %3418 = vmatpush1.xpose.msra.mxu0 %v999
  %3419 = vmatprep.subr.mxu0 0.0
  %3420 = vmatpush1.xpose.msra.mxu0 %v996
  %3421 = vmatprep.subr.mxu0 0.0
  %3422 = vmatpush1.xpose.msra.mxu0 %v993
  %3423 = vmatprep.subr.mxu0 0.0
  %3424 = vmatpush1.xpose.msra.mxu0 %v990
  %3425 = vmatprep.subr.mxu0 0.0
  %3426 = vmatpush2.xpose.msra.mxu0 0.0
  %3427 = vmatprep.subr.mxu0 0.0
  %3428 = vmatpush2.xpose.msra.mxu0 0.0
  %3429 = vmatprep.subr.mxu0 0.0
  %3430 = vmatpush2.xpose.msra.mxu0 0.0
  %3431 = vmatprep.subr.mxu0 0.0
  %3432 = vmatpush2.xpose.msra.mxu0 0.0
  %3433 = vmatprep.subr.mxu0 0.0
  %3434 = vmatpush2.xpose.msra.mxu0 0.0
  %3435 = vmatprep.subr.mxu0 0.0
  %3436 = vmatpush2.xpose.msra.mxu0 0.0
  %3437 = vmatprep.subr.mxu0 0.0
  %3438 = vmatpush2.xpose.msra.mxu0 0.0
  %3439 = vmatprep.subr.mxu0 0.0
  %3440 = vmatpush2.xpose.msra.mxu0 0.0
  %3441 = vmatprep.subr.mxu0 0.0
  %3442 = vmatpush2.xpose.msra.mxu0 0.0
  %3443 = vmatprep.subr.mxu0 0.0
  %3444 = vmatpush2.xpose.msra.mxu0 0.0
  %3445 = vmatprep.subr.mxu0 0.0
  %3446 = vmatpush2.xpose.msra.mxu0 0.0
  %3447 = vmatprep.subr.mxu0 0.0
  %3448 = vmatpush2.xpose.msra.mxu0 0.0
  %3449 = vmatprep.subr.mxu0 0.0
  %3450 = vmatpush2.xpose.msra.mxu0 0.0
  %3451 = vmatprep.subr.mxu0 0.0
  %3452 = vmatpush2.xpose.msra.mxu0 0.0
  %3453 = vmatprep.subr.mxu0 0.0
  %3454 = vmatpush2.xpose.msra.mxu0 0.0
  %3455 = vmatprep.subr.mxu0 0.0
  %3456 = vmatpush2.xpose.msra.mxu0 0.0
  %3457 = vmatprep.mubr.f32.mxu0 0.0
  %3458 = vmatmul.mubr.f32.gmra.mxu0 %v3391
  %v3459 = vpop.f32.mrf.mxu0
  %v3460 = vadd.f32 %v805, %v3459
  %v3461 = vpop.f32.mrf.mxu0
  %3462 = vdwg.mxu0
  %3463 = vmax.xlane.f32.xlu0 %v3460
  %v3464 = vpop.xlane.xlu0 %3463
  %v3465 = vsub.f32 %v3460, %v3464
  %v3466 = vmul.f32 %v3465, 1.442695
  %v3467 = vpow.pop %v3466
  %3468 = vadd.xlane.f32.xlu0 %v3467
  %v3469 = vpop.xlane.xlu0 %3468
  %v3470 = vrcp.pop %v3469
  %v3471 = vmul.f32 %v3467, %v3470
  %3472 = vmatprep.subr.mxu0 0.0
  %3473 = vmatpush1.msra.mxu0 %v313
  %3474 = vmatprep.subr.mxu0 0.0
  %3475 = vmatpush1.msra.mxu0 %v312
  %3476 = vmatprep.subr.mxu0 0.0
  %3477 = vmatpush1.msra.mxu0 %v311
  %3478 = vmatprep.subr.mxu0 0.0
  %3479 = vmatpush1.msra.mxu0 %v310
  %3480 = vmatprep.subr.mxu0 0.0
  %3481 = vmatpush1.msra.mxu0 %v309
  %3482 = vmatprep.subr.mxu0 0.0
  %3483 = vmatpush1.msra.mxu0 %v308
  %3484 = vmatprep.subr.mxu0 0.0
  %3485 = vmatpush1.msra.mxu0 %v307
  %3486 = vmatprep.subr.mxu0 0.0
  %3487 = vmatpush1.msra.mxu0 %v306
  %3488 = vmatprep.subr.mxu0 0.0
  %3489 = vmatpush1.msra.mxu0 %v305
  %3490 = vmatprep.subr.mxu0 0.0
  %3491 = vmatpush1.msra.mxu0 %v304
  %3492 = vmatprep.subr.mxu0 0.0
  %3493 = vmatpush1.msra.mxu0 %v303
  %3494 = vmatprep.subr.mxu0 0.0
  %3495 = vmatpush1.msra.mxu0 %v302
  %3496 = vmatprep.subr.mxu0 0.0
  %3497 = vmatpush1.msra.mxu0 %v301
  %3498 = vmatprep.subr.mxu0 0.0
  %3499 = vmatpush1.msra.mxu0 %v300
  %3500 = vmatprep.subr.mxu0 0.0
  %3501 = vmatpush1.msra.mxu0 %v299
  %3502 = vmatprep.subr.mxu0 0.0
  %3503 = vmatpush1.msra.mxu0 %v298
  %3504 = vmatprep.subr.mxu0 0.0
  %3505 = vmatpush2.msra.mxu0 0.0
  %3506 = vmatprep.subr.mxu0 0.0
  %3507 = vmatpush2.msra.mxu0 0.0
  %3508 = vmatprep.subr.mxu0 0.0
  %3509 = vmatpush2.msra.mxu0 0.0
  %3510 = vmatprep.subr.mxu0 0.0
  %3511 = vmatpush2.msra.mxu0 0.0
  %3512 = vmatprep.subr.mxu0 0.0
  %3513 = vmatpush2.msra.mxu0 0.0
  %3514 = vmatprep.subr.mxu0 0.0
  %3515 = vmatpush2.msra.mxu0 0.0
  %3516 = vmatprep.subr.mxu0 0.0
  %3517 = vmatpush2.msra.mxu0 0.0
  %3518 = vmatprep.subr.mxu0 0.0
  %3519 = vmatpush2.msra.mxu0 0.0
  %3520 = vmatprep.subr.mxu0 0.0
  %3521 = vmatpush2.msra.mxu0 0.0
  %3522 = vmatprep.subr.mxu0 0.0
  %3523 = vmatpush2.msra.mxu0 0.0
  %3524 = vmatprep.subr.mxu0 0.0
  %3525 = vmatpush2.msra.mxu0 0.0
  %3526 = vmatprep.subr.mxu0 0.0
  %3527 = vmatpush2.msra.mxu0 0.0
  %3528 = vmatprep.subr.mxu0 0.0
  %3529 = vmatpush2.msra.mxu0 0.0
  %3530 = vmatprep.subr.mxu0 0.0
  %3531 = vmatpush2.msra.mxu0 0.0
  %3532 = vmatprep.subr.mxu0 0.0
  %3533 = vmatpush2.msra.mxu0 0.0
  %3534 = vmatprep.subr.mxu0 0.0
  %3535 = vmatpush2.msra.mxu0 0.0
  %3536 = vmatprep.mubr.f32.mxu0 0.0
  %3537 = vmatmul.mubr.f32.gmra.mxu0 %v3471
  %v3538 = vpop.f32.mrf.mxu0
  %v3539 = vadd.f32 0.0, %v3538
  %v3540 = vpop.f32.mrf.mxu0
  %3541 = vdwg.mxu0
  %v3543 = vsel %vm104, %v3539, 0
  %3545 = vmatprep.subr.mxu0 0.0
  %3546 = vmatpush1.msra.mxu0 0.0
  %3547 = vmatprep.subr.mxu0 0.0
  %3548 = vmatpush1.msra.mxu0 0.0
  %3549 = vmatprep.subr.mxu0 0.0
  %3550 = vmatpush1.msra.mxu0 0.0
  %3551 = vmatprep.subr.mxu0 0.0
  %3552 = vmatpush1.msra.mxu0 0.0
  %3553 = vmatprep.subr.mxu0 0.0
  %3554 = vmatpush1.msra.mxu0 0.0
  %3555 = vmatprep.subr.mxu0 0.0
  %3556 = vmatpush1.msra.mxu0 0.0
  %3557 = vmatprep.subr.mxu0 0.0
  %3558 = vmatpush1.msra.mxu0 0.0
  %3559 = vmatprep.subr.mxu0 0.0
  %3560 = vmatpush1.msra.mxu0 0.0
  %3561 = vmatprep.subr.mxu0 0.0
  %3562 = vmatpush1.msra.mxu0 0.0
  %3563 = vmatprep.subr.mxu0 0.0
  %3564 = vmatpush1.msra.mxu0 0.0
  %3565 = vmatprep.subr.mxu0 0.0
  %3566 = vmatpush1.msra.mxu0 0.0
  %3567 = vmatprep.subr.mxu0 0.0
  %3568 = vmatpush1.msra.mxu0 0.0
  %3569 = vmatprep.subr.mxu0 0.0
  %3570 = vmatpush1.msra.mxu0 %v803
  %3571 = vmatprep.subr.mxu0 0.0
  %3572 = vmatpush1.msra.mxu0 %v802
  %3573 = vmatprep.subr.mxu0 0.0
  %3574 = vmatpush1.msra.mxu0 %v801
  %3575 = vmatprep.subr.mxu0 0.0
  %3576 = vmatpush1.msra.mxu0 %v800
  %3577 = vmatprep.subr.mxu0 0.0
  %3578 = vmatpush2.msra.mxu0 0.0
  %3579 = vmatprep.subr.mxu0 0.0
  %3580 = vmatpush2.msra.mxu0 0.0
  %3581 = vmatprep.subr.mxu0 0.0
  %3582 = vmatpush2.msra.mxu0 0.0
  %3583 = vmatprep.subr.mxu0 0.0
  %3584 = vmatpush2.msra.mxu0 0.0
  %3585 = vmatprep.subr.mxu0 0.0
  %3586 = vmatpush2.msra.mxu0 0.0
  %3587 = vmatprep.subr.mxu0 0.0
  %3588 = vmatpush2.msra.mxu0 0.0
  %3589 = vmatprep.subr.mxu0 0.0
  %3590 = vmatpush2.msra.mxu0 0.0
  %3591 = vmatprep.subr.mxu0 0.0
  %3592 = vmatpush2.msra.mxu0 0.0
  %3593 = vmatprep.subr.mxu0 0.0
  %3594 = vmatpush2.msra.mxu0 0.0
  %3595 = vmatprep.subr.mxu0 0.0
  %3596 = vmatpush2.msra.mxu0 0.0
  %3597 = vmatprep.subr.mxu0 0.0
  %3598 = vmatpush2.msra.mxu0 0.0
  %3599 = vmatprep.subr.mxu0 0.0
  %3600 = vmatpush2.msra.mxu0 0.0
  %3601 = vmatprep.subr.mxu0 0.0
  %3602 = vmatpush2.msra.mxu0 0.0
  %3603 = vmatprep.subr.mxu0 0.0
  %3604 = vmatpush2.msra.mxu0 0.0
  %3605 = vmatprep.subr.mxu0 0.0
  %3606 = vmatpush2.msra.mxu0 0.0
  %3607 = vmatprep.subr.mxu0 0.0
  %3608 = vmatpush2.msra.mxu0 0.0
  %3609 = vmatprep.mubr.f32.mxu0 0.0
  %3610 = vmatmul.mubr.f32.gmra.mxu0 %v3543
  %v3611 = vpop.f32.mrf.mxu0
  %v3612 = vadd.f32 0.0, %v3611
  %v3613 = vpop.f32.mrf.mxu0
  %3614 = vdwg.mxu0
  %3615 = vmatprep.subr.mxu0 0.0
  %3616 = vmatpush1.msra.mxu0 0.0
  %3617 = vmatprep.subr.mxu0 0.0
  %3618 = vmatpush1.msra.mxu0 0.0
  %3619 = vmatprep.subr.mxu0 0.0
  %3620 = vmatpush1.msra.mxu0 0.0
  %3621 = vmatprep.subr.mxu0 0.0
  %3622 = vmatpush1.msra.mxu0 0.0
  %3623 = vmatprep.subr.mxu0 0.0
  %3624 = vmatpush1.msra.mxu0 0.0
  %3625 = vmatprep.subr.mxu0 0.0
  %3626 = vmatpush1.msra.mxu0 0.0
  %3627 = vmatprep.subr.mxu0 0.0
  %3628 = vmatpush1.msra.mxu0 0.0
  %3629 = vmatprep.subr.mxu0 0.0
  %3630 = vmatpush1.msra.mxu0 0.0
  %3631 = vmatprep.subr.mxu0 0.0
  %3632 = vmatpush1.msra.mxu0 0.0
  %3633 = vmatprep.subr.mxu0 0.0
  %3634 = vmatpush1.msra.mxu0 0.0
  %3635 = vmatprep.subr.mxu0 0.0
  %3636 = vmatpush1.msra.mxu0 0.0
  %3637 = vmatprep.subr.mxu0 0.0
  %3638 = vmatpush1.msra.mxu0 0.0
  %3639 = vmatprep.subr.mxu0 0.0
  %3640 = vmatpush1.msra.mxu0 %v799
  %3641 = vmatprep.subr.mxu0 0.0
  %3642 = vmatpush1.msra.mxu0 %v798
  %3643 = vmatprep.subr.mxu0 0.0
  %3644 = vmatpush1.msra.mxu0 %v797
  %3645 = vmatprep.subr.mxu0 0.0
  %3646 = vmatpush1.msra.mxu0 %v796
  %3647 = vmatprep.subr.mxu0 0.0
  %3648 = vmatpush2.msra.mxu0 0.0
  %3649 = vmatprep.subr.mxu0 0.0
  %3650 = vmatpush2.msra.mxu0 0.0
  %3651 = vmatprep.subr.mxu0 0.0
  %3652 = vmatpush2.msra.mxu0 0.0
  %3653 = vmatprep.subr.mxu0 0.0
  %3654 = vmatpush2.msra.mxu0 0.0
  %3655 = vmatprep.subr.mxu0 0.0
  %3656 = vmatpush2.msra.mxu0 0.0
  %3657 = vmatprep.subr.mxu0 0.0
  %3658 = vmatpush2.msra.mxu0 0.0
  %3659 = vmatprep.subr.mxu0 0.0
  %3660 = vmatpush2.msra.mxu0 0.0
  %3661 = vmatprep.subr.mxu0 0.0
  %3662 = vmatpush2.msra.mxu0 0.0
  %3663 = vmatprep.subr.mxu0 0.0
  %3664 = vmatpush2.msra.mxu0 0.0
  %3665 = vmatprep.subr.mxu0 0.0
  %3666 = vmatpush2.msra.mxu0 0.0
  %3667 = vmatprep.subr.mxu0 0.0
  %3668 = vmatpush2.msra.mxu0 0.0
  %3669 = vmatprep.subr.mxu0 0.0
  %3670 = vmatpush2.msra.mxu0 0.0
  %3671 = vmatprep.subr.mxu0 0.0
  %3672 = vmatpush2.msra.mxu0 0.0
  %3673 = vmatprep.subr.mxu0 0.0
  %3674 = vmatpush2.msra.mxu0 0.0
  %3675 = vmatprep.subr.mxu0 0.0
  %3676 = vmatpush2.msra.mxu0 0.0
  %3677 = vmatprep.subr.mxu0 0.0
  %3678 = vmatpush2.msra.mxu0 0.0
  %3679 = vmatprep.mubr.f32.mxu0 0.0
  %3680 = vmatmul.mubr.f32.gmra.mxu0 %v3391
  %v3681 = vpop.f32.mrf.mxu0
  %v3682 = vadd.f32 %v3612, %v3681
  %v3683 = vpop.f32.mrf.mxu0
  %3684 = vdwg.mxu0
  %v3685 = vadd.f32 %v3682, %v1333
  %v3686 = vtanh.pop %v3685
  %3687 = vst.msk [vmem:[#allocation2 + $0x28] sm:$0xff] %vm104, %v3686
  %s3688 = scalar_lea.vmem %s3, 48
  %v3689 = vld [vmem:[%s3688] sm:$0xff]
  %3690 = vmatprep.subr.mxu0 0.0
  %3691 = vmatpush1.msra.mxu0 0.0
  %3692 = vmatprep.subr.mxu0 0.0
  %3693 = vmatpush1.msra.mxu0 0.0
  %3694 = vmatprep.subr.mxu0 0.0
  %3695 = vmatpush1.msra.mxu0 0.0
  %3696 = vmatprep.subr.mxu0 0.0
  %3697 = vmatpush1.msra.mxu0 0.0
  %3698 = vmatprep.subr.mxu0 0.0
  %3699 = vmatpush1.msra.mxu0 0.0
  %3700 = vmatprep.subr.mxu0 0.0
  %3701 = vmatpush1.msra.mxu0 0.0
  %3702 = vmatprep.subr.mxu0 0.0
  %3703 = vmatpush1.msra.mxu0 0.0
  %3704 = vmatprep.subr.mxu0 0.0
  %3705 = vmatpush1.msra.mxu0 0.0
  %3706 = vmatprep.subr.mxu0 0.0
  %3707 = vmatpush1.msra.mxu0 0.0
  %3708 = vmatprep.subr.mxu0 0.0
  %3709 = vmatpush1.msra.mxu0 0.0
  %3710 = vmatprep.subr.mxu0 0.0
  %3711 = vmatpush1.msra.mxu0 0.0
  %3712 = vmatprep.subr.mxu0 0.0
  %3713 = vmatpush1.msra.mxu0 0.0
  %3714 = vmatprep.subr.mxu0 0.0
  %3715 = vmatpush1.msra.mxu0 %v794
  %3716 = vmatprep.subr.mxu0 0.0
  %3717 = vmatpush1.msra.mxu0 %v793
  %3718 = vmatprep.subr.mxu0 0.0
  %3719 = vmatpush1.msra.mxu0 %v792
  %3720 = vmatprep.subr.mxu0 0.0
  %3721 = vmatpush1.msra.mxu0 %v791
  %3722 = vmatprep.subr.mxu0 0.0
  %3723 = vmatpush2.msra.mxu0 0.0
  %3724 = vmatprep.subr.mxu0 0.0
  %3725 = vmatpush2.msra.mxu0 0.0
  %3726 = vmatprep.subr.mxu0 0.0
  %3727 = vmatpush2.msra.mxu0 0.0
  %3728 = vmatprep.subr.mxu0 0.0
  %3729 = vmatpush2.msra.mxu0 0.0
  %3730 = vmatprep.subr.mxu0 0.0
  %3731 = vmatpush2.msra.mxu0 0.0
  %3732 = vmatprep.subr.mxu0 0.0
  %3733 = vmatpush2.msra.mxu0 0.0
  %3734 = vmatprep.subr.mxu0 0.0
  %3735 = vmatpush2.msra.mxu0 0.0
  %3736 = vmatprep.subr.mxu0 0.0
  %3737 = vmatpush2.msra.mxu0 0.0
  %3738 = vmatprep.subr.mxu0 0.0
  %3739 = vmatpush2.msra.mxu0 0.0
  %3740 = vmatprep.subr.mxu0 0.0
  %3741 = vmatpush2.msra.mxu0 0.0
  %3742 = vmatprep.subr.mxu0 0.0
  %3743 = vmatpush2.msra.mxu0 0.0
  %3744 = vmatprep.subr.mxu0 0.0
  %3745 = vmatpush2.msra.mxu0 0.0
  %3746 = vmatprep.subr.mxu0 0.0
  %3747 = vmatpush2.msra.mxu0 0.0
  %3748 = vmatprep.subr.mxu0 0.0
  %3749 = vmatpush2.msra.mxu0 0.0
  %3750 = vmatprep.subr.mxu0 0.0
  %3751 = vmatpush2.msra.mxu0 0.0
  %3752 = vmatprep.subr.mxu0 0.0
  %3753 = vmatpush2.msra.mxu0 0.0
  %3754 = vmatprep.mubr.f32.mxu0 0.0
  %3755 = vmatmul.mubr.f32.gmra.mxu0 %v3391
  %v3756 = vpop.f32.mrf.mxu0
  %v3757 = vadd.f32 0.0, %v3756
  %v3758 = vpop.f32.mrf.mxu0
  %3759 = vdwg.mxu0
  %v3761 = vsel %vm104, %v3689, 0
  %3763 = vmatprep.subr.mxu0 0.0
  %3764 = vmatpush1.msra.mxu0 0.0
  %3765 = vmatprep.subr.mxu0 0.0
  %3766 = vmatpush1.msra.mxu0 0.0
  %3767 = vmatprep.subr.mxu0 0.0
  %3768 = vmatpush1.msra.mxu0 0.0
  %3769 = vmatprep.subr.mxu0 0.0
  %3770 = vmatpush1.msra.mxu0 0.0
  %3771 = vmatprep.subr.mxu0 0.0
  %3772 = vmatpush1.msra.mxu0 0.0
  %3773 = vmatprep.subr.mxu0 0.0
  %3774 = vmatpush1.msra.mxu0 0.0
  %3775 = vmatprep.subr.mxu0 0.0
  %3776 = vmatpush1.msra.mxu0 0.0
  %3777 = vmatprep.subr.mxu0 0.0
  %3778 = vmatpush1.msra.mxu0 0.0
  %3779 = vmatprep.subr.mxu0 0.0
  %3780 = vmatpush1.msra.mxu0 0.0
  %3781 = vmatprep.subr.mxu0 0.0
  %3782 = vmatpush1.msra.mxu0 0.0
  %3783 = vmatprep.subr.mxu0 0.0
  %3784 = vmatpush1.msra.mxu0 0.0
  %3785 = vmatprep.subr.mxu0 0.0
  %3786 = vmatpush1.msra.mxu0 0.0
  %3787 = vmatprep.subr.mxu0 0.0
  %3788 = vmatpush1.msra.mxu0 %v790
  %3789 = vmatprep.subr.mxu0 0.0
  %3790 = vmatpush1.msra.mxu0 %v789
  %3791 = vmatprep.subr.mxu0 0.0
  %3792 = vmatpush1.msra.mxu0 %v788
  %3793 = vmatprep.subr.mxu0 0.0
  %3794 = vmatpush1.msra.mxu0 %v787
  %3795 = vmatprep.subr.mxu0 0.0
  %3796 = vmatpush2.msra.mxu0 0.0
  %3797 = vmatprep.subr.mxu0 0.0
  %3798 = vmatpush2.msra.mxu0 0.0
  %3799 = vmatprep.subr.mxu0 0.0
  %3800 = vmatpush2.msra.mxu0 0.0
  %3801 = vmatprep.subr.mxu0 0.0
  %3802 = vmatpush2.msra.mxu0 0.0
  %3803 = vmatprep.subr.mxu0 0.0
  %3804 = vmatpush2.msra.mxu0 0.0
  %3805 = vmatprep.subr.mxu0 0.0
  %3806 = vmatpush2.msra.mxu0 0.0
  %3807 = vmatprep.subr.mxu0 0.0
  %3808 = vmatpush2.msra.mxu0 0.0
  %3809 = vmatprep.subr.mxu0 0.0
  %3810 = vmatpush2.msra.mxu0 0.0
  %3811 = vmatprep.subr.mxu0 0.0
  %3812 = vmatpush2.msra.mxu0 0.0
  %3813 = vmatprep.subr.mxu0 0.0
  %3814 = vmatpush2.msra.mxu0 0.0
  %3815 = vmatprep.subr.mxu0 0.0
  %3816 = vmatpush2.msra.mxu0 0.0
  %3817 = vmatprep.subr.mxu0 0.0
  %3818 = vmatpush2.msra.mxu0 0.0
  %3819 = vmatprep.subr.mxu0 0.0
  %3820 = vmatpush2.msra.mxu0 0.0
  %3821 = vmatprep.subr.mxu0 0.0
  %3822 = vmatpush2.msra.mxu0 0.0
  %3823 = vmatprep.subr.mxu0 0.0
  %3824 = vmatpush2.msra.mxu0 0.0
  %3825 = vmatprep.subr.mxu0 0.0
  %3826 = vmatpush2.msra.mxu0 0.0
  %3827 = vmatprep.mubr.f32.mxu0 0.0
  %3828 = vmatmul.mubr.f32.gmra.mxu0 %v3761
  %v3829 = vpop.f32.mrf.mxu0
  %v3830 = vadd.f32 %v3757, %v3829
  %v3831 = vpop.f32.mrf.mxu0
  %3832 = vdwg.mxu0
  %v3833 = vadd.f32 %v3830, %v957
  %v3834 = vxor.u32 %v3833, 2147483648
  %v3835 = vmul.f32 %v3834, 1.442695
  %v3836 = vpow.pop %v3835
  %v3837 = vadd.f32 %v3836, 1.0
  %v3838 = vrcp.pop %v3837
  %v3839 = vmul.f32 1.0, %v3838
  %v3840 = vtanh.pop %v3833
  %v3841 = vmul.f32 %v3839, %v3381
  %3843 = vrot.lane.b32.xlu0 %v3840, 64
  %v3844 = vpop.permute.xlu0 %3843
  %v3846 = vmul.f32 %v3839, %v3844
  %3848 = vrot.lane.b32.xlu0 %v3846, 32
  %v3849 = vpop.permute.xlu0 %3848
  %v3851 = vadd.f32 %v3841, %v3849
  %v3852 = vtanh.pop %v3851
  %3854 = vrot.lane.b32.xlu0 %v3852, 64
  %v3855 = vpop.permute.xlu0 %3854
  %v3857 = vmul.f32 %v3839, %v3855
  %3859 = vrot.lane.b32.xlu0 %v3857, 32
  %v3860 = vpop.permute.xlu0 %3859
  %v3861 = vsel %vm104, %v3860, 0
  %3863 = vmatprep.subr.mxu0 0.0
  %3864 = vmatpush1.xpose.msra.mxu0 %v1035
  %3865 = vmatprep.subr.mxu0 0.0
  %3866 = vmatpush1.xpose.msra.mxu0 %v1032
  %3867 = vmatprep.subr.mxu0 0.0
  %3868 = vmatpush1.xpose.msra.mxu0 %v1029
  %3869 = vmatprep.subr.mxu0 0.0
  %3870 = vmatpush1.xpose.msra.mxu0 %v1026
  %3871 = vmatprep.subr.mxu0 0.0
  %3872 = vmatpush1.xpose.msra.mxu0 %v1023
  %3873 = vmatprep.subr.mxu0 0.0
  %3874 = vmatpush1.xpose.msra.mxu0 %v1020
  %3875 = vmatprep.subr.mxu0 0.0
  %3876 = vmatpush1.xpose.msra.mxu0 %v1017
  %3877 = vmatprep.subr.mxu0 0.0
  %3878 = vmatpush1.xpose.msra.mxu0 %v1014
  %3879 = vmatprep.subr.mxu0 0.0
  %3880 = vmatpush1.xpose.msra.mxu0 %v1011
  %3881 = vmatprep.subr.mxu0 0.0
  %3882 = vmatpush1.xpose.msra.mxu0 %v1008
  %3883 = vmatprep.subr.mxu0 0.0
  %3884 = vmatpush1.xpose.msra.mxu0 %v1005
  %3885 = vmatprep.subr.mxu0 0.0
  %3886 = vmatpush1.xpose.msra.mxu0 %v1002
  %3887 = vmatprep.subr.mxu0 0.0
  %3888 = vmatpush1.xpose.msra.mxu0 %v999
  %3889 = vmatprep.subr.mxu0 0.0
  %3890 = vmatpush1.xpose.msra.mxu0 %v996
  %3891 = vmatprep.subr.mxu0 0.0
  %3892 = vmatpush1.xpose.msra.mxu0 %v993
  %3893 = vmatprep.subr.mxu0 0.0
  %3894 = vmatpush1.xpose.msra.mxu0 %v990
  %3895 = vmatprep.subr.mxu0 0.0
  %3896 = vmatpush2.xpose.msra.mxu0 0.0
  %3897 = vmatprep.subr.mxu0 0.0
  %3898 = vmatpush2.xpose.msra.mxu0 0.0
  %3899 = vmatprep.subr.mxu0 0.0
  %3900 = vmatpush2.xpose.msra.mxu0 0.0
  %3901 = vmatprep.subr.mxu0 0.0
  %3902 = vmatpush2.xpose.msra.mxu0 0.0
  %3903 = vmatprep.subr.mxu0 0.0
  %3904 = vmatpush2.xpose.msra.mxu0 0.0
  %3905 = vmatprep.subr.mxu0 0.0
  %3906 = vmatpush2.xpose.msra.mxu0 0.0
  %3907 = vmatprep.subr.mxu0 0.0
  %3908 = vmatpush2.xpose.msra.mxu0 0.0
  %3909 = vmatprep.subr.mxu0 0.0
  %3910 = vmatpush2.xpose.msra.mxu0 0.0
  %3911 = vmatprep.subr.mxu0 0.0
  %3912 = vmatpush2.xpose.msra.mxu0 0.0
  %3913 = vmatprep.subr.mxu0 0.0
  %3914 = vmatpush2.xpose.msra.mxu0 0.0
  %3915 = vmatprep.subr.mxu0 0.0
  %3916 = vmatpush2.xpose.msra.mxu0 0.0
  %3917 = vmatprep.subr.mxu0 0.0
  %3918 = vmatpush2.xpose.msra.mxu0 0.0
  %3919 = vmatprep.subr.mxu0 0.0
  %3920 = vmatpush2.xpose.msra.mxu0 0.0
  %3921 = vmatprep.subr.mxu0 0.0
  %3922 = vmatpush2.xpose.msra.mxu0 0.0
  %3923 = vmatprep.subr.mxu0 0.0
  %3924 = vmatpush2.xpose.msra.mxu0 0.0
  %3925 = vmatprep.subr.mxu0 0.0
  %3926 = vmatpush2.xpose.msra.mxu0 0.0
  %3927 = vmatprep.mubr.f32.mxu0 0.0
  %3928 = vmatmul.mubr.f32.gmra.mxu0 %v3861
  %v3929 = vpop.f32.mrf.mxu0
  %v3930 = vadd.f32 %v805, %v3929
  %v3931 = vpop.f32.mrf.mxu0
  %3932 = vdwg.mxu0
  %3933 = vmax.xlane.f32.xlu0 %v3930
  %v3934 = vpop.xlane.xlu0 %3933
  %v3935 = vsub.f32 %v3930, %v3934
  %v3936 = vmul.f32 %v3935, 1.442695
  %v3937 = vpow.pop %v3936
  %3938 = vadd.xlane.f32.xlu0 %v3937
  %v3939 = vpop.xlane.xlu0 %3938
  %v3940 = vrcp.pop %v3939
  %v3941 = vmul.f32 %v3937, %v3940
  %3942 = vmatprep.subr.mxu0 0.0
  %3943 = vmatpush1.msra.mxu0 %v313
  %3944 = vmatprep.subr.mxu0 0.0
  %3945 = vmatpush1.msra.mxu0 %v312
  %3946 = vmatprep.subr.mxu0 0.0
  %3947 = vmatpush1.msra.mxu0 %v311
  %3948 = vmatprep.subr.mxu0 0.0
  %3949 = vmatpush1.msra.mxu0 %v310
  %3950 = vmatprep.subr.mxu0 0.0
  %3951 = vmatpush1.msra.mxu0 %v309
  %3952 = vmatprep.subr.mxu0 0.0
  %3953 = vmatpush1.msra.mxu0 %v308
  %3954 = vmatprep.subr.mxu0 0.0
  %3955 = vmatpush1.msra.mxu0 %v307
  %3956 = vmatprep.subr.mxu0 0.0
  %3957 = vmatpush1.msra.mxu0 %v306
  %3958 = vmatprep.subr.mxu0 0.0
  %3959 = vmatpush1.msra.mxu0 %v305
  %3960 = vmatprep.subr.mxu0 0.0
  %3961 = vmatpush1.msra.mxu0 %v304
  %3962 = vmatprep.subr.mxu0 0.0
  %3963 = vmatpush1.msra.mxu0 %v303
  %3964 = vmatprep.subr.mxu0 0.0
  %3965 = vmatpush1.msra.mxu0 %v302
  %3966 = vmatprep.subr.mxu0 0.0
  %3967 = vmatpush1.msra.mxu0 %v301
  %3968 = vmatprep.subr.mxu0 0.0
  %3969 = vmatpush1.msra.mxu0 %v300
  %3970 = vmatprep.subr.mxu0 0.0
  %3971 = vmatpush1.msra.mxu0 %v299
  %3972 = vmatprep.subr.mxu0 0.0
  %3973 = vmatpush1.msra.mxu0 %v298
  %3974 = vmatprep.subr.mxu0 0.0
  %3975 = vmatpush2.msra.mxu0 0.0
  %3976 = vmatprep.subr.mxu0 0.0
  %3977 = vmatpush2.msra.mxu0 0.0
  %3978 = vmatprep.subr.mxu0 0.0
  %3979 = vmatpush2.msra.mxu0 0.0
  %3980 = vmatprep.subr.mxu0 0.0
  %3981 = vmatpush2.msra.mxu0 0.0
  %3982 = vmatprep.subr.mxu0 0.0
  %3983 = vmatpush2.msra.mxu0 0.0
  %3984 = vmatprep.subr.mxu0 0.0
  %3985 = vmatpush2.msra.mxu0 0.0
  %3986 = vmatprep.subr.mxu0 0.0
  %3987 = vmatpush2.msra.mxu0 0.0
  %3988 = vmatprep.subr.mxu0 0.0
  %3989 = vmatpush2.msra.mxu0 0.0
  %3990 = vmatprep.subr.mxu0 0.0
  %3991 = vmatpush2.msra.mxu0 0.0
  %3992 = vmatprep.subr.mxu0 0.0
  %3993 = vmatpush2.msra.mxu0 0.0
  %3994 = vmatprep.subr.mxu0 0.0
  %3995 = vmatpush2.msra.mxu0 0.0
  %3996 = vmatprep.subr.mxu0 0.0
  %3997 = vmatpush2.msra.mxu0 0.0
  %3998 = vmatprep.subr.mxu0 0.0
  %3999 = vmatpush2.msra.mxu0 0.0
  %4000 = vmatprep.subr.mxu0 0.0
  %4001 = vmatpush2.msra.mxu0 0.0
  %4002 = vmatprep.subr.mxu0 0.0
  %4003 = vmatpush2.msra.mxu0 0.0
  %4004 = vmatprep.subr.mxu0 0.0
  %4005 = vmatpush2.msra.mxu0 0.0
  %4006 = vmatprep.mubr.f32.mxu0 0.0
  %4007 = vmatmul.mubr.f32.gmra.mxu0 %v3941
  %v4008 = vpop.f32.mrf.mxu0
  %v4009 = vadd.f32 0.0, %v4008
  %v4010 = vpop.f32.mrf.mxu0
  %4011 = vdwg.mxu0
  %v4013 = vsel %vm104, %v4009, 0
  %4015 = vmatprep.subr.mxu0 0.0
  %4016 = vmatpush1.msra.mxu0 0.0
  %4017 = vmatprep.subr.mxu0 0.0
  %4018 = vmatpush1.msra.mxu0 0.0
  %4019 = vmatprep.subr.mxu0 0.0
  %4020 = vmatpush1.msra.mxu0 0.0
  %4021 = vmatprep.subr.mxu0 0.0
  %4022 = vmatpush1.msra.mxu0 0.0
  %4023 = vmatprep.subr.mxu0 0.0
  %4024 = vmatpush1.msra.mxu0 0.0
  %4025 = vmatprep.subr.mxu0 0.0
  %4026 = vmatpush1.msra.mxu0 0.0
  %4027 = vmatprep.subr.mxu0 0.0
  %4028 = vmatpush1.msra.mxu0 0.0
  %4029 = vmatprep.subr.mxu0 0.0
  %4030 = vmatpush1.msra.mxu0 0.0
  %4031 = vmatprep.subr.mxu0 0.0
  %4032 = vmatpush1.msra.mxu0 0.0
  %4033 = vmatprep.subr.mxu0 0.0
  %4034 = vmatpush1.msra.mxu0 0.0
  %4035 = vmatprep.subr.mxu0 0.0
  %4036 = vmatpush1.msra.mxu0 0.0
  %4037 = vmatprep.subr.mxu0 0.0
  %4038 = vmatpush1.msra.mxu0 0.0
  %4039 = vmatprep.subr.mxu0 0.0
  %4040 = vmatpush1.msra.mxu0 %v803
  %4041 = vmatprep.subr.mxu0 0.0
  %4042 = vmatpush1.msra.mxu0 %v802
  %4043 = vmatprep.subr.mxu0 0.0
  %4044 = vmatpush1.msra.mxu0 %v801
  %4045 = vmatprep.subr.mxu0 0.0
  %4046 = vmatpush1.msra.mxu0 %v800
  %4047 = vmatprep.subr.mxu0 0.0
  %4048 = vmatpush2.msra.mxu0 0.0
  %4049 = vmatprep.subr.mxu0 0.0
  %4050 = vmatpush2.msra.mxu0 0.0
  %4051 = vmatprep.subr.mxu0 0.0
  %4052 = vmatpush2.msra.mxu0 0.0
  %4053 = vmatprep.subr.mxu0 0.0
  %4054 = vmatpush2.msra.mxu0 0.0
  %4055 = vmatprep.subr.mxu0 0.0
  %4056 = vmatpush2.msra.mxu0 0.0
  %4057 = vmatprep.subr.mxu0 0.0
  %4058 = vmatpush2.msra.mxu0 0.0
  %4059 = vmatprep.subr.mxu0 0.0
  %4060 = vmatpush2.msra.mxu0 0.0
  %4061 = vmatprep.subr.mxu0 0.0
  %4062 = vmatpush2.msra.mxu0 0.0
  %4063 = vmatprep.subr.mxu0 0.0
  %4064 = vmatpush2.msra.mxu0 0.0
  %4065 = vmatprep.subr.mxu0 0.0
  %4066 = vmatpush2.msra.mxu0 0.0
  %4067 = vmatprep.subr.mxu0 0.0
  %4068 = vmatpush2.msra.mxu0 0.0
  %4069 = vmatprep.subr.mxu0 0.0
  %4070 = vmatpush2.msra.mxu0 0.0
  %4071 = vmatprep.subr.mxu0 0.0
  %4072 = vmatpush2.msra.mxu0 0.0
  %4073 = vmatprep.subr.mxu0 0.0
  %4074 = vmatpush2.msra.mxu0 0.0
  %4075 = vmatprep.subr.mxu0 0.0
  %4076 = vmatpush2.msra.mxu0 0.0
  %4077 = vmatprep.subr.mxu0 0.0
  %4078 = vmatpush2.msra.mxu0 0.0
  %4079 = vmatprep.mubr.f32.mxu0 0.0
  %4080 = vmatmul.mubr.f32.gmra.mxu0 %v4013
  %v4081 = vpop.f32.mrf.mxu0
  %v4082 = vadd.f32 0.0, %v4081
  %v4083 = vpop.f32.mrf.mxu0
  %4084 = vdwg.mxu0
  %4085 = vmatprep.subr.mxu0 0.0
  %4086 = vmatpush1.msra.mxu0 0.0
  %4087 = vmatprep.subr.mxu0 0.0
  %4088 = vmatpush1.msra.mxu0 0.0
  %4089 = vmatprep.subr.mxu0 0.0
  %4090 = vmatpush1.msra.mxu0 0.0
  %4091 = vmatprep.subr.mxu0 0.0
  %4092 = vmatpush1.msra.mxu0 0.0
  %4093 = vmatprep.subr.mxu0 0.0
  %4094 = vmatpush1.msra.mxu0 0.0
  %4095 = vmatprep.subr.mxu0 0.0
  %4096 = vmatpush1.msra.mxu0 0.0
  %4097 = vmatprep.subr.mxu0 0.0
  %4098 = vmatpush1.msra.mxu0 0.0
  %4099 = vmatprep.subr.mxu0 0.0
  %4100 = vmatpush1.msra.mxu0 0.0
  %4101 = vmatprep.subr.mxu0 0.0
  %4102 = vmatpush1.msra.mxu0 0.0
  %4103 = vmatprep.subr.mxu0 0.0
  %4104 = vmatpush1.msra.mxu0 0.0
  %4105 = vmatprep.subr.mxu0 0.0
  %4106 = vmatpush1.msra.mxu0 0.0
  %4107 = vmatprep.subr.mxu0 0.0
  %4108 = vmatpush1.msra.mxu0 0.0
  %4109 = vmatprep.subr.mxu0 0.0
  %4110 = vmatpush1.msra.mxu0 %v799
  %4111 = vmatprep.subr.mxu0 0.0
  %4112 = vmatpush1.msra.mxu0 %v798
  %4113 = vmatprep.subr.mxu0 0.0
  %4114 = vmatpush1.msra.mxu0 %v797
  %4115 = vmatprep.subr.mxu0 0.0
  %4116 = vmatpush1.msra.mxu0 %v796
  %4117 = vmatprep.subr.mxu0 0.0
  %4118 = vmatpush2.msra.mxu0 0.0
  %4119 = vmatprep.subr.mxu0 0.0
  %4120 = vmatpush2.msra.mxu0 0.0
  %4121 = vmatprep.subr.mxu0 0.0
  %4122 = vmatpush2.msra.mxu0 0.0
  %4123 = vmatprep.subr.mxu0 0.0
  %4124 = vmatpush2.msra.mxu0 0.0
  %4125 = vmatprep.subr.mxu0 0.0
  %4126 = vmatpush2.msra.mxu0 0.0
  %4127 = vmatprep.subr.mxu0 0.0
  %4128 = vmatpush2.msra.mxu0 0.0
  %4129 = vmatprep.subr.mxu0 0.0
  %4130 = vmatpush2.msra.mxu0 0.0
  %4131 = vmatprep.subr.mxu0 0.0
  %4132 = vmatpush2.msra.mxu0 0.0
  %4133 = vmatprep.subr.mxu0 0.0
  %4134 = vmatpush2.msra.mxu0 0.0
  %4135 = vmatprep.subr.mxu0 0.0
  %4136 = vmatpush2.msra.mxu0 0.0
  %4137 = vmatprep.subr.mxu0 0.0
  %4138 = vmatpush2.msra.mxu0 0.0
  %4139 = vmatprep.subr.mxu0 0.0
  %4140 = vmatpush2.msra.mxu0 0.0
  %4141 = vmatprep.subr.mxu0 0.0
  %4142 = vmatpush2.msra.mxu0 0.0
  %4143 = vmatprep.subr.mxu0 0.0
  %4144 = vmatpush2.msra.mxu0 0.0
  %4145 = vmatprep.subr.mxu0 0.0
  %4146 = vmatpush2.msra.mxu0 0.0
  %4147 = vmatprep.subr.mxu0 0.0
  %4148 = vmatpush2.msra.mxu0 0.0
  %4149 = vmatprep.mubr.f32.mxu0 0.0
  %4150 = vmatmul.mubr.f32.gmra.mxu0 %v3861
  %v4151 = vpop.f32.mrf.mxu0
  %v4152 = vadd.f32 %v4082, %v4151
  %v4153 = vpop.f32.mrf.mxu0
  %4154 = vdwg.mxu0
  %v4155 = vadd.f32 %v4152, %v1333
  %v4156 = vtanh.pop %v4155
  %4157 = vst.msk [vmem:[#allocation2 + $0x30] sm:$0xff] %vm104, %v4156
  %s4158 = scalar_lea.vmem %s3, 56
  %v4159 = vld [vmem:[%s4158] sm:$0xff]
  %4160 = vmatprep.subr.mxu0 0.0
  %4161 = vmatpush1.msra.mxu0 0.0
  %4162 = vmatprep.subr.mxu0 0.0
  %4163 = vmatpush1.msra.mxu0 0.0
  %4164 = vmatprep.subr.mxu0 0.0
  %4165 = vmatpush1.msra.mxu0 0.0
  %4166 = vmatprep.subr.mxu0 0.0
  %4167 = vmatpush1.msra.mxu0 0.0
  %4168 = vmatprep.subr.mxu0 0.0
  %4169 = vmatpush1.msra.mxu0 0.0
  %4170 = vmatprep.subr.mxu0 0.0
  %4171 = vmatpush1.msra.mxu0 0.0
  %4172 = vmatprep.subr.mxu0 0.0
  %4173 = vmatpush1.msra.mxu0 0.0
  %4174 = vmatprep.subr.mxu0 0.0
  %4175 = vmatpush1.msra.mxu0 0.0
  %4176 = vmatprep.subr.mxu0 0.0
  %4177 = vmatpush1.msra.mxu0 0.0
  %4178 = vmatprep.subr.mxu0 0.0
  %4179 = vmatpush1.msra.mxu0 0.0
  %4180 = vmatprep.subr.mxu0 0.0
  %4181 = vmatpush1.msra.mxu0 0.0
  %4182 = vmatprep.subr.mxu0 0.0
  %4183 = vmatpush1.msra.mxu0 0.0
  %4184 = vmatprep.subr.mxu0 0.0
  %4185 = vmatpush1.msra.mxu0 %v794
  %4186 = vmatprep.subr.mxu0 0.0
  %4187 = vmatpush1.msra.mxu0 %v793
  %4188 = vmatprep.subr.mxu0 0.0
  %4189 = vmatpush1.msra.mxu0 %v792
  %4190 = vmatprep.subr.mxu0 0.0
  %4191 = vmatpush1.msra.mxu0 %v791
  %4192 = vmatprep.subr.mxu0 0.0
  %4193 = vmatpush2.msra.mxu0 0.0
  %4194 = vmatprep.subr.mxu0 0.0
  %4195 = vmatpush2.msra.mxu0 0.0
  %4196 = vmatprep.subr.mxu0 0.0
  %4197 = vmatpush2.msra.mxu0 0.0
  %4198 = vmatprep.subr.mxu0 0.0
  %4199 = vmatpush2.msra.mxu0 0.0
  %4200 = vmatprep.subr.mxu0 0.0
  %4201 = vmatpush2.msra.mxu0 0.0
  %4202 = vmatprep.subr.mxu0 0.0
  %4203 = vmatpush2.msra.mxu0 0.0
  %4204 = vmatprep.subr.mxu0 0.0
  %4205 = vmatpush2.msra.mxu0 0.0
  %4206 = vmatprep.subr.mxu0 0.0
  %4207 = vmatpush2.msra.mxu0 0.0
  %4208 = vmatprep.subr.mxu0 0.0
  %4209 = vmatpush2.msra.mxu0 0.0
  %4210 = vmatprep.subr.mxu0 0.0
  %4211 = vmatpush2.msra.mxu0 0.0
  %4212 = vmatprep.subr.mxu0 0.0
  %4213 = vmatpush2.msra.mxu0 0.0
  %4214 = vmatprep.subr.mxu0 0.0
  %4215 = vmatpush2.msra.mxu0 0.0
  %4216 = vmatprep.subr.mxu0 0.0
  %4217 = vmatpush2.msra.mxu0 0.0
  %4218 = vmatprep.subr.mxu0 0.0
  %4219 = vmatpush2.msra.mxu0 0.0
  %4220 = vmatprep.subr.mxu0 0.0
  %4221 = vmatpush2.msra.mxu0 0.0
  %4222 = vmatprep.subr.mxu0 0.0
  %4223 = vmatpush2.msra.mxu0 0.0
  %4224 = vmatprep.mubr.f32.mxu0 0.0
  %4225 = vmatmul.mubr.f32.gmra.mxu0 %v3861
  %v4226 = vpop.f32.mrf.mxu0
  %v4227 = vadd.f32 0.0, %v4226
  %v4228 = vpop.f32.mrf.mxu0
  %4229 = vdwg.mxu0
  %v4231 = vsel %vm104, %v4159, 0
  %4233 = vmatprep.subr.mxu0 0.0
  %4234 = vmatpush1.msra.mxu0 0.0
  %4235 = vmatprep.subr.mxu0 0.0
  %4236 = vmatpush1.msra.mxu0 0.0
  %4237 = vmatprep.subr.mxu0 0.0
  %4238 = vmatpush1.msra.mxu0 0.0
  %4239 = vmatprep.subr.mxu0 0.0
  %4240 = vmatpush1.msra.mxu0 0.0
  %4241 = vmatprep.subr.mxu0 0.0
  %4242 = vmatpush1.msra.mxu0 0.0
  %4243 = vmatprep.subr.mxu0 0.0
  %4244 = vmatpush1.msra.mxu0 0.0
  %4245 = vmatprep.subr.mxu0 0.0
  %4246 = vmatpush1.msra.mxu0 0.0
  %4247 = vmatprep.subr.mxu0 0.0
  %4248 = vmatpush1.msra.mxu0 0.0
  %4249 = vmatprep.subr.mxu0 0.0
  %4250 = vmatpush1.msra.mxu0 0.0
  %4251 = vmatprep.subr.mxu0 0.0
  %4252 = vmatpush1.msra.mxu0 0.0
  %4253 = vmatprep.subr.mxu0 0.0
  %4254 = vmatpush1.msra.mxu0 0.0
  %4255 = vmatprep.subr.mxu0 0.0
  %4256 = vmatpush1.msra.mxu0 0.0
  %4257 = vmatprep.subr.mxu0 0.0
  %4258 = vmatpush1.msra.mxu0 %v790
  %4259 = vmatprep.subr.mxu0 0.0
  %4260 = vmatpush1.msra.mxu0 %v789
  %4261 = vmatprep.subr.mxu0 0.0
  %4262 = vmatpush1.msra.mxu0 %v788
  %4263 = vmatprep.subr.mxu0 0.0
  %4264 = vmatpush1.msra.mxu0 %v787
  %4265 = vmatprep.subr.mxu0 0.0
  %4266 = vmatpush2.msra.mxu0 0.0
  %4267 = vmatprep.subr.mxu0 0.0
  %4268 = vmatpush2.msra.mxu0 0.0
  %4269 = vmatprep.subr.mxu0 0.0
  %4270 = vmatpush2.msra.mxu0 0.0
  %4271 = vmatprep.subr.mxu0 0.0
  %4272 = vmatpush2.msra.mxu0 0.0
  %4273 = vmatprep.subr.mxu0 0.0
  %4274 = vmatpush2.msra.mxu0 0.0
  %4275 = vmatprep.subr.mxu0 0.0
  %4276 = vmatpush2.msra.mxu0 0.0
  %4277 = vmatprep.subr.mxu0 0.0
  %4278 = vmatpush2.msra.mxu0 0.0
  %4279 = vmatprep.subr.mxu0 0.0
  %4280 = vmatpush2.msra.mxu0 0.0
  %4281 = vmatprep.subr.mxu0 0.0
  %4282 = vmatpush2.msra.mxu0 0.0
  %4283 = vmatprep.subr.mxu0 0.0
  %4284 = vmatpush2.msra.mxu0 0.0
  %4285 = vmatprep.subr.mxu0 0.0
  %4286 = vmatpush2.msra.mxu0 0.0
  %4287 = vmatprep.subr.mxu0 0.0
  %4288 = vmatpush2.msra.mxu0 0.0
  %4289 = vmatprep.subr.mxu0 0.0
  %4290 = vmatpush2.msra.mxu0 0.0
  %4291 = vmatprep.subr.mxu0 0.0
  %4292 = vmatpush2.msra.mxu0 0.0
  %4293 = vmatprep.subr.mxu0 0.0
  %4294 = vmatpush2.msra.mxu0 0.0
  %4295 = vmatprep.subr.mxu0 0.0
  %4296 = vmatpush2.msra.mxu0 0.0
  %4297 = vmatprep.mubr.f32.mxu0 0.0
  %4298 = vmatmul.mubr.f32.gmra.mxu0 %v4231
  %v4299 = vpop.f32.mrf.mxu0
  %v4300 = vadd.f32 %v4227, %v4299
  %v4301 = vpop.f32.mrf.mxu0
  %4302 = vdwg.mxu0
  %v4303 = vadd.f32 %v4300, %v957
  %v4304 = vxor.u32 %v4303, 2147483648
  %v4305 = vmul.f32 %v4304, 1.442695
  %v4306 = vpow.pop %v4305
  %v4307 = vadd.f32 %v4306, 1.0
  %v4308 = vrcp.pop %v4307
  %v4309 = vmul.f32 1.0, %v4308
  %v4310 = vtanh.pop %v4303
  %v4311 = vmul.f32 %v4309, %v3851
  %4313 = vrot.lane.b32.xlu0 %v4310, 64
  %v4314 = vpop.permute.xlu0 %4313
  %v4316 = vmul.f32 %v4309, %v4314
  %4318 = vrot.lane.b32.xlu0 %v4316, 32
  %v4319 = vpop.permute.xlu0 %4318
  %v4321 = vadd.f32 %v4311, %v4319
  %v4322 = vtanh.pop %v4321
  %4324 = vrot.lane.b32.xlu0 %v4322, 64
  %v4325 = vpop.permute.xlu0 %4324
  %v4327 = vmul.f32 %v4309, %v4325
  %4329 = vrot.lane.b32.xlu0 %v4327, 32
  %v4330 = vpop.permute.xlu0 %4329
  %v4331 = vsel %vm104, %v4330, 0
  %4333 = vmatprep.subr.mxu0 0.0
  %4334 = vmatpush1.xpose.msra.mxu0 %v1035
  %4335 = vmatprep.subr.mxu0 0.0
  %4336 = vmatpush1.xpose.msra.mxu0 %v1032
  %4337 = vmatprep.subr.mxu0 0.0
  %4338 = vmatpush1.xpose.msra.mxu0 %v1029
  %4339 = vmatprep.subr.mxu0 0.0
  %4340 = vmatpush1.xpose.msra.mxu0 %v1026
  %4341 = vmatprep.subr.mxu0 0.0
  %4342 = vmatpush1.xpose.msra.mxu0 %v1023
  %4343 = vmatprep.subr.mxu0 0.0
  %4344 = vmatpush1.xpose.msra.mxu0 %v1020
  %4345 = vmatprep.subr.mxu0 0.0
  %4346 = vmatpush1.xpose.msra.mxu0 %v1017
  %4347 = vmatprep.subr.mxu0 0.0
  %4348 = vmatpush1.xpose.msra.mxu0 %v1014
  %4349 = vmatprep.subr.mxu0 0.0
  %4350 = vmatpush1.xpose.msra.mxu0 %v1011
  %4351 = vmatprep.subr.mxu0 0.0
  %4352 = vmatpush1.xpose.msra.mxu0 %v1008
  %4353 = vmatprep.subr.mxu0 0.0
  %4354 = vmatpush1.xpose.msra.mxu0 %v1005
  %4355 = vmatprep.subr.mxu0 0.0
  %4356 = vmatpush1.xpose.msra.mxu0 %v1002
  %4357 = vmatprep.subr.mxu0 0.0
  %4358 = vmatpush1.xpose.msra.mxu0 %v999
  %4359 = vmatprep.subr.mxu0 0.0
  %4360 = vmatpush1.xpose.msra.mxu0 %v996
  %4361 = vmatprep.subr.mxu0 0.0
  %4362 = vmatpush1.xpose.msra.mxu0 %v993
  %4363 = vmatprep.subr.mxu0 0.0
  %4364 = vmatpush1.xpose.msra.mxu0 %v990
  %4365 = vmatprep.subr.mxu0 0.0
  %4366 = vmatpush2.xpose.msra.mxu0 0.0
  %4367 = vmatprep.subr.mxu0 0.0
  %4368 = vmatpush2.xpose.msra.mxu0 0.0
  %4369 = vmatprep.subr.mxu0 0.0
  %4370 = vmatpush2.xpose.msra.mxu0 0.0
  %4371 = vmatprep.subr.mxu0 0.0
  %4372 = vmatpush2.xpose.msra.mxu0 0.0
  %4373 = vmatprep.subr.mxu0 0.0
  %4374 = vmatpush2.xpose.msra.mxu0 0.0
  %4375 = vmatprep.subr.mxu0 0.0
  %4376 = vmatpush2.xpose.msra.mxu0 0.0
  %4377 = vmatprep.subr.mxu0 0.0
  %4378 = vmatpush2.xpose.msra.mxu0 0.0
  %4379 = vmatprep.subr.mxu0 0.0
  %4380 = vmatpush2.xpose.msra.mxu0 0.0
  %4381 = vmatprep.subr.mxu0 0.0
  %4382 = vmatpush2.xpose.msra.mxu0 0.0
  %4383 = vmatprep.subr.mxu0 0.0
  %4384 = vmatpush2.xpose.msra.mxu0 0.0
  %4385 = vmatprep.subr.mxu0 0.0
  %4386 = vmatpush2.xpose.msra.mxu0 0.0
  %4387 = vmatprep.subr.mxu0 0.0
  %4388 = vmatpush2.xpose.msra.mxu0 0.0
  %4389 = vmatprep.subr.mxu0 0.0
  %4390 = vmatpush2.xpose.msra.mxu0 0.0
  %4391 = vmatprep.subr.mxu0 0.0
  %4392 = vmatpush2.xpose.msra.mxu0 0.0
  %4393 = vmatprep.subr.mxu0 0.0
  %4394 = vmatpush2.xpose.msra.mxu0 0.0
  %4395 = vmatprep.subr.mxu0 0.0
  %4396 = vmatpush2.xpose.msra.mxu0 0.0
  %4397 = vmatprep.mubr.f32.mxu0 0.0
  %4398 = vmatmul.mubr.f32.gmra.mxu0 %v4331
  %v4399 = vpop.f32.mrf.mxu0
  %v4400 = vadd.f32 %v805, %v4399
  %v4401 = vpop.f32.mrf.mxu0
  %4402 = vdwg.mxu0
  %4403 = vmax.xlane.f32.xlu0 %v4400
  %v4404 = vpop.xlane.xlu0 %4403
  %v4405 = vsub.f32 %v4400, %v4404
  %v4406 = vmul.f32 %v4405, 1.442695
  %v4407 = vpow.pop %v4406
  %4408 = vadd.xlane.f32.xlu0 %v4407
  %v4409 = vpop.xlane.xlu0 %4408
  %v4410 = vrcp.pop %v4409
  %v4411 = vmul.f32 %v4407, %v4410
  %4412 = vmatprep.subr.mxu0 0.0
  %4413 = vmatpush1.msra.mxu0 %v313
  %4414 = vmatprep.subr.mxu0 0.0
  %4415 = vmatpush1.msra.mxu0 %v312
  %4416 = vmatprep.subr.mxu0 0.0
  %4417 = vmatpush1.msra.mxu0 %v311
  %4418 = vmatprep.subr.mxu0 0.0
  %4419 = vmatpush1.msra.mxu0 %v310
  %4420 = vmatprep.subr.mxu0 0.0
  %4421 = vmatpush1.msra.mxu0 %v309
  %4422 = vmatprep.subr.mxu0 0.0
  %4423 = vmatpush1.msra.mxu0 %v308
  %4424 = vmatprep.subr.mxu0 0.0
  %4425 = vmatpush1.msra.mxu0 %v307
  %4426 = vmatprep.subr.mxu0 0.0
  %4427 = vmatpush1.msra.mxu0 %v306
  %4428 = vmatprep.subr.mxu0 0.0
  %4429 = vmatpush1.msra.mxu0 %v305
  %4430 = vmatprep.subr.mxu0 0.0
  %4431 = vmatpush1.msra.mxu0 %v304
  %4432 = vmatprep.subr.mxu0 0.0
  %4433 = vmatpush1.msra.mxu0 %v303
  %4434 = vmatprep.subr.mxu0 0.0
  %4435 = vmatpush1.msra.mxu0 %v302
  %4436 = vmatprep.subr.mxu0 0.0
  %4437 = vmatpush1.msra.mxu0 %v301
  %4438 = vmatprep.subr.mxu0 0.0
  %4439 = vmatpush1.msra.mxu0 %v300
  %4440 = vmatprep.subr.mxu0 0.0
  %4441 = vmatpush1.msra.mxu0 %v299
  %4442 = vmatprep.subr.mxu0 0.0
  %4443 = vmatpush1.msra.mxu0 %v298
  %4444 = vmatprep.subr.mxu0 0.0
  %4445 = vmatpush2.msra.mxu0 0.0
  %4446 = vmatprep.subr.mxu0 0.0
  %4447 = vmatpush2.msra.mxu0 0.0
  %4448 = vmatprep.subr.mxu0 0.0
  %4449 = vmatpush2.msra.mxu0 0.0
  %4450 = vmatprep.subr.mxu0 0.0
  %4451 = vmatpush2.msra.mxu0 0.0
  %4452 = vmatprep.subr.mxu0 0.0
  %4453 = vmatpush2.msra.mxu0 0.0
  %4454 = vmatprep.subr.mxu0 0.0
  %4455 = vmatpush2.msra.mxu0 0.0
  %4456 = vmatprep.subr.mxu0 0.0
  %4457 = vmatpush2.msra.mxu0 0.0
  %4458 = vmatprep.subr.mxu0 0.0
  %4459 = vmatpush2.msra.mxu0 0.0
  %4460 = vmatprep.subr.mxu0 0.0
  %4461 = vmatpush2.msra.mxu0 0.0
  %4462 = vmatprep.subr.mxu0 0.0
  %4463 = vmatpush2.msra.mxu0 0.0
  %4464 = vmatprep.subr.mxu0 0.0
  %4465 = vmatpush2.msra.mxu0 0.0
  %4466 = vmatprep.subr.mxu0 0.0
  %4467 = vmatpush2.msra.mxu0 0.0
  %4468 = vmatprep.subr.mxu0 0.0
  %4469 = vmatpush2.msra.mxu0 0.0
  %4470 = vmatprep.subr.mxu0 0.0
  %4471 = vmatpush2.msra.mxu0 0.0
  %4472 = vmatprep.subr.mxu0 0.0
  %4473 = vmatpush2.msra.mxu0 0.0
  %4474 = vmatprep.subr.mxu0 0.0
  %4475 = vmatpush2.msra.mxu0 0.0
  %4476 = vmatprep.mubr.f32.mxu0 0.0
  %4477 = vmatmul.mubr.f32.gmra.mxu0 %v4411
  %v4478 = vpop.f32.mrf.mxu0
  %v4479 = vadd.f32 0.0, %v4478
  %v4480 = vpop.f32.mrf.mxu0
  %4481 = vdwg.mxu0
  %v4483 = vsel %vm104, %v4479, 0
  %4485 = vmatprep.subr.mxu0 0.0
  %4486 = vmatpush1.msra.mxu0 0.0
  %4487 = vmatprep.subr.mxu0 0.0
  %4488 = vmatpush1.msra.mxu0 0.0
  %4489 = vmatprep.subr.mxu0 0.0
  %4490 = vmatpush1.msra.mxu0 0.0
  %4491 = vmatprep.subr.mxu0 0.0
  %4492 = vmatpush1.msra.mxu0 0.0
  %4493 = vmatprep.subr.mxu0 0.0
  %4494 = vmatpush1.msra.mxu0 0.0
  %4495 = vmatprep.subr.mxu0 0.0
  %4496 = vmatpush1.msra.mxu0 0.0
  %4497 = vmatprep.subr.mxu0 0.0
  %4498 = vmatpush1.msra.mxu0 0.0
  %4499 = vmatprep.subr.mxu0 0.0
  %4500 = vmatpush1.msra.mxu0 0.0
  %4501 = vmatprep.subr.mxu0 0.0
  %4502 = vmatpush1.msra.mxu0 0.0
  %4503 = vmatprep.subr.mxu0 0.0
  %4504 = vmatpush1.msra.mxu0 0.0
  %4505 = vmatprep.subr.mxu0 0.0
  %4506 = vmatpush1.msra.mxu0 0.0
  %4507 = vmatprep.subr.mxu0 0.0
  %4508 = vmatpush1.msra.mxu0 0.0
  %4509 = vmatprep.subr.mxu0 0.0
  %4510 = vmatpush1.msra.mxu0 %v803
  %4511 = vmatprep.subr.mxu0 0.0
  %4512 = vmatpush1.msra.mxu0 %v802
  %4513 = vmatprep.subr.mxu0 0.0
  %4514 = vmatpush1.msra.mxu0 %v801
  %4515 = vmatprep.subr.mxu0 0.0
  %4516 = vmatpush1.msra.mxu0 %v800
  %4517 = vmatprep.subr.mxu0 0.0
  %4518 = vmatpush2.msra.mxu0 0.0
  %4519 = vmatprep.subr.mxu0 0.0
  %4520 = vmatpush2.msra.mxu0 0.0
  %4521 = vmatprep.subr.mxu0 0.0
  %4522 = vmatpush2.msra.mxu0 0.0
  %4523 = vmatprep.subr.mxu0 0.0
  %4524 = vmatpush2.msra.mxu0 0.0
  %4525 = vmatprep.subr.mxu0 0.0
  %4526 = vmatpush2.msra.mxu0 0.0
  %4527 = vmatprep.subr.mxu0 0.0
  %4528 = vmatpush2.msra.mxu0 0.0
  %4529 = vmatprep.subr.mxu0 0.0
  %4530 = vmatpush2.msra.mxu0 0.0
  %4531 = vmatprep.subr.mxu0 0.0
  %4532 = vmatpush2.msra.mxu0 0.0
  %4533 = vmatprep.subr.mxu0 0.0
  %4534 = vmatpush2.msra.mxu0 0.0
  %4535 = vmatprep.subr.mxu0 0.0
  %4536 = vmatpush2.msra.mxu0 0.0
  %4537 = vmatprep.subr.mxu0 0.0
  %4538 = vmatpush2.msra.mxu0 0.0
  %4539 = vmatprep.subr.mxu0 0.0
  %4540 = vmatpush2.msra.mxu0 0.0
  %4541 = vmatprep.subr.mxu0 0.0
  %4542 = vmatpush2.msra.mxu0 0.0
  %4543 = vmatprep.subr.mxu0 0.0
  %4544 = vmatpush2.msra.mxu0 0.0
  %4545 = vmatprep.subr.mxu0 0.0
  %4546 = vmatpush2.msra.mxu0 0.0
  %4547 = vmatprep.subr.mxu0 0.0
  %4548 = vmatpush2.msra.mxu0 0.0
  %4549 = vmatprep.mubr.f32.mxu0 0.0
  %4550 = vmatmul.mubr.f32.gmra.mxu0 %v4483
  %v4551 = vpop.f32.mrf.mxu0
  %v4552 = vadd.f32 0.0, %v4551
  %v4553 = vpop.f32.mrf.mxu0
  %4554 = vdwg.mxu0
  %4555 = vmatprep.subr.mxu0 0.0
  %4556 = vmatpush1.msra.mxu0 0.0
  %4557 = vmatprep.subr.mxu0 0.0
  %4558 = vmatpush1.msra.mxu0 0.0
  %4559 = vmatprep.subr.mxu0 0.0
  %4560 = vmatpush1.msra.mxu0 0.0
  %4561 = vmatprep.subr.mxu0 0.0
  %4562 = vmatpush1.msra.mxu0 0.0
  %4563 = vmatprep.subr.mxu0 0.0
  %4564 = vmatpush1.msra.mxu0 0.0
  %4565 = vmatprep.subr.mxu0 0.0
  %4566 = vmatpush1.msra.mxu0 0.0
  %4567 = vmatprep.subr.mxu0 0.0
  %4568 = vmatpush1.msra.mxu0 0.0
  %4569 = vmatprep.subr.mxu0 0.0
  %4570 = vmatpush1.msra.mxu0 0.0
  %4571 = vmatprep.subr.mxu0 0.0
  %4572 = vmatpush1.msra.mxu0 0.0
  %4573 = vmatprep.subr.mxu0 0.0
  %4574 = vmatpush1.msra.mxu0 0.0
  %4575 = vmatprep.subr.mxu0 0.0
  %4576 = vmatpush1.msra.mxu0 0.0
  %4577 = vmatprep.subr.mxu0 0.0
  %4578 = vmatpush1.msra.mxu0 0.0
  %4579 = vmatprep.subr.mxu0 0.0
  %4580 = vmatpush1.msra.mxu0 %v799
  %4581 = vmatprep.subr.mxu0 0.0
  %4582 = vmatpush1.msra.mxu0 %v798
  %4583 = vmatprep.subr.mxu0 0.0
  %4584 = vmatpush1.msra.mxu0 %v797
  %4585 = vmatprep.subr.mxu0 0.0
  %4586 = vmatpush1.msra.mxu0 %v796
  %4587 = vmatprep.subr.mxu0 0.0
  %4588 = vmatpush2.msra.mxu0 0.0
  %4589 = vmatprep.subr.mxu0 0.0
  %4590 = vmatpush2.msra.mxu0 0.0
  %4591 = vmatprep.subr.mxu0 0.0
  %4592 = vmatpush2.msra.mxu0 0.0
  %4593 = vmatprep.subr.mxu0 0.0
  %4594 = vmatpush2.msra.mxu0 0.0
  %4595 = vmatprep.subr.mxu0 0.0
  %4596 = vmatpush2.msra.mxu0 0.0
  %4597 = vmatprep.subr.mxu0 0.0
  %4598 = vmatpush2.msra.mxu0 0.0
  %4599 = vmatprep.subr.mxu0 0.0
  %4600 = vmatpush2.msra.mxu0 0.0
  %4601 = vmatprep.subr.mxu0 0.0
  %4602 = vmatpush2.msra.mxu0 0.0
  %4603 = vmatprep.subr.mxu0 0.0
  %4604 = vmatpush2.msra.mxu0 0.0
  %4605 = vmatprep.subr.mxu0 0.0
  %4606 = vmatpush2.msra.mxu0 0.0
  %4607 = vmatprep.subr.mxu0 0.0
  %4608 = vmatpush2.msra.mxu0 0.0
  %4609 = vmatprep.subr.mxu0 0.0
  %4610 = vmatpush2.msra.mxu0 0.0
  %4611 = vmatprep.subr.mxu0 0.0
  %4612 = vmatpush2.msra.mxu0 0.0
  %4613 = vmatprep.subr.mxu0 0.0
  %4614 = vmatpush2.msra.mxu0 0.0
  %4615 = vmatprep.subr.mxu0 0.0
  %4616 = vmatpush2.msra.mxu0 0.0
  %4617 = vmatprep.subr.mxu0 0.0
  %4618 = vmatpush2.msra.mxu0 0.0
  %4619 = vmatprep.mubr.f32.mxu0 0.0
  %4620 = vmatmul.mubr.f32.gmra.mxu0 %v4331
  %v4621 = vpop.f32.mrf.mxu0
  %v4622 = vadd.f32 %v4552, %v4621
  %v4623 = vpop.f32.mrf.mxu0
  %4624 = vdwg.mxu0
  %v4625 = vadd.f32 %v4622, %v1333
  %v4626 = vtanh.pop %v4625
  %4627 = vst.msk [vmem:[#allocation2 + $0x38] sm:$0xff] %vm104, %v4626
  %v4628 = vld [vmem:[#allocation2] sm:$0xff]
  %v4629 = vld [vmem:[#allocation2 + $0x8] sm:$0xff]
  %v4630 = vld [vmem:[#allocation2 + $0x10] sm:$0xff]
  %v4631 = vld [vmem:[#allocation2 + $0x18] sm:$0xff]
  %v4632 = vld [vmem:[#allocation2 + $0x20] sm:$0xff]
  %v4633 = vld [vmem:[#allocation2 + $0x28] sm:$0xff]
  %v4634 = vld [vmem:[#allocation2 + $0x30] sm:$0xff]
  %v4635 = vld [vmem:[#allocation2 + $0x38] sm:$0xff]
  %v4636 = vpack.c.bf16 %v4629, %v4628
  %v4637 = vpack.c.bf16 %v4631, %v4630
  %v4638 = vpack.c.bf16 %v4633, %v4632
  %v4639 = vpack.c.bf16 %v4635, %v4634
  %v4640 = vld [vmem:[%s21] sm:$0xff]
  %v4641 = vld [vmem:[%s21 + $0x8] sm:$0xff]
  %v4642 = vld [vmem:[%s21 + $0x10] sm:$0xff]
  %v4643 = vld [vmem:[%s21 + $0x18] sm:$0xff]
  %v4644 = vld [vmem:[%s21 + $0x20] sm:$0xff]
  %v4645 = vld [vmem:[%s21 + $0x28] sm:$0xff]
  %v4646 = vld [vmem:[%s21 + $0x30] sm:$0xff]
  %v4647 = vld [vmem:[%s21 + $0x38] sm:$0xff]
  %v4648 = vld [vmem:[%s21 + $0x40] sm:$0xff]
  %v4649 = vld [vmem:[%s21 + $0x48] sm:$0xff]
  %v4650 = vld [vmem:[%s21 + $0x50] sm:$0xff]
  %v4651 = vld [vmem:[%s21 + $0x58] sm:$0xff]
  %v4652 = vld [vmem:[%s21 + $0x60] sm:$0xff]
  %v4653 = vld [vmem:[%s21 + $0x68] sm:$0xff]
  %v4654 = vld [vmem:[%s21 + $0x70] sm:$0xff]
  %v4655 = vld [vmem:[%s21 + $0x78] sm:$0xff]
  %v4656 = vld [vmem:[%s21 + $0x80] sm:$0xff]
  %v4657 = vld [vmem:[%s21 + $0x88] sm:$0xff]
  %v4658 = vld [vmem:[%s21 + $0x90] sm:$0xff]
  %v4659 = vld [vmem:[%s21 + $0x98] sm:$0xff]
  %v4660 = vld [vmem:[%s21 + $0xa0] sm:$0xff]
  %v4661 = vld [vmem:[%s21 + $0xa8] sm:$0xff]
  %v4662 = vld [vmem:[%s21 + $0xb0] sm:$0xff]
  %v4663 = vld [vmem:[%s21 + $0xb8] sm:$0xff]
  %v4664 = vld [vmem:[%s21 + $0xc0] sm:$0xff]
  %v4665 = vld [vmem:[%s21 + $0xc8] sm:$0xff]
  %v4666 = vld [vmem:[%s21 + $0xd0] sm:$0xff]
  %v4667 = vld [vmem:[%s21 + $0xd8] sm:$0xff]
  %v4668 = vld [vmem:[%s21 + $0xe0] sm:$0xff]
  %v4669 = vld [vmem:[%s21 + $0xe8] sm:$0xff]
  %v4670 = vld [vmem:[%s21 + $0xf0] sm:$0xff]
  %v4671 = vld [vmem:[%s21 + $0xf8] sm:$0xff]
  %v4672 = vld [vmem:[%s21 + $0x100] sm:$0xff]
  %v4673 = vld [vmem:[%s21 + $0x108] sm:$0xff]
  %v4674 = vld [vmem:[%s21 + $0x110] sm:$0xff]
  %v4675 = vld [vmem:[%s21 + $0x118] sm:$0xff]
  %v4676 = vld [vmem:[%s21 + $0x120] sm:$0xff]
  %v4677 = vld [vmem:[%s21 + $0x128] sm:$0xff]
  %v4678 = vld [vmem:[%s21 + $0x130] sm:$0xff]
  %v4679 = vld [vmem:[%s21 + $0x138] sm:$0xff]
  %v4680 = vld [vmem:[%s21 + $0x140] sm:$0xff]
  %v4681 = vld [vmem:[%s21 + $0x148] sm:$0xff]
  %v4682 = vld [vmem:[%s21 + $0x150] sm:$0xff]
  %v4683 = vld [vmem:[%s21 + $0x158] sm:$0xff]
  %v4684 = vld [vmem:[%s21 + $0x160] sm:$0xff]
  %v4685 = vld [vmem:[%s21 + $0x168] sm:$0xff]
  %v4686 = vld [vmem:[%s21 + $0x170] sm:$0xff]
  %v4687 = vld [vmem:[%s21 + $0x178] sm:$0xff]
  %v4688 = vld [vmem:[%s21 + $0x180] sm:$0xff]
  %v4689 = vld [vmem:[%s21 + $0x188] sm:$0xff]
  %v4690 = vld [vmem:[%s21 + $0x190] sm:$0xff]
  %v4691 = vld [vmem:[%s21 + $0x198] sm:$0xff]
  %v4692 = vld [vmem:[%s21 + $0x1a0] sm:$0xff]
  %v4693 = vld [vmem:[%s21 + $0x1a8] sm:$0xff]
  %v4694 = vld [vmem:[%s21 + $0x1b0] sm:$0xff]
  %v4695 = vld [vmem:[%s21 + $0x1b8] sm:$0xff]
  %v4696 = vld [vmem:[%s21 + $0x1c0] sm:$0xff]
  %v4697 = vld [vmem:[%s21 + $0x1c8] sm:$0xff]
  %v4698 = vld [vmem:[%s21 + $0x1d0] sm:$0xff]
  %v4699 = vld [vmem:[%s21 + $0x1d8] sm:$0xff]
  %v4700 = vld [vmem:[%s21 + $0x1e0] sm:$0xff]
  %v4701 = vld [vmem:[%s21 + $0x1e8] sm:$0xff]
  %v4702 = vld [vmem:[%s21 + $0x1f0] sm:$0xff]
  %v4703 = vld [vmem:[%s21 + $0x1f8] sm:$0xff]
  %v4704 = vld [vmem:[%s22] sm:$0xff]
  %v4705 = vld [vmem:[%s22 + $0x8] sm:$0xff]
  %v4706 = vld [vmem:[%s22 + $0x10] sm:$0xff]
  %v4707 = vld [vmem:[%s22 + $0x18] sm:$0xff]
  %v4712 = vlaneseq
  %v4713 = vshrl.u32 %v4712, 7
  %v4714 = vsub.s32 0, %v4713
  %v4715 = vrot.slane %v4704, %v4714
  %v4716 = vlaneseq
  %v4717 = vshrl.u32 %v4716, 7
  %v4718 = vsub.s32 1, %v4717
  %v4719 = vrot.slane %v4704, %v4718
  %v4720 = vlaneseq
  %v4721 = vshrl.u32 %v4720, 7
  %v4722 = vsub.s32 2, %v4721
  %v4723 = vrot.slane %v4704, %v4722
  %v4724 = vlaneseq
  %v4725 = vshrl.u32 %v4724, 7
  %v4726 = vsub.s32 3, %v4725
  %v4727 = vrot.slane %v4704, %v4726
  %v4728 = vlaneseq
  %v4729 = vshrl.u32 %v4728, 7
  %v4730 = vsub.s32 4, %v4729
  %v4731 = vrot.slane %v4704, %v4730
  %v4732 = vlaneseq
  %v4733 = vshrl.u32 %v4732, 7
  %v4734 = vsub.s32 5, %v4733
  %v4735 = vrot.slane %v4704, %v4734
  %v4736 = vlaneseq
  %v4737 = vshrl.u32 %v4736, 7
  %v4738 = vsub.s32 6, %v4737
  %v4739 = vrot.slane %v4704, %v4738
  %v4740 = vlaneseq
  %v4741 = vshrl.u32 %v4740, 7
  %v4742 = vsub.s32 7, %v4741
  %v4743 = vrot.slane %v4704, %v4742
  %v4744 = vlaneseq
  %v4745 = vshrl.u32 %v4744, 7
  %v4746 = vsub.s32 0, %v4745
  %v4747 = vrot.slane %v4705, %v4746
  %v4748 = vlaneseq
  %v4749 = vshrl.u32 %v4748, 7
  %v4750 = vsub.s32 1, %v4749
  %v4751 = vrot.slane %v4705, %v4750
  %v4752 = vlaneseq
  %v4753 = vshrl.u32 %v4752, 7
  %v4754 = vsub.s32 2, %v4753
  %v4755 = vrot.slane %v4705, %v4754
  %v4756 = vlaneseq
  %v4757 = vshrl.u32 %v4756, 7
  %v4758 = vsub.s32 3, %v4757
  %v4759 = vrot.slane %v4705, %v4758
  %v4760 = vlaneseq
  %v4761 = vshrl.u32 %v4760, 7
  %v4762 = vsub.s32 4, %v4761
  %v4763 = vrot.slane %v4705, %v4762
  %v4764 = vlaneseq
  %v4765 = vshrl.u32 %v4764, 7
  %v4766 = vsub.s32 5, %v4765
  %v4767 = vrot.slane %v4705, %v4766
  %v4768 = vlaneseq
  %v4769 = vshrl.u32 %v4768, 7
  %v4770 = vsub.s32 6, %v4769
  %v4771 = vrot.slane %v4705, %v4770
  %v4772 = vlaneseq
  %v4773 = vshrl.u32 %v4772, 7
  %v4774 = vsub.s32 7, %v4773
  %v4775 = vrot.slane %v4705, %v4774
  %v4776 = vlaneseq
  %v4777 = vshrl.u32 %v4776, 7
  %v4778 = vsub.s32 0, %v4777
  %v4779 = vrot.slane %v4706, %v4778
  %v4780 = vlaneseq
  %v4781 = vshrl.u32 %v4780, 7
  %v4782 = vsub.s32 1, %v4781
  %v4783 = vrot.slane %v4706, %v4782
  %v4784 = vlaneseq
  %v4785 = vshrl.u32 %v4784, 7
  %v4786 = vsub.s32 2, %v4785
  %v4787 = vrot.slane %v4706, %v4786
  %v4788 = vlaneseq
  %v4789 = vshrl.u32 %v4788, 7
  %v4790 = vsub.s32 3, %v4789
  %v4791 = vrot.slane %v4706, %v4790
  %v4792 = vlaneseq
  %v4793 = vshrl.u32 %v4792, 7
  %v4794 = vsub.s32 4, %v4793
  %v4795 = vrot.slane %v4706, %v4794
  %v4796 = vlaneseq
  %v4797 = vshrl.u32 %v4796, 7
  %v4798 = vsub.s32 5, %v4797
  %v4799 = vrot.slane %v4706, %v4798
  %v4800 = vlaneseq
  %v4801 = vshrl.u32 %v4800, 7
  %v4802 = vsub.s32 6, %v4801
  %v4803 = vrot.slane %v4706, %v4802
  %v4804 = vlaneseq
  %v4805 = vshrl.u32 %v4804, 7
  %v4806 = vsub.s32 7, %v4805
  %v4807 = vrot.slane %v4706, %v4806
  %v4808 = vlaneseq
  %v4809 = vshrl.u32 %v4808, 7
  %v4810 = vsub.s32 0, %v4809
  %v4811 = vrot.slane %v4707, %v4810
  %v4812 = vlaneseq
  %v4813 = vshrl.u32 %v4812, 7
  %v4814 = vsub.s32 1, %v4813
  %v4815 = vrot.slane %v4707, %v4814
  %v4816 = vlaneseq
  %v4817 = vshrl.u32 %v4816, 7
  %v4818 = vsub.s32 2, %v4817
  %v4819 = vrot.slane %v4707, %v4818
  %v4820 = vlaneseq
  %v4821 = vshrl.u32 %v4820, 7
  %v4822 = vsub.s32 3, %v4821
  %v4823 = vrot.slane %v4707, %v4822
  %v4824 = vlaneseq
  %v4825 = vshrl.u32 %v4824, 7
  %v4826 = vsub.s32 4, %v4825
  %v4827 = vrot.slane %v4707, %v4826
  %v4828 = vlaneseq
  %v4829 = vshrl.u32 %v4828, 7
  %v4830 = vsub.s32 5, %v4829
  %v4831 = vrot.slane %v4707, %v4830
  %v4832 = vlaneseq
  %v4833 = vshrl.u32 %v4832, 7
  %v4834 = vsub.s32 6, %v4833
  %v4835 = vrot.slane %v4707, %v4834
  %v4836 = vlaneseq
  %v4837 = vshrl.u32 %v4836, 7
  %v4838 = vsub.s32 7, %v4837
  %v4839 = vrot.slane %v4707, %v4838
  %v4936 = vunpack.c.l.b16 %v4640
  %v4937 = vunpack.c.h.b16 %v4640
  %v4938 = vunpack.c.l.b16 %v4641
  %v4939 = vunpack.c.h.b16 %v4641
  %v4940 = vunpack.c.l.b16 %v4642
  %v4941 = vunpack.c.h.b16 %v4642
  %v4942 = vunpack.c.l.b16 %v4643
  %v4943 = vunpack.c.h.b16 %v4643
  %v4944 = vunpack.c.l.b16 %v4644
  %v4945 = vunpack.c.h.b16 %v4644
  %v4946 = vunpack.c.l.b16 %v4645
  %v4947 = vunpack.c.h.b16 %v4645
  %v4948 = vunpack.c.l.b16 %v4646
  %v4949 = vunpack.c.h.b16 %v4646
  %v4950 = vunpack.c.l.b16 %v4647
  %v4951 = vunpack.c.h.b16 %v4647
  %v4952 = vunpack.c.l.b16 %v4648
  %v4953 = vunpack.c.h.b16 %v4648
  %v4954 = vunpack.c.l.b16 %v4649
  %v4955 = vunpack.c.h.b16 %v4649
  %v4956 = vunpack.c.l.b16 %v4650
  %v4957 = vunpack.c.h.b16 %v4650
  %v4958 = vunpack.c.l.b16 %v4651
  %v4959 = vunpack.c.h.b16 %v4651
  %v4960 = vunpack.c.l.b16 %v4652
  %v4961 = vunpack.c.h.b16 %v4652
  %v4962 = vunpack.c.l.b16 %v4653
  %v4963 = vunpack.c.h.b16 %v4653
  %v4964 = vunpack.c.l.b16 %v4654
  %v4965 = vunpack.c.h.b16 %v4654
  %v4966 = vunpack.c.l.b16 %v4655
  %v4967 = vunpack.c.h.b16 %v4655
  %v4968 = vunpack.c.l.b16 %v4656
  %v4969 = vunpack.c.h.b16 %v4656
  %v4970 = vunpack.c.l.b16 %v4657
  %v4971 = vunpack.c.h.b16 %v4657
  %v4972 = vunpack.c.l.b16 %v4658
  %v4973 = vunpack.c.h.b16 %v4658
  %v4974 = vunpack.c.l.b16 %v4659
  %v4975 = vunpack.c.h.b16 %v4659
  %v4976 = vunpack.c.l.b16 %v4660
  %v4977 = vunpack.c.h.b16 %v4660
  %v4978 = vunpack.c.l.b16 %v4661
  %v4979 = vunpack.c.h.b16 %v4661
  %v4980 = vunpack.c.l.b16 %v4662
  %v4981 = vunpack.c.h.b16 %v4662
  %v4982 = vunpack.c.l.b16 %v4663
  %v4983 = vunpack.c.h.b16 %v4663
  %v4984 = vunpack.c.l.b16 %v4664
  %v4985 = vunpack.c.h.b16 %v4664
  %v4986 = vunpack.c.l.b16 %v4665
  %v4987 = vunpack.c.h.b16 %v4665
  %v4988 = vunpack.c.l.b16 %v4666
  %v4989 = vunpack.c.h.b16 %v4666
  %v4990 = vunpack.c.l.b16 %v4667
  %v4991 = vunpack.c.h.b16 %v4667
  %v4992 = vunpack.c.l.b16 %v4668
  %v4993 = vunpack.c.h.b16 %v4668
  %v4994 = vunpack.c.l.b16 %v4669
  %v4995 = vunpack.c.h.b16 %v4669
  %v4996 = vunpack.c.l.b16 %v4670
  %v4997 = vunpack.c.h.b16 %v4670
  %v4998 = vunpack.c.l.b16 %v4671
  %v4999 = vunpack.c.h.b16 %v4671
  %v5000 = vunpack.c.l.b16 %v4672
  %v5001 = vunpack.c.h.b16 %v4672
  %v5002 = vunpack.c.l.b16 %v4673
  %v5003 = vunpack.c.h.b16 %v4673
  %v5004 = vunpack.c.l.b16 %v4674
  %v5005 = vunpack.c.h.b16 %v4674
  %v5006 = vunpack.c.l.b16 %v4675
  %v5007 = vunpack.c.h.b16 %v4675
  %v5008 = vunpack.c.l.b16 %v4676
  %v5009 = vunpack.c.h.b16 %v4676
  %v5010 = vunpack.c.l.b16 %v4677
  %v5011 = vunpack.c.h.b16 %v4677
  %v5012 = vunpack.c.l.b16 %v4678
  %v5013 = vunpack.c.h.b16 %v4678
  %v5014 = vunpack.c.l.b16 %v4679
  %v5015 = vunpack.c.h.b16 %v4679
  %v5016 = vunpack.c.l.b16 %v4680
  %v5017 = vunpack.c.h.b16 %v4680
  %v5018 = vunpack.c.l.b16 %v4681
  %v5019 = vunpack.c.h.b16 %v4681
  %v5020 = vunpack.c.l.b16 %v4682
  %v5021 = vunpack.c.h.b16 %v4682
  %v5022 = vunpack.c.l.b16 %v4683
  %v5023 = vunpack.c.h.b16 %v4683
  %v5024 = vunpack.c.l.b16 %v4684
  %v5025 = vunpack.c.h.b16 %v4684
  %v5026 = vunpack.c.l.b16 %v4685
  %v5027 = vunpack.c.h.b16 %v4685
  %v5028 = vunpack.c.l.b16 %v4686
  %v5029 = vunpack.c.h.b16 %v4686
  %v5030 = vunpack.c.l.b16 %v4687
  %v5031 = vunpack.c.h.b16 %v4687
  %v5032 = vunpack.c.l.b16 %v4688
  %v5033 = vunpack.c.h.b16 %v4688
  %v5034 = vunpack.c.l.b16 %v4689
  %v5035 = vunpack.c.h.b16 %v4689
  %v5036 = vunpack.c.l.b16 %v4690
  %v5037 = vunpack.c.h.b16 %v4690
  %v5038 = vunpack.c.l.b16 %v4691
  %v5039 = vunpack.c.h.b16 %v4691
  %v5040 = vunpack.c.l.b16 %v4692
  %v5041 = vunpack.c.h.b16 %v4692
  %v5042 = vunpack.c.l.b16 %v4693
  %v5043 = vunpack.c.h.b16 %v4693
  %v5044 = vunpack.c.l.b16 %v4694
  %v5045 = vunpack.c.h.b16 %v4694
  %v5046 = vunpack.c.l.b16 %v4695
  %v5047 = vunpack.c.h.b16 %v4695
  %v5048 = vunpack.c.l.b16 %v4696
  %v5049 = vunpack.c.h.b16 %v4696
  %v5050 = vunpack.c.l.b16 %v4697
  %v5051 = vunpack.c.h.b16 %v4697
  %v5052 = vunpack.c.l.b16 %v4698
  %v5053 = vunpack.c.h.b16 %v4698
  %v5054 = vunpack.c.l.b16 %v4699
  %v5055 = vunpack.c.h.b16 %v4699
  %v5056 = vunpack.c.l.b16 %v4700
  %v5057 = vunpack.c.h.b16 %v4700
  %v5058 = vunpack.c.l.b16 %v4701
  %v5059 = vunpack.c.h.b16 %v4701
  %v5060 = vunpack.c.l.b16 %v4702
  %v5061 = vunpack.c.h.b16 %v4702
  %v5062 = vunpack.c.l.b16 %v4703
  %v5063 = vunpack.c.h.b16 %v4703
  %v5064 = vpack.c.b16 %v4968, %v4936
  %v5065 = vpack.c.b16 %v4969, %v4937
  %v5066 = vpack.c.b16 %v4970, %v4938
  %v5067 = vpack.c.b16 %v4971, %v4939
  %v5068 = vpack.c.b16 %v4972, %v4940
  %v5069 = vpack.c.b16 %v4973, %v4941
  %v5070 = vpack.c.b16 %v4974, %v4942
  %v5071 = vpack.c.b16 %v4975, %v4943
  %v5072 = vpack.c.b16 %v4976, %v4944
  %v5073 = vpack.c.b16 %v4977, %v4945
  %v5074 = vpack.c.b16 %v4978, %v4946
  %v5075 = vpack.c.b16 %v4979, %v4947
  %v5076 = vpack.c.b16 %v4980, %v4948
  %v5077 = vpack.c.b16 %v4981, %v4949
  %v5078 = vpack.c.b16 %v4982, %v4950
  %v5079 = vpack.c.b16 %v4983, %v4951
  %v5080 = vpack.c.b16 %v4984, %v4952
  %v5081 = vpack.c.b16 %v4985, %v4953
  %v5082 = vpack.c.b16 %v4986, %v4954
  %v5083 = vpack.c.b16 %v4987, %v4955
  %v5084 = vpack.c.b16 %v4988, %v4956
  %v5085 = vpack.c.b16 %v4989, %v4957
  %v5086 = vpack.c.b16 %v4990, %v4958
  %v5087 = vpack.c.b16 %v4991, %v4959
  %v5088 = vpack.c.b16 %v4992, %v4960
  %v5089 = vpack.c.b16 %v4993, %v4961
  %v5090 = vpack.c.b16 %v4994, %v4962
  %v5091 = vpack.c.b16 %v4995, %v4963
  %v5092 = vpack.c.b16 %v4996, %v4964
  %v5093 = vpack.c.b16 %v4997, %v4965
  %v5094 = vpack.c.b16 %v4998, %v4966
  %v5095 = vpack.c.b16 %v4999, %v4967
  %v5096 = vpack.c.b16 %v5032, %v5000
  %v5097 = vpack.c.b16 %v5033, %v5001
  %v5098 = vpack.c.b16 %v5034, %v5002
  %v5099 = vpack.c.b16 %v5035, %v5003
  %v5100 = vpack.c.b16 %v5036, %v5004
  %v5101 = vpack.c.b16 %v5037, %v5005
  %v5102 = vpack.c.b16 %v5038, %v5006
  %v5103 = vpack.c.b16 %v5039, %v5007
  %v5104 = vpack.c.b16 %v5040, %v5008
  %v5105 = vpack.c.b16 %v5041, %v5009
  %v5106 = vpack.c.b16 %v5042, %v5010
  %v5107 = vpack.c.b16 %v5043, %v5011
  %v5108 = vpack.c.b16 %v5044, %v5012
  %v5109 = vpack.c.b16 %v5045, %v5013
  %v5110 = vpack.c.b16 %v5046, %v5014
  %v5111 = vpack.c.b16 %v5047, %v5015
  %v5112 = vpack.c.b16 %v5048, %v5016
  %v5113 = vpack.c.b16 %v5049, %v5017
  %v5114 = vpack.c.b16 %v5050, %v5018
  %v5115 = vpack.c.b16 %v5051, %v5019
  %v5116 = vpack.c.b16 %v5052, %v5020
  %v5117 = vpack.c.b16 %v5053, %v5021
  %v5118 = vpack.c.b16 %v5054, %v5022
  %v5119 = vpack.c.b16 %v5055, %v5023
  %v5120 = vpack.c.b16 %v5056, %v5024
  %v5121 = vpack.c.b16 %v5057, %v5025
  %v5122 = vpack.c.b16 %v5058, %v5026
  %v5123 = vpack.c.b16 %v5059, %v5027
  %v5124 = vpack.c.b16 %v5060, %v5028
  %v5125 = vpack.c.b16 %v5061, %v5029
  %v5126 = vpack.c.b16 %v5062, %v5030
  %v5127 = vpack.c.b16 %v5063, %v5031
  %v5193 = vsel %vm104, %v4636, 0
  %v5196 = vsel %vm104, %v4637, 0
  %v5199 = vsel %vm104, %v4638, 0
  %v5202 = vsel %vm104, %v4639, 0
  %5204 = vmatprep.subr.bf16.mxu0 0
  %5205 = vmatpush1.bf16.msra.mxu0 0
  %5206 = vmatprep.subr.bf16.mxu0 0
  %5207 = vmatpush1.bf16.msra.mxu0 0
  %5208 = vmatprep.subr.bf16.mxu0 0
  %5209 = vmatpush1.bf16.msra.mxu0 0
  %5210 = vmatprep.subr.bf16.mxu0 0
  %5211 = vmatpush1.bf16.msra.mxu0 0
  %5212 = vmatprep.subr.bf16.mxu0 0
  %5213 = vmatpush1.bf16.msra.mxu0 0
  %5214 = vmatprep.subr.bf16.mxu0 0
  %5215 = vmatpush1.bf16.msra.mxu0 0
  %5216 = vmatprep.subr.bf16.mxu0 %v5097
  %5217 = vmatpush1.bf16.msra.mxu0 %v5096
  %5218 = vmatprep.subr.bf16.mxu0 %v5065
  %5219 = vmatpush1.bf16.msra.mxu0 %v5064
  %5220 = vmatprep.subr.bf16.mxu0 0
  %5221 = vmatpush2.bf16.msra.mxu0 0
  %5222 = vmatprep.subr.bf16.mxu0 0
  %5223 = vmatpush2.bf16.msra.mxu0 0
  %5224 = vmatprep.subr.bf16.mxu0 0
  %5225 = vmatpush2.bf16.msra.mxu0 0
  %5226 = vmatprep.subr.bf16.mxu0 0
  %5227 = vmatpush2.bf16.msra.mxu0 0
  %5228 = vmatprep.subr.bf16.mxu0 0
  %5229 = vmatpush2.bf16.msra.mxu0 0
  %5230 = vmatprep.subr.bf16.mxu0 0
  %5231 = vmatpush2.bf16.msra.mxu0 0
  %5232 = vmatprep.subr.bf16.mxu0 0
  %5233 = vmatpush2.bf16.msra.mxu0 0
  %5234 = vmatprep.subr.bf16.mxu0 0
  %5235 = vmatpush2.bf16.msra.mxu0 0
  %5236 = vmatprep.mubr.bf16.mxu0 0
  %5237 = vmatmul.mubr.bf16.gmra.mxu0 %v5193
  %v5238 = vpop.f32.mrf.mxu0
  %v5239 = vadd.f32 %v4715, %v5238
  %v5240 = vpop.f32.mrf.mxu0
  %v5241 = vadd.f32 %v4719, %v5240
  %v5242 = vpop.f32.mrf.mxu0
  %v5243 = vadd.f32 %v4715, %v5242
  %v5244 = vpop.f32.mrf.mxu0
  %v5245 = vadd.f32 %v4719, %v5244
  %5246 = vmatprep.mubr.bf16.mxu0 0
  %5247 = vmatmul.mubr.bf16.gmra.mxu0 %v5196
  %v5248 = vpop.f32.mrf.mxu0
  %v5249 = vadd.f32 %v4715, %v5248
  %v5250 = vpop.f32.mrf.mxu0
  %v5251 = vadd.f32 %v4719, %v5250
  %v5252 = vpop.f32.mrf.mxu0
  %v5253 = vadd.f32 %v4715, %v5252
  %v5254 = vpop.f32.mrf.mxu0
  %v5255 = vadd.f32 %v4719, %v5254
  %5256 = vmatprep.mubr.bf16.mxu0 0
  %5257 = vmatmul.mubr.bf16.gmra.mxu0 %v5199
  %v5258 = vpop.f32.mrf.mxu0
  %v5259 = vadd.f32 %v4715, %v5258
  %v5260 = vpop.f32.mrf.mxu0
  %v5261 = vadd.f32 %v4719, %v5260
  %v5262 = vpop.f32.mrf.mxu0
  %v5263 = vadd.f32 %v4715, %v5262
  %v5264 = vpop.f32.mrf.mxu0
  %v5265 = vadd.f32 %v4719, %v5264
  %5266 = vmatprep.mubr.bf16.mxu0 0
  %5267 = vmatmul.mubr.bf16.gmra.mxu0 %v5202
  %v5268 = vpop.f32.mrf.mxu0
  %v5269 = vadd.f32 %v4715, %v5268
  %v5270 = vpop.f32.mrf.mxu0
  %v5271 = vadd.f32 %v4719, %v5270
  %v5272 = vpop.f32.mrf.mxu0
  %v5273 = vadd.f32 %v4715, %v5272
  %v5274 = vpop.f32.mrf.mxu0
  %v5275 = vadd.f32 %v4719, %v5274
  %5276 = vdwg.mxu0
  %5277 = vmatprep.subr.bf16.mxu0 0
  %5278 = vmatpush1.bf16.msra.mxu0 0
  %5279 = vmatprep.subr.bf16.mxu0 0
  %5280 = vmatpush1.bf16.msra.mxu0 0
  %5281 = vmatprep.subr.bf16.mxu0 0
  %5282 = vmatpush1.bf16.msra.mxu0 0
  %5283 = vmatprep.subr.bf16.mxu0 0
  %5284 = vmatpush1.bf16.msra.mxu0 0
  %5285 = vmatprep.subr.bf16.mxu0 0
  %5286 = vmatpush1.bf16.msra.mxu0 0
  %5287 = vmatprep.subr.bf16.mxu0 0
  %5288 = vmatpush1.bf16.msra.mxu0 0
  %5289 = vmatprep.subr.bf16.mxu0 %v5099
  %5290 = vmatpush1.bf16.msra.mxu0 %v5098
  %5291 = vmatprep.subr.bf16.mxu0 %v5067
  %5292 = vmatpush1.bf16.msra.mxu0 %v5066
  %5293 = vmatprep.subr.bf16.mxu0 0
  %5294 = vmatpush2.bf16.msra.mxu0 0
  %5295 = vmatprep.subr.bf16.mxu0 0
  %5296 = vmatpush2.bf16.msra.mxu0 0
  %5297 = vmatprep.subr.bf16.mxu0 0
  %5298 = vmatpush2.bf16.msra.mxu0 0
  %5299 = vmatprep.subr.bf16.mxu0 0
  %5300 = vmatpush2.bf16.msra.mxu0 0
  %5301 = vmatprep.subr.bf16.mxu0 0
  %5302 = vmatpush2.bf16.msra.mxu0 0
  %5303 = vmatprep.subr.bf16.mxu0 0
  %5304 = vmatpush2.bf16.msra.mxu0 0
  %5305 = vmatprep.subr.bf16.mxu0 0
  %5306 = vmatpush2.bf16.msra.mxu0 0
  %5307 = vmatprep.subr.bf16.mxu0 0
  %5308 = vmatpush2.bf16.msra.mxu0 0
  %5309 = vmatprep.mubr.bf16.mxu0 0
  %5310 = vmatmul.mubr.bf16.gmra.mxu0 %v5193
  %v5311 = vpop.f32.mrf.mxu0
  %v5312 = vadd.f32 %v4723, %v5311
  %v5313 = vpop.f32.mrf.mxu0
  %v5314 = vadd.f32 %v4727, %v5313
  %v5315 = vpop.f32.mrf.mxu0
  %v5316 = vadd.f32 %v4723, %v5315
  %v5317 = vpop.f32.mrf.mxu0
  %v5318 = vadd.f32 %v4727, %v5317
  %5319 = vmatprep.mubr.bf16.mxu0 0
  %5320 = vmatmul.mubr.bf16.gmra.mxu0 %v5196
  %v5321 = vpop.f32.mrf.mxu0
  %v5322 = vadd.f32 %v4723, %v5321
  %v5323 = vpop.f32.mrf.mxu0
  %v5324 = vadd.f32 %v4727, %v5323
  %v5325 = vpop.f32.mrf.mxu0
  %v5326 = vadd.f32 %v4723, %v5325
  %v5327 = vpop.f32.mrf.mxu0
  %v5328 = vadd.f32 %v4727, %v5327
  %5329 = vmatprep.mubr.bf16.mxu0 0
  %5330 = vmatmul.mubr.bf16.gmra.mxu0 %v5199
  %v5331 = vpop.f32.mrf.mxu0
  %v5332 = vadd.f32 %v4723, %v5331
  %v5333 = vpop.f32.mrf.mxu0
  %v5334 = vadd.f32 %v4727, %v5333
  %v5335 = vpop.f32.mrf.mxu0
  %v5336 = vadd.f32 %v4723, %v5335
  %v5337 = vpop.f32.mrf.mxu0
  %v5338 = vadd.f32 %v4727, %v5337
  %5339 = vmatprep.mubr.bf16.mxu0 0
  %5340 = vmatmul.mubr.bf16.gmra.mxu0 %v5202
  %v5341 = vpop.f32.mrf.mxu0
  %v5342 = vadd.f32 %v4723, %v5341
  %v5343 = vpop.f32.mrf.mxu0
  %v5344 = vadd.f32 %v4727, %v5343
  %v5345 = vpop.f32.mrf.mxu0
  %v5346 = vadd.f32 %v4723, %v5345
  %v5347 = vpop.f32.mrf.mxu0
  %v5348 = vadd.f32 %v4727, %v5347
  %5349 = vdwg.mxu0
  %5350 = vmatprep.subr.bf16.mxu0 0
  %5351 = vmatpush1.bf16.msra.mxu0 0
  %5352 = vmatprep.subr.bf16.mxu0 0
  %5353 = vmatpush1.bf16.msra.mxu0 0
  %5354 = vmatprep.subr.bf16.mxu0 0
  %5355 = vmatpush1.bf16.msra.mxu0 0
  %5356 = vmatprep.subr.bf16.mxu0 0
  %5357 = vmatpush1.bf16.msra.mxu0 0
  %5358 = vmatprep.subr.bf16.mxu0 0
  %5359 = vmatpush1.bf16.msra.mxu0 0
  %5360 = vmatprep.subr.bf16.mxu0 0
  %5361 = vmatpush1.bf16.msra.mxu0 0
  %5362 = vmatprep.subr.bf16.mxu0 %v5101
  %5363 = vmatpush1.bf16.msra.mxu0 %v5100
  %5364 = vmatprep.subr.bf16.mxu0 %v5069
  %5365 = vmatpush1.bf16.msra.mxu0 %v5068
  %5366 = vmatprep.subr.bf16.mxu0 0
  %5367 = vmatpush2.bf16.msra.mxu0 0
  %5368 = vmatprep.subr.bf16.mxu0 0
  %5369 = vmatpush2.bf16.msra.mxu0 0
  %5370 = vmatprep.subr.bf16.mxu0 0
  %5371 = vmatpush2.bf16.msra.mxu0 0
  %5372 = vmatprep.subr.bf16.mxu0 0
  %5373 = vmatpush2.bf16.msra.mxu0 0
  %5374 = vmatprep.subr.bf16.mxu0 0
  %5375 = vmatpush2.bf16.msra.mxu0 0
  %5376 = vmatprep.subr.bf16.mxu0 0
  %5377 = vmatpush2.bf16.msra.mxu0 0
  %5378 = vmatprep.subr.bf16.mxu0 0
  %5379 = vmatpush2.bf16.msra.mxu0 0
  %5380 = vmatprep.subr.bf16.mxu0 0
  %5381 = vmatpush2.bf16.msra.mxu0 0
  %5382 = vmatprep.mubr.bf16.mxu0 0
  %5383 = vmatmul.mubr.bf16.gmra.mxu0 %v5193
  %v5384 = vpop.f32.mrf.mxu0
  %v5385 = vadd.f32 %v4731, %v5384
  %v5386 = vpop.f32.mrf.mxu0
  %v5387 = vadd.f32 %v4735, %v5386
  %v5388 = vpop.f32.mrf.mxu0
  %v5389 = vadd.f32 %v4731, %v5388
  %v5390 = vpop.f32.mrf.mxu0
  %v5391 = vadd.f32 %v4735, %v5390
  %5392 = vmatprep.mubr.bf16.mxu0 0
  %5393 = vmatmul.mubr.bf16.gmra.mxu0 %v5196
  %v5394 = vpop.f32.mrf.mxu0
  %v5395 = vadd.f32 %v4731, %v5394
  %v5396 = vpop.f32.mrf.mxu0
  %v5397 = vadd.f32 %v4735, %v5396
  %v5398 = vpop.f32.mrf.mxu0
  %v5399 = vadd.f32 %v4731, %v5398
  %v5400 = vpop.f32.mrf.mxu0
  %v5401 = vadd.f32 %v4735, %v5400
  %5402 = vmatprep.mubr.bf16.mxu0 0
  %5403 = vmatmul.mubr.bf16.gmra.mxu0 %v5199
  %v5404 = vpop.f32.mrf.mxu0
  %v5405 = vadd.f32 %v4731, %v5404
  %v5406 = vpop.f32.mrf.mxu0
  %v5407 = vadd.f32 %v4735, %v5406
  %v5408 = vpop.f32.mrf.mxu0
  %v5409 = vadd.f32 %v4731, %v5408
  %v5410 = vpop.f32.mrf.mxu0
  %v5411 = vadd.f32 %v4735, %v5410
  %5412 = vmatprep.mubr.bf16.mxu0 0
  %5413 = vmatmul.mubr.bf16.gmra.mxu0 %v5202
  %v5414 = vpop.f32.mrf.mxu0
  %v5415 = vadd.f32 %v4731, %v5414
  %v5416 = vpop.f32.mrf.mxu0
  %v5417 = vadd.f32 %v4735, %v5416
  %v5418 = vpop.f32.mrf.mxu0
  %v5419 = vadd.f32 %v4731, %v5418
  %v5420 = vpop.f32.mrf.mxu0
  %v5421 = vadd.f32 %v4735, %v5420
  %5422 = vdwg.mxu0
  %5423 = vmatprep.subr.bf16.mxu0 0
  %5424 = vmatpush1.bf16.msra.mxu0 0
  %5425 = vmatprep.subr.bf16.mxu0 0
  %5426 = vmatpush1.bf16.msra.mxu0 0
  %5427 = vmatprep.subr.bf16.mxu0 0
  %5428 = vmatpush1.bf16.msra.mxu0 0
  %5429 = vmatprep.subr.bf16.mxu0 0
  %5430 = vmatpush1.bf16.msra.mxu0 0
  %5431 = vmatprep.subr.bf16.mxu0 0
  %5432 = vmatpush1.bf16.msra.mxu0 0
  %5433 = vmatprep.subr.bf16.mxu0 0
  %5434 = vmatpush1.bf16.msra.mxu0 0
  %5435 = vmatprep.subr.bf16.mxu0 %v5103
  %5436 = vmatpush1.bf16.msra.mxu0 %v5102
  %5437 = vmatprep.subr.bf16.mxu0 %v5071
  %5438 = vmatpush1.bf16.msra.mxu0 %v5070
  %5439 = vmatprep.subr.bf16.mxu0 0
  %5440 = vmatpush2.bf16.msra.mxu0 0
  %5441 = vmatprep.subr.bf16.mxu0 0
  %5442 = vmatpush2.bf16.msra.mxu0 0
  %5443 = vmatprep.subr.bf16.mxu0 0
  %5444 = vmatpush2.bf16.msra.mxu0 0
  %5445 = vmatprep.subr.bf16.mxu0 0
  %5446 = vmatpush2.bf16.msra.mxu0 0
  %5447 = vmatprep.subr.bf16.mxu0 0
  %5448 = vmatpush2.bf16.msra.mxu0 0
  %5449 = vmatprep.subr.bf16.mxu0 0
  %5450 = vmatpush2.bf16.msra.mxu0 0
  %5451 = vmatprep.subr.bf16.mxu0 0
  %5452 = vmatpush2.bf16.msra.mxu0 0
  %5453 = vmatprep.subr.bf16.mxu0 0
  %5454 = vmatpush2.bf16.msra.mxu0 0
  %5455 = vmatprep.mubr.bf16.mxu0 0
  %5456 = vmatmul.mubr.bf16.gmra.mxu0 %v5193
  %v5457 = vpop.f32.mrf.mxu0
  %v5458 = vadd.f32 %v4739, %v5457
  %v5459 = vpop.f32.mrf.mxu0
  %v5460 = vadd.f32 %v4743, %v5459
  %v5461 = vpop.f32.mrf.mxu0
  %v5462 = vadd.f32 %v4739, %v5461
  %v5463 = vpop.f32.mrf.mxu0
  %v5464 = vadd.f32 %v4743, %v5463
  %5465 = vmatprep.mubr.bf16.mxu0 0
  %5466 = vmatmul.mubr.bf16.gmra.mxu0 %v5196
  %v5467 = vpop.f32.mrf.mxu0
  %v5468 = vadd.f32 %v4739, %v5467
  %v5469 = vpop.f32.mrf.mxu0
  %v5470 = vadd.f32 %v4743, %v5469
  %v5471 = vpop.f32.mrf.mxu0
  %v5472 = vadd.f32 %v4739, %v5471
  %v5473 = vpop.f32.mrf.mxu0
  %v5474 = vadd.f32 %v4743, %v5473
  %5475 = vmatprep.mubr.bf16.mxu0 0
  %5476 = vmatmul.mubr.bf16.gmra.mxu0 %v5199
  %v5477 = vpop.f32.mrf.mxu0
  %v5478 = vadd.f32 %v4739, %v5477
  %v5479 = vpop.f32.mrf.mxu0
  %v5480 = vadd.f32 %v4743, %v5479
  %v5481 = vpop.f32.mrf.mxu0
  %v5482 = vadd.f32 %v4739, %v5481
  %v5483 = vpop.f32.mrf.mxu0
  %v5484 = vadd.f32 %v4743, %v5483
  %5485 = vmatprep.mubr.bf16.mxu0 0
  %5486 = vmatmul.mubr.bf16.gmra.mxu0 %v5202
  %v5487 = vpop.f32.mrf.mxu0
  %v5488 = vadd.f32 %v4739, %v5487
  %v5489 = vpop.f32.mrf.mxu0
  %v5490 = vadd.f32 %v4743, %v5489
  %v5491 = vpop.f32.mrf.mxu0
  %v5492 = vadd.f32 %v4739, %v5491
  %v5493 = vpop.f32.mrf.mxu0
  %v5494 = vadd.f32 %v4743, %v5493
  %5495 = vdwg.mxu0
  %5496 = vmatprep.subr.bf16.mxu0 0
  %5497 = vmatpush1.bf16.msra.mxu0 0
  %5498 = vmatprep.subr.bf16.mxu0 0
  %5499 = vmatpush1.bf16.msra.mxu0 0
  %5500 = vmatprep.subr.bf16.mxu0 0
  %5501 = vmatpush1.bf16.msra.mxu0 0
  %5502 = vmatprep.subr.bf16.mxu0 0
  %5503 = vmatpush1.bf16.msra.mxu0 0
  %5504 = vmatprep.subr.bf16.mxu0 0
  %5505 = vmatpush1.bf16.msra.mxu0 0
  %5506 = vmatprep.subr.bf16.mxu0 0
  %5507 = vmatpush1.bf16.msra.mxu0 0
  %5508 = vmatprep.subr.bf16.mxu0 %v5105
  %5509 = vmatpush1.bf16.msra.mxu0 %v5104
  %5510 = vmatprep.subr.bf16.mxu0 %v5073
  %5511 = vmatpush1.bf16.msra.mxu0 %v5072
  %5512 = vmatprep.subr.bf16.mxu0 0
  %5513 = vmatpush2.bf16.msra.mxu0 0
  %5514 = vmatprep.subr.bf16.mxu0 0
  %5515 = vmatpush2.bf16.msra.mxu0 0
  %5516 = vmatprep.subr.bf16.mxu0 0
  %5517 = vmatpush2.bf16.msra.mxu0 0
  %5518 = vmatprep.subr.bf16.mxu0 0
  %5519 = vmatpush2.bf16.msra.mxu0 0
  %5520 = vmatprep.subr.bf16.mxu0 0
  %5521 = vmatpush2.bf16.msra.mxu0 0
  %5522 = vmatprep.subr.bf16.mxu0 0
  %5523 = vmatpush2.bf16.msra.mxu0 0
  %5524 = vmatprep.subr.bf16.mxu0 0
  %5525 = vmatpush2.bf16.msra.mxu0 0
  %5526 = vmatprep.subr.bf16.mxu0 0
  %5527 = vmatpush2.bf16.msra.mxu0 0
  %5528 = vmatprep.mubr.bf16.mxu0 0
  %5529 = vmatmul.mubr.bf16.gmra.mxu0 %v5193
  %v5530 = vpop.f32.mrf.mxu0
  %v5531 = vadd.f32 %v4747, %v5530
  %v5532 = vpop.f32.mrf.mxu0
  %v5533 = vadd.f32 %v4751, %v5532
  %v5534 = vpop.f32.mrf.mxu0
  %v5535 = vadd.f32 %v4747, %v5534
  %v5536 = vpop.f32.mrf.mxu0
  %v5537 = vadd.f32 %v4751, %v5536
  %5538 = vmatprep.mubr.bf16.mxu0 0
  %5539 = vmatmul.mubr.bf16.gmra.mxu0 %v5196
  %v5540 = vpop.f32.mrf.mxu0
  %v5541 = vadd.f32 %v4747, %v5540
  %v5542 = vpop.f32.mrf.mxu0
  %v5543 = vadd.f32 %v4751, %v5542
  %v5544 = vpop.f32.mrf.mxu0
  %v5545 = vadd.f32 %v4747, %v5544
  %v5546 = vpop.f32.mrf.mxu0
  %v5547 = vadd.f32 %v4751, %v5546
  %5548 = vmatprep.mubr.bf16.mxu0 0
  %5549 = vmatmul.mubr.bf16.gmra.mxu0 %v5199
  %v5550 = vpop.f32.mrf.mxu0
  %v5551 = vadd.f32 %v4747, %v5550
  %v5552 = vpop.f32.mrf.mxu0
  %v5553 = vadd.f32 %v4751, %v5552
  %v5554 = vpop.f32.mrf.mxu0
  %v5555 = vadd.f32 %v4747, %v5554
  %v5556 = vpop.f32.mrf.mxu0
  %v5557 = vadd.f32 %v4751, %v5556
  %5558 = vmatprep.mubr.bf16.mxu0 0
  %5559 = vmatmul.mubr.bf16.gmra.mxu0 %v5202
  %v5560 = vpop.f32.mrf.mxu0
  %v5561 = vadd.f32 %v4747, %v5560
  %v5562 = vpop.f32.mrf.mxu0
  %v5563 = vadd.f32 %v4751, %v5562
  %v5564 = vpop.f32.mrf.mxu0
  %v5565 = vadd.f32 %v4747, %v5564
  %v5566 = vpop.f32.mrf.mxu0
  %v5567 = vadd.f32 %v4751, %v5566
  %5568 = vdwg.mxu0
  %5569 = vmatprep.subr.bf16.mxu0 0
  %5570 = vmatpush1.bf16.msra.mxu0 0
  %5571 = vmatprep.subr.bf16.mxu0 0
  %5572 = vmatpush1.bf16.msra.mxu0 0
  %5573 = vmatprep.subr.bf16.mxu0 0
  %5574 = vmatpush1.bf16.msra.mxu0 0
  %5575 = vmatprep.subr.bf16.mxu0 0
  %5576 = vmatpush1.bf16.msra.mxu0 0
  %5577 = vmatprep.subr.bf16.mxu0 0
  %5578 = vmatpush1.bf16.msra.mxu0 0
  %5579 = vmatprep.subr.bf16.mxu0 0
  %5580 = vmatpush1.bf16.msra.mxu0 0
  %5581 = vmatprep.subr.bf16.mxu0 %v5107
  %5582 = vmatpush1.bf16.msra.mxu0 %v5106
  %5583 = vmatprep.subr.bf16.mxu0 %v5075
  %5584 = vmatpush1.bf16.msra.mxu0 %v5074
  %5585 = vmatprep.subr.bf16.mxu0 0
  %5586 = vmatpush2.bf16.msra.mxu0 0
  %5587 = vmatprep.subr.bf16.mxu0 0
  %5588 = vmatpush2.bf16.msra.mxu0 0
  %5589 = vmatprep.subr.bf16.mxu0 0
  %5590 = vmatpush2.bf16.msra.mxu0 0
  %5591 = vmatprep.subr.bf16.mxu0 0
  %5592 = vmatpush2.bf16.msra.mxu0 0
  %5593 = vmatprep.subr.bf16.mxu0 0
  %5594 = vmatpush2.bf16.msra.mxu0 0
  %5595 = vmatprep.subr.bf16.mxu0 0
  %5596 = vmatpush2.bf16.msra.mxu0 0
  %5597 = vmatprep.subr.bf16.mxu0 0
  %5598 = vmatpush2.bf16.msra.mxu0 0
  %5599 = vmatprep.subr.bf16.mxu0 0
  %5600 = vmatpush2.bf16.msra.mxu0 0
  %5601 = vmatprep.mubr.bf16.mxu0 0
  %5602 = vmatmul.mubr.bf16.gmra.mxu0 %v5193
  %v5603 = vpop.f32.mrf.mxu0
  %v5604 = vadd.f32 %v4755, %v5603
  %v5605 = vpop.f32.mrf.mxu0
  %v5606 = vadd.f32 %v4759, %v5605
  %v5607 = vpop.f32.mrf.mxu0
  %v5608 = vadd.f32 %v4755, %v5607
  %v5609 = vpop.f32.mrf.mxu0
  %v5610 = vadd.f32 %v4759, %v5609
  %5611 = vmatprep.mubr.bf16.mxu0 0
  %5612 = vmatmul.mubr.bf16.gmra.mxu0 %v5196
  %v5613 = vpop.f32.mrf.mxu0
  %v5614 = vadd.f32 %v4755, %v5613
  %v5615 = vpop.f32.mrf.mxu0
  %v5616 = vadd.f32 %v4759, %v5615
  %v5617 = vpop.f32.mrf.mxu0
  %v5618 = vadd.f32 %v4755, %v5617
  %v5619 = vpop.f32.mrf.mxu0
  %v5620 = vadd.f32 %v4759, %v5619
  %5621 = vmatprep.mubr.bf16.mxu0 0
  %5622 = vmatmul.mubr.bf16.gmra.mxu0 %v5199
  %v5623 = vpop.f32.mrf.mxu0
  %v5624 = vadd.f32 %v4755, %v5623
  %v5625 = vpop.f32.mrf.mxu0
  %v5626 = vadd.f32 %v4759, %v5625
  %v5627 = vpop.f32.mrf.mxu0
  %v5628 = vadd.f32 %v4755, %v5627
  %v5629 = vpop.f32.mrf.mxu0
  %v5630 = vadd.f32 %v4759, %v5629
  %5631 = vmatprep.mubr.bf16.mxu0 0
  %5632 = vmatmul.mubr.bf16.gmra.mxu0 %v5202
  %v5633 = vpop.f32.mrf.mxu0
  %v5634 = vadd.f32 %v4755, %v5633
  %v5635 = vpop.f32.mrf.mxu0
  %v5636 = vadd.f32 %v4759, %v5635
  %v5637 = vpop.f32.mrf.mxu0
  %v5638 = vadd.f32 %v4755, %v5637
  %v5639 = vpop.f32.mrf.mxu0
  %v5640 = vadd.f32 %v4759, %v5639
  %5641 = vdwg.mxu0
  %5642 = vmatprep.subr.bf16.mxu0 0
  %5643 = vmatpush1.bf16.msra.mxu0 0
  %5644 = vmatprep.subr.bf16.mxu0 0
  %5645 = vmatpush1.bf16.msra.mxu0 0
  %5646 = vmatprep.subr.bf16.mxu0 0
  %5647 = vmatpush1.bf16.msra.mxu0 0
  %5648 = vmatprep.subr.bf16.mxu0 0
  %5649 = vmatpush1.bf16.msra.mxu0 0
  %5650 = vmatprep.subr.bf16.mxu0 0
  %5651 = vmatpush1.bf16.msra.mxu0 0
  %5652 = vmatprep.subr.bf16.mxu0 0
  %5653 = vmatpush1.bf16.msra.mxu0 0
  %5654 = vmatprep.subr.bf16.mxu0 %v5109
  %5655 = vmatpush1.bf16.msra.mxu0 %v5108
  %5656 = vmatprep.subr.bf16.mxu0 %v5077
  %5657 = vmatpush1.bf16.msra.mxu0 %v5076
  %5658 = vmatprep.subr.bf16.mxu0 0
  %5659 = vmatpush2.bf16.msra.mxu0 0
  %5660 = vmatprep.subr.bf16.mxu0 0
  %5661 = vmatpush2.bf16.msra.mxu0 0
  %5662 = vmatprep.subr.bf16.mxu0 0
  %5663 = vmatpush2.bf16.msra.mxu0 0
  %5664 = vmatprep.subr.bf16.mxu0 0
  %5665 = vmatpush2.bf16.msra.mxu0 0
  %5666 = vmatprep.subr.bf16.mxu0 0
  %5667 = vmatpush2.bf16.msra.mxu0 0
  %5668 = vmatprep.subr.bf16.mxu0 0
  %5669 = vmatpush2.bf16.msra.mxu0 0
  %5670 = vmatprep.subr.bf16.mxu0 0
  %5671 = vmatpush2.bf16.msra.mxu0 0
  %5672 = vmatprep.subr.bf16.mxu0 0
  %5673 = vmatpush2.bf16.msra.mxu0 0
  %5674 = vmatprep.mubr.bf16.mxu0 0
  %5675 = vmatmul.mubr.bf16.gmra.mxu0 %v5193
  %v5676 = vpop.f32.mrf.mxu0
  %v5677 = vadd.f32 %v4763, %v5676
  %v5678 = vpop.f32.mrf.mxu0
  %v5679 = vadd.f32 %v4767, %v5678
  %v5680 = vpop.f32.mrf.mxu0
  %v5681 = vadd.f32 %v4763, %v5680
  %v5682 = vpop.f32.mrf.mxu0
  %v5683 = vadd.f32 %v4767, %v5682
  %5684 = vmatprep.mubr.bf16.mxu0 0
  %5685 = vmatmul.mubr.bf16.gmra.mxu0 %v5196
  %v5686 = vpop.f32.mrf.mxu0
  %v5687 = vadd.f32 %v4763, %v5686
  %v5688 = vpop.f32.mrf.mxu0
  %v5689 = vadd.f32 %v4767, %v5688
  %v5690 = vpop.f32.mrf.mxu0
  %v5691 = vadd.f32 %v4763, %v5690
  %v5692 = vpop.f32.mrf.mxu0
  %v5693 = vadd.f32 %v4767, %v5692
  %5694 = vmatprep.mubr.bf16.mxu0 0
  %5695 = vmatmul.mubr.bf16.gmra.mxu0 %v5199
  %v5696 = vpop.f32.mrf.mxu0
  %v5697 = vadd.f32 %v4763, %v5696
  %v5698 = vpop.f32.mrf.mxu0
  %v5699 = vadd.f32 %v4767, %v5698
  %v5700 = vpop.f32.mrf.mxu0
  %v5701 = vadd.f32 %v4763, %v5700
  %v5702 = vpop.f32.mrf.mxu0
  %v5703 = vadd.f32 %v4767, %v5702
  %5704 = vmatprep.mubr.bf16.mxu0 0
  %5705 = vmatmul.mubr.bf16.gmra.mxu0 %v5202
  %v5706 = vpop.f32.mrf.mxu0
  %v5707 = vadd.f32 %v4763, %v5706
  %v5708 = vpop.f32.mrf.mxu0
  %v5709 = vadd.f32 %v4767, %v5708
  %v5710 = vpop.f32.mrf.mxu0
  %v5711 = vadd.f32 %v4763, %v5710
  %v5712 = vpop.f32.mrf.mxu0
  %v5713 = vadd.f32 %v4767, %v5712
  %5714 = vdwg.mxu0
  %5715 = vmatprep.subr.bf16.mxu0 0
  %5716 = vmatpush1.bf16.msra.mxu0 0
  %5717 = vmatprep.subr.bf16.mxu0 0
  %5718 = vmatpush1.bf16.msra.mxu0 0
  %5719 = vmatprep.subr.bf16.mxu0 0
  %5720 = vmatpush1.bf16.msra.mxu0 0
  %5721 = vmatprep.subr.bf16.mxu0 0
  %5722 = vmatpush1.bf16.msra.mxu0 0
  %5723 = vmatprep.subr.bf16.mxu0 0
  %5724 = vmatpush1.bf16.msra.mxu0 0
  %5725 = vmatprep.subr.bf16.mxu0 0
  %5726 = vmatpush1.bf16.msra.mxu0 0
  %5727 = vmatprep.subr.bf16.mxu0 %v5111
  %5728 = vmatpush1.bf16.msra.mxu0 %v5110
  %5729 = vmatprep.subr.bf16.mxu0 %v5079
  %5730 = vmatpush1.bf16.msra.mxu0 %v5078
  %5731 = vmatprep.subr.bf16.mxu0 0
  %5732 = vmatpush2.bf16.msra.mxu0 0
  %5733 = vmatprep.subr.bf16.mxu0 0
  %5734 = vmatpush2.bf16.msra.mxu0 0
  %5735 = vmatprep.subr.bf16.mxu0 0
  %5736 = vmatpush2.bf16.msra.mxu0 0
  %5737 = vmatprep.subr.bf16.mxu0 0
  %5738 = vmatpush2.bf16.msra.mxu0 0
  %5739 = vmatprep.subr.bf16.mxu0 0
  %5740 = vmatpush2.bf16.msra.mxu0 0
  %5741 = vmatprep.subr.bf16.mxu0 0
  %5742 = vmatpush2.bf16.msra.mxu0 0
  %5743 = vmatprep.subr.bf16.mxu0 0
  %5744 = vmatpush2.bf16.msra.mxu0 0
  %5745 = vmatprep.subr.bf16.mxu0 0
  %5746 = vmatpush2.bf16.msra.mxu0 0
  %5747 = vmatprep.mubr.bf16.mxu0 0
  %5748 = vmatmul.mubr.bf16.gmra.mxu0 %v5193
  %v5749 = vpop.f32.mrf.mxu0
  %v5750 = vadd.f32 %v4771, %v5749
  %v5751 = vpop.f32.mrf.mxu0
  %v5752 = vadd.f32 %v4775, %v5751
  %v5753 = vpop.f32.mrf.mxu0
  %v5754 = vadd.f32 %v4771, %v5753
  %v5755 = vpop.f32.mrf.mxu0
  %v5756 = vadd.f32 %v4775, %v5755
  %5757 = vmatprep.mubr.bf16.mxu0 0
  %5758 = vmatmul.mubr.bf16.gmra.mxu0 %v5196
  %v5759 = vpop.f32.mrf.mxu0
  %v5760 = vadd.f32 %v4771, %v5759
  %v5761 = vpop.f32.mrf.mxu0
  %v5762 = vadd.f32 %v4775, %v5761
  %v5763 = vpop.f32.mrf.mxu0
  %v5764 = vadd.f32 %v4771, %v5763
  %v5765 = vpop.f32.mrf.mxu0
  %v5766 = vadd.f32 %v4775, %v5765
  %5767 = vmatprep.mubr.bf16.mxu0 0
  %5768 = vmatmul.mubr.bf16.gmra.mxu0 %v5199
  %v5769 = vpop.f32.mrf.mxu0
  %v5770 = vadd.f32 %v4771, %v5769
  %v5771 = vpop.f32.mrf.mxu0
  %v5772 = vadd.f32 %v4775, %v5771
  %v5773 = vpop.f32.mrf.mxu0
  %v5774 = vadd.f32 %v4771, %v5773
  %v5775 = vpop.f32.mrf.mxu0
  %v5776 = vadd.f32 %v4775, %v5775
  %5777 = vmatprep.mubr.bf16.mxu0 0
  %5778 = vmatmul.mubr.bf16.gmra.mxu0 %v5202
  %v5779 = vpop.f32.mrf.mxu0
  %v5780 = vadd.f32 %v4771, %v5779
  %v5781 = vpop.f32.mrf.mxu0
  %v5782 = vadd.f32 %v4775, %v5781
  %v5783 = vpop.f32.mrf.mxu0
  %v5784 = vadd.f32 %v4771, %v5783
  %v5785 = vpop.f32.mrf.mxu0
  %v5786 = vadd.f32 %v4775, %v5785
  %5787 = vdwg.mxu0
  %5788 = vmatprep.subr.bf16.mxu0 0
  %5789 = vmatpush1.bf16.msra.mxu0 0
  %5790 = vmatprep.subr.bf16.mxu0 0
  %5791 = vmatpush1.bf16.msra.mxu0 0
  %5792 = vmatprep.subr.bf16.mxu0 0
  %5793 = vmatpush1.bf16.msra.mxu0 0
  %5794 = vmatprep.subr.bf16.mxu0 0
  %5795 = vmatpush1.bf16.msra.mxu0 0
  %5796 = vmatprep.subr.bf16.mxu0 0
  %5797 = vmatpush1.bf16.msra.mxu0 0
  %5798 = vmatprep.subr.bf16.mxu0 0
  %5799 = vmatpush1.bf16.msra.mxu0 0
  %5800 = vmatprep.subr.bf16.mxu0 %v5113
  %5801 = vmatpush1.bf16.msra.mxu0 %v5112
  %5802 = vmatprep.subr.bf16.mxu0 %v5081
  %5803 = vmatpush1.bf16.msra.mxu0 %v5080
  %5804 = vmatprep.subr.bf16.mxu0 0
  %5805 = vmatpush2.bf16.msra.mxu0 0
  %5806 = vmatprep.subr.bf16.mxu0 0
  %5807 = vmatpush2.bf16.msra.mxu0 0
  %5808 = vmatprep.subr.bf16.mxu0 0
  %5809 = vmatpush2.bf16.msra.mxu0 0
  %5810 = vmatprep.subr.bf16.mxu0 0
  %5811 = vmatpush2.bf16.msra.mxu0 0
  %5812 = vmatprep.subr.bf16.mxu0 0
  %5813 = vmatpush2.bf16.msra.mxu0 0
  %5814 = vmatprep.subr.bf16.mxu0 0
  %5815 = vmatpush2.bf16.msra.mxu0 0
  %5816 = vmatprep.subr.bf16.mxu0 0
  %5817 = vmatpush2.bf16.msra.mxu0 0
  %5818 = vmatprep.subr.bf16.mxu0 0
  %5819 = vmatpush2.bf16.msra.mxu0 0
  %5820 = vmatprep.mubr.bf16.mxu0 0
  %5821 = vmatmul.mubr.bf16.gmra.mxu0 %v5193
  %v5822 = vpop.f32.mrf.mxu0
  %v5823 = vadd.f32 %v4779, %v5822
  %v5824 = vpop.f32.mrf.mxu0
  %v5825 = vadd.f32 %v4783, %v5824
  %v5826 = vpop.f32.mrf.mxu0
  %v5827 = vadd.f32 %v4779, %v5826
  %v5828 = vpop.f32.mrf.mxu0
  %v5829 = vadd.f32 %v4783, %v5828
  %5830 = vmatprep.mubr.bf16.mxu0 0
  %5831 = vmatmul.mubr.bf16.gmra.mxu0 %v5196
  %v5832 = vpop.f32.mrf.mxu0
  %v5833 = vadd.f32 %v4779, %v5832
  %v5834 = vpop.f32.mrf.mxu0
  %v5835 = vadd.f32 %v4783, %v5834
  %v5836 = vpop.f32.mrf.mxu0
  %v5837 = vadd.f32 %v4779, %v5836
  %v5838 = vpop.f32.mrf.mxu0
  %v5839 = vadd.f32 %v4783, %v5838
  %5840 = vmatprep.mubr.bf16.mxu0 0
  %5841 = vmatmul.mubr.bf16.gmra.mxu0 %v5199
  %v5842 = vpop.f32.mrf.mxu0
  %v5843 = vadd.f32 %v4779, %v5842
  %v5844 = vpop.f32.mrf.mxu0
  %v5845 = vadd.f32 %v4783, %v5844
  %v5846 = vpop.f32.mrf.mxu0
  %v5847 = vadd.f32 %v4779, %v5846
  %v5848 = vpop.f32.mrf.mxu0
  %v5849 = vadd.f32 %v4783, %v5848
  %5850 = vmatprep.mubr.bf16.mxu0 0
  %5851 = vmatmul.mubr.bf16.gmra.mxu0 %v5202
  %v5852 = vpop.f32.mrf.mxu0
  %v5853 = vadd.f32 %v4779, %v5852
  %v5854 = vpop.f32.mrf.mxu0
  %v5855 = vadd.f32 %v4783, %v5854
  %v5856 = vpop.f32.mrf.mxu0
  %v5857 = vadd.f32 %v4779, %v5856
  %v5858 = vpop.f32.mrf.mxu0
  %v5859 = vadd.f32 %v4783, %v5858
  %5860 = vdwg.mxu0
  %5861 = vmatprep.subr.bf16.mxu0 0
  %5862 = vmatpush1.bf16.msra.mxu0 0
  %5863 = vmatprep.subr.bf16.mxu0 0
  %5864 = vmatpush1.bf16.msra.mxu0 0
  %5865 = vmatprep.subr.bf16.mxu0 0
  %5866 = vmatpush1.bf16.msra.mxu0 0
  %5867 = vmatprep.subr.bf16.mxu0 0
  %5868 = vmatpush1.bf16.msra.mxu0 0
  %5869 = vmatprep.subr.bf16.mxu0 0
  %5870 = vmatpush1.bf16.msra.mxu0 0
  %5871 = vmatprep.subr.bf16.mxu0 0
  %5872 = vmatpush1.bf16.msra.mxu0 0
  %5873 = vmatprep.subr.bf16.mxu0 %v5115
  %5874 = vmatpush1.bf16.msra.mxu0 %v5114
  %5875 = vmatprep.subr.bf16.mxu0 %v5083
  %5876 = vmatpush1.bf16.msra.mxu0 %v5082
  %5877 = vmatprep.subr.bf16.mxu0 0
  %5878 = vmatpush2.bf16.msra.mxu0 0
  %5879 = vmatprep.subr.bf16.mxu0 0
  %5880 = vmatpush2.bf16.msra.mxu0 0
  %5881 = vmatprep.subr.bf16.mxu0 0
  %5882 = vmatpush2.bf16.msra.mxu0 0
  %5883 = vmatprep.subr.bf16.mxu0 0
  %5884 = vmatpush2.bf16.msra.mxu0 0
  %5885 = vmatprep.subr.bf16.mxu0 0
  %5886 = vmatpush2.bf16.msra.mxu0 0
  %5887 = vmatprep.subr.bf16.mxu0 0
  %5888 = vmatpush2.bf16.msra.mxu0 0
  %5889 = vmatprep.subr.bf16.mxu0 0
  %5890 = vmatpush2.bf16.msra.mxu0 0
  %5891 = vmatprep.subr.bf16.mxu0 0
  %5892 = vmatpush2.bf16.msra.mxu0 0
  %5893 = vmatprep.mubr.bf16.mxu0 0
  %5894 = vmatmul.mubr.bf16.gmra.mxu0 %v5193
  %v5895 = vpop.f32.mrf.mxu0
  %v5896 = vadd.f32 %v4787, %v5895
  %v5897 = vpop.f32.mrf.mxu0
  %v5898 = vadd.f32 %v4791, %v5897
  %v5899 = vpop.f32.mrf.mxu0
  %v5900 = vadd.f32 %v4787, %v5899
  %v5901 = vpop.f32.mrf.mxu0
  %v5902 = vadd.f32 %v4791, %v5901
  %5903 = vmatprep.mubr.bf16.mxu0 0
  %5904 = vmatmul.mubr.bf16.gmra.mxu0 %v5196
  %v5905 = vpop.f32.mrf.mxu0
  %v5906 = vadd.f32 %v4787, %v5905
  %v5907 = vpop.f32.mrf.mxu0
  %v5908 = vadd.f32 %v4791, %v5907
  %v5909 = vpop.f32.mrf.mxu0
  %v5910 = vadd.f32 %v4787, %v5909
  %v5911 = vpop.f32.mrf.mxu0
  %v5912 = vadd.f32 %v4791, %v5911
  %5913 = vmatprep.mubr.bf16.mxu0 0
  %5914 = vmatmul.mubr.bf16.gmra.mxu0 %v5199
  %v5915 = vpop.f32.mrf.mxu0
  %v5916 = vadd.f32 %v4787, %v5915
  %v5917 = vpop.f32.mrf.mxu0
  %v5918 = vadd.f32 %v4791, %v5917
  %v5919 = vpop.f32.mrf.mxu0
  %v5920 = vadd.f32 %v4787, %v5919
  %v5921 = vpop.f32.mrf.mxu0
  %v5922 = vadd.f32 %v4791, %v5921
  %5923 = vmatprep.mubr.bf16.mxu0 0
  %5924 = vmatmul.mubr.bf16.gmra.mxu0 %v5202
  %v5925 = vpop.f32.mrf.mxu0
  %v5926 = vadd.f32 %v4787, %v5925
  %v5927 = vpop.f32.mrf.mxu0
  %v5928 = vadd.f32 %v4791, %v5927
  %v5929 = vpop.f32.mrf.mxu0
  %v5930 = vadd.f32 %v4787, %v5929
  %v5931 = vpop.f32.mrf.mxu0
  %v5932 = vadd.f32 %v4791, %v5931
  %5933 = vdwg.mxu0
  %5934 = vmatprep.subr.bf16.mxu0 0
  %5935 = vmatpush1.bf16.msra.mxu0 0
  %5936 = vmatprep.subr.bf16.mxu0 0
  %5937 = vmatpush1.bf16.msra.mxu0 0
  %5938 = vmatprep.subr.bf16.mxu0 0
  %5939 = vmatpush1.bf16.msra.mxu0 0
  %5940 = vmatprep.subr.bf16.mxu0 0
  %5941 = vmatpush1.bf16.msra.mxu0 0
  %5942 = vmatprep.subr.bf16.mxu0 0
  %5943 = vmatpush1.bf16.msra.mxu0 0
  %5944 = vmatprep.subr.bf16.mxu0 0
  %5945 = vmatpush1.bf16.msra.mxu0 0
  %5946 = vmatprep.subr.bf16.mxu0 %v5117
  %5947 = vmatpush1.bf16.msra.mxu0 %v5116
  %5948 = vmatprep.subr.bf16.mxu0 %v5085
  %5949 = vmatpush1.bf16.msra.mxu0 %v5084
  %5950 = vmatprep.subr.bf16.mxu0 0
  %5951 = vmatpush2.bf16.msra.mxu0 0
  %5952 = vmatprep.subr.bf16.mxu0 0
  %5953 = vmatpush2.bf16.msra.mxu0 0
  %5954 = vmatprep.subr.bf16.mxu0 0
  %5955 = vmatpush2.bf16.msra.mxu0 0
  %5956 = vmatprep.subr.bf16.mxu0 0
  %5957 = vmatpush2.bf16.msra.mxu0 0
  %5958 = vmatprep.subr.bf16.mxu0 0
  %5959 = vmatpush2.bf16.msra.mxu0 0
  %5960 = vmatprep.subr.bf16.mxu0 0
  %5961 = vmatpush2.bf16.msra.mxu0 0
  %5962 = vmatprep.subr.bf16.mxu0 0
  %5963 = vmatpush2.bf16.msra.mxu0 0
  %5964 = vmatprep.subr.bf16.mxu0 0
  %5965 = vmatpush2.bf16.msra.mxu0 0
  %5966 = vmatprep.mubr.bf16.mxu0 0
  %5967 = vmatmul.mubr.bf16.gmra.mxu0 %v5193
  %v5968 = vpop.f32.mrf.mxu0
  %v5969 = vadd.f32 %v4795, %v5968
  %v5970 = vpop.f32.mrf.mxu0
  %v5971 = vadd.f32 %v4799, %v5970
  %v5972 = vpop.f32.mrf.mxu0
  %v5973 = vadd.f32 %v4795, %v5972
  %v5974 = vpop.f32.mrf.mxu0
  %v5975 = vadd.f32 %v4799, %v5974
  %5976 = vmatprep.mubr.bf16.mxu0 0
  %5977 = vmatmul.mubr.bf16.gmra.mxu0 %v5196
  %v5978 = vpop.f32.mrf.mxu0
  %v5979 = vadd.f32 %v4795, %v5978
  %v5980 = vpop.f32.mrf.mxu0
  %v5981 = vadd.f32 %v4799, %v5980
  %v5982 = vpop.f32.mrf.mxu0
  %v5983 = vadd.f32 %v4795, %v5982
  %v5984 = vpop.f32.mrf.mxu0
  %v5985 = vadd.f32 %v4799, %v5984
  %5986 = vmatprep.mubr.bf16.mxu0 0
  %5987 = vmatmul.mubr.bf16.gmra.mxu0 %v5199
  %v5988 = vpop.f32.mrf.mxu0
  %v5989 = vadd.f32 %v4795, %v5988
  %v5990 = vpop.f32.mrf.mxu0
  %v5991 = vadd.f32 %v4799, %v5990
  %v5992 = vpop.f32.mrf.mxu0
  %v5993 = vadd.f32 %v4795, %v5992
  %v5994 = vpop.f32.mrf.mxu0
  %v5995 = vadd.f32 %v4799, %v5994
  %5996 = vmatprep.mubr.bf16.mxu0 0
  %5997 = vmatmul.mubr.bf16.gmra.mxu0 %v5202
  %v5998 = vpop.f32.mrf.mxu0
  %v5999 = vadd.f32 %v4795, %v5998
  %v6000 = vpop.f32.mrf.mxu0
  %v6001 = vadd.f32 %v4799, %v6000
  %v6002 = vpop.f32.mrf.mxu0
  %v6003 = vadd.f32 %v4795, %v6002
  %v6004 = vpop.f32.mrf.mxu0
  %v6005 = vadd.f32 %v4799, %v6004
  %6006 = vdwg.mxu0
  %6007 = vmatprep.subr.bf16.mxu0 0
  %6008 = vmatpush1.bf16.msra.mxu0 0
  %6009 = vmatprep.subr.bf16.mxu0 0
  %6010 = vmatpush1.bf16.msra.mxu0 0
  %6011 = vmatprep.subr.bf16.mxu0 0
  %6012 = vmatpush1.bf16.msra.mxu0 0
  %6013 = vmatprep.subr.bf16.mxu0 0
  %6014 = vmatpush1.bf16.msra.mxu0 0
  %6015 = vmatprep.subr.bf16.mxu0 0
  %6016 = vmatpush1.bf16.msra.mxu0 0
  %6017 = vmatprep.subr.bf16.mxu0 0
  %6018 = vmatpush1.bf16.msra.mxu0 0
  %6019 = vmatprep.subr.bf16.mxu0 %v5119
  %6020 = vmatpush1.bf16.msra.mxu0 %v5118
  %6021 = vmatprep.subr.bf16.mxu0 %v5087
  %6022 = vmatpush1.bf16.msra.mxu0 %v5086
  %6023 = vmatprep.subr.bf16.mxu0 0
  %6024 = vmatpush2.bf16.msra.mxu0 0
  %6025 = vmatprep.subr.bf16.mxu0 0
  %6026 = vmatpush2.bf16.msra.mxu0 0
  %6027 = vmatprep.subr.bf16.mxu0 0
  %6028 = vmatpush2.bf16.msra.mxu0 0
  %6029 = vmatprep.subr.bf16.mxu0 0
  %6030 = vmatpush2.bf16.msra.mxu0 0
  %6031 = vmatprep.subr.bf16.mxu0 0
  %6032 = vmatpush2.bf16.msra.mxu0 0
  %6033 = vmatprep.subr.bf16.mxu0 0
  %6034 = vmatpush2.bf16.msra.mxu0 0
  %6035 = vmatprep.subr.bf16.mxu0 0
  %6036 = vmatpush2.bf16.msra.mxu0 0
  %6037 = vmatprep.subr.bf16.mxu0 0
  %6038 = vmatpush2.bf16.msra.mxu0 0
  %6039 = vmatprep.mubr.bf16.mxu0 0
  %6040 = vmatmul.mubr.bf16.gmra.mxu0 %v5193
  %v6041 = vpop.f32.mrf.mxu0
  %v6042 = vadd.f32 %v4803, %v6041
  %v6043 = vpop.f32.mrf.mxu0
  %v6044 = vadd.f32 %v4807, %v6043
  %v6045 = vpop.f32.mrf.mxu0
  %v6046 = vadd.f32 %v4803, %v6045
  %v6047 = vpop.f32.mrf.mxu0
  %v6048 = vadd.f32 %v4807, %v6047
  %6049 = vmatprep.mubr.bf16.mxu0 0
  %6050 = vmatmul.mubr.bf16.gmra.mxu0 %v5196
  %v6051 = vpop.f32.mrf.mxu0
  %v6052 = vadd.f32 %v4803, %v6051
  %v6053 = vpop.f32.mrf.mxu0
  %v6054 = vadd.f32 %v4807, %v6053
  %v6055 = vpop.f32.mrf.mxu0
  %v6056 = vadd.f32 %v4803, %v6055
  %v6057 = vpop.f32.mrf.mxu0
  %v6058 = vadd.f32 %v4807, %v6057
  %6059 = vmatprep.mubr.bf16.mxu0 0
  %6060 = vmatmul.mubr.bf16.gmra.mxu0 %v5199
  %v6061 = vpop.f32.mrf.mxu0
  %v6062 = vadd.f32 %v4803, %v6061
  %v6063 = vpop.f32.mrf.mxu0
  %v6064 = vadd.f32 %v4807, %v6063
  %v6065 = vpop.f32.mrf.mxu0
  %v6066 = vadd.f32 %v4803, %v6065
  %v6067 = vpop.f32.mrf.mxu0
  %v6068 = vadd.f32 %v4807, %v6067
  %6069 = vmatprep.mubr.bf16.mxu0 0
  %6070 = vmatmul.mubr.bf16.gmra.mxu0 %v5202
  %v6071 = vpop.f32.mrf.mxu0
  %v6072 = vadd.f32 %v4803, %v6071
  %v6073 = vpop.f32.mrf.mxu0
  %v6074 = vadd.f32 %v4807, %v6073
  %v6075 = vpop.f32.mrf.mxu0
  %v6076 = vadd.f32 %v4803, %v6075
  %v6077 = vpop.f32.mrf.mxu0
  %v6078 = vadd.f32 %v4807, %v6077
  %6079 = vdwg.mxu0
  %6080 = vmatprep.subr.bf16.mxu0 0
  %6081 = vmatpush1.bf16.msra.mxu0 0
  %6082 = vmatprep.subr.bf16.mxu0 0
  %6083 = vmatpush1.bf16.msra.mxu0 0
  %6084 = vmatprep.subr.bf16.mxu0 0
  %6085 = vmatpush1.bf16.msra.mxu0 0
  %6086 = vmatprep.subr.bf16.mxu0 0
  %6087 = vmatpush1.bf16.msra.mxu0 0
  %6088 = vmatprep.subr.bf16.mxu0 0
  %6089 = vmatpush1.bf16.msra.mxu0 0
  %6090 = vmatprep.subr.bf16.mxu0 0
  %6091 = vmatpush1.bf16.msra.mxu0 0
  %6092 = vmatprep.subr.bf16.mxu0 %v5121
  %6093 = vmatpush1.bf16.msra.mxu0 %v5120
  %6094 = vmatprep.subr.bf16.mxu0 %v5089
  %6095 = vmatpush1.bf16.msra.mxu0 %v5088
  %6096 = vmatprep.subr.bf16.mxu0 0
  %6097 = vmatpush2.bf16.msra.mxu0 0
  %6098 = vmatprep.subr.bf16.mxu0 0
  %6099 = vmatpush2.bf16.msra.mxu0 0
  %6100 = vmatprep.subr.bf16.mxu0 0
  %6101 = vmatpush2.bf16.msra.mxu0 0
  %6102 = vmatprep.subr.bf16.mxu0 0
  %6103 = vmatpush2.bf16.msra.mxu0 0
  %6104 = vmatprep.subr.bf16.mxu0 0
  %6105 = vmatpush2.bf16.msra.mxu0 0
  %6106 = vmatprep.subr.bf16.mxu0 0
  %6107 = vmatpush2.bf16.msra.mxu0 0
  %6108 = vmatprep.subr.bf16.mxu0 0
  %6109 = vmatpush2.bf16.msra.mxu0 0
  %6110 = vmatprep.subr.bf16.mxu0 0
  %6111 = vmatpush2.bf16.msra.mxu0 0
  %6112 = vmatprep.mubr.bf16.mxu0 0
  %6113 = vmatmul.mubr.bf16.gmra.mxu0 %v5193
  %v6114 = vpop.f32.mrf.mxu0
  %v6115 = vadd.f32 %v4811, %v6114
  %v6116 = vpop.f32.mrf.mxu0
  %v6117 = vadd.f32 %v4815, %v6116
  %v6118 = vpop.f32.mrf.mxu0
  %v6119 = vadd.f32 %v4811, %v6118
  %v6120 = vpop.f32.mrf.mxu0
  %v6121 = vadd.f32 %v4815, %v6120
  %6122 = vmatprep.mubr.bf16.mxu0 0
  %6123 = vmatmul.mubr.bf16.gmra.mxu0 %v5196
  %v6124 = vpop.f32.mrf.mxu0
  %v6125 = vadd.f32 %v4811, %v6124
  %v6126 = vpop.f32.mrf.mxu0
  %v6127 = vadd.f32 %v4815, %v6126
  %v6128 = vpop.f32.mrf.mxu0
  %v6129 = vadd.f32 %v4811, %v6128
  %v6130 = vpop.f32.mrf.mxu0
  %v6131 = vadd.f32 %v4815, %v6130
  %6132 = vmatprep.mubr.bf16.mxu0 0
  %6133 = vmatmul.mubr.bf16.gmra.mxu0 %v5199
  %v6134 = vpop.f32.mrf.mxu0
  %v6135 = vadd.f32 %v4811, %v6134
  %v6136 = vpop.f32.mrf.mxu0
  %v6137 = vadd.f32 %v4815, %v6136
  %v6138 = vpop.f32.mrf.mxu0
  %v6139 = vadd.f32 %v4811, %v6138
  %v6140 = vpop.f32.mrf.mxu0
  %v6141 = vadd.f32 %v4815, %v6140
  %6142 = vmatprep.mubr.bf16.mxu0 0
  %6143 = vmatmul.mubr.bf16.gmra.mxu0 %v5202
  %v6144 = vpop.f32.mrf.mxu0
  %v6145 = vadd.f32 %v4811, %v6144
  %v6146 = vpop.f32.mrf.mxu0
  %v6147 = vadd.f32 %v4815, %v6146
  %v6148 = vpop.f32.mrf.mxu0
  %v6149 = vadd.f32 %v4811, %v6148
  %v6150 = vpop.f32.mrf.mxu0
  %v6151 = vadd.f32 %v4815, %v6150
  %6152 = vdwg.mxu0
  %6153 = vmatprep.subr.bf16.mxu0 0
  %6154 = vmatpush1.bf16.msra.mxu0 0
  %6155 = vmatprep.subr.bf16.mxu0 0
  %6156 = vmatpush1.bf16.msra.mxu0 0
  %6157 = vmatprep.subr.bf16.mxu0 0
  %6158 = vmatpush1.bf16.msra.mxu0 0
  %6159 = vmatprep.subr.bf16.mxu0 0
  %6160 = vmatpush1.bf16.msra.mxu0 0
  %6161 = vmatprep.subr.bf16.mxu0 0
  %6162 = vmatpush1.bf16.msra.mxu0 0
  %6163 = vmatprep.subr.bf16.mxu0 0
  %6164 = vmatpush1.bf16.msra.mxu0 0
  %6165 = vmatprep.subr.bf16.mxu0 %v5123
  %6166 = vmatpush1.bf16.msra.mxu0 %v5122
  %6167 = vmatprep.subr.bf16.mxu0 %v5091
  %6168 = vmatpush1.bf16.msra.mxu0 %v5090
  %6169 = vmatprep.subr.bf16.mxu0 0
  %6170 = vmatpush2.bf16.msra.mxu0 0
  %6171 = vmatprep.subr.bf16.mxu0 0
  %6172 = vmatpush2.bf16.msra.mxu0 0
  %6173 = vmatprep.subr.bf16.mxu0 0
  %6174 = vmatpush2.bf16.msra.mxu0 0
  %6175 = vmatprep.subr.bf16.mxu0 0
  %6176 = vmatpush2.bf16.msra.mxu0 0
  %6177 = vmatprep.subr.bf16.mxu0 0
  %6178 = vmatpush2.bf16.msra.mxu0 0
  %6179 = vmatprep.subr.bf16.mxu0 0
  %6180 = vmatpush2.bf16.msra.mxu0 0
  %6181 = vmatprep.subr.bf16.mxu0 0
  %6182 = vmatpush2.bf16.msra.mxu0 0
  %6183 = vmatprep.subr.bf16.mxu0 0
  %6184 = vmatpush2.bf16.msra.mxu0 0
  %6185 = vmatprep.mubr.bf16.mxu0 0
  %6186 = vmatmul.mubr.bf16.gmra.mxu0 %v5193
  %v6187 = vpop.f32.mrf.mxu0
  %v6188 = vadd.f32 %v4819, %v6187
  %v6189 = vpop.f32.mrf.mxu0
  %v6190 = vadd.f32 %v4823, %v6189
  %v6191 = vpop.f32.mrf.mxu0
  %v6192 = vadd.f32 %v4819, %v6191
  %v6193 = vpop.f32.mrf.mxu0
  %v6194 = vadd.f32 %v4823, %v6193
  %6195 = vmatprep.mubr.bf16.mxu0 0
  %6196 = vmatmul.mubr.bf16.gmra.mxu0 %v5196
  %v6197 = vpop.f32.mrf.mxu0
  %v6198 = vadd.f32 %v4819, %v6197
  %v6199 = vpop.f32.mrf.mxu0
  %v6200 = vadd.f32 %v4823, %v6199
  %v6201 = vpop.f32.mrf.mxu0
  %v6202 = vadd.f32 %v4819, %v6201
  %v6203 = vpop.f32.mrf.mxu0
  %v6204 = vadd.f32 %v4823, %v6203
  %6205 = vmatprep.mubr.bf16.mxu0 0
  %6206 = vmatmul.mubr.bf16.gmra.mxu0 %v5199
  %v6207 = vpop.f32.mrf.mxu0
  %v6208 = vadd.f32 %v4819, %v6207
  %v6209 = vpop.f32.mrf.mxu0
  %v6210 = vadd.f32 %v4823, %v6209
  %v6211 = vpop.f32.mrf.mxu0
  %v6212 = vadd.f32 %v4819, %v6211
  %v6213 = vpop.f32.mrf.mxu0
  %v6214 = vadd.f32 %v4823, %v6213
  %6215 = vmatprep.mubr.bf16.mxu0 0
  %6216 = vmatmul.mubr.bf16.gmra.mxu0 %v5202
  %v6217 = vpop.f32.mrf.mxu0
  %v6218 = vadd.f32 %v4819, %v6217
  %v6219 = vpop.f32.mrf.mxu0
  %v6220 = vadd.f32 %v4823, %v6219
  %v6221 = vpop.f32.mrf.mxu0
  %v6222 = vadd.f32 %v4819, %v6221
  %v6223 = vpop.f32.mrf.mxu0
  %v6224 = vadd.f32 %v4823, %v6223
  %6225 = vdwg.mxu0
  %6226 = vmatprep.subr.bf16.mxu0 0
  %6227 = vmatpush1.bf16.msra.mxu0 0
  %6228 = vmatprep.subr.bf16.mxu0 0
  %6229 = vmatpush1.bf16.msra.mxu0 0
  %6230 = vmatprep.subr.bf16.mxu0 0
  %6231 = vmatpush1.bf16.msra.mxu0 0
  %6232 = vmatprep.subr.bf16.mxu0 0
  %6233 = vmatpush1.bf16.msra.mxu0 0
  %6234 = vmatprep.subr.bf16.mxu0 0
  %6235 = vmatpush1.bf16.msra.mxu0 0
  %6236 = vmatprep.subr.bf16.mxu0 0
  %6237 = vmatpush1.bf16.msra.mxu0 0
  %6238 = vmatprep.subr.bf16.mxu0 %v5125
  %6239 = vmatpush1.bf16.msra.mxu0 %v5124
  %6240 = vmatprep.subr.bf16.mxu0 %v5093
  %6241 = vmatpush1.bf16.msra.mxu0 %v5092
  %6242 = vmatprep.subr.bf16.mxu0 0
  %6243 = vmatpush2.bf16.msra.mxu0 0
  %6244 = vmatprep.subr.bf16.mxu0 0
  %6245 = vmatpush2.bf16.msra.mxu0 0
  %6246 = vmatprep.subr.bf16.mxu0 0
  %6247 = vmatpush2.bf16.msra.mxu0 0
  %6248 = vmatprep.subr.bf16.mxu0 0
  %6249 = vmatpush2.bf16.msra.mxu0 0
  %6250 = vmatprep.subr.bf16.mxu0 0
  %6251 = vmatpush2.bf16.msra.mxu0 0
  %6252 = vmatprep.subr.bf16.mxu0 0
  %6253 = vmatpush2.bf16.msra.mxu0 0
  %6254 = vmatprep.subr.bf16.mxu0 0
  %6255 = vmatpush2.bf16.msra.mxu0 0
  %6256 = vmatprep.subr.bf16.mxu0 0
  %6257 = vmatpush2.bf16.msra.mxu0 0
  %6258 = vmatprep.mubr.bf16.mxu0 0
  %6259 = vmatmul.mubr.bf16.gmra.mxu0 %v5193
  %v6260 = vpop.f32.mrf.mxu0
  %v6261 = vadd.f32 %v4827, %v6260
  %v6262 = vpop.f32.mrf.mxu0
  %v6263 = vadd.f32 %v4831, %v6262
  %v6264 = vpop.f32.mrf.mxu0
  %v6265 = vadd.f32 %v4827, %v6264
  %v6266 = vpop.f32.mrf.mxu0
  %v6267 = vadd.f32 %v4831, %v6266
  %6268 = vmatprep.mubr.bf16.mxu0 0
  %6269 = vmatmul.mubr.bf16.gmra.mxu0 %v5196
  %v6270 = vpop.f32.mrf.mxu0
  %v6271 = vadd.f32 %v4827, %v6270
  %v6272 = vpop.f32.mrf.mxu0
  %v6273 = vadd.f32 %v4831, %v6272
  %v6274 = vpop.f32.mrf.mxu0
  %v6275 = vadd.f32 %v4827, %v6274
  %v6276 = vpop.f32.mrf.mxu0
  %v6277 = vadd.f32 %v4831, %v6276
  %6278 = vmatprep.mubr.bf16.mxu0 0
  %6279 = vmatmul.mubr.bf16.gmra.mxu0 %v5199
  %v6280 = vpop.f32.mrf.mxu0
  %v6281 = vadd.f32 %v4827, %v6280
  %v6282 = vpop.f32.mrf.mxu0
  %v6283 = vadd.f32 %v4831, %v6282
  %v6284 = vpop.f32.mrf.mxu0
  %v6285 = vadd.f32 %v4827, %v6284
  %v6286 = vpop.f32.mrf.mxu0
  %v6287 = vadd.f32 %v4831, %v6286
  %6288 = vmatprep.mubr.bf16.mxu0 0
  %6289 = vmatmul.mubr.bf16.gmra.mxu0 %v5202
  %v6290 = vpop.f32.mrf.mxu0
  %v6291 = vadd.f32 %v4827, %v6290
  %v6292 = vpop.f32.mrf.mxu0
  %v6293 = vadd.f32 %v4831, %v6292
  %v6294 = vpop.f32.mrf.mxu0
  %v6295 = vadd.f32 %v4827, %v6294
  %v6296 = vpop.f32.mrf.mxu0
  %v6297 = vadd.f32 %v4831, %v6296
  %6298 = vdwg.mxu0
  %6299 = vmatprep.subr.bf16.mxu0 0
  %6300 = vmatpush1.bf16.msra.mxu0 0
  %6301 = vmatprep.subr.bf16.mxu0 0
  %6302 = vmatpush1.bf16.msra.mxu0 0
  %6303 = vmatprep.subr.bf16.mxu0 0
  %6304 = vmatpush1.bf16.msra.mxu0 0
  %6305 = vmatprep.subr.bf16.mxu0 0
  %6306 = vmatpush1.bf16.msra.mxu0 0
  %6307 = vmatprep.subr.bf16.mxu0 0
  %6308 = vmatpush1.bf16.msra.mxu0 0
  %6309 = vmatprep.subr.bf16.mxu0 0
  %6310 = vmatpush1.bf16.msra.mxu0 0
  %6311 = vmatprep.subr.bf16.mxu0 %v5127
  %6312 = vmatpush1.bf16.msra.mxu0 %v5126
  %6313 = vmatprep.subr.bf16.mxu0 %v5095
  %6314 = vmatpush1.bf16.msra.mxu0 %v5094
  %6315 = vmatprep.subr.bf16.mxu0 0
  %6316 = vmatpush2.bf16.msra.mxu0 0
  %6317 = vmatprep.subr.bf16.mxu0 0
  %6318 = vmatpush2.bf16.msra.mxu0 0
  %6319 = vmatprep.subr.bf16.mxu0 0
  %6320 = vmatpush2.bf16.msra.mxu0 0
  %6321 = vmatprep.subr.bf16.mxu0 0
  %6322 = vmatpush2.bf16.msra.mxu0 0
  %6323 = vmatprep.subr.bf16.mxu0 0
  %6324 = vmatpush2.bf16.msra.mxu0 0
  %6325 = vmatprep.subr.bf16.mxu0 0
  %6326 = vmatpush2.bf16.msra.mxu0 0
  %6327 = vmatprep.subr.bf16.mxu0 0
  %6328 = vmatpush2.bf16.msra.mxu0 0
  %6329 = vmatprep.subr.bf16.mxu0 0
  %6330 = vmatpush2.bf16.msra.mxu0 0
  %6331 = vmatprep.mubr.bf16.mxu0 0
  %6332 = vmatmul.mubr.bf16.gmra.mxu0 %v5193
  %v6333 = vpop.f32.mrf.mxu0
  %v6334 = vadd.f32 %v4835, %v6333
  %v6335 = vpop.f32.mrf.mxu0
  %v6336 = vadd.f32 %v4839, %v6335
  %v6337 = vpop.f32.mrf.mxu0
  %v6338 = vadd.f32 %v4835, %v6337
  %v6339 = vpop.f32.mrf.mxu0
  %v6340 = vadd.f32 %v4839, %v6339
  %6341 = vmatprep.mubr.bf16.mxu0 0
  %6342 = vmatmul.mubr.bf16.gmra.mxu0 %v5196
  %v6343 = vpop.f32.mrf.mxu0
  %v6344 = vadd.f32 %v4835, %v6343
  %v6345 = vpop.f32.mrf.mxu0
  %v6346 = vadd.f32 %v4839, %v6345
  %v6347 = vpop.f32.mrf.mxu0
  %v6348 = vadd.f32 %v4835, %v6347
  %v6349 = vpop.f32.mrf.mxu0
  %v6350 = vadd.f32 %v4839, %v6349
  %6351 = vmatprep.mubr.bf16.mxu0 0
  %6352 = vmatmul.mubr.bf16.gmra.mxu0 %v5199
  %v6353 = vpop.f32.mrf.mxu0
  %v6354 = vadd.f32 %v4835, %v6353
  %v6355 = vpop.f32.mrf.mxu0
  %v6356 = vadd.f32 %v4839, %v6355
  %v6357 = vpop.f32.mrf.mxu0
  %v6358 = vadd.f32 %v4835, %v6357
  %v6359 = vpop.f32.mrf.mxu0
  %v6360 = vadd.f32 %v4839, %v6359
  %6361 = vmatprep.mubr.bf16.mxu0 0
  %6362 = vmatmul.mubr.bf16.gmra.mxu0 %v5202
  %v6363 = vpop.f32.mrf.mxu0
  %v6364 = vadd.f32 %v4835, %v6363
  %v6365 = vpop.f32.mrf.mxu0
  %v6366 = vadd.f32 %v4839, %v6365
  %v6367 = vpop.f32.mrf.mxu0
  %v6368 = vadd.f32 %v4835, %v6367
  %v6369 = vpop.f32.mrf.mxu0
  %v6370 = vadd.f32 %v4839, %v6369
  %6371 = vdwg.mxu0
  %6372 = vst [vmem:[%s23] sm:$0xff] %v5239
  %6373 = vst [vmem:[%s23 + $0x8] sm:$0xff] %v5241
  %6374 = vst [vmem:[%s23 + $0x10] sm:$0xff] %v5312
  %6375 = vst [vmem:[%s23 + $0x18] sm:$0xff] %v5314
  %6376 = vst [vmem:[%s23 + $0x20] sm:$0xff] %v5385
  %6377 = vst [vmem:[%s23 + $0x28] sm:$0xff] %v5387
  %6378 = vst [vmem:[%s23 + $0x30] sm:$0xff] %v5458
  %6379 = vst [vmem:[%s23 + $0x38] sm:$0xff] %v5460
  %6380 = vst [vmem:[%s23 + $0x40] sm:$0xff] %v5531
  %6381 = vst [vmem:[%s23 + $0x48] sm:$0xff] %v5533
  %6382 = vst [vmem:[%s23 + $0x50] sm:$0xff] %v5604
  %6383 = vst [vmem:[%s23 + $0x58] sm:$0xff] %v5606
  %6384 = vst [vmem:[%s23 + $0x60] sm:$0xff] %v5677
  %6385 = vst [vmem:[%s23 + $0x68] sm:$0xff] %v5679
  %6386 = vst [vmem:[%s23 + $0x70] sm:$0xff] %v5750
  %6387 = vst [vmem:[%s23 + $0x78] sm:$0xff] %v5752
  %6388 = vst [vmem:[%s23 + $0x80] sm:$0xff] %v5823
  %6389 = vst [vmem:[%s23 + $0x88] sm:$0xff] %v5825
  %6390 = vst [vmem:[%s23 + $0x90] sm:$0xff] %v5896
  %6391 = vst [vmem:[%s23 + $0x98] sm:$0xff] %v5898
  %6392 = vst [vmem:[%s23 + $0xa0] sm:$0xff] %v5969
  %6393 = vst [vmem:[%s23 + $0xa8] sm:$0xff] %v5971
  %6394 = vst [vmem:[%s23 + $0xb0] sm:$0xff] %v6042
  %6395 = vst [vmem:[%s23 + $0xb8] sm:$0xff] %v6044
  %6396 = vst [vmem:[%s23 + $0xc0] sm:$0xff] %v6115
  %6397 = vst [vmem:[%s23 + $0xc8] sm:$0xff] %v6117
  %6398 = vst [vmem:[%s23 + $0xd0] sm:$0xff] %v6188
  %6399 = vst [vmem:[%s23 + $0xd8] sm:$0xff] %v6190
  %6400 = vst [vmem:[%s23 + $0xe0] sm:$0xff] %v6261
  %6401 = vst [vmem:[%s23 + $0xe8] sm:$0xff] %v6263
  %6402 = vst [vmem:[%s23 + $0xf0] sm:$0xff] %v6334
  %6403 = vst [vmem:[%s23 + $0xf8] sm:$0xff] %v6336
  %6404 = vst [vmem:[%s23 + $0x100] sm:$0xff] %v5243
  %6405 = vst [vmem:[%s23 + $0x108] sm:$0xff] %v5245
  %6406 = vst [vmem:[%s23 + $0x110] sm:$0xff] %v5316
  %6407 = vst [vmem:[%s23 + $0x118] sm:$0xff] %v5318
  %6408 = vst [vmem:[%s23 + $0x120] sm:$0xff] %v5389
  %6409 = vst [vmem:[%s23 + $0x128] sm:$0xff] %v5391
  %6410 = vst [vmem:[%s23 + $0x130] sm:$0xff] %v5462
  %6411 = vst [vmem:[%s23 + $0x138] sm:$0xff] %v5464
  %6412 = vst [vmem:[%s23 + $0x140] sm:$0xff] %v5535
  %6413 = vst [vmem:[%s23 + $0x148] sm:$0xff] %v5537
  %6414 = vst [vmem:[%s23 + $0x150] sm:$0xff] %v5608
  %6415 = vst [vmem:[%s23 + $0x158] sm:$0xff] %v5610
  %6416 = vst [vmem:[%s23 + $0x160] sm:$0xff] %v5681
  %6417 = vst [vmem:[%s23 + $0x168] sm:$0xff] %v5683
  %6418 = vst [vmem:[%s23 + $0x170] sm:$0xff] %v5754
  %6419 = vst [vmem:[%s23 + $0x178] sm:$0xff] %v5756
  %6420 = vst [vmem:[%s23 + $0x180] sm:$0xff] %v5827
  %6421 = vst [vmem:[%s23 + $0x188] sm:$0xff] %v5829
  %6422 = vst [vmem:[%s23 + $0x190] sm:$0xff] %v5900
  %6423 = vst [vmem:[%s23 + $0x198] sm:$0xff] %v5902
  %6424 = vst [vmem:[%s23 + $0x1a0] sm:$0xff] %v5973
  %6425 = vst [vmem:[%s23 + $0x1a8] sm:$0xff] %v5975
  %6426 = vst [vmem:[%s23 + $0x1b0] sm:$0xff] %v6046
  %6427 = vst [vmem:[%s23 + $0x1b8] sm:$0xff] %v6048
  %6428 = vst [vmem:[%s23 + $0x1c0] sm:$0xff] %v6119
  %6429 = vst [vmem:[%s23 + $0x1c8] sm:$0xff] %v6121
  %6430 = vst [vmem:[%s23 + $0x1d0] sm:$0xff] %v6192
  %6431 = vst [vmem:[%s23 + $0x1d8] sm:$0xff] %v6194
  %6432 = vst [vmem:[%s23 + $0x1e0] sm:$0xff] %v6265
  %6433 = vst [vmem:[%s23 + $0x1e8] sm:$0xff] %v6267
  %6434 = vst [vmem:[%s23 + $0x1f0] sm:$0xff] %v6338
  %6435 = vst [vmem:[%s23 + $0x1f8] sm:$0xff] %v6340
  %6436 = vst [vmem:[%s23 + $0x200] sm:$0xff] %v5249
  %6437 = vst [vmem:[%s23 + $0x208] sm:$0xff] %v5251
  %6438 = vst [vmem:[%s23 + $0x210] sm:$0xff] %v5322
  %6439 = vst [vmem:[%s23 + $0x218] sm:$0xff] %v5324
  %6440 = vst [vmem:[%s23 + $0x220] sm:$0xff] %v5395
  %6441 = vst [vmem:[%s23 + $0x228] sm:$0xff] %v5397
  %6442 = vst [vmem:[%s23 + $0x230] sm:$0xff] %v5468
  %6443 = vst [vmem:[%s23 + $0x238] sm:$0xff] %v5470
  %6444 = vst [vmem:[%s23 + $0x240] sm:$0xff] %v5541
  %6445 = vst [vmem:[%s23 + $0x248] sm:$0xff] %v5543
  %6446 = vst [vmem:[%s23 + $0x250] sm:$0xff] %v5614
  %6447 = vst [vmem:[%s23 + $0x258] sm:$0xff] %v5616
  %6448 = vst [vmem:[%s23 + $0x260] sm:$0xff] %v5687
  %6449 = vst [vmem:[%s23 + $0x268] sm:$0xff] %v5689
  %6450 = vst [vmem:[%s23 + $0x270] sm:$0xff] %v5760
  %6451 = vst [vmem:[%s23 + $0x278] sm:$0xff] %v5762
  %6452 = vst [vmem:[%s23 + $0x280] sm:$0xff] %v5833
  %6453 = vst [vmem:[%s23 + $0x288] sm:$0xff] %v5835
  %6454 = vst [vmem:[%s23 + $0x290] sm:$0xff] %v5906
  %6455 = vst [vmem:[%s23 + $0x298] sm:$0xff] %v5908
  %6456 = vst [vmem:[%s23 + $0x2a0] sm:$0xff] %v5979
  %6457 = vst [vmem:[%s23 + $0x2a8] sm:$0xff] %v5981
  %6458 = vst [vmem:[%s23 + $0x2b0] sm:$0xff] %v6052
  %6459 = vst [vmem:[%s23 + $0x2b8] sm:$0xff] %v6054
  %6460 = vst [vmem:[%s23 + $0x2c0] sm:$0xff] %v6125
  %6461 = vst [vmem:[%s23 + $0x2c8] sm:$0xff] %v6127
  %6462 = vst [vmem:[%s23 + $0x2d0] sm:$0xff] %v6198
  %6463 = vst [vmem:[%s23 + $0x2d8] sm:$0xff] %v6200
  %6464 = vst [vmem:[%s23 + $0x2e0] sm:$0xff] %v6271
  %6465 = vst [vmem:[%s23 + $0x2e8] sm:$0xff] %v6273
  %6466 = vst [vmem:[%s23 + $0x2f0] sm:$0xff] %v6344
  %6467 = vst [vmem:[%s23 + $0x2f8] sm:$0xff] %v6346
  %6468 = vst [vmem:[%s23 + $0x300] sm:$0xff] %v5253
  %6469 = vst [vmem:[%s23 + $0x308] sm:$0xff] %v5255
  %6470 = vst [vmem:[%s23 + $0x310] sm:$0xff] %v5326
  %6471 = vst [vmem:[%s23 + $0x318] sm:$0xff] %v5328
  %6472 = vst [vmem:[%s23 + $0x320] sm:$0xff] %v5399
  %6473 = vst [vmem:[%s23 + $0x328] sm:$0xff] %v5401
  %6474 = vst [vmem:[%s23 + $0x330] sm:$0xff] %v5472
  %6475 = vst [vmem:[%s23 + $0x338] sm:$0xff] %v5474
  %6476 = vst [vmem:[%s23 + $0x340] sm:$0xff] %v5545
  %6477 = vst [vmem:[%s23 + $0x348] sm:$0xff] %v5547
  %6478 = vst [vmem:[%s23 + $0x350] sm:$0xff] %v5618
  %6479 = vst [vmem:[%s23 + $0x358] sm:$0xff] %v5620
  %6480 = vst [vmem:[%s23 + $0x360] sm:$0xff] %v5691
  %6481 = vst [vmem:[%s23 + $0x368] sm:$0xff] %v5693
  %6482 = vst [vmem:[%s23 + $0x370] sm:$0xff] %v5764
  %6483 = vst [vmem:[%s23 + $0x378] sm:$0xff] %v5766
  %6484 = vst [vmem:[%s23 + $0x380] sm:$0xff] %v5837
  %6485 = vst [vmem:[%s23 + $0x388] sm:$0xff] %v5839
  %6486 = vst [vmem:[%s23 + $0x390] sm:$0xff] %v5910
  %6487 = vst [vmem:[%s23 + $0x398] sm:$0xff] %v5912
  %6488 = vst [vmem:[%s23 + $0x3a0] sm:$0xff] %v5983
  %6489 = vst [vmem:[%s23 + $0x3a8] sm:$0xff] %v5985
  %6490 = vst [vmem:[%s23 + $0x3b0] sm:$0xff] %v6056
  %6491 = vst [vmem:[%s23 + $0x3b8] sm:$0xff] %v6058
  %6492 = vst [vmem:[%s23 + $0x3c0] sm:$0xff] %v6129
  %6493 = vst [vmem:[%s23 + $0x3c8] sm:$0xff] %v6131
  %6494 = vst [vmem:[%s23 + $0x3d0] sm:$0xff] %v6202
  %6495 = vst [vmem:[%s23 + $0x3d8] sm:$0xff] %v6204
  %6496 = vst [vmem:[%s23 + $0x3e0] sm:$0xff] %v6275
  %6497 = vst [vmem:[%s23 + $0x3e8] sm:$0xff] %v6277
  %6498 = vst [vmem:[%s23 + $0x3f0] sm:$0xff] %v6348
  %6499 = vst [vmem:[%s23 + $0x3f8] sm:$0xff] %v6350
  %6500 = vst [vmem:[%s23 + $0x400] sm:$0xff] %v5259
  %6501 = vst [vmem:[%s23 + $0x408] sm:$0xff] %v5261
  %6502 = vst [vmem:[%s23 + $0x410] sm:$0xff] %v5332
  %6503 = vst [vmem:[%s23 + $0x418] sm:$0xff] %v5334
  %6504 = vst [vmem:[%s23 + $0x420] sm:$0xff] %v5405
  %6505 = vst [vmem:[%s23 + $0x428] sm:$0xff] %v5407
  %6506 = vst [vmem:[%s23 + $0x430] sm:$0xff] %v5478
  %6507 = vst [vmem:[%s23 + $0x438] sm:$0xff] %v5480
  %6508 = vst [vmem:[%s23 + $0x440] sm:$0xff] %v5551
  %6509 = vst [vmem:[%s23 + $0x448] sm:$0xff] %v5553
  %6510 = vst [vmem:[%s23 + $0x450] sm:$0xff] %v5624
  %6511 = vst [vmem:[%s23 + $0x458] sm:$0xff] %v5626
  %6512 = vst [vmem:[%s23 + $0x460] sm:$0xff] %v5697
  %6513 = vst [vmem:[%s23 + $0x468] sm:$0xff] %v5699
  %6514 = vst [vmem:[%s23 + $0x470] sm:$0xff] %v5770
  %6515 = vst [vmem:[%s23 + $0x478] sm:$0xff] %v5772
  %6516 = vst [vmem:[%s23 + $0x480] sm:$0xff] %v5843
  %6517 = vst [vmem:[%s23 + $0x488] sm:$0xff] %v5845
  %6518 = vst [vmem:[%s23 + $0x490] sm:$0xff] %v5916
  %6519 = vst [vmem:[%s23 + $0x498] sm:$0xff] %v5918
  %6520 = vst [vmem:[%s23 + $0x4a0] sm:$0xff] %v5989
  %6521 = vst [vmem:[%s23 + $0x4a8] sm:$0xff] %v5991
  %6522 = vst [vmem:[%s23 + $0x4b0] sm:$0xff] %v6062
  %6523 = vst [vmem:[%s23 + $0x4b8] sm:$0xff] %v6064
  %6524 = vst [vmem:[%s23 + $0x4c0] sm:$0xff] %v6135
  %6525 = vst [vmem:[%s23 + $0x4c8] sm:$0xff] %v6137
  %6526 = vst [vmem:[%s23 + $0x4d0] sm:$0xff] %v6208
  %6527 = vst [vmem:[%s23 + $0x4d8] sm:$0xff] %v6210
  %6528 = vst [vmem:[%s23 + $0x4e0] sm:$0xff] %v6281
  %6529 = vst [vmem:[%s23 + $0x4e8] sm:$0xff] %v6283
  %6530 = vst [vmem:[%s23 + $0x4f0] sm:$0xff] %v6354
  %6531 = vst [vmem:[%s23 + $0x4f8] sm:$0xff] %v6356
  %6532 = vst [vmem:[%s23 + $0x500] sm:$0xff] %v5263
  %6533 = vst [vmem:[%s23 + $0x508] sm:$0xff] %v5265
  %6534 = vst [vmem:[%s23 + $0x510] sm:$0xff] %v5336
  %6535 = vst [vmem:[%s23 + $0x518] sm:$0xff] %v5338
  %6536 = vst [vmem:[%s23 + $0x520] sm:$0xff] %v5409
  %6537 = vst [vmem:[%s23 + $0x528] sm:$0xff] %v5411
  %6538 = vst [vmem:[%s23 + $0x530] sm:$0xff] %v5482
  %6539 = vst [vmem:[%s23 + $0x538] sm:$0xff] %v5484
  %6540 = vst [vmem:[%s23 + $0x540] sm:$0xff] %v5555
  %6541 = vst [vmem:[%s23 + $0x548] sm:$0xff] %v5557
  %6542 = vst [vmem:[%s23 + $0x550] sm:$0xff] %v5628
  %6543 = vst [vmem:[%s23 + $0x558] sm:$0xff] %v5630
  %6544 = vst [vmem:[%s23 + $0x560] sm:$0xff] %v5701
  %6545 = vst [vmem:[%s23 + $0x568] sm:$0xff] %v5703
  %6546 = vst [vmem:[%s23 + $0x570] sm:$0xff] %v5774
  %6547 = vst [vmem:[%s23 + $0x578] sm:$0xff] %v5776
  %6548 = vst [vmem:[%s23 + $0x580] sm:$0xff] %v5847
  %6549 = vst [vmem:[%s23 + $0x588] sm:$0xff] %v5849
  %6550 = vst [vmem:[%s23 + $0x590] sm:$0xff] %v5920
  %6551 = vst [vmem:[%s23 + $0x598] sm:$0xff] %v5922
  %6552 = vst [vmem:[%s23 + $0x5a0] sm:$0xff] %v5993
  %6553 = vst [vmem:[%s23 + $0x5a8] sm:$0xff] %v5995
  %6554 = vst [vmem:[%s23 + $0x5b0] sm:$0xff] %v6066
  %6555 = vst [vmem:[%s23 + $0x5b8] sm:$0xff] %v6068
  %6556 = vst [vmem:[%s23 + $0x5c0] sm:$0xff] %v6139
  %6557 = vst [vmem:[%s23 + $0x5c8] sm:$0xff] %v6141
  %6558 = vst [vmem:[%s23 + $0x5d0] sm:$0xff] %v6212
  %6559 = vst [vmem:[%s23 + $0x5d8] sm:$0xff] %v6214
  %6560 = vst [vmem:[%s23 + $0x5e0] sm:$0xff] %v6285
  %6561 = vst [vmem:[%s23 + $0x5e8] sm:$0xff] %v6287
  %6562 = vst [vmem:[%s23 + $0x5f0] sm:$0xff] %v6358
  %6563 = vst [vmem:[%s23 + $0x5f8] sm:$0xff] %v6360
  %6564 = vst [vmem:[%s23 + $0x600] sm:$0xff] %v5269
  %6565 = vst [vmem:[%s23 + $0x608] sm:$0xff] %v5271
  %6566 = vst [vmem:[%s23 + $0x610] sm:$0xff] %v5342
  %6567 = vst [vmem:[%s23 + $0x618] sm:$0xff] %v5344
  %6568 = vst [vmem:[%s23 + $0x620] sm:$0xff] %v5415
  %6569 = vst [vmem:[%s23 + $0x628] sm:$0xff] %v5417
  %6570 = vst [vmem:[%s23 + $0x630] sm:$0xff] %v5488
  %6571 = vst [vmem:[%s23 + $0x638] sm:$0xff] %v5490
  %6572 = vst [vmem:[%s23 + $0x640] sm:$0xff] %v5561
  %6573 = vst [vmem:[%s23 + $0x648] sm:$0xff] %v5563
  %6574 = vst [vmem:[%s23 + $0x650] sm:$0xff] %v5634
  %6575 = vst [vmem:[%s23 + $0x658] sm:$0xff] %v5636
  %6576 = vst [vmem:[%s23 + $0x660] sm:$0xff] %v5707
  %6577 = vst [vmem:[%s23 + $0x668] sm:$0xff] %v5709
  %6578 = vst [vmem:[%s23 + $0x670] sm:$0xff] %v5780
  %6579 = vst [vmem:[%s23 + $0x678] sm:$0xff] %v5782
  %6580 = vst [vmem:[%s23 + $0x680] sm:$0xff] %v5853
  %6581 = vst [vmem:[%s23 + $0x688] sm:$0xff] %v5855
  %6582 = vst [vmem:[%s23 + $0x690] sm:$0xff] %v5926
  %6583 = vst [vmem:[%s23 + $0x698] sm:$0xff] %v5928
  %6584 = vst [vmem:[%s23 + $0x6a0] sm:$0xff] %v5999
  %6585 = vst [vmem:[%s23 + $0x6a8] sm:$0xff] %v6001
  %6586 = vst [vmem:[%s23 + $0x6b0] sm:$0xff] %v6072
  %6587 = vst [vmem:[%s23 + $0x6b8] sm:$0xff] %v6074
  %6588 = vst [vmem:[%s23 + $0x6c0] sm:$0xff] %v6145
  %6589 = vst [vmem:[%s23 + $0x6c8] sm:$0xff] %v6147
  %6590 = vst [vmem:[%s23 + $0x6d0] sm:$0xff] %v6218
  %6591 = vst [vmem:[%s23 + $0x6d8] sm:$0xff] %v6220
  %6592 = vst [vmem:[%s23 + $0x6e0] sm:$0xff] %v6291
  %6593 = vst [vmem:[%s23 + $0x6e8] sm:$0xff] %v6293
  %6594 = vst [vmem:[%s23 + $0x6f0] sm:$0xff] %v6364
  %6595 = vst [vmem:[%s23 + $0x6f8] sm:$0xff] %v6366
  %6596 = vst [vmem:[%s23 + $0x700] sm:$0xff] %v5273
  %6597 = vst [vmem:[%s23 + $0x708] sm:$0xff] %v5275
  %6598 = vst [vmem:[%s23 + $0x710] sm:$0xff] %v5346
  %6599 = vst [vmem:[%s23 + $0x718] sm:$0xff] %v5348
  %6600 = vst [vmem:[%s23 + $0x720] sm:$0xff] %v5419
  %6601 = vst [vmem:[%s23 + $0x728] sm:$0xff] %v5421
  %6602 = vst [vmem:[%s23 + $0x730] sm:$0xff] %v5492
  %6603 = vst [vmem:[%s23 + $0x738] sm:$0xff] %v5494
  %6604 = vst [vmem:[%s23 + $0x740] sm:$0xff] %v5565
  %6605 = vst [vmem:[%s23 + $0x748] sm:$0xff] %v5567
  %6606 = vst [vmem:[%s23 + $0x750] sm:$0xff] %v5638
  %6607 = vst [vmem:[%s23 + $0x758] sm:$0xff] %v5640
  %6608 = vst [vmem:[%s23 + $0x760] sm:$0xff] %v5711
  %6609 = vst [vmem:[%s23 + $0x768] sm:$0xff] %v5713
  %6610 = vst [vmem:[%s23 + $0x770] sm:$0xff] %v5784
  %6611 = vst [vmem:[%s23 + $0x778] sm:$0xff] %v5786
  %6612 = vst [vmem:[%s23 + $0x780] sm:$0xff] %v5857
  %6613 = vst [vmem:[%s23 + $0x788] sm:$0xff] %v5859
  %6614 = vst [vmem:[%s23 + $0x790] sm:$0xff] %v5930
  %6615 = vst [vmem:[%s23 + $0x798] sm:$0xff] %v5932
  %6616 = vst [vmem:[%s23 + $0x7a0] sm:$0xff] %v6003
  %6617 = vst [vmem:[%s23 + $0x7a8] sm:$0xff] %v6005
  %6618 = vst [vmem:[%s23 + $0x7b0] sm:$0xff] %v6076
  %6619 = vst [vmem:[%s23 + $0x7b8] sm:$0xff] %v6078
  %6620 = vst [vmem:[%s23 + $0x7c0] sm:$0xff] %v6149
  %6621 = vst [vmem:[%s23 + $0x7c8] sm:$0xff] %v6151
  %6622 = vst [vmem:[%s23 + $0x7d0] sm:$0xff] %v6222
  %6623 = vst [vmem:[%s23 + $0x7d8] sm:$0xff] %v6224
  %6624 = vst [vmem:[%s23 + $0x7e0] sm:$0xff] %v6295
  %6625 = vst [vmem:[%s23 + $0x7e8] sm:$0xff] %v6297
  %6626 = vst [vmem:[%s23 + $0x7f0] sm:$0xff] %v6368
  %6627 = vst [vmem:[%s23 + $0x7f8] sm:$0xff] %v6370
  %v6628 = vld [vmem:[%s4] sm:$0xff]
  %v6629 = vld [vmem:[%s4 + $0x8] sm:$0xff]
  %v6630 = vld [vmem:[%s4 + $0x10] sm:$0xff]
  %v6631 = vld [vmem:[%s4 + $0x18] sm:$0xff]
  %v6632 = vld [vmem:[%s4 + $0x20] sm:$0xff]
  %v6633 = vld [vmem:[%s4 + $0x28] sm:$0xff]
  %v6634 = vld [vmem:[%s4 + $0x30] sm:$0xff]
  %v6635 = vld [vmem:[%s4 + $0x38] sm:$0xff]
  %v6636 = vlaneseq
  %v6637 = vand.u32 %v6636, 127
  %v6638 = vadd.s32 %v6637, 128
  %v6639 = vadd.s32 %v6637, 256
  %v6640 = vadd.s32 %v6637, 384
  %v6641 = vadd.s32 %v6637, 512
  %v6642 = vadd.s32 %v6637, 640
  %v6643 = vadd.s32 %v6637, 768
  %v6644 = vadd.s32 %v6637, 896
  %v6645 = vadd.s32 %v6637, 1024
  %v6646 = vadd.s32 %v6637, 1152
  %v6647 = vadd.s32 %v6637, 1280
  %v6648 = vadd.s32 %v6637, 1408
  %v6649 = vadd.s32 %v6637, 1536
  %v6650 = vadd.s32 %v6637, 1664
  %v6651 = vadd.s32 %v6637, 1792
  %v6652 = vadd.s32 %v6637, 1920
  %v6653 = vadd.s32 %v6637, 2048
  %v6654 = vadd.s32 %v6637, 2176
  %v6655 = vadd.s32 %v6637, 2304
  %v6656 = vadd.s32 %v6637, 2432
  %v6657 = vadd.s32 %v6637, 2560
  %v6658 = vadd.s32 %v6637, 2688
  %v6659 = vadd.s32 %v6637, 2816
  %v6660 = vadd.s32 %v6637, 2944
  %v6661 = vadd.s32 %v6637, 3072
  %v6662 = vadd.s32 %v6637, 3200
  %v6663 = vadd.s32 %v6637, 3328
  %v6664 = vadd.s32 %v6637, 3456
  %v6665 = vadd.s32 %v6637, 3584
  %v6666 = vadd.s32 %v6637, 3712
  %v6667 = vadd.s32 %v6637, 3840
  %v6668 = vadd.s32 %v6637, 3968
  %6669 = vset.pattern.permute.xlu0 0
  %6670 = vperm.xlu0 %6669, %v6628
  %v6671 = vpop.permute.xlu0 %6670
  %6672 = vset.pattern.permute.xlu0 0
  %6673 = vperm.xlu0 %6672, %v6629
  %v6674 = vpop.permute.xlu0 %6673
  %6675 = vset.pattern.permute.xlu0 0
  %6676 = vperm.xlu0 %6675, %v6630
  %v6677 = vpop.permute.xlu0 %6676
  %6678 = vset.pattern.permute.xlu0 0
  %6679 = vperm.xlu0 %6678, %v6631
  %v6680 = vpop.permute.xlu0 %6679
  %6681 = vset.pattern.permute.xlu0 0
  %6682 = vperm.xlu0 %6681, %v6632
  %v6683 = vpop.permute.xlu0 %6682
  %6684 = vset.pattern.permute.xlu0 0
  %6685 = vperm.xlu0 %6684, %v6633
  %v6686 = vpop.permute.xlu0 %6685
  %6687 = vset.pattern.permute.xlu0 0
  %6688 = vperm.xlu0 %6687, %v6634
  %v6689 = vpop.permute.xlu0 %6688
  %6690 = vset.pattern.permute.xlu0 0
  %6691 = vperm.xlu0 %6690, %v6635
  %v6692 = vpop.permute.xlu0 %6691
  %vm6693 = vcmp.eq.s32.totalorder %v6637, %v6671
  %vm6694 = vcmp.eq.s32.totalorder %v6638, %v6671
  %vm6695 = vcmp.eq.s32.totalorder %v6639, %v6671
  %vm6696 = vcmp.eq.s32.totalorder %v6640, %v6671
  %vm6697 = vcmp.eq.s32.totalorder %v6641, %v6671
  %vm6698 = vcmp.eq.s32.totalorder %v6642, %v6671
  %vm6699 = vcmp.eq.s32.totalorder %v6643, %v6671
  %vm6700 = vcmp.eq.s32.totalorder %v6644, %v6671
  %vm6701 = vcmp.eq.s32.totalorder %v6645, %v6671
  %vm6702 = vcmp.eq.s32.totalorder %v6646, %v6671
  %vm6703 = vcmp.eq.s32.totalorder %v6647, %v6671
  %vm6704 = vcmp.eq.s32.totalorder %v6648, %v6671
  %vm6705 = vcmp.eq.s32.totalorder %v6649, %v6671
  %vm6706 = vcmp.eq.s32.totalorder %v6650, %v6671
  %vm6707 = vcmp.eq.s32.totalorder %v6651, %v6671
  %vm6708 = vcmp.eq.s32.totalorder %v6652, %v6671
  %vm6709 = vcmp.eq.s32.totalorder %v6653, %v6671
  %vm6710 = vcmp.eq.s32.totalorder %v6654, %v6671
  %vm6711 = vcmp.eq.s32.totalorder %v6655, %v6671
  %vm6712 = vcmp.eq.s32.totalorder %v6656, %v6671
  %vm6713 = vcmp.eq.s32.totalorder %v6657, %v6671
  %vm6714 = vcmp.eq.s32.totalorder %v6658, %v6671
  %vm6715 = vcmp.eq.s32.totalorder %v6659, %v6671
  %vm6716 = vcmp.eq.s32.totalorder %v6660, %v6671
  %vm6717 = vcmp.eq.s32.totalorder %v6661, %v6671
  %vm6718 = vcmp.eq.s32.totalorder %v6662, %v6671
  %vm6719 = vcmp.eq.s32.totalorder %v6663, %v6671
  %vm6720 = vcmp.eq.s32.totalorder %v6664, %v6671
  %vm6721 = vcmp.eq.s32.totalorder %v6665, %v6671
  %vm6722 = vcmp.eq.s32.totalorder %v6666, %v6671
  %vm6723 = vcmp.eq.s32.totalorder %v6667, %v6671
  %vm6724 = vcmp.eq.s32.totalorder %v6668, %v6671
  %vm6725 = vcmp.eq.s32.totalorder %v6637, %v6674
  %vm6726 = vcmp.eq.s32.totalorder %v6638, %v6674
  %vm6727 = vcmp.eq.s32.totalorder %v6639, %v6674
  %vm6728 = vcmp.eq.s32.totalorder %v6640, %v6674
  %vm6729 = vcmp.eq.s32.totalorder %v6641, %v6674
  %vm6730 = vcmp.eq.s32.totalorder %v6642, %v6674
  %vm6731 = vcmp.eq.s32.totalorder %v6643, %v6674
  %vm6732 = vcmp.eq.s32.totalorder %v6644, %v6674
  %vm6733 = vcmp.eq.s32.totalorder %v6645, %v6674
  %vm6734 = vcmp.eq.s32.totalorder %v6646, %v6674
  %vm6735 = vcmp.eq.s32.totalorder %v6647, %v6674
  %vm6736 = vcmp.eq.s32.totalorder %v6648, %v6674
  %vm6737 = vcmp.eq.s32.totalorder %v6649, %v6674
  %vm6738 = vcmp.eq.s32.totalorder %v6650, %v6674
  %vm6739 = vcmp.eq.s32.totalorder %v6651, %v6674
  %vm6740 = vcmp.eq.s32.totalorder %v6652, %v6674
  %vm6741 = vcmp.eq.s32.totalorder %v6653, %v6674
  %vm6742 = vcmp.eq.s32.totalorder %v6654, %v6674
  %vm6743 = vcmp.eq.s32.totalorder %v6655, %v6674
  %vm6744 = vcmp.eq.s32.totalorder %v6656, %v6674
  %vm6745 = vcmp.eq.s32.totalorder %v6657, %v6674
  %vm6746 = vcmp.eq.s32.totalorder %v6658, %v6674
  %vm6747 = vcmp.eq.s32.totalorder %v6659, %v6674
  %vm6748 = vcmp.eq.s32.totalorder %v6660, %v6674
  %vm6749 = vcmp.eq.s32.totalorder %v6661, %v6674
  %vm6750 = vcmp.eq.s32.totalorder %v6662, %v6674
  %vm6751 = vcmp.eq.s32.totalorder %v6663, %v6674
  %vm6752 = vcmp.eq.s32.totalorder %v6664, %v6674
  %vm6753 = vcmp.eq.s32.totalorder %v6665, %v6674
  %vm6754 = vcmp.eq.s32.totalorder %v6666, %v6674
  %vm6755 = vcmp.eq.s32.totalorder %v6667, %v6674
  %vm6756 = vcmp.eq.s32.totalorder %v6668, %v6674
  %vm6757 = vcmp.eq.s32.totalorder %v6637, %v6677
  %vm6758 = vcmp.eq.s32.totalorder %v6638, %v6677
  %vm6759 = vcmp.eq.s32.totalorder %v6639, %v6677
  %vm6760 = vcmp.eq.s32.totalorder %v6640, %v6677
  %vm6761 = vcmp.eq.s32.totalorder %v6641, %v6677
  %vm6762 = vcmp.eq.s32.totalorder %v6642, %v6677
  %vm6763 = vcmp.eq.s32.totalorder %v6643, %v6677
  %vm6764 = vcmp.eq.s32.totalorder %v6644, %v6677
  %vm6765 = vcmp.eq.s32.totalorder %v6645, %v6677
  %vm6766 = vcmp.eq.s32.totalorder %v6646, %v6677
  %vm6767 = vcmp.eq.s32.totalorder %v6647, %v6677
  %vm6768 = vcmp.eq.s32.totalorder %v6648, %v6677
  %vm6769 = vcmp.eq.s32.totalorder %v6649, %v6677
  %vm6770 = vcmp.eq.s32.totalorder %v6650, %v6677
  %vm6771 = vcmp.eq.s32.totalorder %v6651, %v6677
  %vm6772 = vcmp.eq.s32.totalorder %v6652, %v6677
  %vm6773 = vcmp.eq.s32.totalorder %v6653, %v6677
  %vm6774 = vcmp.eq.s32.totalorder %v6654, %v6677
  %vm6775 = vcmp.eq.s32.totalorder %v6655, %v6677
  %vm6776 = vcmp.eq.s32.totalorder %v6656, %v6677
  %vm6777 = vcmp.eq.s32.totalorder %v6657, %v6677
  %vm6778 = vcmp.eq.s32.totalorder %v6658, %v6677
  %vm6779 = vcmp.eq.s32.totalorder %v6659, %v6677
  %vm6780 = vcmp.eq.s32.totalorder %v6660, %v6677
  %vm6781 = vcmp.eq.s32.totalorder %v6661, %v6677
  %vm6782 = vcmp.eq.s32.totalorder %v6662, %v6677
  %vm6783 = vcmp.eq.s32.totalorder %v6663, %v6677
  %vm6784 = vcmp.eq.s32.totalorder %v6664, %v6677
  %vm6785 = vcmp.eq.s32.totalorder %v6665, %v6677
  %vm6786 = vcmp.eq.s32.totalorder %v6666, %v6677
  %vm6787 = vcmp.eq.s32.totalorder %v6667, %v6677
  %vm6788 = vcmp.eq.s32.totalorder %v6668, %v6677
  %vm6789 = vcmp.eq.s32.totalorder %v6637, %v6680
  %vm6790 = vcmp.eq.s32.totalorder %v6638, %v6680
  %vm6791 = vcmp.eq.s32.totalorder %v6639, %v6680
  %vm6792 = vcmp.eq.s32.totalorder %v6640, %v6680
  %vm6793 = vcmp.eq.s32.totalorder %v6641, %v6680
  %vm6794 = vcmp.eq.s32.totalorder %v6642, %v6680
  %vm6795 = vcmp.eq.s32.totalorder %v6643, %v6680
  %vm6796 = vcmp.eq.s32.totalorder %v6644, %v6680
  %vm6797 = vcmp.eq.s32.totalorder %v6645, %v6680
  %vm6798 = vcmp.eq.s32.totalorder %v6646, %v6680
  %vm6799 = vcmp.eq.s32.totalorder %v6647, %v6680
  %vm6800 = vcmp.eq.s32.totalorder %v6648, %v6680
  %vm6801 = vcmp.eq.s32.totalorder %v6649, %v6680
  %vm6802 = vcmp.eq.s32.totalorder %v6650, %v6680
  %vm6803 = vcmp.eq.s32.totalorder %v6651, %v6680
  %vm6804 = vcmp.eq.s32.totalorder %v6652, %v6680
  %vm6805 = vcmp.eq.s32.totalorder %v6653, %v6680
  %vm6806 = vcmp.eq.s32.totalorder %v6654, %v6680
  %vm6807 = vcmp.eq.s32.totalorder %v6655, %v6680
  %vm6808 = vcmp.eq.s32.totalorder %v6656, %v6680
  %vm6809 = vcmp.eq.s32.totalorder %v6657, %v6680
  %vm6810 = vcmp.eq.s32.totalorder %v6658, %v6680
  %vm6811 = vcmp.eq.s32.totalorder %v6659, %v6680
  %vm6812 = vcmp.eq.s32.totalorder %v6660, %v6680
  %vm6813 = vcmp.eq.s32.totalorder %v6661, %v6680
  %vm6814 = vcmp.eq.s32.totalorder %v6662, %v6680
  %vm6815 = vcmp.eq.s32.totalorder %v6663, %v6680
  %vm6816 = vcmp.eq.s32.totalorder %v6664, %v6680
  %vm6817 = vcmp.eq.s32.totalorder %v6665, %v6680
  %vm6818 = vcmp.eq.s32.totalorder %v6666, %v6680
  %vm6819 = vcmp.eq.s32.totalorder %v6667, %v6680
  %vm6820 = vcmp.eq.s32.totalorder %v6668, %v6680
  %vm6821 = vcmp.eq.s32.totalorder %v6637, %v6683
  %vm6822 = vcmp.eq.s32.totalorder %v6638, %v6683
  %vm6823 = vcmp.eq.s32.totalorder %v6639, %v6683
  %vm6824 = vcmp.eq.s32.totalorder %v6640, %v6683
  %vm6825 = vcmp.eq.s32.totalorder %v6641, %v6683
  %vm6826 = vcmp.eq.s32.totalorder %v6642, %v6683
  %vm6827 = vcmp.eq.s32.totalorder %v6643, %v6683
  %vm6828 = vcmp.eq.s32.totalorder %v6644, %v6683
  %vm6829 = vcmp.eq.s32.totalorder %v6645, %v6683
  %vm6830 = vcmp.eq.s32.totalorder %v6646, %v6683
  %vm6831 = vcmp.eq.s32.totalorder %v6647, %v6683
  %vm6832 = vcmp.eq.s32.totalorder %v6648, %v6683
  %vm6833 = vcmp.eq.s32.totalorder %v6649, %v6683
  %vm6834 = vcmp.eq.s32.totalorder %v6650, %v6683
  %vm6835 = vcmp.eq.s32.totalorder %v6651, %v6683
  %vm6836 = vcmp.eq.s32.totalorder %v6652, %v6683
  %vm6837 = vcmp.eq.s32.totalorder %v6653, %v6683
  %vm6838 = vcmp.eq.s32.totalorder %v6654, %v6683
  %vm6839 = vcmp.eq.s32.totalorder %v6655, %v6683
  %vm6840 = vcmp.eq.s32.totalorder %v6656, %v6683
  %vm6841 = vcmp.eq.s32.totalorder %v6657, %v6683
  %vm6842 = vcmp.eq.s32.totalorder %v6658, %v6683
  %vm6843 = vcmp.eq.s32.totalorder %v6659, %v6683
  %vm6844 = vcmp.eq.s32.totalorder %v6660, %v6683
  %vm6845 = vcmp.eq.s32.totalorder %v6661, %v6683
  %vm6846 = vcmp.eq.s32.totalorder %v6662, %v6683
  %vm6847 = vcmp.eq.s32.totalorder %v6663, %v6683
  %vm6848 = vcmp.eq.s32.totalorder %v6664, %v6683
  %vm6849 = vcmp.eq.s32.totalorder %v6665, %v6683
  %vm6850 = vcmp.eq.s32.totalorder %v6666, %v6683
  %vm6851 = vcmp.eq.s32.totalorder %v6667, %v6683
  %vm6852 = vcmp.eq.s32.totalorder %v6668, %v6683
  %vm6853 = vcmp.eq.s32.totalorder %v6637, %v6686
  %vm6854 = vcmp.eq.s32.totalorder %v6638, %v6686
  %vm6855 = vcmp.eq.s32.totalorder %v6639, %v6686
  %vm6856 = vcmp.eq.s32.totalorder %v6640, %v6686
  %vm6857 = vcmp.eq.s32.totalorder %v6641, %v6686
  %vm6858 = vcmp.eq.s32.totalorder %v6642, %v6686
  %vm6859 = vcmp.eq.s32.totalorder %v6643, %v6686
  %vm6860 = vcmp.eq.s32.totalorder %v6644, %v6686
  %vm6861 = vcmp.eq.s32.totalorder %v6645, %v6686
  %vm6862 = vcmp.eq.s32.totalorder %v6646, %v6686
  %vm6863 = vcmp.eq.s32.totalorder %v6647, %v6686
  %vm6864 = vcmp.eq.s32.totalorder %v6648, %v6686
  %vm6865 = vcmp.eq.s32.totalorder %v6649, %v6686
  %vm6866 = vcmp.eq.s32.totalorder %v6650, %v6686
  %vm6867 = vcmp.eq.s32.totalorder %v6651, %v6686
  %vm6868 = vcmp.eq.s32.totalorder %v6652, %v6686
  %vm6869 = vcmp.eq.s32.totalorder %v6653, %v6686
  %vm6870 = vcmp.eq.s32.totalorder %v6654, %v6686
  %vm6871 = vcmp.eq.s32.totalorder %v6655, %v6686
  %vm6872 = vcmp.eq.s32.totalorder %v6656, %v6686
  %vm6873 = vcmp.eq.s32.totalorder %v6657, %v6686
  %vm6874 = vcmp.eq.s32.totalorder %v6658, %v6686
  %vm6875 = vcmp.eq.s32.totalorder %v6659, %v6686
  %vm6876 = vcmp.eq.s32.totalorder %v6660, %v6686
  %vm6877 = vcmp.eq.s32.totalorder %v6661, %v6686
  %vm6878 = vcmp.eq.s32.totalorder %v6662, %v6686
  %vm6879 = vcmp.eq.s32.totalorder %v6663, %v6686
  %vm6880 = vcmp.eq.s32.totalorder %v6664, %v6686
  %vm6881 = vcmp.eq.s32.totalorder %v6665, %v6686
  %vm6882 = vcmp.eq.s32.totalorder %v6666, %v6686
  %vm6883 = vcmp.eq.s32.totalorder %v6667, %v6686
  %vm6884 = vcmp.eq.s32.totalorder %v6668, %v6686
  %vm6885 = vcmp.eq.s32.totalorder %v6637, %v6689
  %vm6886 = vcmp.eq.s32.totalorder %v6638, %v6689
  %vm6887 = vcmp.eq.s32.totalorder %v6639, %v6689
  %vm6888 = vcmp.eq.s32.totalorder %v6640, %v6689
  %vm6889 = vcmp.eq.s32.totalorder %v6641, %v6689
  %vm6890 = vcmp.eq.s32.totalorder %v6642, %v6689
  %vm6891 = vcmp.eq.s32.totalorder %v6643, %v6689
  %vm6892 = vcmp.eq.s32.totalorder %v6644, %v6689
  %vm6893 = vcmp.eq.s32.totalorder %v6645, %v6689
  %vm6894 = vcmp.eq.s32.totalorder %v6646, %v6689
  %vm6895 = vcmp.eq.s32.totalorder %v6647, %v6689
  %vm6896 = vcmp.eq.s32.totalorder %v6648, %v6689
  %vm6897 = vcmp.eq.s32.totalorder %v6649, %v6689
  %vm6898 = vcmp.eq.s32.totalorder %v6650, %v6689
  %vm6899 = vcmp.eq.s32.totalorder %v6651, %v6689
  %vm6900 = vcmp.eq.s32.totalorder %v6652, %v6689
  %vm6901 = vcmp.eq.s32.totalorder %v6653, %v6689
  %vm6902 = vcmp.eq.s32.totalorder %v6654, %v6689
  %vm6903 = vcmp.eq.s32.totalorder %v6655, %v6689
  %vm6904 = vcmp.eq.s32.totalorder %v6656, %v6689
  %vm6905 = vcmp.eq.s32.totalorder %v6657, %v6689
  %vm6906 = vcmp.eq.s32.totalorder %v6658, %v6689
  %vm6907 = vcmp.eq.s32.totalorder %v6659, %v6689
  %vm6908 = vcmp.eq.s32.totalorder %v6660, %v6689
  %vm6909 = vcmp.eq.s32.totalorder %v6661, %v6689
  %vm6910 = vcmp.eq.s32.totalorder %v6662, %v6689
  %vm6911 = vcmp.eq.s32.totalorder %v6663, %v6689
  %vm6912 = vcmp.eq.s32.totalorder %v6664, %v6689
  %vm6913 = vcmp.eq.s32.totalorder %v6665, %v6689
  %vm6914 = vcmp.eq.s32.totalorder %v6666, %v6689
  %vm6915 = vcmp.eq.s32.totalorder %v6667, %v6689
  %vm6916 = vcmp.eq.s32.totalorder %v6668, %v6689
  %vm6917 = vcmp.eq.s32.totalorder %v6637, %v6692
  %vm6918 = vcmp.eq.s32.totalorder %v6638, %v6692
  %vm6919 = vcmp.eq.s32.totalorder %v6639, %v6692
  %vm6920 = vcmp.eq.s32.totalorder %v6640, %v6692
  %vm6921 = vcmp.eq.s32.totalorder %v6641, %v6692
  %vm6922 = vcmp.eq.s32.totalorder %v6642, %v6692
  %vm6923 = vcmp.eq.s32.totalorder %v6643, %v6692
  %vm6924 = vcmp.eq.s32.totalorder %v6644, %v6692
  %vm6925 = vcmp.eq.s32.totalorder %v6645, %v6692
  %vm6926 = vcmp.eq.s32.totalorder %v6646, %v6692
  %vm6927 = vcmp.eq.s32.totalorder %v6647, %v6692
  %vm6928 = vcmp.eq.s32.totalorder %v6648, %v6692
  %vm6929 = vcmp.eq.s32.totalorder %v6649, %v6692
  %vm6930 = vcmp.eq.s32.totalorder %v6650, %v6692
  %vm6931 = vcmp.eq.s32.totalorder %v6651, %v6692
  %vm6932 = vcmp.eq.s32.totalorder %v6652, %v6692
  %vm6933 = vcmp.eq.s32.totalorder %v6653, %v6692
  %vm6934 = vcmp.eq.s32.totalorder %v6654, %v6692
  %vm6935 = vcmp.eq.s32.totalorder %v6655, %v6692
  %vm6936 = vcmp.eq.s32.totalorder %v6656, %v6692
  %vm6937 = vcmp.eq.s32.totalorder %v6657, %v6692
  %vm6938 = vcmp.eq.s32.totalorder %v6658, %v6692
  %vm6939 = vcmp.eq.s32.totalorder %v6659, %v6692
  %vm6940 = vcmp.eq.s32.totalorder %v6660, %v6692
  %vm6941 = vcmp.eq.s32.totalorder %v6661, %v6692
  %vm6942 = vcmp.eq.s32.totalorder %v6662, %v6692
  %vm6943 = vcmp.eq.s32.totalorder %v6663, %v6692
  %vm6944 = vcmp.eq.s32.totalorder %v6664, %v6692
  %vm6945 = vcmp.eq.s32.totalorder %v6665, %v6692
  %vm6946 = vcmp.eq.s32.totalorder %v6666, %v6692
  %vm6947 = vcmp.eq.s32.totalorder %v6667, %v6692
  %vm6948 = vcmp.eq.s32.totalorder %v6668, %v6692
  %v6949 = vsel %vm6693, %v5239, 0.0
  %v6950 = vsel %vm6694, %v5241, 0.0
  %v6951 = vsel %vm6695, %v5312, 0.0
  %v6952 = vsel %vm6696, %v5314, 0.0
  %v6953 = vsel %vm6697, %v5385, 0.0
  %v6954 = vsel %vm6698, %v5387, 0.0
  %v6955 = vsel %vm6699, %v5458, 0.0
  %v6956 = vsel %vm6700, %v5460, 0.0
  %v6957 = vsel %vm6701, %v5531, 0.0
  %v6958 = vsel %vm6702, %v5533, 0.0
  %v6959 = vsel %vm6703, %v5604, 0.0
  %v6960 = vsel %vm6704, %v5606, 0.0
  %v6961 = vsel %vm6705, %v5677, 0.0
  %v6962 = vsel %vm6706, %v5679, 0.0
  %v6963 = vsel %vm6707, %v5750, 0.0
  %v6964 = vsel %vm6708, %v5752, 0.0
  %v6965 = vsel %vm6709, %v5823, 0.0
  %v6966 = vsel %vm6710, %v5825, 0.0
  %v6967 = vsel %vm6711, %v5896, 0.0
  %v6968 = vsel %vm6712, %v5898, 0.0
  %v6969 = vsel %vm6713, %v5969, 0.0
  %v6970 = vsel %vm6714, %v5971, 0.0
  %v6971 = vsel %vm6715, %v6042, 0.0
  %v6972 = vsel %vm6716, %v6044, 0.0
  %v6973 = vsel %vm6717, %v6115, 0.0
  %v6974 = vsel %vm6718, %v6117, 0.0
  %v6975 = vsel %vm6719, %v6188, 0.0
  %v6976 = vsel %vm6720, %v6190, 0.0
  %v6977 = vsel %vm6721, %v6261, 0.0
  %v6978 = vsel %vm6722, %v6263, 0.0
  %v6979 = vsel %vm6723, %v6334, 0.0
  %v6980 = vsel %vm6724, %v6336, 0.0
  %v6981 = vsel %vm6725, %v5243, 0.0
  %v6982 = vsel %vm6726, %v5245, 0.0
  %v6983 = vsel %vm6727, %v5316, 0.0
  %v6984 = vsel %vm6728, %v5318, 0.0
  %v6985 = vsel %vm6729, %v5389, 0.0
  %v6986 = vsel %vm6730, %v5391, 0.0
  %v6987 = vsel %vm6731, %v5462, 0.0
  %v6988 = vsel %vm6732, %v5464, 0.0
  %v6989 = vsel %vm6733, %v5535, 0.0
  %v6990 = vsel %vm6734, %v5537, 0.0
  %v6991 = vsel %vm6735, %v5608, 0.0
  %v6992 = vsel %vm6736, %v5610, 0.0
  %v6993 = vsel %vm6737, %v5681, 0.0
  %v6994 = vsel %vm6738, %v5683, 0.0
  %v6995 = vsel %vm6739, %v5754, 0.0
  %v6996 = vsel %vm6740, %v5756, 0.0
  %v6997 = vsel %vm6741, %v5827, 0.0
  %v6998 = vsel %vm6742, %v5829, 0.0
  %v6999 = vsel %vm6743, %v5900, 0.0
  %v7000 = vsel %vm6744, %v5902, 0.0
  %v7001 = vsel %vm6745, %v5973, 0.0
  %v7002 = vsel %vm6746, %v5975, 0.0
  %v7003 = vsel %vm6747, %v6046, 0.0
  %v7004 = vsel %vm6748, %v6048, 0.0
  %v7005 = vsel %vm6749, %v6119, 0.0
  %v7006 = vsel %vm6750, %v6121, 0.0
  %v7007 = vsel %vm6751, %v6192, 0.0
  %v7008 = vsel %vm6752, %v6194, 0.0
  %v7009 = vsel %vm6753, %v6265, 0.0
  %v7010 = vsel %vm6754, %v6267, 0.0
  %v7011 = vsel %vm6755, %v6338, 0.0
  %v7012 = vsel %vm6756, %v6340, 0.0
  %v7013 = vsel %vm6757, %v5249, 0.0
  %v7014 = vsel %vm6758, %v5251, 0.0
  %v7015 = vsel %vm6759, %v5322, 0.0
  %v7016 = vsel %vm6760, %v5324, 0.0
  %v7017 = vsel %vm6761, %v5395, 0.0
  %v7018 = vsel %vm6762, %v5397, 0.0
  %v7019 = vsel %vm6763, %v5468, 0.0
  %v7020 = vsel %vm6764, %v5470, 0.0
  %v7021 = vsel %vm6765, %v5541, 0.0
  %v7022 = vsel %vm6766, %v5543, 0.0
  %v7023 = vsel %vm6767, %v5614, 0.0
  %v7024 = vsel %vm6768, %v5616, 0.0
  %v7025 = vsel %vm6769, %v5687, 0.0
  %v7026 = vsel %vm6770, %v5689, 0.0
  %v7027 = vsel %vm6771, %v5760, 0.0
  %v7028 = vsel %vm6772, %v5762, 0.0
  %v7029 = vsel %vm6773, %v5833, 0.0
  %v7030 = vsel %vm6774, %v5835, 0.0
  %v7031 = vsel %vm6775, %v5906, 0.0
  %v7032 = vsel %vm6776, %v5908, 0.0
  %v7033 = vsel %vm6777, %v5979, 0.0
  %v7034 = vsel %vm6778, %v5981, 0.0
  %v7035 = vsel %vm6779, %v6052, 0.0
  %v7036 = vsel %vm6780, %v6054, 0.0
  %v7037 = vsel %vm6781, %v6125, 0.0
  %v7038 = vsel %vm6782, %v6127, 0.0
  %v7039 = vsel %vm6783, %v6198, 0.0
  %v7040 = vsel %vm6784, %v6200, 0.0
  %v7041 = vsel %vm6785, %v6271, 0.0
  %v7042 = vsel %vm6786, %v6273, 0.0
  %v7043 = vsel %vm6787, %v6344, 0.0
  %v7044 = vsel %vm6788, %v6346, 0.0
  %v7045 = vsel %vm6789, %v5253, 0.0
  %v7046 = vsel %vm6790, %v5255, 0.0
  %v7047 = vsel %vm6791, %v5326, 0.0
  %v7048 = vsel %vm6792, %v5328, 0.0
  %v7049 = vsel %vm6793, %v5399, 0.0
  %v7050 = vsel %vm6794, %v5401, 0.0
  %v7051 = vsel %vm6795, %v5472, 0.0
  %v7052 = vsel %vm6796, %v5474, 0.0
  %v7053 = vsel %vm6797, %v5545, 0.0
  %v7054 = vsel %vm6798, %v5547, 0.0
  %v7055 = vsel %vm6799, %v5618, 0.0
  %v7056 = vsel %vm6800, %v5620, 0.0
  %v7057 = vsel %vm6801, %v5691, 0.0
  %v7058 = vsel %vm6802, %v5693, 0.0
  %v7059 = vsel %vm6803, %v5764, 0.0
  %v7060 = vsel %vm6804, %v5766, 0.0
  %v7061 = vsel %vm6805, %v5837, 0.0
  %v7062 = vsel %vm6806, %v5839, 0.0
  %v7063 = vsel %vm6807, %v5910, 0.0
  %v7064 = vsel %vm6808, %v5912, 0.0
  %v7065 = vsel %vm6809, %v5983, 0.0
  %v7066 = vsel %vm6810, %v5985, 0.0
  %v7067 = vsel %vm6811, %v6056, 0.0
  %v7068 = vsel %vm6812, %v6058, 0.0
  %v7069 = vsel %vm6813, %v6129, 0.0
  %v7070 = vsel %vm6814, %v6131, 0.0
  %v7071 = vsel %vm6815, %v6202, 0.0
  %v7072 = vsel %vm6816, %v6204, 0.0
  %v7073 = vsel %vm6817, %v6275, 0.0
  %v7074 = vsel %vm6818, %v6277, 0.0
  %v7075 = vsel %vm6819, %v6348, 0.0
  %v7076 = vsel %vm6820, %v6350, 0.0
  %v7077 = vsel %vm6821, %v5259, 0.0
  %v7078 = vsel %vm6822, %v5261, 0.0
  %v7079 = vsel %vm6823, %v5332, 0.0
  %v7080 = vsel %vm6824, %v5334, 0.0
  %v7081 = vsel %vm6825, %v5405, 0.0
  %v7082 = vsel %vm6826, %v5407, 0.0
  %v7083 = vsel %vm6827, %v5478, 0.0
  %v7084 = vsel %vm6828, %v5480, 0.0
  %v7085 = vsel %vm6829, %v5551, 0.0
  %v7086 = vsel %vm6830, %v5553, 0.0
  %v7087 = vsel %vm6831, %v5624, 0.0
  %v7088 = vsel %vm6832, %v5626, 0.0
  %v7089 = vsel %vm6833, %v5697, 0.0
  %v7090 = vsel %vm6834, %v5699, 0.0
  %v7091 = vsel %vm6835, %v5770, 0.0
  %v7092 = vsel %vm6836, %v5772, 0.0
  %v7093 = vsel %vm6837, %v5843, 0.0
  %v7094 = vsel %vm6838, %v5845, 0.0
  %v7095 = vsel %vm6839, %v5916, 0.0
  %v7096 = vsel %vm6840, %v5918, 0.0
  %v7097 = vsel %vm6841, %v5989, 0.0
  %v7098 = vsel %vm6842, %v5991, 0.0
  %v7099 = vsel %vm6843, %v6062, 0.0
  %v7100 = vsel %vm6844, %v6064, 0.0
  %v7101 = vsel %vm6845, %v6135, 0.0
  %v7102 = vsel %vm6846, %v6137, 0.0
  %v7103 = vsel %vm6847, %v6208, 0.0
  %v7104 = vsel %vm6848, %v6210, 0.0
  %v7105 = vsel %vm6849, %v6281, 0.0
  %v7106 = vsel %vm6850, %v6283, 0.0
  %v7107 = vsel %vm6851, %v6354, 0.0
  %v7108 = vsel %vm6852, %v6356, 0.0
  %v7109 = vsel %vm6853, %v5263, 0.0
  %v7110 = vsel %vm6854, %v5265, 0.0
  %v7111 = vsel %vm6855, %v5336, 0.0
  %v7112 = vsel %vm6856, %v5338, 0.0
  %v7113 = vsel %vm6857, %v5409, 0.0
  %v7114 = vsel %vm6858, %v5411, 0.0
  %v7115 = vsel %vm6859, %v5482, 0.0
  %v7116 = vsel %vm6860, %v5484, 0.0
  %v7117 = vsel %vm6861, %v5555, 0.0
  %v7118 = vsel %vm6862, %v5557, 0.0
  %v7119 = vsel %vm6863, %v5628, 0.0
  %v7120 = vsel %vm6864, %v5630, 0.0
  %v7121 = vsel %vm6865, %v5701, 0.0
  %v7122 = vsel %vm6866, %v5703, 0.0
  %v7123 = vsel %vm6867, %v5774, 0.0
  %v7124 = vsel %vm6868, %v5776, 0.0
  %v7125 = vsel %vm6869, %v5847, 0.0
  %v7126 = vsel %vm6870, %v5849, 0.0
  %v7127 = vsel %vm6871, %v5920, 0.0
  %v7128 = vsel %vm6872, %v5922, 0.0
  %v7129 = vsel %vm6873, %v5993, 0.0
  %v7130 = vsel %vm6874, %v5995, 0.0
  %v7131 = vsel %vm6875, %v6066, 0.0
  %v7132 = vsel %vm6876, %v6068, 0.0
  %v7133 = vsel %vm6877, %v6139, 0.0
  %v7134 = vsel %vm6878, %v6141, 0.0
  %v7135 = vsel %vm6879, %v6212, 0.0
  %v7136 = vsel %vm6880, %v6214, 0.0
  %v7137 = vsel %vm6881, %v6285, 0.0
  %v7138 = vsel %vm6882, %v6287, 0.0
  %v7139 = vsel %vm6883, %v6358, 0.0
  %v7140 = vsel %vm6884, %v6360, 0.0
  %v7141 = vsel %vm6885, %v5269, 0.0
  %v7142 = vsel %vm6886, %v5271, 0.0
  %v7143 = vsel %vm6887, %v5342, 0.0
  %v7144 = vsel %vm6888, %v5344, 0.0
  %v7145 = vsel %vm6889, %v5415, 0.0
  %v7146 = vsel %vm6890, %v5417, 0.0
  %v7147 = vsel %vm6891, %v5488, 0.0
  %v7148 = vsel %vm6892, %v5490, 0.0
  %v7149 = vsel %vm6893, %v5561, 0.0
  %v7150 = vsel %vm6894, %v5563, 0.0
  %v7151 = vsel %vm6895, %v5634, 0.0
  %v7152 = vsel %vm6896, %v5636, 0.0
  %v7153 = vsel %vm6897, %v5707, 0.0
  %v7154 = vsel %vm6898, %v5709, 0.0
  %v7155 = vsel %vm6899, %v5780, 0.0
  %v7156 = vsel %vm6900, %v5782, 0.0
  %v7157 = vsel %vm6901, %v5853, 0.0
  %v7158 = vsel %vm6902, %v5855, 0.0
  %v7159 = vsel %vm6903, %v5926, 0.0
  %v7160 = vsel %vm6904, %v5928, 0.0
  %v7161 = vsel %vm6905, %v5999, 0.0
  %v7162 = vsel %vm6906, %v6001, 0.0
  %v7163 = vsel %vm6907, %v6072, 0.0
  %v7164 = vsel %vm6908, %v6074, 0.0
  %v7165 = vsel %vm6909, %v6145, 0.0
  %v7166 = vsel %vm6910, %v6147, 0.0
  %v7167 = vsel %vm6911, %v6218, 0.0
  %v7168 = vsel %vm6912, %v6220, 0.0
  %v7169 = vsel %vm6913, %v6291, 0.0
  %v7170 = vsel %vm6914, %v6293, 0.0
  %v7171 = vsel %vm6915, %v6364, 0.0
  %v7172 = vsel %vm6916, %v6366, 0.0
  %v7173 = vsel %vm6917, %v5273, 0.0
  %v7174 = vsel %vm6918, %v5275, 0.0
  %v7175 = vsel %vm6919, %v5346, 0.0
  %v7176 = vsel %vm6920, %v5348, 0.0
  %v7177 = vsel %vm6921, %v5419, 0.0
  %v7178 = vsel %vm6922, %v5421, 0.0
  %v7179 = vsel %vm6923, %v5492, 0.0
  %v7180 = vsel %vm6924, %v5494, 0.0
  %v7181 = vsel %vm6925, %v5565, 0.0
  %v7182 = vsel %vm6926, %v5567, 0.0
  %v7183 = vsel %vm6927, %v5638, 0.0
  %v7184 = vsel %vm6928, %v5640, 0.0
  %v7185 = vsel %vm6929, %v5711, 0.0
  %v7186 = vsel %vm6930, %v5713, 0.0
  %v7187 = vsel %vm6931, %v5784, 0.0
  %v7188 = vsel %vm6932, %v5786, 0.0
  %v7189 = vsel %vm6933, %v5857, 0.0
  %v7190 = vsel %vm6934, %v5859, 0.0
  %v7191 = vsel %vm6935, %v5930, 0.0
  %v7192 = vsel %vm6936, %v5932, 0.0
  %v7193 = vsel %vm6937, %v6003, 0.0
  %v7194 = vsel %vm6938, %v6005, 0.0
  %v7195 = vsel %vm6939, %v6076, 0.0
  %v7196 = vsel %vm6940, %v6078, 0.0
  %v7197 = vsel %vm6941, %v6149, 0.0
  %v7198 = vsel %vm6942, %v6151, 0.0
  %v7199 = vsel %vm6943, %v6222, 0.0
  %v7200 = vsel %vm6944, %v6224, 0.0
  %v7201 = vsel %vm6945, %v6295, 0.0
  %v7202 = vsel %vm6946, %v6297, 0.0
  %v7203 = vsel %vm6947, %v6368, 0.0
  %v7204 = vsel %vm6948, %v6370, 0.0
  %v7205 = vadd.f32 %v6949, %v6950
  %v7206 = vadd.f32 %v7205, %v6951
  %v7207 = vadd.f32 %v7206, %v6952
  %v7208 = vadd.f32 %v7207, %v6953
  %v7209 = vadd.f32 %v7208, %v6954
  %v7210 = vadd.f32 %v7209, %v6955
  %v7211 = vadd.f32 %v7210, %v6956
  %v7212 = vadd.f32 %v7211, %v6957
  %v7213 = vadd.f32 %v7212, %v6958
  %v7214 = vadd.f32 %v7213, %v6959
  %v7215 = vadd.f32 %v7214, %v6960
  %v7216 = vadd.f32 %v7215, %v6961
  %v7217 = vadd.f32 %v7216, %v6962
  %v7218 = vadd.f32 %v7217, %v6963
  %v7219 = vadd.f32 %v7218, %v6964
  %v7220 = vadd.f32 %v7219, %v6965
  %v7221 = vadd.f32 %v7220, %v6966
  %v7222 = vadd.f32 %v7221, %v6967
  %v7223 = vadd.f32 %v7222, %v6968
  %v7224 = vadd.f32 %v7223, %v6969
  %v7225 = vadd.f32 %v7224, %v6970
  %v7226 = vadd.f32 %v7225, %v6971
  %v7227 = vadd.f32 %v7226, %v6972
  %v7228 = vadd.f32 %v7227, %v6973
  %v7229 = vadd.f32 %v7228, %v6974
  %v7230 = vadd.f32 %v7229, %v6975
  %v7231 = vadd.f32 %v7230, %v6976
  %v7232 = vadd.f32 %v7231, %v6977
  %v7233 = vadd.f32 %v7232, %v6978
  %v7234 = vadd.f32 %v7233, %v6979
  %v7235 = vadd.f32 %v7234, %v6980
  %7236 = vadd.xlane.f32.xlu0 %v7235
  %v7237 = vpop.xlane.xlu0 %7236
  %v7238 = vadd.f32 %v6981, %v6982
  %v7239 = vadd.f32 %v7238, %v6983
  %v7240 = vadd.f32 %v7239, %v6984
  %v7241 = vadd.f32 %v7240, %v6985
  %v7242 = vadd.f32 %v7241, %v6986
  %v7243 = vadd.f32 %v7242, %v6987
  %v7244 = vadd.f32 %v7243, %v6988
  %v7245 = vadd.f32 %v7244, %v6989
  %v7246 = vadd.f32 %v7245, %v6990
  %v7247 = vadd.f32 %v7246, %v6991
  %v7248 = vadd.f32 %v7247, %v6992
  %v7249 = vadd.f32 %v7248, %v6993
  %v7250 = vadd.f32 %v7249, %v6994
  %v7251 = vadd.f32 %v7250, %v6995
  %v7252 = vadd.f32 %v7251, %v6996
  %v7253 = vadd.f32 %v7252, %v6997
  %v7254 = vadd.f32 %v7253, %v6998
  %v7255 = vadd.f32 %v7254, %v6999
  %v7256 = vadd.f32 %v7255, %v7000
  %v7257 = vadd.f32 %v7256, %v7001
  %v7258 = vadd.f32 %v7257, %v7002
  %v7259 = vadd.f32 %v7258, %v7003
  %v7260 = vadd.f32 %v7259, %v7004
  %v7261 = vadd.f32 %v7260, %v7005
  %v7262 = vadd.f32 %v7261, %v7006
  %v7263 = vadd.f32 %v7262, %v7007
  %v7264 = vadd.f32 %v7263, %v7008
  %v7265 = vadd.f32 %v7264, %v7009
  %v7266 = vadd.f32 %v7265, %v7010
  %v7267 = vadd.f32 %v7266, %v7011
  %v7268 = vadd.f32 %v7267, %v7012
  %7269 = vadd.xlane.f32.xlu0 %v7268
  %v7270 = vpop.xlane.xlu0 %7269
  %v7271 = vadd.f32 %v7013, %v7014
  %v7272 = vadd.f32 %v7271, %v7015
  %v7273 = vadd.f32 %v7272, %v7016
  %v7274 = vadd.f32 %v7273, %v7017
  %v7275 = vadd.f32 %v7274, %v7018
  %v7276 = vadd.f32 %v7275, %v7019
  %v7277 = vadd.f32 %v7276, %v7020
  %v7278 = vadd.f32 %v7277, %v7021
  %v7279 = vadd.f32 %v7278, %v7022
  %v7280 = vadd.f32 %v7279, %v7023
  %v7281 = vadd.f32 %v7280, %v7024
  %v7282 = vadd.f32 %v7281, %v7025
  %v7283 = vadd.f32 %v7282, %v7026
  %v7284 = vadd.f32 %v7283, %v7027
  %v7285 = vadd.f32 %v7284, %v7028
  %v7286 = vadd.f32 %v7285, %v7029
  %v7287 = vadd.f32 %v7286, %v7030
  %v7288 = vadd.f32 %v7287, %v7031
  %v7289 = vadd.f32 %v7288, %v7032
  %v7290 = vadd.f32 %v7289, %v7033
  %v7291 = vadd.f32 %v7290, %v7034
  %v7292 = vadd.f32 %v7291, %v7035
  %v7293 = vadd.f32 %v7292, %v7036
  %v7294 = vadd.f32 %v7293, %v7037
  %v7295 = vadd.f32 %v7294, %v7038
  %v7296 = vadd.f32 %v7295, %v7039
  %v7297 = vadd.f32 %v7296, %v7040
  %v7298 = vadd.f32 %v7297, %v7041
  %v7299 = vadd.f32 %v7298, %v7042
  %v7300 = vadd.f32 %v7299, %v7043
  %v7301 = vadd.f32 %v7300, %v7044
  %7302 = vadd.xlane.f32.xlu0 %v7301
  %v7303 = vpop.xlane.xlu0 %7302
  %v7304 = vadd.f32 %v7045, %v7046
  %v7305 = vadd.f32 %v7304, %v7047
  %v7306 = vadd.f32 %v7305, %v7048
  %v7307 = vadd.f32 %v7306, %v7049
  %v7308 = vadd.f32 %v7307, %v7050
  %v7309 = vadd.f32 %v7308, %v7051
  %v7310 = vadd.f32 %v7309, %v7052
  %v7311 = vadd.f32 %v7310, %v7053
  %v7312 = vadd.f32 %v7311, %v7054
  %v7313 = vadd.f32 %v7312, %v7055
  %v7314 = vadd.f32 %v7313, %v7056
  %v7315 = vadd.f32 %v7314, %v7057
  %v7316 = vadd.f32 %v7315, %v7058
  %v7317 = vadd.f32 %v7316, %v7059
  %v7318 = vadd.f32 %v7317, %v7060
  %v7319 = vadd.f32 %v7318, %v7061
  %v7320 = vadd.f32 %v7319, %v7062
  %v7321 = vadd.f32 %v7320, %v7063
  %v7322 = vadd.f32 %v7321, %v7064
  %v7323 = vadd.f32 %v7322, %v7065
  %v7324 = vadd.f32 %v7323, %v7066
  %v7325 = vadd.f32 %v7324, %v7067
  %v7326 = vadd.f32 %v7325, %v7068
  %v7327 = vadd.f32 %v7326, %v7069
  %v7328 = vadd.f32 %v7327, %v7070
  %v7329 = vadd.f32 %v7328, %v7071
  %v7330 = vadd.f32 %v7329, %v7072
  %v7331 = vadd.f32 %v7330, %v7073
  %v7332 = vadd.f32 %v7331, %v7074
  %v7333 = vadd.f32 %v7332, %v7075
  %v7334 = vadd.f32 %v7333, %v7076
  %7335 = vadd.xlane.f32.xlu0 %v7334
  %v7336 = vpop.xlane.xlu0 %7335
  %v7337 = vadd.f32 %v7077, %v7078
  %v7338 = vadd.f32 %v7337, %v7079
  %v7339 = vadd.f32 %v7338, %v7080
  %v7340 = vadd.f32 %v7339, %v7081
  %v7341 = vadd.f32 %v7340, %v7082
  %v7342 = vadd.f32 %v7341, %v7083
  %v7343 = vadd.f32 %v7342, %v7084
  %v7344 = vadd.f32 %v7343, %v7085
  %v7345 = vadd.f32 %v7344, %v7086
  %v7346 = vadd.f32 %v7345, %v7087
  %v7347 = vadd.f32 %v7346, %v7088
  %v7348 = vadd.f32 %v7347, %v7089
  %v7349 = vadd.f32 %v7348, %v7090
  %v7350 = vadd.f32 %v7349, %v7091
  %v7351 = vadd.f32 %v7350, %v7092
  %v7352 = vadd.f32 %v7351, %v7093
  %v7353 = vadd.f32 %v7352, %v7094
  %v7354 = vadd.f32 %v7353, %v7095
  %v7355 = vadd.f32 %v7354, %v7096
  %v7356 = vadd.f32 %v7355, %v7097
  %v7357 = vadd.f32 %v7356, %v7098
  %v7358 = vadd.f32 %v7357, %v7099
  %v7359 = vadd.f32 %v7358, %v7100
  %v7360 = vadd.f32 %v7359, %v7101
  %v7361 = vadd.f32 %v7360, %v7102
  %v7362 = vadd.f32 %v7361, %v7103
  %v7363 = vadd.f32 %v7362, %v7104
  %v7364 = vadd.f32 %v7363, %v7105
  %v7365 = vadd.f32 %v7364, %v7106
  %v7366 = vadd.f32 %v7365, %v7107
  %v7367 = vadd.f32 %v7366, %v7108
  %7368 = vadd.xlane.f32.xlu0 %v7367
  %v7369 = vpop.xlane.xlu0 %7368
  %v7370 = vadd.f32 %v7109, %v7110
  %v7371 = vadd.f32 %v7370, %v7111
  %v7372 = vadd.f32 %v7371, %v7112
  %v7373 = vadd.f32 %v7372, %v7113
  %v7374 = vadd.f32 %v7373, %v7114
  %v7375 = vadd.f32 %v7374, %v7115
  %v7376 = vadd.f32 %v7375, %v7116
  %v7377 = vadd.f32 %v7376, %v7117
  %v7378 = vadd.f32 %v7377, %v7118
  %v7379 = vadd.f32 %v7378, %v7119
  %v7380 = vadd.f32 %v7379, %v7120
  %v7381 = vadd.f32 %v7380, %v7121
  %v7382 = vadd.f32 %v7381, %v7122
  %v7383 = vadd.f32 %v7382, %v7123
  %v7384 = vadd.f32 %v7383, %v7124
  %v7385 = vadd.f32 %v7384, %v7125
  %v7386 = vadd.f32 %v7385, %v7126
  %v7387 = vadd.f32 %v7386, %v7127
  %v7388 = vadd.f32 %v7387, %v7128
  %v7389 = vadd.f32 %v7388, %v7129
  %v7390 = vadd.f32 %v7389, %v7130
  %v7391 = vadd.f32 %v7390, %v7131
  %v7392 = vadd.f32 %v7391, %v7132
  %v7393 = vadd.f32 %v7392, %v7133
  %v7394 = vadd.f32 %v7393, %v7134
  %v7395 = vadd.f32 %v7394, %v7135
  %v7396 = vadd.f32 %v7395, %v7136
  %v7397 = vadd.f32 %v7396, %v7137
  %v7398 = vadd.f32 %v7397, %v7138
  %v7399 = vadd.f32 %v7398, %v7139
  %v7400 = vadd.f32 %v7399, %v7140
  %7401 = vadd.xlane.f32.xlu0 %v7400
  %v7402 = vpop.xlane.xlu0 %7401
  %v7403 = vadd.f32 %v7141, %v7142
  %v7404 = vadd.f32 %v7403, %v7143
  %v7405 = vadd.f32 %v7404, %v7144
  %v7406 = vadd.f32 %v7405, %v7145
  %v7407 = vadd.f32 %v7406, %v7146
  %v7408 = vadd.f32 %v7407, %v7147
  %v7409 = vadd.f32 %v7408, %v7148
  %v7410 = vadd.f32 %v7409, %v7149
  %v7411 = vadd.f32 %v7410, %v7150
  %v7412 = vadd.f32 %v7411, %v7151
  %v7413 = vadd.f32 %v7412, %v7152
  %v7414 = vadd.f32 %v7413, %v7153
  %v7415 = vadd.f32 %v7414, %v7154
  %v7416 = vadd.f32 %v7415, %v7155
  %v7417 = vadd.f32 %v7416, %v7156
  %v7418 = vadd.f32 %v7417, %v7157
  %v7419 = vadd.f32 %v7418, %v7158
  %v7420 = vadd.f32 %v7419, %v7159
  %v7421 = vadd.f32 %v7420, %v7160
  %v7422 = vadd.f32 %v7421, %v7161
  %v7423 = vadd.f32 %v7422, %v7162
  %v7424 = vadd.f32 %v7423, %v7163
  %v7425 = vadd.f32 %v7424, %v7164
  %v7426 = vadd.f32 %v7425, %v7165
  %v7427 = vadd.f32 %v7426, %v7166
  %v7428 = vadd.f32 %v7427, %v7167
  %v7429 = vadd.f32 %v7428, %v7168
  %v7430 = vadd.f32 %v7429, %v7169
  %v7431 = vadd.f32 %v7430, %v7170
  %v7432 = vadd.f32 %v7431, %v7171
  %v7433 = vadd.f32 %v7432, %v7172
  %7434 = vadd.xlane.f32.xlu0 %v7433
  %v7435 = vpop.xlane.xlu0 %7434
  %v7436 = vadd.f32 %v7173, %v7174
  %v7437 = vadd.f32 %v7436, %v7175
  %v7438 = vadd.f32 %v7437, %v7176
  %v7439 = vadd.f32 %v7438, %v7177
  %v7440 = vadd.f32 %v7439, %v7178
  %v7441 = vadd.f32 %v7440, %v7179
  %v7442 = vadd.f32 %v7441, %v7180
  %v7443 = vadd.f32 %v7442, %v7181
  %v7444 = vadd.f32 %v7443, %v7182
  %v7445 = vadd.f32 %v7444, %v7183
  %v7446 = vadd.f32 %v7445, %v7184
  %v7447 = vadd.f32 %v7446, %v7185
  %v7448 = vadd.f32 %v7447, %v7186
  %v7449 = vadd.f32 %v7448, %v7187
  %v7450 = vadd.f32 %v7449, %v7188
  %v7451 = vadd.f32 %v7450, %v7189
  %v7452 = vadd.f32 %v7451, %v7190
  %v7453 = vadd.f32 %v7452, %v7191
  %v7454 = vadd.f32 %v7453, %v7192
  %v7455 = vadd.f32 %v7454, %v7193
  %v7456 = vadd.f32 %v7455, %v7194
  %v7457 = vadd.f32 %v7456, %v7195
  %v7458 = vadd.f32 %v7457, %v7196
  %v7459 = vadd.f32 %v7458, %v7197
  %v7460 = vadd.f32 %v7459, %v7198
  %v7461 = vadd.f32 %v7460, %v7199
  %v7462 = vadd.f32 %v7461, %v7200
  %v7463 = vadd.f32 %v7462, %v7201
  %v7464 = vadd.f32 %v7463, %v7202
  %v7465 = vadd.f32 %v7464, %v7203
  %v7466 = vadd.f32 %v7465, %v7204
  %7467 = vadd.xlane.f32.xlu0 %v7466
  %v7468 = vpop.xlane.xlu0 %7467
  %v7469 = vmax.f32 %v5239, %v5241
  %v7470 = vmax.f32 %v7469, %v5312
  %v7471 = vmax.f32 %v7470, %v5314
  %v7472 = vmax.f32 %v7471, %v5385
  %v7473 = vmax.f32 %v7472, %v5387
  %v7474 = vmax.f32 %v7473, %v5458
  %v7475 = vmax.f32 %v7474, %v5460
  %v7476 = vmax.f32 %v7475, %v5531
  %v7477 = vmax.f32 %v7476, %v5533
  %v7478 = vmax.f32 %v7477, %v5604
  %v7479 = vmax.f32 %v7478, %v5606
  %v7480 = vmax.f32 %v7479, %v5677
  %v7481 = vmax.f32 %v7480, %v5679
  %v7482 = vmax.f32 %v7481, %v5750
  %v7483 = vmax.f32 %v7482, %v5752
  %v7484 = vmax.f32 %v7483, %v5823
  %v7485 = vmax.f32 %v7484, %v5825
  %v7486 = vmax.f32 %v7485, %v5896
  %v7487 = vmax.f32 %v7486, %v5898
  %v7488 = vmax.f32 %v7487, %v5969
  %v7489 = vmax.f32 %v7488, %v5971
  %v7490 = vmax.f32 %v7489, %v6042
  %v7491 = vmax.f32 %v7490, %v6044
  %v7492 = vmax.f32 %v7491, %v6115
  %v7493 = vmax.f32 %v7492, %v6117
  %v7494 = vmax.f32 %v7493, %v6188
  %v7495 = vmax.f32 %v7494, %v6190
  %v7496 = vmax.f32 %v7495, %v6261
  %v7497 = vmax.f32 %v7496, %v6263
  %v7498 = vmax.f32 %v7497, %v6334
  %v7499 = vmax.f32 %v7498, %v6336
  %7500 = vmax.xlane.f32.xlu0 %v7499
  %v7501 = vpop.xlane.xlu0 %7500
  %v7502 = vmax.f32 %v5243, %v5245
  %v7503 = vmax.f32 %v7502, %v5316
  %v7504 = vmax.f32 %v7503, %v5318
  %v7505 = vmax.f32 %v7504, %v5389
  %v7506 = vmax.f32 %v7505, %v5391
  %v7507 = vmax.f32 %v7506, %v5462
  %v7508 = vmax.f32 %v7507, %v5464
  %v7509 = vmax.f32 %v7508, %v5535
  %v7510 = vmax.f32 %v7509, %v5537
  %v7511 = vmax.f32 %v7510, %v5608
  %v7512 = vmax.f32 %v7511, %v5610
  %v7513 = vmax.f32 %v7512, %v5681
  %v7514 = vmax.f32 %v7513, %v5683
  %v7515 = vmax.f32 %v7514, %v5754
  %v7516 = vmax.f32 %v7515, %v5756
  %v7517 = vmax.f32 %v7516, %v5827
  %v7518 = vmax.f32 %v7517, %v5829
  %v7519 = vmax.f32 %v7518, %v5900
  %v7520 = vmax.f32 %v7519, %v5902
  %v7521 = vmax.f32 %v7520, %v5973
  %v7522 = vmax.f32 %v7521, %v5975
  %v7523 = vmax.f32 %v7522, %v6046
  %v7524 = vmax.f32 %v7523, %v6048
  %v7525 = vmax.f32 %v7524, %v6119
  %v7526 = vmax.f32 %v7525, %v6121
  %v7527 = vmax.f32 %v7526, %v6192
  %v7528 = vmax.f32 %v7527, %v6194
  %v7529 = vmax.f32 %v7528, %v6265
  %v7530 = vmax.f32 %v7529, %v6267
  %v7531 = vmax.f32 %v7530, %v6338
  %v7532 = vmax.f32 %v7531, %v6340
  %7533 = vmax.xlane.f32.xlu0 %v7532
  %v7534 = vpop.xlane.xlu0 %7533
  %v7535 = vmax.f32 %v5249, %v5251
  %v7536 = vmax.f32 %v7535, %v5322
  %v7537 = vmax.f32 %v7536, %v5324
  %v7538 = vmax.f32 %v7537, %v5395
  %v7539 = vmax.f32 %v7538, %v5397
  %v7540 = vmax.f32 %v7539, %v5468
  %v7541 = vmax.f32 %v7540, %v5470
  %v7542 = vmax.f32 %v7541, %v5541
  %v7543 = vmax.f32 %v7542, %v5543
  %v7544 = vmax.f32 %v7543, %v5614
  %v7545 = vmax.f32 %v7544, %v5616
  %v7546 = vmax.f32 %v7545, %v5687
  %v7547 = vmax.f32 %v7546, %v5689
  %v7548 = vmax.f32 %v7547, %v5760
  %v7549 = vmax.f32 %v7548, %v5762
  %v7550 = vmax.f32 %v7549, %v5833
  %v7551 = vmax.f32 %v7550, %v5835
  %v7552 = vmax.f32 %v7551, %v5906
  %v7553 = vmax.f32 %v7552, %v5908
  %v7554 = vmax.f32 %v7553, %v5979
  %v7555 = vmax.f32 %v7554, %v5981
  %v7556 = vmax.f32 %v7555, %v6052
  %v7557 = vmax.f32 %v7556, %v6054
  %v7558 = vmax.f32 %v7557, %v6125
  %v7559 = vmax.f32 %v7558, %v6127
  %v7560 = vmax.f32 %v7559, %v6198
  %v7561 = vmax.f32 %v7560, %v6200
  %v7562 = vmax.f32 %v7561, %v6271
  %v7563 = vmax.f32 %v7562, %v6273
  %v7564 = vmax.f32 %v7563, %v6344
  %v7565 = vmax.f32 %v7564, %v6346
  %7566 = vmax.xlane.f32.xlu0 %v7565
  %v7567 = vpop.xlane.xlu0 %7566
  %v7568 = vmax.f32 %v5253, %v5255
  %v7569 = vmax.f32 %v7568, %v5326
  %v7570 = vmax.f32 %v7569, %v5328
  %v7571 = vmax.f32 %v7570, %v5399
  %v7572 = vmax.f32 %v7571, %v5401
  %v7573 = vmax.f32 %v7572, %v5472
  %v7574 = vmax.f32 %v7573, %v5474
  %v7575 = vmax.f32 %v7574, %v5545
  %v7576 = vmax.f32 %v7575, %v5547
  %v7577 = vmax.f32 %v7576, %v5618
  %v7578 = vmax.f32 %v7577, %v5620
  %v7579 = vmax.f32 %v7578, %v5691
  %v7580 = vmax.f32 %v7579, %v5693
  %v7581 = vmax.f32 %v7580, %v5764
  %v7582 = vmax.f32 %v7581, %v5766
  %v7583 = vmax.f32 %v7582, %v5837
  %v7584 = vmax.f32 %v7583, %v5839
  %v7585 = vmax.f32 %v7584, %v5910
  %v7586 = vmax.f32 %v7585, %v5912
  %v7587 = vmax.f32 %v7586, %v5983
  %v7588 = vmax.f32 %v7587, %v5985
  %v7589 = vmax.f32 %v7588, %v6056
  %v7590 = vmax.f32 %v7589, %v6058
  %v7591 = vmax.f32 %v7590, %v6129
  %v7592 = vmax.f32 %v7591, %v6131
  %v7593 = vmax.f32 %v7592, %v6202
  %v7594 = vmax.f32 %v7593, %v6204
  %v7595 = vmax.f32 %v7594, %v6275
  %v7596 = vmax.f32 %v7595, %v6277
  %v7597 = vmax.f32 %v7596, %v6348
  %v7598 = vmax.f32 %v7597, %v6350
  %7599 = vmax.xlane.f32.xlu0 %v7598
  %v7600 = vpop.xlane.xlu0 %7599
  %v7601 = vmax.f32 %v5259, %v5261
  %v7602 = vmax.f32 %v7601, %v5332
  %v7603 = vmax.f32 %v7602, %v5334
  %v7604 = vmax.f32 %v7603, %v5405
  %v7605 = vmax.f32 %v7604, %v5407
  %v7606 = vmax.f32 %v7605, %v5478
  %v7607 = vmax.f32 %v7606, %v5480
  %v7608 = vmax.f32 %v7607, %v5551
  %v7609 = vmax.f32 %v7608, %v5553
  %v7610 = vmax.f32 %v7609, %v5624
  %v7611 = vmax.f32 %v7610, %v5626
  %v7612 = vmax.f32 %v7611, %v5697
  %v7613 = vmax.f32 %v7612, %v5699
  %v7614 = vmax.f32 %v7613, %v5770
  %v7615 = vmax.f32 %v7614, %v5772
  %v7616 = vmax.f32 %v7615, %v5843
  %v7617 = vmax.f32 %v7616, %v5845
  %v7618 = vmax.f32 %v7617, %v5916
  %v7619 = vmax.f32 %v7618, %v5918
  %v7620 = vmax.f32 %v7619, %v5989
  %v7621 = vmax.f32 %v7620, %v5991
  %v7622 = vmax.f32 %v7621, %v6062
  %v7623 = vmax.f32 %v7622, %v6064
  %v7624 = vmax.f32 %v7623, %v6135
  %v7625 = vmax.f32 %v7624, %v6137
  %v7626 = vmax.f32 %v7625, %v6208
  %v7627 = vmax.f32 %v7626, %v6210
  %v7628 = vmax.f32 %v7627, %v6281
  %v7629 = vmax.f32 %v7628, %v6283
  %v7630 = vmax.f32 %v7629, %v6354
  %v7631 = vmax.f32 %v7630, %v6356
  %7632 = vmax.xlane.f32.xlu0 %v7631
  %v7633 = vpop.xlane.xlu0 %7632
  %v7634 = vmax.f32 %v5263, %v5265
  %v7635 = vmax.f32 %v7634, %v5336
  %v7636 = vmax.f32 %v7635, %v5338
  %v7637 = vmax.f32 %v7636, %v5409
  %v7638 = vmax.f32 %v7637, %v5411
  %v7639 = vmax.f32 %v7638, %v5482
  %v7640 = vmax.f32 %v7639, %v5484
  %v7641 = vmax.f32 %v7640, %v5555
  %v7642 = vmax.f32 %v7641, %v5557
  %v7643 = vmax.f32 %v7642, %v5628
  %v7644 = vmax.f32 %v7643, %v5630
  %v7645 = vmax.f32 %v7644, %v5701
  %v7646 = vmax.f32 %v7645, %v5703
  %v7647 = vmax.f32 %v7646, %v5774
  %v7648 = vmax.f32 %v7647, %v5776
  %v7649 = vmax.f32 %v7648, %v5847
  %v7650 = vmax.f32 %v7649, %v5849
  %v7651 = vmax.f32 %v7650, %v5920
  %v7652 = vmax.f32 %v7651, %v5922
  %v7653 = vmax.f32 %v7652, %v5993
  %v7654 = vmax.f32 %v7653, %v5995
  %v7655 = vmax.f32 %v7654, %v6066
  %v7656 = vmax.f32 %v7655, %v6068
  %v7657 = vmax.f32 %v7656, %v6139
  %v7658 = vmax.f32 %v7657, %v6141
  %v7659 = vmax.f32 %v7658, %v6212
  %v7660 = vmax.f32 %v7659, %v6214
  %v7661 = vmax.f32 %v7660, %v6285
  %v7662 = vmax.f32 %v7661, %v6287
  %v7663 = vmax.f32 %v7662, %v6358
  %v7664 = vmax.f32 %v7663, %v6360
  %7665 = vmax.xlane.f32.xlu0 %v7664
  %v7666 = vpop.xlane.xlu0 %7665
  %v7667 = vmax.f32 %v5269, %v5271
  %v7668 = vmax.f32 %v7667, %v5342
  %v7669 = vmax.f32 %v7668, %v5344
  %v7670 = vmax.f32 %v7669, %v5415
  %v7671 = vmax.f32 %v7670, %v5417
  %v7672 = vmax.f32 %v7671, %v5488
  %v7673 = vmax.f32 %v7672, %v5490
  %v7674 = vmax.f32 %v7673, %v5561
  %v7675 = vmax.f32 %v7674, %v5563
  %v7676 = vmax.f32 %v7675, %v5634
  %v7677 = vmax.f32 %v7676, %v5636
  %v7678 = vmax.f32 %v7677, %v5707
  %v7679 = vmax.f32 %v7678, %v5709
  %v7680 = vmax.f32 %v7679, %v5780
  %v7681 = vmax.f32 %v7680, %v5782
  %v7682 = vmax.f32 %v7681, %v5853
  %v7683 = vmax.f32 %v7682, %v5855
  %v7684 = vmax.f32 %v7683, %v5926
  %v7685 = vmax.f32 %v7684, %v5928
  %v7686 = vmax.f32 %v7685, %v5999
  %v7687 = vmax.f32 %v7686, %v6001
  %v7688 = vmax.f32 %v7687, %v6072
  %v7689 = vmax.f32 %v7688, %v6074
  %v7690 = vmax.f32 %v7689, %v6145
  %v7691 = vmax.f32 %v7690, %v6147
  %v7692 = vmax.f32 %v7691, %v6218
  %v7693 = vmax.f32 %v7692, %v6220
  %v7694 = vmax.f32 %v7693, %v6291
  %v7695 = vmax.f32 %v7694, %v6293
  %v7696 = vmax.f32 %v7695, %v6364
  %v7697 = vmax.f32 %v7696, %v6366
  %7698 = vmax.xlane.f32.xlu0 %v7697
  %v7699 = vpop.xlane.xlu0 %7698
  %v7700 = vmax.f32 %v5273, %v5275
  %v7701 = vmax.f32 %v7700, %v5346
  %v7702 = vmax.f32 %v7701, %v5348
  %v7703 = vmax.f32 %v7702, %v5419
  %v7704 = vmax.f32 %v7703, %v5421
  %v7705 = vmax.f32 %v7704, %v5492
  %v7706 = vmax.f32 %v7705, %v5494
  %v7707 = vmax.f32 %v7706, %v5565
  %v7708 = vmax.f32 %v7707, %v5567
  %v7709 = vmax.f32 %v7708, %v5638
  %v7710 = vmax.f32 %v7709, %v5640
  %v7711 = vmax.f32 %v7710, %v5711
  %v7712 = vmax.f32 %v7711, %v5713
  %v7713 = vmax.f32 %v7712, %v5784
  %v7714 = vmax.f32 %v7713, %v5786
  %v7715 = vmax.f32 %v7714, %v5857
  %v7716 = vmax.f32 %v7715, %v5859
  %v7717 = vmax.f32 %v7716, %v5930
  %v7718 = vmax.f32 %v7717, %v5932
  %v7719 = vmax.f32 %v7718, %v6003
  %v7720 = vmax.f32 %v7719, %v6005
  %v7721 = vmax.f32 %v7720, %v6076
  %v7722 = vmax.f32 %v7721, %v6078
  %v7723 = vmax.f32 %v7722, %v6149
  %v7724 = vmax.f32 %v7723, %v6151
  %v7725 = vmax.f32 %v7724, %v6222
  %v7726 = vmax.f32 %v7725, %v6224
  %v7727 = vmax.f32 %v7726, %v6295
  %v7728 = vmax.f32 %v7727, %v6297
  %v7729 = vmax.f32 %v7728, %v6368
  %v7730 = vmax.f32 %v7729, %v6370
  %7731 = vmax.xlane.f32.xlu0 %v7730
  %v7732 = vpop.xlane.xlu0 %7731
  %v7733 = vsub.f32 %v5239, %v7501
  %v7734 = vsub.f32 %v5241, %v7501
  %v7735 = vsub.f32 %v5312, %v7501
  %v7736 = vsub.f32 %v5314, %v7501
  %v7737 = vsub.f32 %v5385, %v7501
  %v7738 = vsub.f32 %v5387, %v7501
  %v7739 = vsub.f32 %v5458, %v7501
  %v7740 = vsub.f32 %v5460, %v7501
  %v7741 = vsub.f32 %v5531, %v7501
  %v7742 = vsub.f32 %v5533, %v7501
  %v7743 = vsub.f32 %v5604, %v7501
  %v7744 = vsub.f32 %v5606, %v7501
  %v7745 = vsub.f32 %v5677, %v7501
  %v7746 = vsub.f32 %v5679, %v7501
  %v7747 = vsub.f32 %v5750, %v7501
  %v7748 = vsub.f32 %v5752, %v7501
  %v7749 = vsub.f32 %v5823, %v7501
  %v7750 = vsub.f32 %v5825, %v7501
  %v7751 = vsub.f32 %v5896, %v7501
  %v7752 = vsub.f32 %v5898, %v7501
  %v7753 = vsub.f32 %v5969, %v7501
  %v7754 = vsub.f32 %v5971, %v7501
  %v7755 = vsub.f32 %v6042, %v7501
  %v7756 = vsub.f32 %v6044, %v7501
  %v7757 = vsub.f32 %v6115, %v7501
  %v7758 = vsub.f32 %v6117, %v7501
  %v7759 = vsub.f32 %v6188, %v7501
  %v7760 = vsub.f32 %v6190, %v7501
  %v7761 = vsub.f32 %v6261, %v7501
  %v7762 = vsub.f32 %v6263, %v7501
  %v7763 = vsub.f32 %v6334, %v7501
  %v7764 = vsub.f32 %v6336, %v7501
  %v7765 = vsub.f32 %v5243, %v7534
  %v7766 = vsub.f32 %v5245, %v7534
  %v7767 = vsub.f32 %v5316, %v7534
  %v7768 = vsub.f32 %v5318, %v7534
  %v7769 = vsub.f32 %v5389, %v7534
  %v7770 = vsub.f32 %v5391, %v7534
  %v7771 = vsub.f32 %v5462, %v7534
  %v7772 = vsub.f32 %v5464, %v7534
  %v7773 = vsub.f32 %v5535, %v7534
  %v7774 = vsub.f32 %v5537, %v7534
  %v7775 = vsub.f32 %v5608, %v7534
  %v7776 = vsub.f32 %v5610, %v7534
  %v7777 = vsub.f32 %v5681, %v7534
  %v7778 = vsub.f32 %v5683, %v7534
  %v7779 = vsub.f32 %v5754, %v7534
  %v7780 = vsub.f32 %v5756, %v7534
  %v7781 = vsub.f32 %v5827, %v7534
  %v7782 = vsub.f32 %v5829, %v7534
  %v7783 = vsub.f32 %v5900, %v7534
  %v7784 = vsub.f32 %v5902, %v7534
  %v7785 = vsub.f32 %v5973, %v7534
  %v7786 = vsub.f32 %v5975, %v7534
  %v7787 = vsub.f32 %v6046, %v7534
  %v7788 = vsub.f32 %v6048, %v7534
  %v7789 = vsub.f32 %v6119, %v7534
  %v7790 = vsub.f32 %v6121, %v7534
  %v7791 = vsub.f32 %v6192, %v7534
  %v7792 = vsub.f32 %v6194, %v7534
  %v7793 = vsub.f32 %v6265, %v7534
  %v7794 = vsub.f32 %v6267, %v7534
  %v7795 = vsub.f32 %v6338, %v7534
  %v7796 = vsub.f32 %v6340, %v7534
  %v7797 = vsub.f32 %v5249, %v7567
  %v7798 = vsub.f32 %v5251, %v7567
  %v7799 = vsub.f32 %v5322, %v7567
  %v7800 = vsub.f32 %v5324, %v7567
  %v7801 = vsub.f32 %v5395, %v7567
  %v7802 = vsub.f32 %v5397, %v7567
  %v7803 = vsub.f32 %v5468, %v7567
  %v7804 = vsub.f32 %v5470, %v7567
  %v7805 = vsub.f32 %v5541, %v7567
  %v7806 = vsub.f32 %v5543, %v7567
  %v7807 = vsub.f32 %v5614, %v7567
  %v7808 = vsub.f32 %v5616, %v7567
  %v7809 = vsub.f32 %v5687, %v7567
  %v7810 = vsub.f32 %v5689, %v7567
  %v7811 = vsub.f32 %v5760, %v7567
  %v7812 = vsub.f32 %v5762, %v7567
  %v7813 = vsub.f32 %v5833, %v7567
  %v7814 = vsub.f32 %v5835, %v7567
  %v7815 = vsub.f32 %v5906, %v7567
  %v7816 = vsub.f32 %v5908, %v7567
  %v7817 = vsub.f32 %v5979, %v7567
  %v7818 = vsub.f32 %v5981, %v7567
  %v7819 = vsub.f32 %v6052, %v7567
  %v7820 = vsub.f32 %v6054, %v7567
  %v7821 = vsub.f32 %v6125, %v7567
  %v7822 = vsub.f32 %v6127, %v7567
  %v7823 = vsub.f32 %v6198, %v7567
  %v7824 = vsub.f32 %v6200, %v7567
  %v7825 = vsub.f32 %v6271, %v7567
  %v7826 = vsub.f32 %v6273, %v7567
  %v7827 = vsub.f32 %v6344, %v7567
  %v7828 = vsub.f32 %v6346, %v7567
  %v7829 = vsub.f32 %v5253, %v7600
  %v7830 = vsub.f32 %v5255, %v7600
  %v7831 = vsub.f32 %v5326, %v7600
  %v7832 = vsub.f32 %v5328, %v7600
  %v7833 = vsub.f32 %v5399, %v7600
  %v7834 = vsub.f32 %v5401, %v7600
  %v7835 = vsub.f32 %v5472, %v7600
  %v7836 = vsub.f32 %v5474, %v7600
  %v7837 = vsub.f32 %v5545, %v7600
  %v7838 = vsub.f32 %v5547, %v7600
  %v7839 = vsub.f32 %v5618, %v7600
  %v7840 = vsub.f32 %v5620, %v7600
  %v7841 = vsub.f32 %v5691, %v7600
  %v7842 = vsub.f32 %v5693, %v7600
  %v7843 = vsub.f32 %v5764, %v7600
  %v7844 = vsub.f32 %v5766, %v7600
  %v7845 = vsub.f32 %v5837, %v7600
  %v7846 = vsub.f32 %v5839, %v7600
  %v7847 = vsub.f32 %v5910, %v7600
  %v7848 = vsub.f32 %v5912, %v7600
  %v7849 = vsub.f32 %v5983, %v7600
  %v7850 = vsub.f32 %v5985, %v7600
  %v7851 = vsub.f32 %v6056, %v7600
  %v7852 = vsub.f32 %v6058, %v7600
  %v7853 = vsub.f32 %v6129, %v7600
  %v7854 = vsub.f32 %v6131, %v7600
  %v7855 = vsub.f32 %v6202, %v7600
  %v7856 = vsub.f32 %v6204, %v7600
  %v7857 = vsub.f32 %v6275, %v7600
  %v7858 = vsub.f32 %v6277, %v7600
  %v7859 = vsub.f32 %v6348, %v7600
  %v7860 = vsub.f32 %v6350, %v7600
  %v7861 = vsub.f32 %v5259, %v7633
  %v7862 = vsub.f32 %v5261, %v7633
  %v7863 = vsub.f32 %v5332, %v7633
  %v7864 = vsub.f32 %v5334, %v7633
  %v7865 = vsub.f32 %v5405, %v7633
  %v7866 = vsub.f32 %v5407, %v7633
  %v7867 = vsub.f32 %v5478, %v7633
  %v7868 = vsub.f32 %v5480, %v7633
  %v7869 = vsub.f32 %v5551, %v7633
  %v7870 = vsub.f32 %v5553, %v7633
  %v7871 = vsub.f32 %v5624, %v7633
  %v7872 = vsub.f32 %v5626, %v7633
  %v7873 = vsub.f32 %v5697, %v7633
  %v7874 = vsub.f32 %v5699, %v7633
  %v7875 = vsub.f32 %v5770, %v7633
  %v7876 = vsub.f32 %v5772, %v7633
  %v7877 = vsub.f32 %v5843, %v7633
  %v7878 = vsub.f32 %v5845, %v7633
  %v7879 = vsub.f32 %v5916, %v7633
  %v7880 = vsub.f32 %v5918, %v7633
  %v7881 = vsub.f32 %v5989, %v7633
  %v7882 = vsub.f32 %v5991, %v7633
  %v7883 = vsub.f32 %v6062, %v7633
  %v7884 = vsub.f32 %v6064, %v7633
  %v7885 = vsub.f32 %v6135, %v7633
  %v7886 = vsub.f32 %v6137, %v7633
  %v7887 = vsub.f32 %v6208, %v7633
  %v7888 = vsub.f32 %v6210, %v7633
  %v7889 = vsub.f32 %v6281, %v7633
  %v7890 = vsub.f32 %v6283, %v7633
  %v7891 = vsub.f32 %v6354, %v7633
  %v7892 = vsub.f32 %v6356, %v7633
  %v7893 = vsub.f32 %v5263, %v7666
  %v7894 = vsub.f32 %v5265, %v7666
  %v7895 = vsub.f32 %v5336, %v7666
  %v7896 = vsub.f32 %v5338, %v7666
  %v7897 = vsub.f32 %v5409, %v7666
  %v7898 = vsub.f32 %v5411, %v7666
  %v7899 = vsub.f32 %v5482, %v7666
  %v7900 = vsub.f32 %v5484, %v7666
  %v7901 = vsub.f32 %v5555, %v7666
  %v7902 = vsub.f32 %v5557, %v7666
  %v7903 = vsub.f32 %v5628, %v7666
  %v7904 = vsub.f32 %v5630, %v7666
  %v7905 = vsub.f32 %v5701, %v7666
  %v7906 = vsub.f32 %v5703, %v7666
  %v7907 = vsub.f32 %v5774, %v7666
  %v7908 = vsub.f32 %v5776, %v7666
  %v7909 = vsub.f32 %v5847, %v7666
  %v7910 = vsub.f32 %v5849, %v7666
  %v7911 = vsub.f32 %v5920, %v7666
  %v7912 = vsub.f32 %v5922, %v7666
  %v7913 = vsub.f32 %v5993, %v7666
  %v7914 = vsub.f32 %v5995, %v7666
  %v7915 = vsub.f32 %v6066, %v7666
  %v7916 = vsub.f32 %v6068, %v7666
  %v7917 = vsub.f32 %v6139, %v7666
  %v7918 = vsub.f32 %v6141, %v7666
  %v7919 = vsub.f32 %v6212, %v7666
  %v7920 = vsub.f32 %v6214, %v7666
  %v7921 = vsub.f32 %v6285, %v7666
  %v7922 = vsub.f32 %v6287, %v7666
  %v7923 = vsub.f32 %v6358, %v7666
  %v7924 = vsub.f32 %v6360, %v7666
  %v7925 = vsub.f32 %v5269, %v7699
  %v7926 = vsub.f32 %v5271, %v7699
  %v7927 = vsub.f32 %v5342, %v7699
  %v7928 = vsub.f32 %v5344, %v7699
  %v7929 = vsub.f32 %v5415, %v7699
  %v7930 = vsub.f32 %v5417, %v7699
  %v7931 = vsub.f32 %v5488, %v7699
  %v7932 = vsub.f32 %v5490, %v7699
  %v7933 = vsub.f32 %v5561, %v7699
  %v7934 = vsub.f32 %v5563, %v7699
  %v7935 = vsub.f32 %v5634, %v7699
  %v7936 = vsub.f32 %v5636, %v7699
  %v7937 = vsub.f32 %v5707, %v7699
  %v7938 = vsub.f32 %v5709, %v7699
  %v7939 = vsub.f32 %v5780, %v7699
  %v7940 = vsub.f32 %v5782, %v7699
  %v7941 = vsub.f32 %v5853, %v7699
  %v7942 = vsub.f32 %v5855, %v7699
  %v7943 = vsub.f32 %v5926, %v7699
  %v7944 = vsub.f32 %v5928, %v7699
  %v7945 = vsub.f32 %v5999, %v7699
  %v7946 = vsub.f32 %v6001, %v7699
  %v7947 = vsub.f32 %v6072, %v7699
  %v7948 = vsub.f32 %v6074, %v7699
  %v7949 = vsub.f32 %v6145, %v7699
  %v7950 = vsub.f32 %v6147, %v7699
  %v7951 = vsub.f32 %v6218, %v7699
  %v7952 = vsub.f32 %v6220, %v7699
  %v7953 = vsub.f32 %v6291, %v7699
  %v7954 = vsub.f32 %v6293, %v7699
  %v7955 = vsub.f32 %v6364, %v7699
  %v7956 = vsub.f32 %v6366, %v7699
  %v7957 = vsub.f32 %v5273, %v7732
  %v7958 = vsub.f32 %v5275, %v7732
  %v7959 = vsub.f32 %v5346, %v7732
  %v7960 = vsub.f32 %v5348, %v7732
  %v7961 = vsub.f32 %v5419, %v7732
  %v7962 = vsub.f32 %v5421, %v7732
  %v7963 = vsub.f32 %v5492, %v7732
  %v7964 = vsub.f32 %v5494, %v7732
  %v7965 = vsub.f32 %v5565, %v7732
  %v7966 = vsub.f32 %v5567, %v7732
  %v7967 = vsub.f32 %v5638, %v7732
  %v7968 = vsub.f32 %v5640, %v7732
  %v7969 = vsub.f32 %v5711, %v7732
  %v7970 = vsub.f32 %v5713, %v7732
  %v7971 = vsub.f32 %v5784, %v7732
  %v7972 = vsub.f32 %v5786, %v7732
  %v7973 = vsub.f32 %v5857, %v7732
  %v7974 = vsub.f32 %v5859, %v7732
  %v7975 = vsub.f32 %v5930, %v7732
  %v7976 = vsub.f32 %v5932, %v7732
  %v7977 = vsub.f32 %v6003, %v7732
  %v7978 = vsub.f32 %v6005, %v7732
  %v7979 = vsub.f32 %v6076, %v7732
  %v7980 = vsub.f32 %v6078, %v7732
  %v7981 = vsub.f32 %v6149, %v7732
  %v7982 = vsub.f32 %v6151, %v7732
  %v7983 = vsub.f32 %v6222, %v7732
  %v7984 = vsub.f32 %v6224, %v7732
  %v7985 = vsub.f32 %v6295, %v7732
  %v7986 = vsub.f32 %v6297, %v7732
  %v7987 = vsub.f32 %v6368, %v7732
  %v7988 = vsub.f32 %v6370, %v7732
  %v7989 = vmul.f32 %v7733, 1.442695
  %v7990 = vpow.pop %v7989
  %v7991 = vmul.f32 %v7734, 1.442695
  %v7992 = vpow.pop %v7991
  %v7993 = vmul.f32 %v7735, 1.442695
  %v7994 = vpow.pop %v7993
  %v7995 = vmul.f32 %v7736, 1.442695
  %v7996 = vpow.pop %v7995
  %v7997 = vmul.f32 %v7737, 1.442695
  %v7998 = vpow.pop %v7997
  %v7999 = vmul.f32 %v7738, 1.442695
  %v8000 = vpow.pop %v7999
  %v8001 = vmul.f32 %v7739, 1.442695
  %v8002 = vpow.pop %v8001
  %v8003 = vmul.f32 %v7740, 1.442695
  %v8004 = vpow.pop %v8003
  %v8005 = vmul.f32 %v7741, 1.442695
  %v8006 = vpow.pop %v8005
  %v8007 = vmul.f32 %v7742, 1.442695
  %v8008 = vpow.pop %v8007
  %v8009 = vmul.f32 %v7743, 1.442695
  %v8010 = vpow.pop %v8009
  %v8011 = vmul.f32 %v7744, 1.442695
  %v8012 = vpow.pop %v8011
  %v8013 = vmul.f32 %v7745, 1.442695
  %v8014 = vpow.pop %v8013
  %v8015 = vmul.f32 %v7746, 1.442695
  %v8016 = vpow.pop %v8015
  %v8017 = vmul.f32 %v7747, 1.442695
  %v8018 = vpow.pop %v8017
  %v8019 = vmul.f32 %v7748, 1.442695
  %v8020 = vpow.pop %v8019
  %v8021 = vmul.f32 %v7749, 1.442695
  %v8022 = vpow.pop %v8021
  %v8023 = vmul.f32 %v7750, 1.442695
  %v8024 = vpow.pop %v8023
  %v8025 = vmul.f32 %v7751, 1.442695
  %v8026 = vpow.pop %v8025
  %v8027 = vmul.f32 %v7752, 1.442695
  %v8028 = vpow.pop %v8027
  %v8029 = vmul.f32 %v7753, 1.442695
  %v8030 = vpow.pop %v8029
  %v8031 = vmul.f32 %v7754, 1.442695
  %v8032 = vpow.pop %v8031
  %v8033 = vmul.f32 %v7755, 1.442695
  %v8034 = vpow.pop %v8033
  %v8035 = vmul.f32 %v7756, 1.442695
  %v8036 = vpow.pop %v8035
  %v8037 = vmul.f32 %v7757, 1.442695
  %v8038 = vpow.pop %v8037
  %v8039 = vmul.f32 %v7758, 1.442695
  %v8040 = vpow.pop %v8039
  %v8041 = vmul.f32 %v7759, 1.442695
  %v8042 = vpow.pop %v8041
  %v8043 = vmul.f32 %v7760, 1.442695
  %v8044 = vpow.pop %v8043
  %v8045 = vmul.f32 %v7761, 1.442695
  %v8046 = vpow.pop %v8045
  %v8047 = vmul.f32 %v7762, 1.442695
  %v8048 = vpow.pop %v8047
  %v8049 = vmul.f32 %v7763, 1.442695
  %v8050 = vpow.pop %v8049
  %v8051 = vmul.f32 %v7764, 1.442695
  %v8052 = vpow.pop %v8051
  %v8053 = vmul.f32 %v7765, 1.442695
  %v8054 = vpow.pop %v8053
  %v8055 = vmul.f32 %v7766, 1.442695
  %v8056 = vpow.pop %v8055
  %v8057 = vmul.f32 %v7767, 1.442695
  %v8058 = vpow.pop %v8057
  %v8059 = vmul.f32 %v7768, 1.442695
  %v8060 = vpow.pop %v8059
  %v8061 = vmul.f32 %v7769, 1.442695
  %v8062 = vpow.pop %v8061
  %v8063 = vmul.f32 %v7770, 1.442695
  %v8064 = vpow.pop %v8063
  %v8065 = vmul.f32 %v7771, 1.442695
  %v8066 = vpow.pop %v8065
  %v8067 = vmul.f32 %v7772, 1.442695
  %v8068 = vpow.pop %v8067
  %v8069 = vmul.f32 %v7773, 1.442695
  %v8070 = vpow.pop %v8069
  %v8071 = vmul.f32 %v7774, 1.442695
  %v8072 = vpow.pop %v8071
  %v8073 = vmul.f32 %v7775, 1.442695
  %v8074 = vpow.pop %v8073
  %v8075 = vmul.f32 %v7776, 1.442695
  %v8076 = vpow.pop %v8075
  %v8077 = vmul.f32 %v7777, 1.442695
  %v8078 = vpow.pop %v8077
  %v8079 = vmul.f32 %v7778, 1.442695
  %v8080 = vpow.pop %v8079
  %v8081 = vmul.f32 %v7779, 1.442695
  %v8082 = vpow.pop %v8081
  %v8083 = vmul.f32 %v7780, 1.442695
  %v8084 = vpow.pop %v8083
  %v8085 = vmul.f32 %v7781, 1.442695
  %v8086 = vpow.pop %v8085
  %v8087 = vmul.f32 %v7782, 1.442695
  %v8088 = vpow.pop %v8087
  %v8089 = vmul.f32 %v7783, 1.442695
  %v8090 = vpow.pop %v8089
  %v8091 = vmul.f32 %v7784, 1.442695
  %v8092 = vpow.pop %v8091
  %v8093 = vmul.f32 %v7785, 1.442695
  %v8094 = vpow.pop %v8093
  %v8095 = vmul.f32 %v7786, 1.442695
  %v8096 = vpow.pop %v8095
  %v8097 = vmul.f32 %v7787, 1.442695
  %v8098 = vpow.pop %v8097
  %v8099 = vmul.f32 %v7788, 1.442695
  %v8100 = vpow.pop %v8099
  %v8101 = vmul.f32 %v7789, 1.442695
  %v8102 = vpow.pop %v8101
  %v8103 = vmul.f32 %v7790, 1.442695
  %v8104 = vpow.pop %v8103
  %v8105 = vmul.f32 %v7791, 1.442695
  %v8106 = vpow.pop %v8105
  %v8107 = vmul.f32 %v7792, 1.442695
  %v8108 = vpow.pop %v8107
  %v8109 = vmul.f32 %v7793, 1.442695
  %v8110 = vpow.pop %v8109
  %v8111 = vmul.f32 %v7794, 1.442695
  %v8112 = vpow.pop %v8111
  %v8113 = vmul.f32 %v7795, 1.442695
  %v8114 = vpow.pop %v8113
  %v8115 = vmul.f32 %v7796, 1.442695
  %v8116 = vpow.pop %v8115
  %v8117 = vmul.f32 %v7797, 1.442695
  %v8118 = vpow.pop %v8117
  %v8119 = vmul.f32 %v7798, 1.442695
  %v8120 = vpow.pop %v8119
  %v8121 = vmul.f32 %v7799, 1.442695
  %v8122 = vpow.pop %v8121
  %v8123 = vmul.f32 %v7800, 1.442695
  %v8124 = vpow.pop %v8123
  %v8125 = vmul.f32 %v7801, 1.442695
  %v8126 = vpow.pop %v8125
  %v8127 = vmul.f32 %v7802, 1.442695
  %v8128 = vpow.pop %v8127
  %v8129 = vmul.f32 %v7803, 1.442695
  %v8130 = vpow.pop %v8129
  %v8131 = vmul.f32 %v7804, 1.442695
  %v8132 = vpow.pop %v8131
  %v8133 = vmul.f32 %v7805, 1.442695
  %v8134 = vpow.pop %v8133
  %v8135 = vmul.f32 %v7806, 1.442695
  %v8136 = vpow.pop %v8135
  %v8137 = vmul.f32 %v7807, 1.442695
  %v8138 = vpow.pop %v8137
  %v8139 = vmul.f32 %v7808, 1.442695
  %v8140 = vpow.pop %v8139
  %v8141 = vmul.f32 %v7809, 1.442695
  %v8142 = vpow.pop %v8141
  %v8143 = vmul.f32 %v7810, 1.442695
  %v8144 = vpow.pop %v8143
  %v8145 = vmul.f32 %v7811, 1.442695
  %v8146 = vpow.pop %v8145
  %v8147 = vmul.f32 %v7812, 1.442695
  %v8148 = vpow.pop %v8147
  %v8149 = vmul.f32 %v7813, 1.442695
  %v8150 = vpow.pop %v8149
  %v8151 = vmul.f32 %v7814, 1.442695
  %v8152 = vpow.pop %v8151
  %v8153 = vmul.f32 %v7815, 1.442695
  %v8154 = vpow.pop %v8153
  %v8155 = vmul.f32 %v7816, 1.442695
  %v8156 = vpow.pop %v8155
  %v8157 = vmul.f32 %v7817, 1.442695
  %v8158 = vpow.pop %v8157
  %v8159 = vmul.f32 %v7818, 1.442695
  %v8160 = vpow.pop %v8159
  %v8161 = vmul.f32 %v7819, 1.442695
  %v8162 = vpow.pop %v8161
  %v8163 = vmul.f32 %v7820, 1.442695
  %v8164 = vpow.pop %v8163
  %v8165 = vmul.f32 %v7821, 1.442695
  %v8166 = vpow.pop %v8165
  %v8167 = vmul.f32 %v7822, 1.442695
  %v8168 = vpow.pop %v8167
  %v8169 = vmul.f32 %v7823, 1.442695
  %v8170 = vpow.pop %v8169
  %v8171 = vmul.f32 %v7824, 1.442695
  %v8172 = vpow.pop %v8171
  %v8173 = vmul.f32 %v7825, 1.442695
  %v8174 = vpow.pop %v8173
  %v8175 = vmul.f32 %v7826, 1.442695
  %v8176 = vpow.pop %v8175
  %v8177 = vmul.f32 %v7827, 1.442695
  %v8178 = vpow.pop %v8177
  %v8179 = vmul.f32 %v7828, 1.442695
  %v8180 = vpow.pop %v8179
  %v8181 = vmul.f32 %v7829, 1.442695
  %v8182 = vpow.pop %v8181
  %v8183 = vmul.f32 %v7830, 1.442695
  %v8184 = vpow.pop %v8183
  %v8185 = vmul.f32 %v7831, 1.442695
  %v8186 = vpow.pop %v8185
  %v8187 = vmul.f32 %v7832, 1.442695
  %v8188 = vpow.pop %v8187
  %v8189 = vmul.f32 %v7833, 1.442695
  %v8190 = vpow.pop %v8189
  %v8191 = vmul.f32 %v7834, 1.442695
  %v8192 = vpow.pop %v8191
  %v8193 = vmul.f32 %v7835, 1.442695
  %v8194 = vpow.pop %v8193
  %v8195 = vmul.f32 %v7836, 1.442695
  %v8196 = vpow.pop %v8195
  %v8197 = vmul.f32 %v7837, 1.442695
  %v8198 = vpow.pop %v8197
  %v8199 = vmul.f32 %v7838, 1.442695
  %v8200 = vpow.pop %v8199
  %v8201 = vmul.f32 %v7839, 1.442695
  %v8202 = vpow.pop %v8201
  %v8203 = vmul.f32 %v7840, 1.442695
  %v8204 = vpow.pop %v8203
  %v8205 = vmul.f32 %v7841, 1.442695
  %v8206 = vpow.pop %v8205
  %v8207 = vmul.f32 %v7842, 1.442695
  %v8208 = vpow.pop %v8207
  %v8209 = vmul.f32 %v7843, 1.442695
  %v8210 = vpow.pop %v8209
  %v8211 = vmul.f32 %v7844, 1.442695
  %v8212 = vpow.pop %v8211
  %v8213 = vmul.f32 %v7845, 1.442695
  %v8214 = vpow.pop %v8213
  %v8215 = vmul.f32 %v7846, 1.442695
  %v8216 = vpow.pop %v8215
  %v8217 = vmul.f32 %v7847, 1.442695
  %v8218 = vpow.pop %v8217
  %v8219 = vmul.f32 %v7848, 1.442695
  %v8220 = vpow.pop %v8219
  %v8221 = vmul.f32 %v7849, 1.442695
  %v8222 = vpow.pop %v8221
  %v8223 = vmul.f32 %v7850, 1.442695
  %v8224 = vpow.pop %v8223
  %v8225 = vmul.f32 %v7851, 1.442695
  %v8226 = vpow.pop %v8225
  %v8227 = vmul.f32 %v7852, 1.442695
  %v8228 = vpow.pop %v8227
  %v8229 = vmul.f32 %v7853, 1.442695
  %v8230 = vpow.pop %v8229
  %v8231 = vmul.f32 %v7854, 1.442695
  %v8232 = vpow.pop %v8231
  %v8233 = vmul.f32 %v7855, 1.442695
  %v8234 = vpow.pop %v8233
  %v8235 = vmul.f32 %v7856, 1.442695
  %v8236 = vpow.pop %v8235
  %v8237 = vmul.f32 %v7857, 1.442695
  %v8238 = vpow.pop %v8237
  %v8239 = vmul.f32 %v7858, 1.442695
  %v8240 = vpow.pop %v8239
  %v8241 = vmul.f32 %v7859, 1.442695
  %v8242 = vpow.pop %v8241
  %v8243 = vmul.f32 %v7860, 1.442695
  %v8244 = vpow.pop %v8243
  %v8245 = vmul.f32 %v7861, 1.442695
  %v8246 = vpow.pop %v8245
  %v8247 = vmul.f32 %v7862, 1.442695
  %v8248 = vpow.pop %v8247
  %v8249 = vmul.f32 %v7863, 1.442695
  %v8250 = vpow.pop %v8249
  %v8251 = vmul.f32 %v7864, 1.442695
  %v8252 = vpow.pop %v8251
  %v8253 = vmul.f32 %v7865, 1.442695
  %v8254 = vpow.pop %v8253
  %v8255 = vmul.f32 %v7866, 1.442695
  %v8256 = vpow.pop %v8255
  %v8257 = vmul.f32 %v7867, 1.442695
  %v8258 = vpow.pop %v8257
  %v8259 = vmul.f32 %v7868, 1.442695
  %v8260 = vpow.pop %v8259
  %v8261 = vmul.f32 %v7869, 1.442695
  %v8262 = vpow.pop %v8261
  %v8263 = vmul.f32 %v7870, 1.442695
  %v8264 = vpow.pop %v8263
  %v8265 = vmul.f32 %v7871, 1.442695
  %v8266 = vpow.pop %v8265
  %v8267 = vmul.f32 %v7872, 1.442695
  %v8268 = vpow.pop %v8267
  %v8269 = vmul.f32 %v7873, 1.442695
  %v8270 = vpow.pop %v8269
  %v8271 = vmul.f32 %v7874, 1.442695
  %v8272 = vpow.pop %v8271
  %v8273 = vmul.f32 %v7875, 1.442695
  %v8274 = vpow.pop %v8273
  %v8275 = vmul.f32 %v7876, 1.442695
  %v8276 = vpow.pop %v8275
  %v8277 = vmul.f32 %v7877, 1.442695
  %v8278 = vpow.pop %v8277
  %v8279 = vmul.f32 %v7878, 1.442695
  %v8280 = vpow.pop %v8279
  %v8281 = vmul.f32 %v7879, 1.442695
  %v8282 = vpow.pop %v8281
  %v8283 = vmul.f32 %v7880, 1.442695
  %v8284 = vpow.pop %v8283
  %v8285 = vmul.f32 %v7881, 1.442695
  %v8286 = vpow.pop %v8285
  %v8287 = vmul.f32 %v7882, 1.442695
  %v8288 = vpow.pop %v8287
  %v8289 = vmul.f32 %v7883, 1.442695
  %v8290 = vpow.pop %v8289
  %v8291 = vmul.f32 %v7884, 1.442695
  %v8292 = vpow.pop %v8291
  %v8293 = vmul.f32 %v7885, 1.442695
  %v8294 = vpow.pop %v8293
  %v8295 = vmul.f32 %v7886, 1.442695
  %v8296 = vpow.pop %v8295
  %v8297 = vmul.f32 %v7887, 1.442695
  %v8298 = vpow.pop %v8297
  %v8299 = vmul.f32 %v7888, 1.442695
  %v8300 = vpow.pop %v8299
  %v8301 = vmul.f32 %v7889, 1.442695
  %v8302 = vpow.pop %v8301
  %v8303 = vmul.f32 %v7890, 1.442695
  %v8304 = vpow.pop %v8303
  %v8305 = vmul.f32 %v7891, 1.442695
  %v8306 = vpow.pop %v8305
  %v8307 = vmul.f32 %v7892, 1.442695
  %v8308 = vpow.pop %v8307
  %v8309 = vmul.f32 %v7893, 1.442695
  %v8310 = vpow.pop %v8309
  %v8311 = vmul.f32 %v7894, 1.442695
  %v8312 = vpow.pop %v8311
  %v8313 = vmul.f32 %v7895, 1.442695
  %v8314 = vpow.pop %v8313
  %v8315 = vmul.f32 %v7896, 1.442695
  %v8316 = vpow.pop %v8315
  %v8317 = vmul.f32 %v7897, 1.442695
  %v8318 = vpow.pop %v8317
  %v8319 = vmul.f32 %v7898, 1.442695
  %v8320 = vpow.pop %v8319
  %v8321 = vmul.f32 %v7899, 1.442695
  %v8322 = vpow.pop %v8321
  %v8323 = vmul.f32 %v7900, 1.442695
  %v8324 = vpow.pop %v8323
  %v8325 = vmul.f32 %v7901, 1.442695
  %v8326 = vpow.pop %v8325
  %v8327 = vmul.f32 %v7902, 1.442695
  %v8328 = vpow.pop %v8327
  %v8329 = vmul.f32 %v7903, 1.442695
  %v8330 = vpow.pop %v8329
  %v8331 = vmul.f32 %v7904, 1.442695
  %v8332 = vpow.pop %v8331
  %v8333 = vmul.f32 %v7905, 1.442695
  %v8334 = vpow.pop %v8333
  %v8335 = vmul.f32 %v7906, 1.442695
  %v8336 = vpow.pop %v8335
  %v8337 = vmul.f32 %v7907, 1.442695
  %v8338 = vpow.pop %v8337
  %v8339 = vmul.f32 %v7908, 1.442695
  %v8340 = vpow.pop %v8339
  %v8341 = vmul.f32 %v7909, 1.442695
  %v8342 = vpow.pop %v8341
  %v8343 = vmul.f32 %v7910, 1.442695
  %v8344 = vpow.pop %v8343
  %v8345 = vmul.f32 %v7911, 1.442695
  %v8346 = vpow.pop %v8345
  %v8347 = vmul.f32 %v7912, 1.442695
  %v8348 = vpow.pop %v8347
  %v8349 = vmul.f32 %v7913, 1.442695
  %v8350 = vpow.pop %v8349
  %v8351 = vmul.f32 %v7914, 1.442695
  %v8352 = vpow.pop %v8351
  %v8353 = vmul.f32 %v7915, 1.442695
  %v8354 = vpow.pop %v8353
  %v8355 = vmul.f32 %v7916, 1.442695
  %v8356 = vpow.pop %v8355
  %v8357 = vmul.f32 %v7917, 1.442695
  %v8358 = vpow.pop %v8357
  %v8359 = vmul.f32 %v7918, 1.442695
  %v8360 = vpow.pop %v8359
  %v8361 = vmul.f32 %v7919, 1.442695
  %v8362 = vpow.pop %v8361
  %v8363 = vmul.f32 %v7920, 1.442695
  %v8364 = vpow.pop %v8363
  %v8365 = vmul.f32 %v7921, 1.442695
  %v8366 = vpow.pop %v8365
  %v8367 = vmul.f32 %v7922, 1.442695
  %v8368 = vpow.pop %v8367
  %v8369 = vmul.f32 %v7923, 1.442695
  %v8370 = vpow.pop %v8369
  %v8371 = vmul.f32 %v7924, 1.442695
  %v8372 = vpow.pop %v8371
  %v8373 = vmul.f32 %v7925, 1.442695
  %v8374 = vpow.pop %v8373
  %v8375 = vmul.f32 %v7926, 1.442695
  %v8376 = vpow.pop %v8375
  %v8377 = vmul.f32 %v7927, 1.442695
  %v8378 = vpow.pop %v8377
  %v8379 = vmul.f32 %v7928, 1.442695
  %v8380 = vpow.pop %v8379
  %v8381 = vmul.f32 %v7929, 1.442695
  %v8382 = vpow.pop %v8381
  %v8383 = vmul.f32 %v7930, 1.442695
  %v8384 = vpow.pop %v8383
  %v8385 = vmul.f32 %v7931, 1.442695
  %v8386 = vpow.pop %v8385
  %v8387 = vmul.f32 %v7932, 1.442695
  %v8388 = vpow.pop %v8387
  %v8389 = vmul.f32 %v7933, 1.442695
  %v8390 = vpow.pop %v8389
  %v8391 = vmul.f32 %v7934, 1.442695
  %v8392 = vpow.pop %v8391
  %v8393 = vmul.f32 %v7935, 1.442695
  %v8394 = vpow.pop %v8393
  %v8395 = vmul.f32 %v7936, 1.442695
  %v8396 = vpow.pop %v8395
  %v8397 = vmul.f32 %v7937, 1.442695
  %v8398 = vpow.pop %v8397
  %v8399 = vmul.f32 %v7938, 1.442695
  %v8400 = vpow.pop %v8399
  %v8401 = vmul.f32 %v7939, 1.442695
  %v8402 = vpow.pop %v8401
  %v8403 = vmul.f32 %v7940, 1.442695
  %v8404 = vpow.pop %v8403
  %v8405 = vmul.f32 %v7941, 1.442695
  %v8406 = vpow.pop %v8405
  %v8407 = vmul.f32 %v7942, 1.442695
  %v8408 = vpow.pop %v8407
  %v8409 = vmul.f32 %v7943, 1.442695
  %v8410 = vpow.pop %v8409
  %v8411 = vmul.f32 %v7944, 1.442695
  %v8412 = vpow.pop %v8411
  %v8413 = vmul.f32 %v7945, 1.442695
  %v8414 = vpow.pop %v8413
  %v8415 = vmul.f32 %v7946, 1.442695
  %v8416 = vpow.pop %v8415
  %v8417 = vmul.f32 %v7947, 1.442695
  %v8418 = vpow.pop %v8417
  %v8419 = vmul.f32 %v7948, 1.442695
  %v8420 = vpow.pop %v8419
  %v8421 = vmul.f32 %v7949, 1.442695
  %v8422 = vpow.pop %v8421
  %v8423 = vmul.f32 %v7950, 1.442695
  %v8424 = vpow.pop %v8423
  %v8425 = vmul.f32 %v7951, 1.442695
  %v8426 = vpow.pop %v8425
  %v8427 = vmul.f32 %v7952, 1.442695
  %v8428 = vpow.pop %v8427
  %v8429 = vmul.f32 %v7953, 1.442695
  %v8430 = vpow.pop %v8429
  %v8431 = vmul.f32 %v7954, 1.442695
  %v8432 = vpow.pop %v8431
  %v8433 = vmul.f32 %v7955, 1.442695
  %v8434 = vpow.pop %v8433
  %v8435 = vmul.f32 %v7956, 1.442695
  %v8436 = vpow.pop %v8435
  %v8437 = vmul.f32 %v7957, 1.442695
  %v8438 = vpow.pop %v8437
  %v8439 = vmul.f32 %v7958, 1.442695
  %v8440 = vpow.pop %v8439
  %v8441 = vmul.f32 %v7959, 1.442695
  %v8442 = vpow.pop %v8441
  %v8443 = vmul.f32 %v7960, 1.442695
  %v8444 = vpow.pop %v8443
  %v8445 = vmul.f32 %v7961, 1.442695
  %v8446 = vpow.pop %v8445
  %v8447 = vmul.f32 %v7962, 1.442695
  %v8448 = vpow.pop %v8447
  %v8449 = vmul.f32 %v7963, 1.442695
  %v8450 = vpow.pop %v8449
  %v8451 = vmul.f32 %v7964, 1.442695
  %v8452 = vpow.pop %v8451
  %v8453 = vmul.f32 %v7965, 1.442695
  %v8454 = vpow.pop %v8453
  %v8455 = vmul.f32 %v7966, 1.442695
  %v8456 = vpow.pop %v8455
  %v8457 = vmul.f32 %v7967, 1.442695
  %v8458 = vpow.pop %v8457
  %v8459 = vmul.f32 %v7968, 1.442695
  %v8460 = vpow.pop %v8459
  %v8461 = vmul.f32 %v7969, 1.442695
  %v8462 = vpow.pop %v8461
  %v8463 = vmul.f32 %v7970, 1.442695
  %v8464 = vpow.pop %v8463
  %v8465 = vmul.f32 %v7971, 1.442695
  %v8466 = vpow.pop %v8465
  %v8467 = vmul.f32 %v7972, 1.442695
  %v8468 = vpow.pop %v8467
  %v8469 = vmul.f32 %v7973, 1.442695
  %v8470 = vpow.pop %v8469
  %v8471 = vmul.f32 %v7974, 1.442695
  %v8472 = vpow.pop %v8471
  %v8473 = vmul.f32 %v7975, 1.442695
  %v8474 = vpow.pop %v8473
  %v8475 = vmul.f32 %v7976, 1.442695
  %v8476 = vpow.pop %v8475
  %v8477 = vmul.f32 %v7977, 1.442695
  %v8478 = vpow.pop %v8477
  %v8479 = vmul.f32 %v7978, 1.442695
  %v8480 = vpow.pop %v8479
  %v8481 = vmul.f32 %v7979, 1.442695
  %v8482 = vpow.pop %v8481
  %v8483 = vmul.f32 %v7980, 1.442695
  %v8484 = vpow.pop %v8483
  %v8485 = vmul.f32 %v7981, 1.442695
  %v8486 = vpow.pop %v8485
  %v8487 = vmul.f32 %v7982, 1.442695
  %v8488 = vpow.pop %v8487
  %v8489 = vmul.f32 %v7983, 1.442695
  %v8490 = vpow.pop %v8489
  %v8491 = vmul.f32 %v7984, 1.442695
  %v8492 = vpow.pop %v8491
  %v8493 = vmul.f32 %v7985, 1.442695
  %v8494 = vpow.pop %v8493
  %v8495 = vmul.f32 %v7986, 1.442695
  %v8496 = vpow.pop %v8495
  %v8497 = vmul.f32 %v7987, 1.442695
  %v8498 = vpow.pop %v8497
  %v8499 = vmul.f32 %v7988, 1.442695
  %v8500 = vpow.pop %v8499
  %v8501 = vadd.f32 %v7990, %v7992
  %v8502 = vadd.f32 %v8501, %v7994
  %v8503 = vadd.f32 %v8502, %v7996
  %v8504 = vadd.f32 %v8503, %v7998
  %v8505 = vadd.f32 %v8504, %v8000
  %v8506 = vadd.f32 %v8505, %v8002
  %v8507 = vadd.f32 %v8506, %v8004
  %v8508 = vadd.f32 %v8507, %v8006
  %v8509 = vadd.f32 %v8508, %v8008
  %v8510 = vadd.f32 %v8509, %v8010
  %v8511 = vadd.f32 %v8510, %v8012
  %v8512 = vadd.f32 %v8511, %v8014
  %v8513 = vadd.f32 %v8512, %v8016
  %v8514 = vadd.f32 %v8513, %v8018
  %v8515 = vadd.f32 %v8514, %v8020
  %v8516 = vadd.f32 %v8515, %v8022
  %v8517 = vadd.f32 %v8516, %v8024
  %v8518 = vadd.f32 %v8517, %v8026
  %v8519 = vadd.f32 %v8518, %v8028
  %v8520 = vadd.f32 %v8519, %v8030
  %v8521 = vadd.f32 %v8520, %v8032
  %v8522 = vadd.f32 %v8521, %v8034
  %v8523 = vadd.f32 %v8522, %v8036
  %v8524 = vadd.f32 %v8523, %v8038
  %v8525 = vadd.f32 %v8524, %v8040
  %v8526 = vadd.f32 %v8525, %v8042
  %v8527 = vadd.f32 %v8526, %v8044
  %v8528 = vadd.f32 %v8527, %v8046
  %v8529 = vadd.f32 %v8528, %v8048
  %v8530 = vadd.f32 %v8529, %v8050
  %v8531 = vadd.f32 %v8530, %v8052
  %8532 = vadd.xlane.f32.xlu0 %v8531
  %v8533 = vpop.xlane.xlu0 %8532
  %v8534 = vadd.f32 %v8054, %v8056
  %v8535 = vadd.f32 %v8534, %v8058
  %v8536 = vadd.f32 %v8535, %v8060
  %v8537 = vadd.f32 %v8536, %v8062
  %v8538 = vadd.f32 %v8537, %v8064
  %v8539 = vadd.f32 %v8538, %v8066
  %v8540 = vadd.f32 %v8539, %v8068
  %v8541 = vadd.f32 %v8540, %v8070
  %v8542 = vadd.f32 %v8541, %v8072
  %v8543 = vadd.f32 %v8542, %v8074
  %v8544 = vadd.f32 %v8543, %v8076
  %v8545 = vadd.f32 %v8544, %v8078
  %v8546 = vadd.f32 %v8545, %v8080
  %v8547 = vadd.f32 %v8546, %v8082
  %v8548 = vadd.f32 %v8547, %v8084
  %v8549 = vadd.f32 %v8548, %v8086
  %v8550 = vadd.f32 %v8549, %v8088
  %v8551 = vadd.f32 %v8550, %v8090
  %v8552 = vadd.f32 %v8551, %v8092
  %v8553 = vadd.f32 %v8552, %v8094
  %v8554 = vadd.f32 %v8553, %v8096
  %v8555 = vadd.f32 %v8554, %v8098
  %v8556 = vadd.f32 %v8555, %v8100
  %v8557 = vadd.f32 %v8556, %v8102
  %v8558 = vadd.f32 %v8557, %v8104
  %v8559 = vadd.f32 %v8558, %v8106
  %v8560 = vadd.f32 %v8559, %v8108
  %v8561 = vadd.f32 %v8560, %v8110
  %v8562 = vadd.f32 %v8561, %v8112
  %v8563 = vadd.f32 %v8562, %v8114
  %v8564 = vadd.f32 %v8563, %v8116
  %8565 = vadd.xlane.f32.xlu0 %v8564
  %v8566 = vpop.xlane.xlu0 %8565
  %v8567 = vadd.f32 %v8118, %v8120
  %v8568 = vadd.f32 %v8567, %v8122
  %v8569 = vadd.f32 %v8568, %v8124
  %v8570 = vadd.f32 %v8569, %v8126
  %v8571 = vadd.f32 %v8570, %v8128
  %v8572 = vadd.f32 %v8571, %v8130
  %v8573 = vadd.f32 %v8572, %v8132
  %v8574 = vadd.f32 %v8573, %v8134
  %v8575 = vadd.f32 %v8574, %v8136
  %v8576 = vadd.f32 %v8575, %v8138
  %v8577 = vadd.f32 %v8576, %v8140
  %v8578 = vadd.f32 %v8577, %v8142
  %v8579 = vadd.f32 %v8578, %v8144
  %v8580 = vadd.f32 %v8579, %v8146
  %v8581 = vadd.f32 %v8580, %v8148
  %v8582 = vadd.f32 %v8581, %v8150
  %v8583 = vadd.f32 %v8582, %v8152
  %v8584 = vadd.f32 %v8583, %v8154
  %v8585 = vadd.f32 %v8584, %v8156
  %v8586 = vadd.f32 %v8585, %v8158
  %v8587 = vadd.f32 %v8586, %v8160
  %v8588 = vadd.f32 %v8587, %v8162
  %v8589 = vadd.f32 %v8588, %v8164
  %v8590 = vadd.f32 %v8589, %v8166
  %v8591 = vadd.f32 %v8590, %v8168
  %v8592 = vadd.f32 %v8591, %v8170
  %v8593 = vadd.f32 %v8592, %v8172
  %v8594 = vadd.f32 %v8593, %v8174
  %v8595 = vadd.f32 %v8594, %v8176
  %v8596 = vadd.f32 %v8595, %v8178
  %v8597 = vadd.f32 %v8596, %v8180
  %8598 = vadd.xlane.f32.xlu0 %v8597
  %v8599 = vpop.xlane.xlu0 %8598
  %v8600 = vadd.f32 %v8182, %v8184
  %v8601 = vadd.f32 %v8600, %v8186
  %v8602 = vadd.f32 %v8601, %v8188
  %v8603 = vadd.f32 %v8602, %v8190
  %v8604 = vadd.f32 %v8603, %v8192
  %v8605 = vadd.f32 %v8604, %v8194
  %v8606 = vadd.f32 %v8605, %v8196
  %v8607 = vadd.f32 %v8606, %v8198
  %v8608 = vadd.f32 %v8607, %v8200
  %v8609 = vadd.f32 %v8608, %v8202
  %v8610 = vadd.f32 %v8609, %v8204
  %v8611 = vadd.f32 %v8610, %v8206
  %v8612 = vadd.f32 %v8611, %v8208
  %v8613 = vadd.f32 %v8612, %v8210
  %v8614 = vadd.f32 %v8613, %v8212
  %v8615 = vadd.f32 %v8614, %v8214
  %v8616 = vadd.f32 %v8615, %v8216
  %v8617 = vadd.f32 %v8616, %v8218
  %v8618 = vadd.f32 %v8617, %v8220
  %v8619 = vadd.f32 %v8618, %v8222
  %v8620 = vadd.f32 %v8619, %v8224
  %v8621 = vadd.f32 %v8620, %v8226
  %v8622 = vadd.f32 %v8621, %v8228
  %v8623 = vadd.f32 %v8622, %v8230
  %v8624 = vadd.f32 %v8623, %v8232
  %v8625 = vadd.f32 %v8624, %v8234
  %v8626 = vadd.f32 %v8625, %v8236
  %v8627 = vadd.f32 %v8626, %v8238
  %v8628 = vadd.f32 %v8627, %v8240
  %v8629 = vadd.f32 %v8628, %v8242
  %v8630 = vadd.f32 %v8629, %v8244
  %8631 = vadd.xlane.f32.xlu0 %v8630
  %v8632 = vpop.xlane.xlu0 %8631
  %v8633 = vadd.f32 %v8246, %v8248
  %v8634 = vadd.f32 %v8633, %v8250
  %v8635 = vadd.f32 %v8634, %v8252
  %v8636 = vadd.f32 %v8635, %v8254
  %v8637 = vadd.f32 %v8636, %v8256
  %v8638 = vadd.f32 %v8637, %v8258
  %v8639 = vadd.f32 %v8638, %v8260
  %v8640 = vadd.f32 %v8639, %v8262
  %v8641 = vadd.f32 %v8640, %v8264
  %v8642 = vadd.f32 %v8641, %v8266
  %v8643 = vadd.f32 %v8642, %v8268
  %v8644 = vadd.f32 %v8643, %v8270
  %v8645 = vadd.f32 %v8644, %v8272
  %v8646 = vadd.f32 %v8645, %v8274
  %v8647 = vadd.f32 %v8646, %v8276
  %v8648 = vadd.f32 %v8647, %v8278
  %v8649 = vadd.f32 %v8648, %v8280
  %v8650 = vadd.f32 %v8649, %v8282
  %v8651 = vadd.f32 %v8650, %v8284
  %v8652 = vadd.f32 %v8651, %v8286
  %v8653 = vadd.f32 %v8652, %v8288
  %v8654 = vadd.f32 %v8653, %v8290
  %v8655 = vadd.f32 %v8654, %v8292
  %v8656 = vadd.f32 %v8655, %v8294
  %v8657 = vadd.f32 %v8656, %v8296
  %v8658 = vadd.f32 %v8657, %v8298
  %v8659 = vadd.f32 %v8658, %v8300
  %v8660 = vadd.f32 %v8659, %v8302
  %v8661 = vadd.f32 %v8660, %v8304
  %v8662 = vadd.f32 %v8661, %v8306
  %v8663 = vadd.f32 %v8662, %v8308
  %8664 = vadd.xlane.f32.xlu0 %v8663
  %v8665 = vpop.xlane.xlu0 %8664
  %v8666 = vadd.f32 %v8310, %v8312
  %v8667 = vadd.f32 %v8666, %v8314
  %v8668 = vadd.f32 %v8667, %v8316
  %v8669 = vadd.f32 %v8668, %v8318
  %v8670 = vadd.f32 %v8669, %v8320
  %v8671 = vadd.f32 %v8670, %v8322
  %v8672 = vadd.f32 %v8671, %v8324
  %v8673 = vadd.f32 %v8672, %v8326
  %v8674 = vadd.f32 %v8673, %v8328
  %v8675 = vadd.f32 %v8674, %v8330
  %v8676 = vadd.f32 %v8675, %v8332
  %v8677 = vadd.f32 %v8676, %v8334
  %v8678 = vadd.f32 %v8677, %v8336
  %v8679 = vadd.f32 %v8678, %v8338
  %v8680 = vadd.f32 %v8679, %v8340
  %v8681 = vadd.f32 %v8680, %v8342
  %v8682 = vadd.f32 %v8681, %v8344
  %v8683 = vadd.f32 %v8682, %v8346
  %v8684 = vadd.f32 %v8683, %v8348
  %v8685 = vadd.f32 %v8684, %v8350
  %v8686 = vadd.f32 %v8685, %v8352
  %v8687 = vadd.f32 %v8686, %v8354
  %v8688 = vadd.f32 %v8687, %v8356
  %v8689 = vadd.f32 %v8688, %v8358
  %v8690 = vadd.f32 %v8689, %v8360
  %v8691 = vadd.f32 %v8690, %v8362
  %v8692 = vadd.f32 %v8691, %v8364
  %v8693 = vadd.f32 %v8692, %v8366
  %v8694 = vadd.f32 %v8693, %v8368
  %v8695 = vadd.f32 %v8694, %v8370
  %v8696 = vadd.f32 %v8695, %v8372
  %8697 = vadd.xlane.f32.xlu0 %v8696
  %v8698 = vpop.xlane.xlu0 %8697
  %v8699 = vadd.f32 %v8374, %v8376
  %v8700 = vadd.f32 %v8699, %v8378
  %v8701 = vadd.f32 %v8700, %v8380
  %v8702 = vadd.f32 %v8701, %v8382
  %v8703 = vadd.f32 %v8702, %v8384
  %v8704 = vadd.f32 %v8703, %v8386
  %v8705 = vadd.f32 %v8704, %v8388
  %v8706 = vadd.f32 %v8705, %v8390
  %v8707 = vadd.f32 %v8706, %v8392
  %v8708 = vadd.f32 %v8707, %v8394
  %v8709 = vadd.f32 %v8708, %v8396
  %v8710 = vadd.f32 %v8709, %v8398
  %v8711 = vadd.f32 %v8710, %v8400
  %v8712 = vadd.f32 %v8711, %v8402
  %v8713 = vadd.f32 %v8712, %v8404
  %v8714 = vadd.f32 %v8713, %v8406
  %v8715 = vadd.f32 %v8714, %v8408
  %v8716 = vadd.f32 %v8715, %v8410
  %v8717 = vadd.f32 %v8716, %v8412
  %v8718 = vadd.f32 %v8717, %v8414
  %v8719 = vadd.f32 %v8718, %v8416
  %v8720 = vadd.f32 %v8719, %v8418
  %v8721 = vadd.f32 %v8720, %v8420
  %v8722 = vadd.f32 %v8721, %v8422
  %v8723 = vadd.f32 %v8722, %v8424
  %v8724 = vadd.f32 %v8723, %v8426
  %v8725 = vadd.f32 %v8724, %v8428
  %v8726 = vadd.f32 %v8725, %v8430
  %v8727 = vadd.f32 %v8726, %v8432
  %v8728 = vadd.f32 %v8727, %v8434
  %v8729 = vadd.f32 %v8728, %v8436
  %8730 = vadd.xlane.f32.xlu0 %v8729
  %v8731 = vpop.xlane.xlu0 %8730
  %v8732 = vadd.f32 %v8438, %v8440
  %v8733 = vadd.f32 %v8732, %v8442
  %v8734 = vadd.f32 %v8733, %v8444
  %v8735 = vadd.f32 %v8734, %v8446
  %v8736 = vadd.f32 %v8735, %v8448
  %v8737 = vadd.f32 %v8736, %v8450
  %v8738 = vadd.f32 %v8737, %v8452
  %v8739 = vadd.f32 %v8738, %v8454
  %v8740 = vadd.f32 %v8739, %v8456
  %v8741 = vadd.f32 %v8740, %v8458
  %v8742 = vadd.f32 %v8741, %v8460
  %v8743 = vadd.f32 %v8742, %v8462
  %v8744 = vadd.f32 %v8743, %v8464
  %v8745 = vadd.f32 %v8744, %v8466
  %v8746 = vadd.f32 %v8745, %v8468
  %v8747 = vadd.f32 %v8746, %v8470
  %v8748 = vadd.f32 %v8747, %v8472
  %v8749 = vadd.f32 %v8748, %v8474
  %v8750 = vadd.f32 %v8749, %v8476
  %v8751 = vadd.f32 %v8750, %v8478
  %v8752 = vadd.f32 %v8751, %v8480
  %v8753 = vadd.f32 %v8752, %v8482
  %v8754 = vadd.f32 %v8753, %v8484
  %v8755 = vadd.f32 %v8754, %v8486
  %v8756 = vadd.f32 %v8755, %v8488
  %v8757 = vadd.f32 %v8756, %v8490
  %v8758 = vadd.f32 %v8757, %v8492
  %v8759 = vadd.f32 %v8758, %v8494
  %v8760 = vadd.f32 %v8759, %v8496
  %v8761 = vadd.f32 %v8760, %v8498
  %v8762 = vadd.f32 %v8761, %v8500
  %8763 = vadd.xlane.f32.xlu0 %v8762
  %v8764 = vpop.xlane.xlu0 %8763
  %v8765 = vlog2.pop %v8533
  %v8766 = vmul.f32 %v8765, 0.6931472
  %v8767 = vlog2.pop %v8566
  %v8768 = vmul.f32 %v8767, 0.6931472
  %v8769 = vlog2.pop %v8599
  %v8770 = vmul.f32 %v8769, 0.6931472
  %v8771 = vlog2.pop %v8632
  %v8772 = vmul.f32 %v8771, 0.6931472
  %v8773 = vlog2.pop %v8665
  %v8774 = vmul.f32 %v8773, 0.6931472
  %v8775 = vlog2.pop %v8698
  %v8776 = vmul.f32 %v8775, 0.6931472
  %v8777 = vlog2.pop %v8731
  %v8778 = vmul.f32 %v8777, 0.6931472
  %v8779 = vlog2.pop %v8764
  %v8780 = vmul.f32 %v8779, 0.6931472
  %v8781 = vadd.f32 %v7501, %v8766
  %v8782 = vadd.f32 %v7534, %v8768
  %v8783 = vadd.f32 %v7567, %v8770
  %v8784 = vadd.f32 %v7600, %v8772
  %v8785 = vadd.f32 %v7633, %v8774
  %v8786 = vadd.f32 %v7666, %v8776
  %v8787 = vadd.f32 %v7699, %v8778
  %v8788 = vadd.f32 %v7732, %v8780
  %v8789 = vsub.f32 %v8781, %v7237
  %v8790 = vsub.f32 %v8782, %v7270
  %v8791 = vsub.f32 %v8783, %v7303
  %v8792 = vsub.f32 %v8784, %v7336
  %v8793 = vsub.f32 %v8785, %v7369
  %v8794 = vsub.f32 %v8786, %v7402
  %v8795 = vsub.f32 %v8787, %v7435
  %v8796 = vsub.f32 %v8788, %v7468
  %v8797 = vld [vmem:[%s5] sm:$0xff]
  %v8798 = vld [vmem:[%s5 + $0x8] sm:$0xff]
  %v8799 = vld [vmem:[%s5 + $0x10] sm:$0xff]
  %v8800 = vld [vmem:[%s5 + $0x18] sm:$0xff]
  %v8801 = vld [vmem:[%s5 + $0x20] sm:$0xff]
  %v8802 = vld [vmem:[%s5 + $0x28] sm:$0xff]
  %v8803 = vld [vmem:[%s5 + $0x30] sm:$0xff]
  %v8804 = vld [vmem:[%s5 + $0x38] sm:$0xff]
  %v8805 = vmul.f32 %v8789, %v8797
  %v8806 = vmul.f32 %v8790, %v8798
  %v8807 = vmul.f32 %v8791, %v8799
  %v8808 = vmul.f32 %v8792, %v8800
  %v8809 = vmul.f32 %v8793, %v8801
  %v8810 = vmul.f32 %v8794, %v8802
  %v8811 = vmul.f32 %v8795, %v8803
  %v8812 = vmul.f32 %v8796, %v8804
  %vm8813 = vcmask 7168
  %8814 = vst.msk [vmem:[%s24] sm:$0xff] %vm8813, %v8805
  %8815 = vst.msk [vmem:[%s24 + $0x8] sm:$0xff] %vm8813, %v8806
  %8816 = vst.msk [vmem:[%s24 + $0x10] sm:$0xff] %vm8813, %v8807
  %8817 = vst.msk [vmem:[%s24 + $0x18] sm:$0xff] %vm8813, %v8808
  %8818 = vst.msk [vmem:[%s24 + $0x20] sm:$0xff] %vm8813, %v8809
  %8819 = vst.msk [vmem:[%s24 + $0x28] sm:$0xff] %vm8813, %v8810
  %8820 = vst.msk [vmem:[%s24 + $0x30] sm:$0xff] %vm8813, %v8811
  %8821 = vst.msk [vmem:[%s24 + $0x38] sm:$0xff] %vm8813, %v8812
  // Predicated region
  $region94: #{seq2seq_forward.1} parent=0 // pred_check
    _
  $region95: #{seq2seq_forward.1} parent=0 // pred_check_branch
    %8823 = sbr.rel (0) target = $region97
  $region96: #{seq2seq_forward.1} parent=0 // pred_region
    _
  $region97: #{seq2seq_forward.1} parent=0 // pred_fallthru
    _
  // Predicated region
  $region98: #{seq2seq_forward.1} parent=0 // pred_check
    _
  $region99: #{seq2seq_forward.1} parent=0 // pred_check_branch
    %8825 = sbr.rel (0) target = $region101
  $region100: #{seq2seq_forward.1} parent=0 // pred_region
    _
  $region101: #{seq2seq_forward.1} parent=0 // pred_fallthru
    _
  // Predicated region
  $region102: #{seq2seq_forward.1} parent=0 // pred_check
    _
  $region103: #{seq2seq_forward.1} parent=0 // pred_check_branch
    %8827 = sbr.rel (0) target = $region105
  $region104: #{seq2seq_forward.1} parent=0 // pred_region
    _
  $region105: #{seq2seq_forward.1} parent=0 // pred_fallthru
    _
  // Predicated region
  $region106: #{seq2seq_forward.1} parent=0 // pred_check
    _
  $region107: #{seq2seq_forward.1} parent=0 // pred_check_branch
    %8829 = sbr.rel (0) target = $region109
  $region108: #{seq2seq_forward.1} parent=0 // pred_region
    _
  $region109: #{seq2seq_forward.1} parent=0 // pred_fallthru
    _

</llo_original>
